<compile_context>
chip_gen: v5e
topology: v5e:2x2
jax: 0.10.0
libtpu: 0.0.40
codegen_flags: <defaults>
</compile_context>

<pallas_src>
import numpy as np
import jax
import jax.numpy as jnp
from jax import lax
from jax.experimental import pallas as pl
from jax.experimental.pallas import tpu as pltpu

B, H, W, C = 2, 16, 16, 64    # in_channels == feat_channels == out_channels == C
HW = H * W                    # 256   (matmul M per batch element)
K9 = 9 * C                    # 576   (raw im2col K for a 3x3 conv)
KCOL = K9 + C                 # 640 = 5*128 (lane-aligned K: im2col + raw-x tail)
C2 = 2 * C                    # 128   (fused direction-conv output channels)
EPS = 1e-5
F32 = jnp.float32
BF16 = jnp.bfloat16
PREC = jax.lax.Precision.HIGHEST      # reference only


# ---------------------------------------------------------------------------
# In-kernel helpers
# ---------------------------------------------------------------------------
def _im2col(pad_ref, col_ref, center, tail):
    """Build the (BB, H, W, KCOL) bf16 im2col slab from the (BB, H+2, W+2, C)
    zero-padded f32 buffer.

    Taps are written in 128-lane-aligned pairs, so every store into col_ref
    is a full-width unmasked vst.  The trailing C columns carry `tail`
    (raw x) — the K-extension for the fused 1x1 conv; it multiplies zero
    weight rows in the other matmuls.  `center` is the live interior value
    (tap ky=kx=1), avoiding a shifted read-back from pad_ref.
    """
    def tap(t):
        if t == 4:                       # centre tap == the live value
            return center
        ky, kx = divmod(t, 3)
        return pad_ref[:, ky:ky + H, kx:kx + W, :]

    for pi in range(5):                  # 5 pairs x 128 lanes = 640 columns
        t0 = 2 * pi
        a = tap(t0)
        b = tap(t0 + 1) if t0 + 1 < 9 else tail
        col_ref[:, :, :, t0 * C:(t0 + 2) * C] = (
            jnp.concatenate([a, b], axis=-1).astype(BF16))


def _suffix_max_inplace(buf_ref, axis, n):
    """In-place corner pool: buf[i] = max_{j >= i} buf[j] along `axis`
    (axis=1 -> H, axis=2 -> W) via log-doubling on the full 2C-wide slab."""
    s = 1
    while s < n:
        cur = buf_ref[...]
        if axis == 1:
            buf_ref[:, 0:n - s, :, :] = jnp.maximum(cur[:, 0:n - s, :, :],
                                                    cur[:, s:n, :, :])
        else:
            buf_ref[:, :, 0:n - s, :] = jnp.maximum(cur[:, :, 0:n - s, :],
                                                    cur[:, :, s:n, :])
        s *= 2


def bicorner_kernel(x_ref, wd_ref, bd_ref, wa_ref, ba_ref, w2_ref, b2_ref,
                    o_ref, pad_ref, col_ref, ph_ref, pw_ref):
    BB = x_ref.shape[0]
    M = BB * HW

    # --- zero ONLY the padding border (interior rewritten before each conv).
    #     Kept per-step (per-core scratch validity when the parallel grid
    #     axis is split across TensorCores).
    pad_ref[:, 0:1, :, :] = jnp.zeros((BB, 1, W + 2, C), F32)
    pad_ref[:, H + 1:H + 2, :, :] = jnp.zeros((BB, 1, W + 2, C), F32)
    pad_ref[:, 1:H + 1, 0:1, :] = jnp.zeros((BB, H, 1, C), F32)
    pad_ref[:, 1:H + 1, W + 1:W + 2, :] = jnp.zeros((BB, H, 1, C), F32)

    x = x_ref[...]                                        # (BB, H, W, C) f32

    # --- fused direction1+direction2 conv: 3x3 + folded-BN + ReLU, Cout=2C --
    pad_ref[:, 1:H + 1, 1:W + 1, :] = x
    _im2col(pad_ref, col_ref, x, x)
    d = jnp.dot(col_ref[...].reshape(M, KCOL), wd_ref[...],
                preferred_element_type=F32) + bd_ref[...]
    d = jnp.maximum(d, 0.0).reshape(BB, H, W, C2)

    # --- corner pools on the full lane-dense (.., 2C) slab ------------------
    #     'top'  pool (suffix max over H) -> take channels [0:C]
    #     'left' pool (suffix max over W) -> take channels [C:2C]
    ph_ref[...] = d
    pw_ref[...] = d
    _suffix_max_inplace(ph_ref, axis=1, n=H)
    _suffix_max_inplace(pw_ref, axis=2, n=W)
    pooled = ph_ref[:, :, :, 0:C] + pw_ref[:, :, :, C:C2]   # p1 + p2

    # --- fused aftpool conv3x3(p1+p2) + 1x1 conv(x), folded-BN, add, ReLU ---
    pad_ref[:, 1:H + 1, 1:W + 1, :] = pooled
    _im2col(pad_ref, col_ref, pooled, x_ref[...])
    r = jnp.dot(col_ref[...].reshape(M, KCOL), wa_ref[...],
                preferred_element_type=F32) + ba_ref[...]
    r = jnp.maximum(r, 0.0).reshape(BB, H, W, C)

    # --- final conv2: 3x3 + folded-BN + ReLU --------------------------------
    pad_ref[:, 1:H + 1, 1:W + 1, :] = r
    _im2col(pad_ref, col_ref, r, x_ref[...])
    out = jnp.dot(col_ref[...].reshape(M, KCOL), w2_ref[...],
                  preferred_element_type=F32) + b2_ref[...]
    out = jnp.maximum(out, 0.0)
    o_ref[...] = out.reshape(BB, H, W, C).astype(o_ref.dtype)


# ---------------------------------------------------------------------------
# Wrapper
# ---------------------------------------------------------------------------
def _default_batch_block():
    """Fold the batch into one grid step on single-TensorCore chips
    (v5e / v6e); keep one element per step on multi-TC chips (v7x, ...)."""
    try:
        kind = jax.devices()[0].device_kind.lower()
    except Exception:
        return 1
    single_tc = ("lite" in kind) or ("v5e" in kind) or ("v6e" in kind)
    return B if single_tc else 1


def bicorner_pool(x, packed, batch_block=None):
    wd, bd, wac, bac, w2p, b2p = packed
    bb = _default_batch_block() if batch_block is None else batch_block
    assert B % bb == 0
    grid = (B // bb,)

    in_specs = [
        pl.BlockSpec((bb, H, W, C), lambda b: (b, 0, 0, 0)),   # x
        pl.BlockSpec((KCOL, C2), lambda b: (0, 0)),            # fused dir weights
        pl.BlockSpec((1, C2), lambda b: (0, 0)),               # fused dir bias
        pl.BlockSpec((KCOL, C), lambda b: (0, 0)),             # aftpool+conv1 weights
        pl.BlockSpec((1, C), lambda b: (0, 0)),                # aftpool+conv1 bias
        pl.BlockSpec((KCOL, C), lambda b: (0, 0)),             # conv2 weights
        pl.BlockSpec((1, C), lambda b: (0, 0)),                # conv2 bias
    ]
    out_spec = pl.BlockSpec((bb, H, W, C), lambda b: (b, 0, 0, 0))

    return pl.pallas_call(
        bicorner_kernel,
        out_shape=jax.ShapeDtypeStruct((B, H, W, C), jnp.float32),
        grid_spec=pltpu.PrefetchScalarGridSpec(
            num_scalar_prefetch=0,
            grid=grid,
            in_specs=in_specs,
            out_specs=out_spec,
            scratch_shapes=[
                pltpu.VMEM((bb, H + 2, W + 2, C), F32),   # zero-padded conv input
                pltpu.VMEM((bb, H, W, KCOL), BF16),       # im2col slab (+ x tail)
                pltpu.VMEM((bb, H, W, C2), F32),          # 'top'  pool scan buffer
                pltpu.VMEM((bb, H, W, C2), F32),          # 'left' pool scan buffer
            ],
        ),
        compiler_params=pltpu.CompilerParams(
            dimension_semantics=("parallel",)),
    )(x, wd, bd, wac, bac, w2p, b2p)


# ---------------------------------------------------------------------------
# Deterministic parameter init (conv weight + BN folded to scale/bias)
# ---------------------------------------------------------------------------
def _fold_conv_bn(key, kh, cin, cout):
    kw, kg, kb, km, kv = jax.random.split(key, 5)
    w = 0.05 * jax.random.normal(kw, (kh, kh, cin, cout), jnp.float32)
    gamma = 1.0 + 0.1 * jax.random.normal(kg, (cout,), jnp.float32)
    beta = 0.1 * jax.random.normal(kb, (cout,), jnp.float32)
    mean = 0.1 * jax.random.normal(km, (cout,), jnp.float32)
    var = 0.5 + jax.random.uniform(kv, (cout,), jnp.float32)
    s = gamma * lax.rsqrt(var + EPS)
    w_f = w * s                       # per-output-channel scale (last axis)
    b_f = (beta - mean * s).reshape(1, cout)
    return w_f, b_f


def init_params(key):
    k1, k2, k3, k4, k5 = jax.random.split(key, 5)
    w1, b1 = _fold_conv_bn(k1, 3, C, C)       # direction1_conv
    w2, b2 = _fold_conv_bn(k2, 3, C, C)       # direction2_conv
    wa, ba = _fold_conv_bn(k3, 3, C, C)       # aftpool_conv (no act)
    wc1, bc1 = _fold_conv_bn(k4, 1, C, C)     # conv1 1x1 (no act)
    wc1 = wc1.reshape(C, C)
    wc2, bc2 = _fold_conv_bn(k5, 3, C, C)     # conv2
    return (w1, b1, w2, b2, wa, ba, wc1, bc1, wc2, bc2)


def pack_params(params):
    """Pack folded per-layer params into fused, lane-aligned bf16 matmul slabs.
    All slabs have KCOL = 640 = 5*128 rows; K-order is (ky, kx, cin) matching
    the im2col, with the trailing C rows reserved for the raw-x tail (zeros
    where the tail is unused)."""
    w1, b1, w2, b2, wa, ba, wc1, bc1, wc2, bc2 = params
    # Fused direction conv: (KCOL, 2C); trailing C rows are zero (x tail unused).
    wd = jnp.concatenate([w1.reshape(K9, C), w2.reshape(K9, C)], axis=1)
    wd = jnp.concatenate([wd, jnp.zeros((C, C2), jnp.float32)],
                         axis=0).astype(BF16)
    bd = jnp.concatenate([b1, b2], axis=1)                    # (1, 2C) f32
    # Fused aftpool(3x3) + conv1(1x1): (KCOL, C); x tail hits the conv1 rows.
    wac = jnp.concatenate([wa.reshape(K9, C), wc1], axis=0).astype(BF16)
    bac = ba + bc1                                            # (1, C) f32
    # conv2: (KCOL, C); trailing C rows zero.
    w2p = jnp.concatenate([wc2.reshape(K9, C), jnp.zeros((C, C), jnp.float32)],
                          axis=0).astype(BF16)
    b2p = bc2                                                 # (1, C) f32
    return (wd, bd, wac, bac, w2p, b2p)


# ---------------------------------------------------------------------------
# Plain-JAX reference (for validation), f32 / HIGHEST precision
# ---------------------------------------------------------------------------
def reference(x, params):
    w1, b1, w2, b2, wa, ba, wc1, bc1, wc2, bc2 = params

    def conv3(inp, w, b):
        y = lax.conv_general_dilated(
            inp, w, (1, 1), 'SAME',
            dimension_numbers=('NHWC', 'HWIO', 'NHWC'), precision=PREC)
        return y + b.reshape(-1)

    d1 = jax.nn.relu(conv3(x, w1, b1))
    d2 = jax.nn.relu(conv3(x, w2, b2))
    p1 = lax.cummax(d1, axis=1, reverse=True)   # 'top'  pool (over H)
    p2 = lax.cummax(d2, axis=2, reverse=True)   # 'left' pool (over W)
    aft = conv3(p1 + p2, wa, ba)
    c1 = jnp.einsum('bhwi,io->bhwo', x, wc1, precision=PREC) + bc1.reshape(-1)
    r = jax.nn.relu(aft + c1)
    return jax.nn.relu(conv3(r, wc2, bc2))


if __name__ == "__main__":
    key = jax.random.PRNGKey(0)
    kx, kp = jax.random.split(key)
    x = jax.random.normal(kx, (B, H, W, C), jnp.float32)
    params = init_params(kp)
    packed = pack_params(params)

    out = bicorner_pool(x, packed)
    out = jax.block_until_ready(out)

    ref = reference(x, params)
    # Kernel runs bf16 matmuls (f32 accumulation) chained across three convs
    # plus corner pools vs. an f32/HIGHEST reference -> bf16-level tolerance;
    # structural errors would be O(1), far above this.
    np.testing.assert_allclose(np.asarray(out), np.asarray(ref),
                               rtol=5e-2, atol=1e-1)
    # TODO(synk): BatchNorm is folded in inference mode; training-mode batch
    # statistics are not modeled.
    print("KERNEL_OK")
</pallas_src>

<mosaic_0001>
module attributes {stable_mosaic.version = 11 : i64} {
  func.func @bicorner_kernel(%arg0: i32, %arg1: memref<1x16x16x64xf32, #tpu.memory_space<vmem>>, %arg2: memref<640x128xbf16, #tpu.memory_space<vmem>>, %arg3: memref<1x128xf32, #tpu.memory_space<vmem>>, %arg4: memref<640x64xbf16, #tpu.memory_space<vmem>>, %arg5: memref<1x64xf32, #tpu.memory_space<vmem>>, %arg6: memref<640x64xbf16, #tpu.memory_space<vmem>>, %arg7: memref<1x64xf32, #tpu.memory_space<vmem>>, %arg8: memref<1x16x16x64xf32, #tpu.memory_space<vmem>>, %arg9: memref<1x18x18x64xf32, #tpu.memory_space<vmem>>, %arg10: memref<1x16x16x640xbf16, #tpu.memory_space<vmem>>, %arg11: memref<1x16x16x128xf32, #tpu.memory_space<vmem>>, %arg12: memref<1x16x16x128xf32, #tpu.memory_space<vmem>>) attributes {dimension_semantics = [#tpu.dimension_semantics<parallel>], iteration_bounds = array<i64: 2>, scalar_prefetch = 0 : i64, scratch_operands = 4 : i64, tpu.core_type = #tpu.core_type<tc>, window_params = [{transform_indices = @transform_0, window_bounds = array<i64: 1, 16, 16, 64>}, {pipeline_mode = #tpu.pipeline_mode<synchronous>, transform_indices = @transform_1, window_bounds = array<i64: 640, 128>}, {pipeline_mode = #tpu.pipeline_mode<synchronous>, transform_indices = @transform_2, window_bounds = array<i64: 1, 128>}, {pipeline_mode = #tpu.pipeline_mode<synchronous>, transform_indices = @transform_3, window_bounds = array<i64: 640, 64>}, {pipeline_mode = #tpu.pipeline_mode<synchronous>, transform_indices = @transform_4, window_bounds = array<i64: 1, 64>}, {pipeline_mode = #tpu.pipeline_mode<synchronous>, transform_indices = @transform_5, window_bounds = array<i64: 640, 64>}, {pipeline_mode = #tpu.pipeline_mode<synchronous>, transform_indices = @transform_6, window_bounds = array<i64: 1, 64>}, {transform_indices = @transform_7, window_bounds = array<i64: 1, 16, 16, 64>}]} {
    %cst = arith.constant 0.000000e+00 : f32
    %0 = vector.broadcast %cst : f32 to vector<1x1x18x64xf32>
    %c0 = arith.constant 0 : index
    %c0_0 = arith.constant 0 : index
    %c0_1 = arith.constant 0 : index
    %c0_2 = arith.constant 0 : index
    %1 = vector.load %arg9[%c0, %c0_0, %c0_1, %c0_2] : memref<1x18x18x64xf32, #tpu.memory_space<vmem>>, vector<1x1x18x64xf32>
    tpu.vector_store %arg9[%c0, %c0_0, %c0_1, %c0_2], %0 {strides = array<i32>} : memref<1x18x18x64xf32, #tpu.memory_space<vmem>>, vector<1x1x18x64xf32>,
    %cst_3 = arith.constant 0.000000e+00 : f32
    %2 = vector.broadcast %cst_3 : f32 to vector<1x1x18x64xf32>
    %c0_4 = arith.constant 0 : index
    %c17 = arith.constant 17 : index
    %c0_5 = arith.constant 0 : index
    %c0_6 = arith.constant 0 : index
    %3 = vector.load %arg9[%c0_4, %c17, %c0_5, %c0_6] : memref<1x18x18x64xf32, #tpu.memory_space<vmem>>, vector<1x1x18x64xf32>
    tpu.vector_store %arg9[%c0_4, %c17, %c0_5, %c0_6], %2 {strides = array<i32>} : memref<1x18x18x64xf32, #tpu.memory_space<vmem>>, vector<1x1x18x64xf32>,
    %cst_7 = arith.constant 0.000000e+00 : f32
    %4 = vector.broadcast %cst_7 : f32 to vector<1x16x1x64xf32>
    %c0_8 = arith.constant 0 : index
    %c1 = arith.constant 1 : index
    %c0_9 = arith.constant 0 : index
    %c0_10 = arith.constant 0 : index
    %5 = vector.load %arg9[%c0_8, %c1, %c0_9, %c0_10] : memref<1x18x18x64xf32, #tpu.memory_space<vmem>>, vector<1x16x1x64xf32>
    tpu.vector_store %arg9[%c0_8, %c1, %c0_9, %c0_10], %4 {strides = array<i32>} : memref<1x18x18x64xf32, #tpu.memory_space<vmem>>, vector<1x16x1x64xf32>,
    %cst_11 = arith.constant 0.000000e+00 : f32
    %6 = vector.broadcast %cst_11 : f32 to vector<1x16x1x64xf32>
    %c0_12 = arith.constant 0 : index
    %c1_13 = arith.constant 1 : index
    %c17_14 = arith.constant 17 : index
    %c0_15 = arith.constant 0 : index
    %7 = vector.load %arg9[%c0_12, %c1_13, %c17_14, %c0_15] : memref<1x18x18x64xf32, #tpu.memory_space<vmem>>, vector<1x16x1x64xf32>
    tpu.vector_store %arg9[%c0_12, %c1_13, %c17_14, %c0_15], %6 {strides = array<i32>} : memref<1x18x18x64xf32, #tpu.memory_space<vmem>>, vector<1x16x1x64xf32>,
    %c0_16 = arith.constant 0 : index
    %c0_17 = arith.constant 0 : index
    %c0_18 = arith.constant 0 : index
    %c0_19 = arith.constant 0 : index
    %8 = vector.load %arg1[%c0_16, %c0_17, %c0_18, %c0_19] : memref<1x16x16x64xf32, #tpu.memory_space<vmem>>, vector<1x16x16x64xf32>
    %c0_20 = arith.constant 0 : index
    %c1_21 = arith.constant 1 : index
    %c1_22 = arith.constant 1 : index
    %c0_23 = arith.constant 0 : index
    %9 = vector.load %arg9[%c0_20, %c1_21, %c1_22, %c0_23] : memref<1x18x18x64xf32, #tpu.memory_space<vmem>>, vector<1x16x16x64xf32>
    tpu.vector_store %arg9[%c0_20, %c1_21, %c1_22, %c0_23], %8 {strides = array<i32>} : memref<1x18x18x64xf32, #tpu.memory_space<vmem>>, vector<1x16x16x64xf32>,
    %c0_24 = arith.constant 0 : index
    %c0_25 = arith.constant 0 : index
    %c0_26 = arith.constant 0 : index
    %c0_27 = arith.constant 0 : index
    %10 = vector.load %arg9[%c0_24, %c0_25, %c0_26, %c0_27] : memref<1x18x18x64xf32, #tpu.memory_space<vmem>>, vector<1x16x16x64xf32>
    %c0_28 = arith.constant 0 : index
    %c0_29 = arith.constant 0 : index
    %c1_30 = arith.constant 1 : index
    %c0_31 = arith.constant 0 : index
    %11 = vector.load %arg9[%c0_28, %c0_29, %c1_30, %c0_31] : memref<1x18x18x64xf32, #tpu.memory_space<vmem>>, vector<1x16x16x64xf32>
    %12 = tpu.concatenate %10, %11 in 3 : vector<1x16x16x64xf32>, vector<1x16x16x64xf32> -> vector<1x16x16x128xf32>
    %13 = arith.truncf %12 : vector<1x16x16x128xf32> to vector<1x16x16x128xbf16>
    %c0_32 = arith.constant 0 : index
    %c0_33 = arith.constant 0 : index
    %c0_34 = arith.constant 0 : index
    %c0_35 = arith.constant 0 : index
    %14 = vector.load %arg10[%c0_32, %c0_33, %c0_34, %c0_35] : memref<1x16x16x640xbf16, #tpu.memory_space<vmem>>, vector<1x16x16x128xbf16>
    tpu.vector_store %arg10[%c0_32, %c0_33, %c0_34, %c0_35], %13 {strides = array<i32>} : memref<1x16x16x640xbf16, #tpu.memory_space<vmem>>, vector<1x16x16x128xbf16>,
    %c0_36 = arith.constant 0 : index
    %c0_37 = arith.constant 0 : index
    %c2 = arith.constant 2 : index
    %c0_38 = arith.constant 0 : index
    %15 = vector.load %arg9[%c0_36, %c0_37, %c2, %c0_38] : memref<1x18x18x64xf32, #tpu.memory_space<vmem>>, vector<1x16x16x64xf32>
    %c0_39 = arith.constant 0 : index
    %c1_40 = arith.constant 1 : index
    %c0_41 = arith.constant 0 : index
    %c0_42 = arith.constant 0 : index
    %16 = vector.load %arg9[%c0_39, %c1_40, %c0_41, %c0_42] : memref<1x18x18x64xf32, #tpu.memory_space<vmem>>, vector<1x16x16x64xf32>
    %17 = tpu.concatenate %15, %16 in 3 : vector<1x16x16x64xf32>, vector<1x16x16x64xf32> -> vector<1x16x16x128xf32>
    %18 = arith.truncf %17 : vector<1x16x16x128xf32> to vector<1x16x16x128xbf16>
    %c0_43 = arith.constant 0 : index
    %c0_44 = arith.constant 0 : index
    %c0_45 = arith.constant 0 : index
    %c128 = arith.constant 128 : index
    %19 = vector.load %arg10[%c0_43, %c0_44, %c0_45, %c128] : memref<1x16x16x640xbf16, #tpu.memory_space<vmem>>, vector<1x16x16x128xbf16>
    tpu.vector_store %arg10[%c0_43, %c0_44, %c0_45, %c128], %18 {strides = array<i32>} : memref<1x16x16x640xbf16, #tpu.memory_space<vmem>>, vector<1x16x16x128xbf16>,
    %c0_46 = arith.constant 0 : index
    %c1_47 = arith.constant 1 : index
    %c2_48 = arith.constant 2 : index
    %c0_49 = arith.constant 0 : index
    %20 = vector.load %arg9[%c0_46, %c1_47, %c2_48, %c0_49] : memref<1x18x18x64xf32, #tpu.memory_space<vmem>>, vector<1x16x16x64xf32>
    %21 = tpu.concatenate %8, %20 in 3 : vector<1x16x16x64xf32>, vector<1x16x16x64xf32> -> vector<1x16x16x128xf32>
    %22 = arith.truncf %21 : vector<1x16x16x128xf32> to vector<1x16x16x128xbf16>
    %c0_50 = arith.constant 0 : index
    %c0_51 = arith.constant 0 : index
    %c0_52 = arith.constant 0 : index
    %c256 = arith.constant 256 : index
    %23 = vector.load %arg10[%c0_50, %c0_51, %c0_52, %c256] : memref<1x16x16x640xbf16, #tpu.memory_space<vmem>>, vector<1x16x16x128xbf16>
    tpu.vector_store %arg10[%c0_50, %c0_51, %c0_52, %c256], %22 {strides = array<i32>} : memref<1x16x16x640xbf16, #tpu.memory_space<vmem>>, vector<1x16x16x128xbf16>,
    %c0_53 = arith.constant 0 : index
    %c2_54 = arith.constant 2 : index
    %c0_55 = arith.constant 0 : index
    %c0_56 = arith.constant 0 : index
    %24 = vector.load %arg9[%c0_53, %c2_54, %c0_55, %c0_56] : memref<1x18x18x64xf32, #tpu.memory_space<vmem>>, vector<1x16x16x64xf32>
    %c0_57 = arith.constant 0 : index
    %c2_58 = arith.constant 2 : index
    %c1_59 = arith.constant 1 : index
    %c0_60 = arith.constant 0 : index
    %25 = vector.load %arg9[%c0_57, %c2_58, %c1_59, %c0_60] : memref<1x18x18x64xf32, #tpu.memory_space<vmem>>, vector<1x16x16x64xf32>
    %26 = tpu.concatenate %24, %25 in 3 : vector<1x16x16x64xf32>, vector<1x16x16x64xf32> -> vector<1x16x16x128xf32>
    %27 = arith.truncf %26 : vector<1x16x16x128xf32> to vector<1x16x16x128xbf16>
    %c0_61 = arith.constant 0 : index
    %c0_62 = arith.constant 0 : index
    %c0_63 = arith.constant 0 : index
    %c384 = arith.constant 384 : index
    %28 = vector.load %arg10[%c0_61, %c0_62, %c0_63, %c384] : memref<1x16x16x640xbf16, #tpu.memory_space<vmem>>, vector<1x16x16x128xbf16>
    tpu.vector_store %arg10[%c0_61, %c0_62, %c0_63, %c384], %27 {strides = array<i32>} : memref<1x16x16x640xbf16, #tpu.memory_space<vmem>>, vector<1x16x16x128xbf16>,
    %c0_64 = arith.constant 0 : index
    %c2_65 = arith.constant 2 : index
    %c2_66 = arith.constant 2 : index
    %c0_67 = arith.constant 0 : index
    %29 = vector.load %arg9[%c0_64, %c2_65, %c2_66, %c0_67] : memref<1x18x18x64xf32, #tpu.memory_space<vmem>>, vector<1x16x16x64xf32>
    %30 = tpu.concatenate %29, %8 in 3 : vector<1x16x16x64xf32>, vector<1x16x16x64xf32> -> vector<1x16x16x128xf32>
    %31 = arith.truncf %30 : vector<1x16x16x128xf32> to vector<1x16x16x128xbf16>
    %c0_68 = arith.constant 0 : index
    %c0_69 = arith.constant 0 : index
    %c0_70 = arith.constant 0 : index
    %c512 = arith.constant 512 : index
    %32 = vector.load %arg10[%c0_68, %c0_69, %c0_70, %c512] : memref<1x16x16x640xbf16, #tpu.memory_space<vmem>>, vector<1x16x16x128xbf16>
    tpu.vector_store %arg10[%c0_68, %c0_69, %c0_70, %c512], %31 {strides = array<i32>} : memref<1x16x16x640xbf16, #tpu.memory_space<vmem>>, vector<1x16x16x128xbf16>,
    %c0_71 = arith.constant 0 : index
    %c0_72 = arith.constant 0 : index
    %c0_73 = arith.constant 0 : index
    %c0_74 = arith.constant 0 : index
    %33 = vector.load %arg10[%c0_71, %c0_72, %c0_73, %c0_74] : memref<1x16x16x640xbf16, #tpu.memory_space<vmem>>, vector<1x16x16x640xbf16>
    %34 = vector.shape_cast %33 : vector<1x16x16x640xbf16> to vector<256x640xbf16>
    %c0_75 = arith.constant 0 : index
    %c0_76 = arith.constant 0 : index
    %35 = vector.load %arg2[%c0_75, %c0_76] : memref<640x128xbf16, #tpu.memory_space<vmem>>, vector<640x128xbf16>
    %cst_77 = arith.constant dense<0.000000e+00> : vector<256x128xf32>
    %36 = tpu.matmul %34, %35, %cst_77 {dimension_numbers = #tpu.dot_dimension_numbers<[1], [0], [0], [1], [0, 0, 1, 1], [], []>} : vector<256x640xbf16>, vector<640x128xbf16>, vector<256x128xf32> -> vector<256x128xf32>
    %c0_78 = arith.constant 0 : index
    %c0_79 = arith.constant 0 : index
    %37 = vector.load %arg3[%c0_78, %c0_79] : memref<1x128xf32, #tpu.memory_space<vmem>>, vector<1x128xf32>
    %38 = vector.broadcast %37 : vector<1x128xf32> to vector<256x128xf32>
    %39 = arith.addf %36, %38 : vector<256x128xf32>
    %cst_80 = arith.constant 0.000000e+00 : f32
    %40 = vector.broadcast %cst_80 : f32 to vector<256x128xf32>
    %41 = arith.maximumf %39, %40 : vector<256x128xf32>
    %42 = vector.shape_cast %41 : vector<256x128xf32> to vector<1x16x16x128xf32>
    %c0_81 = arith.constant 0 : index
    %c0_82 = arith.constant 0 : index
    %c0_83 = arith.constant 0 : index
    %c0_84 = arith.constant 0 : index
    %43 = vector.load %arg11[%c0_81, %c0_82, %c0_83, %c0_84] : memref<1x16x16x128xf32, #tpu.memory_space<vmem>>, vector<1x16x16x128xf32>
    tpu.vector_store %arg11[%c0_81, %c0_82, %c0_83, %c0_84], %42 {strides = array<i32>} : memref<1x16x16x128xf32, #tpu.memory_space<vmem>>, vector<1x16x16x128xf32>,
    %c0_85 = arith.constant 0 : index
    %c0_86 = arith.constant 0 : index
    %c0_87 = arith.constant 0 : index
    %c0_88 = arith.constant 0 : index
    %44 = vector.load %arg12[%c0_85, %c0_86, %c0_87, %c0_88] : memref<1x16x16x128xf32, #tpu.memory_space<vmem>>, vector<1x16x16x128xf32>
    tpu.vector_store %arg12[%c0_85, %c0_86, %c0_87, %c0_88], %42 {strides = array<i32>} : memref<1x16x16x128xf32, #tpu.memory_space<vmem>>, vector<1x16x16x128xf32>,
    %c0_89 = arith.constant 0 : index
    %c0_90 = arith.constant 0 : index
    %c0_91 = arith.constant 0 : index
    %c0_92 = arith.constant 0 : index
    %45 = vector.load %arg11[%c0_89, %c0_90, %c0_91, %c0_92] : memref<1x16x16x128xf32, #tpu.memory_space<vmem>>, vector<1x16x16x128xf32>
    %46 = vector.extract_strided_slice %45 {offsets = [0, 0, 0, 0], sizes = [1, 15, 16, 128], strides = [1, 1, 1, 1]} : vector<1x16x16x128xf32> to vector<1x15x16x128xf32>
    %47 = vector.extract_strided_slice %45 {offsets = [0, 1, 0, 0], sizes = [1, 15, 16, 128], strides = [1, 1, 1, 1]} : vector<1x16x16x128xf32> to vector<1x15x16x128xf32>
    %48 = arith.maximumf %46, %47 : vector<1x15x16x128xf32>
    %c0_93 = arith.constant 0 : index
    %c0_94 = arith.constant 0 : index
    %c0_95 = arith.constant 0 : index
    %c0_96 = arith.constant 0 : index
    %49 = vector.load %arg11[%c0_93, %c0_94, %c0_95, %c0_96] : memref<1x16x16x128xf32, #tpu.memory_space<vmem>>, vector<1x15x16x128xf32>
    tpu.vector_store %arg11[%c0_93, %c0_94, %c0_95, %c0_96], %48 {strides = array<i32>} : memref<1x16x16x128xf32, #tpu.memory_space<vmem>>, vector<1x15x16x128xf32>,
    %c0_97 = arith.constant 0 : index
    %c0_98 = arith.constant 0 : index
    %c0_99 = arith.constant 0 : index
    %c0_100 = arith.constant 0 : index
    %50 = vector.load %arg11[%c0_97, %c0_98, %c0_99, %c0_100] : memref<1x16x16x128xf32, #tpu.memory_space<vmem>>, vector<1x16x16x128xf32>
    %51 = vector.extract_strided_slice %50 {offsets = [0, 0, 0, 0], sizes = [1, 14, 16, 128], strides = [1, 1, 1, 1]} : vector<1x16x16x128xf32> to vector<1x14x16x128xf32>
    %52 = vector.extract_strided_slice %50 {offsets = [0, 2, 0, 0], sizes = [1, 14, 16, 128], strides = [1, 1, 1, 1]} : vector<1x16x16x128xf32> to vector<1x14x16x128xf32>
    %53 = arith.maximumf %51, %52 : vector<1x14x16x128xf32>
    %c0_101 = arith.constant 0 : index
    %c0_102 = arith.constant 0 : index
    %c0_103 = arith.constant 0 : index
    %c0_104 = arith.constant 0 : index
    %54 = vector.load %arg11[%c0_101, %c0_102, %c0_103, %c0_104] : memref<1x16x16x128xf32, #tpu.memory_space<vmem>>, vector<1x14x16x128xf32>
    tpu.vector_store %arg11[%c0_101, %c0_102, %c0_103, %c0_104], %53 {strides = array<i32>} : memref<1x16x16x128xf32, #tpu.memory_space<vmem>>, vector<1x14x16x128xf32>,
    %c0_105 = arith.constant 0 : index
    %c0_106 = arith.constant 0 : index
    %c0_107 = arith.constant 0 : index
    %c0_108 = arith.constant 0 : index
    %55 = vector.load %arg11[%c0_105, %c0_106, %c0_107, %c0_108] : memref<1x16x16x128xf32, #tpu.memory_space<vmem>>, vector<1x16x16x128xf32>
    %56 = vector.extract_strided_slice %55 {offsets = [0, 0, 0, 0], sizes = [1, 12, 16, 128], strides = [1, 1, 1, 1]} : vector<1x16x16x128xf32> to vector<1x12x16x128xf32>
    %57 = vector.extract_strided_slice %55 {offsets = [0, 4, 0, 0], sizes = [1, 12, 16, 128], strides = [1, 1, 1, 1]} : vector<1x16x16x128xf32> to vector<1x12x16x128xf32>
    %58 = arith.maximumf %56, %57 : vector<1x12x16x128xf32>
    %c0_109 = arith.constant 0 : index
    %c0_110 = arith.constant 0 : index
    %c0_111 = arith.constant 0 : index
    %c0_112 = arith.constant 0 : index
    %59 = vector.load %arg11[%c0_109, %c0_110, %c0_111, %c0_112] : memref<1x16x16x128xf32, #tpu.memory_space<vmem>>, vector<1x12x16x128xf32>
    tpu.vector_store %arg11[%c0_109, %c0_110, %c0_111, %c0_112], %58 {strides = array<i32>} : memref<1x16x16x128xf32, #tpu.memory_space<vmem>>, vector<1x12x16x128xf32>,
    %c0_113 = arith.constant 0 : index
    %c0_114 = arith.constant 0 : index
    %c0_115 = arith.constant 0 : index
    %c0_116 = arith.constant 0 : index
    %60 = vector.load %arg11[%c0_113, %c0_114, %c0_115, %c0_116] : memref<1x16x16x128xf32, #tpu.memory_space<vmem>>, vector<1x16x16x128xf32>
    %61 = vector.extract_strided_slice %60 {offsets = [0, 0, 0, 0], sizes = [1, 8, 16, 128], strides = [1, 1, 1, 1]} : vector<1x16x16x128xf32> to vector<1x8x16x128xf32>
    %62 = vector.extract_strided_slice %60 {offsets = [0, 8, 0, 0], sizes = [1, 8, 16, 128], strides = [1, 1, 1, 1]} : vector<1x16x16x128xf32> to vector<1x8x16x128xf32>
    %63 = arith.maximumf %61, %62 : vector<1x8x16x128xf32>
    %c0_117 = arith.constant 0 : index
    %c0_118 = arith.constant 0 : index
    %c0_119 = arith.constant 0 : index
    %c0_120 = arith.constant 0 : index
    %64 = vector.load %arg11[%c0_117, %c0_118, %c0_119, %c0_120] : memref<1x16x16x128xf32, #tpu.memory_space<vmem>>, vector<1x8x16x128xf32>
    tpu.vector_store %arg11[%c0_117, %c0_118, %c0_119, %c0_120], %63 {strides = array<i32>} : memref<1x16x16x128xf32, #tpu.memory_space<vmem>>, vector<1x8x16x128xf32>,
    %c0_121 = arith.constant 0 : index
    %c0_122 = arith.constant 0 : index
    %c0_123 = arith.constant 0 : index
    %c0_124 = arith.constant 0 : index
    %65 = vector.load %arg12[%c0_121, %c0_122, %c0_123, %c0_124] : memref<1x16x16x128xf32, #tpu.memory_space<vmem>>, vector<1x16x16x128xf32>
    %66 = vector.extract_strided_slice %65 {offsets = [0, 0, 0, 0], sizes = [1, 16, 15, 128], strides = [1, 1, 1, 1]} : vector<1x16x16x128xf32> to vector<1x16x15x128xf32>
    %67 = vector.extract_strided_slice %65 {offsets = [0, 0, 1, 0], sizes = [1, 16, 15, 128], strides = [1, 1, 1, 1]} : vector<1x16x16x128xf32> to vector<1x16x15x128xf32>
    %68 = arith.maximumf %66, %67 : vector<1x16x15x128xf32>
    %c0_125 = arith.constant 0 : index
    %c0_126 = arith.constant 0 : index
    %c0_127 = arith.constant 0 : index
    %c0_128 = arith.constant 0 : index
    %69 = vector.load %arg12[%c0_125, %c0_126, %c0_127, %c0_128] : memref<1x16x16x128xf32, #tpu.memory_space<vmem>>, vector<1x16x15x128xf32>
    tpu.vector_store %arg12[%c0_125, %c0_126, %c0_127, %c0_128], %68 {strides = array<i32>} : memref<1x16x16x128xf32, #tpu.memory_space<vmem>>, vector<1x16x15x128xf32>,
    %c0_129 = arith.constant 0 : index
    %c0_130 = arith.constant 0 : index
    %c0_131 = arith.constant 0 : index
    %c0_132 = arith.constant 0 : index
    %70 = vector.load %arg12[%c0_129, %c0_130, %c0_131, %c0_132] : memref<1x16x16x128xf32, #tpu.memory_space<vmem>>, vector<1x16x16x128xf32>
    %71 = vector.extract_strided_slice %70 {offsets = [0, 0, 0, 0], sizes = [1, 16, 14, 128], strides = [1, 1, 1, 1]} : vector<1x16x16x128xf32> to vector<1x16x14x128xf32>
    %72 = vector.extract_strided_slice %70 {offsets = [0, 0, 2, 0], sizes = [1, 16, 14, 128], strides = [1, 1, 1, 1]} : vector<1x16x16x128xf32> to vector<1x16x14x128xf32>
    %73 = arith.maximumf %71, %72 : vector<1x16x14x128xf32>
    %c0_133 = arith.constant 0 : index
    %c0_134 = arith.constant 0 : index
    %c0_135 = arith.constant 0 : index
    %c0_136 = arith.constant 0 : index
    %74 = vector.load %arg12[%c0_133, %c0_134, %c0_135, %c0_136] : memref<1x16x16x128xf32, #tpu.memory_space<vmem>>, vector<1x16x14x128xf32>
    tpu.vector_store %arg12[%c0_133, %c0_134, %c0_135, %c0_136], %73 {strides = array<i32>} : memref<1x16x16x128xf32, #tpu.memory_space<vmem>>, vector<1x16x14x128xf32>,
    %c0_137 = arith.constant 0 : index
    %c0_138 = arith.constant 0 : index
    %c0_139 = arith.constant 0 : index
    %c0_140 = arith.constant 0 : index
    %75 = vector.load %arg12[%c0_137, %c0_138, %c0_139, %c0_140] : memref<1x16x16x128xf32, #tpu.memory_space<vmem>>, vector<1x16x16x128xf32>
    %76 = vector.extract_strided_slice %75 {offsets = [0, 0, 0, 0], sizes = [1, 16, 12, 128], strides = [1, 1, 1, 1]} : vector<1x16x16x128xf32> to vector<1x16x12x128xf32>
    %77 = vector.extract_strided_slice %75 {offsets = [0, 0, 4, 0], sizes = [1, 16, 12, 128], strides = [1, 1, 1, 1]} : vector<1x16x16x128xf32> to vector<1x16x12x128xf32>
    %78 = arith.maximumf %76, %77 : vector<1x16x12x128xf32>
    %c0_141 = arith.constant 0 : index
    %c0_142 = arith.constant 0 : index
    %c0_143 = arith.constant 0 : index
    %c0_144 = arith.constant 0 : index
    %79 = vector.load %arg12[%c0_141, %c0_142, %c0_143, %c0_144] : memref<1x16x16x128xf32, #tpu.memory_space<vmem>>, vector<1x16x12x128xf32>
    tpu.vector_store %arg12[%c0_141, %c0_142, %c0_143, %c0_144], %78 {strides = array<i32>} : memref<1x16x16x128xf32, #tpu.memory_space<vmem>>, vector<1x16x12x128xf32>,
    %c0_145 = arith.constant 0 : index
    %c0_146 = arith.constant 0 : index
    %c0_147 = arith.constant 0 : index
    %c0_148 = arith.constant 0 : index
    %80 = vector.load %arg12[%c0_145, %c0_146, %c0_147, %c0_148] : memref<1x16x16x128xf32, #tpu.memory_space<vmem>>, vector<1x16x16x128xf32>
    %81 = vector.extract_strided_slice %80 {offsets = [0, 0, 0, 0], sizes = [1, 16, 8, 128], strides = [1, 1, 1, 1]} : vector<1x16x16x128xf32> to vector<1x16x8x128xf32>
    %82 = vector.extract_strided_slice %80 {offsets = [0, 0, 8, 0], sizes = [1, 16, 8, 128], strides = [1, 1, 1, 1]} : vector<1x16x16x128xf32> to vector<1x16x8x128xf32>
    %83 = arith.maximumf %81, %82 : vector<1x16x8x128xf32>
    %c0_149 = arith.constant 0 : index
    %c0_150 = arith.constant 0 : index
    %c0_151 = arith.constant 0 : index
    %c0_152 = arith.constant 0 : index
    %84 = vector.load %arg12[%c0_149, %c0_150, %c0_151, %c0_152] : memref<1x16x16x128xf32, #tpu.memory_space<vmem>>, vector<1x16x8x128xf32>
    tpu.vector_store %arg12[%c0_149, %c0_150, %c0_151, %c0_152], %83 {strides = array<i32>} : memref<1x16x16x128xf32, #tpu.memory_space<vmem>>, vector<1x16x8x128xf32>,
    %c0_153 = arith.constant 0 : index
    %c0_154 = arith.constant 0 : index
    %c0_155 = arith.constant 0 : index
    %c0_156 = arith.constant 0 : index
    %85 = vector.load %arg11[%c0_153, %c0_154, %c0_155, %c0_156] : memref<1x16x16x128xf32, #tpu.memory_space<vmem>>, vector<1x16x16x64xf32>
    %c0_157 = arith.constant 0 : index
    %c0_158 = arith.constant 0 : index
    %c0_159 = arith.constant 0 : index
    %c64 = arith.constant 64 : index
    %86 = vector.load %arg12[%c0_157, %c0_158, %c0_159, %c64] : memref<1x16x16x128xf32, #tpu.memory_space<vmem>>, vector<1x16x16x64xf32>
    %87 = arith.addf %85, %86 : vector<1x16x16x64xf32>
    %c0_160 = arith.constant 0 : index
    %c1_161 = arith.constant 1 : index
    %c1_162 = arith.constant 1 : index
    %c0_163 = arith.constant 0 : index
    %88 = vector.load %arg9[%c0_160, %c1_161, %c1_162, %c0_163] : memref<1x18x18x64xf32, #tpu.memory_space<vmem>>, vector<1x16x16x64xf32>
    tpu.vector_store %arg9[%c0_160, %c1_161, %c1_162, %c0_163], %87 {strides = array<i32>} : memref<1x18x18x64xf32, #tpu.memory_space<vmem>>, vector<1x16x16x64xf32>,
    %c0_164 = arith.constant 0 : index
    %c0_165 = arith.constant 0 : index
    %c0_166 = arith.constant 0 : index
    %c0_167 = arith.constant 0 : index
    %89 = vector.load %arg1[%c0_164, %c0_165, %c0_166, %c0_167] : memref<1x16x16x64xf32, #tpu.memory_space<vmem>>, vector<1x16x16x64xf32>
    %c0_168 = arith.constant 0 : index
    %c0_169 = arith.constant 0 : index
    %c0_170 = arith.constant 0 : index
    %c0_171 = arith.constant 0 : index
    %90 = vector.load %arg9[%c0_168, %c0_169, %c0_170, %c0_171] : memref<1x18x18x64xf32, #tpu.memory_space<vmem>>, vector<1x16x16x64xf32>
    %c0_172 = arith.constant 0 : index
    %c0_173 = arith.constant 0 : index
    %c1_174 = arith.constant 1 : index
    %c0_175 = arith.constant 0 : index
    %91 = vector.load %arg9[%c0_172, %c0_173, %c1_174, %c0_175] : memref<1x18x18x64xf32, #tpu.memory_space<vmem>>, vector<1x16x16x64xf32>
    %92 = tpu.concatenate %90, %91 in 3 : vector<1x16x16x64xf32>, vector<1x16x16x64xf32> -> vector<1x16x16x128xf32>
    %93 = arith.truncf %92 : vector<1x16x16x128xf32> to vector<1x16x16x128xbf16>
    %c0_176 = arith.constant 0 : index
    %c0_177 = arith.constant 0 : index
    %c0_178 = arith.constant 0 : index
    %c0_179 = arith.constant 0 : index
    %94 = vector.load %arg10[%c0_176, %c0_177, %c0_178, %c0_179] : memref<1x16x16x640xbf16, #tpu.memory_space<vmem>>, vector<1x16x16x128xbf16>
    tpu.vector_store %arg10[%c0_176, %c0_177, %c0_178, %c0_179], %93 {strides = array<i32>} : memref<1x16x16x640xbf16, #tpu.memory_space<vmem>>, vector<1x16x16x128xbf16>,
    %c0_180 = arith.constant 0 : index
    %c0_181 = arith.constant 0 : index
    %c2_182 = arith.constant 2 : index
    %c0_183 = arith.constant 0 : index
    %95 = vector.load %arg9[%c0_180, %c0_181, %c2_182, %c0_183] : memref<1x18x18x64xf32, #tpu.memory_space<vmem>>, vector<1x16x16x64xf32>
    %c0_184 = arith.constant 0 : index
    %c1_185 = arith.constant 1 : index
    %c0_186 = arith.constant 0 : index
    %c0_187 = arith.constant 0 : index
    %96 = vector.load %arg9[%c0_184, %c1_185, %c0_186, %c0_187] : memref<1x18x18x64xf32, #tpu.memory_space<vmem>>, vector<1x16x16x64xf32>
    %97 = tpu.concatenate %95, %96 in 3 : vector<1x16x16x64xf32>, vector<1x16x16x64xf32> -> vector<1x16x16x128xf32>
    %98 = arith.truncf %97 : vector<1x16x16x128xf32> to vector<1x16x16x128xbf16>
    %c0_188 = arith.constant 0 : index
    %c0_189 = arith.constant 0 : index
    %c0_190 = arith.constant 0 : index
    %c128_191 = arith.constant 128 : index
    %99 = vector.load %arg10[%c0_188, %c0_189, %c0_190, %c128_191] : memref<1x16x16x640xbf16, #tpu.memory_space<vmem>>, vector<1x16x16x128xbf16>
    tpu.vector_store %arg10[%c0_188, %c0_189, %c0_190, %c128_191], %98 {strides = array<i32>} : memref<1x16x16x640xbf16, #tpu.memory_space<vmem>>, vector<1x16x16x128xbf16>,
    %c0_192 = arith.constant 0 : index
    %c1_193 = arith.constant 1 : index
    %c2_194 = arith.constant 2 : index
    %c0_195 = arith.constant 0 : index
    %100 = vector.load %arg9[%c0_192, %c1_193, %c2_194, %c0_195] : memref<1x18x18x64xf32, #tpu.memory_space<vmem>>, vector<1x16x16x64xf32>
    %101 = tpu.concatenate %87, %100 in 3 : vector<1x16x16x64xf32>, vector<1x16x16x64xf32> -> vector<1x16x16x128xf32>
    %102 = arith.truncf %101 : vector<1x16x16x128xf32> to vector<1x16x16x128xbf16>
    %c0_196 = arith.constant 0 : index
    %c0_197 = arith.constant 0 : index
    %c0_198 = arith.constant 0 : index
    %c256_199 = arith.constant 256 : index
    %103 = vector.load %arg10[%c0_196, %c0_197, %c0_198, %c256_199] : memref<1x16x16x640xbf16, #tpu.memory_space<vmem>>, vector<1x16x16x128xbf16>
    tpu.vector_store %arg10[%c0_196, %c0_197, %c0_198, %c256_199], %102 {strides = array<i32>} : memref<1x16x16x640xbf16, #tpu.memory_space<vmem>>, vector<1x16x16x128xbf16>,
    %c0_200 = arith.constant 0 : index
    %c2_201 = arith.constant 2 : index
    %c0_202 = arith.constant 0 : index
    %c0_203 = arith.constant 0 : index
    %104 = vector.load %arg9[%c0_200, %c2_201, %c0_202, %c0_203] : memref<1x18x18x64xf32, #tpu.memory_space<vmem>>, vector<1x16x16x64xf32>
    %c0_204 = arith.constant 0 : index
    %c2_205 = arith.constant 2 : index
    %c1_206 = arith.constant 1 : index
    %c0_207 = arith.constant 0 : index
    %105 = vector.load %arg9[%c0_204, %c2_205, %c1_206, %c0_207] : memref<1x18x18x64xf32, #tpu.memory_space<vmem>>, vector<1x16x16x64xf32>
    %106 = tpu.concatenate %104, %105 in 3 : vector<1x16x16x64xf32>, vector<1x16x16x64xf32> -> vector<1x16x16x128xf32>
    %107 = arith.truncf %106 : vector<1x16x16x128xf32> to vector<1x16x16x128xbf16>
    %c0_208 = arith.constant 0 : index
    %c0_209 = arith.constant 0 : index
    %c0_210 = arith.constant 0 : index
    %c384_211 = arith.constant 384 : index
    %108 = vector.load %arg10[%c0_208, %c0_209, %c0_210, %c384_211] : memref<1x16x16x640xbf16, #tpu.memory_space<vmem>>, vector<1x16x16x128xbf16>
    tpu.vector_store %arg10[%c0_208, %c0_209, %c0_210, %c384_211], %107 {strides = array<i32>} : memref<1x16x16x640xbf16, #tpu.memory_space<vmem>>, vector<1x16x16x128xbf16>,
    %c0_212 = arith.constant 0 : index
    %c2_213 = arith.constant 2 : index
    %c2_214 = arith.constant 2 : index
    %c0_215 = arith.constant 0 : index
    %109 = vector.load %arg9[%c0_212, %c2_213, %c2_214, %c0_215] : memref<1x18x18x64xf32, #tpu.memory_space<vmem>>, vector<1x16x16x64xf32>
    %110 = tpu.concatenate %109, %89 in 3 : vector<1x16x16x64xf32>, vector<1x16x16x64xf32> -> vector<1x16x16x128xf32>
    %111 = arith.truncf %110 : vector<1x16x16x128xf32> to vector<1x16x16x128xbf16>
    %c0_216 = arith.constant 0 : index
    %c0_217 = arith.constant 0 : index
    %c0_218 = arith.constant 0 : index
    %c512_219 = arith.constant 512 : index
    %112 = vector.load %arg10[%c0_216, %c0_217, %c0_218, %c512_219] : memref<1x16x16x640xbf16, #tpu.memory_space<vmem>>, vector<1x16x16x128xbf16>
    tpu.vector_store %arg10[%c0_216, %c0_217, %c0_218, %c512_219], %111 {strides = array<i32>} : memref<1x16x16x640xbf16, #tpu.memory_space<vmem>>, vector<1x16x16x128xbf16>,
    %c0_220 = arith.constant 0 : index
    %c0_221 = arith.constant 0 : index
    %c0_222 = arith.constant 0 : index
    %c0_223 = arith.constant 0 : index
    %113 = vector.load %arg10[%c0_220, %c0_221, %c0_222, %c0_223] : memref<1x16x16x640xbf16, #tpu.memory_space<vmem>>, vector<1x16x16x640xbf16>
    %114 = vector.shape_cast %113 : vector<1x16x16x640xbf16> to vector<256x640xbf16>
    %c0_224 = arith.constant 0 : index
    %c0_225 = arith.constant 0 : index
    %115 = vector.load %arg4[%c0_224, %c0_225] : memref<640x64xbf16, #tpu.memory_space<vmem>>, vector<640x64xbf16>
    %cst_226 = arith.constant dense<0.000000e+00> : vector<256x64xf32>
    %116 = tpu.matmul %114, %115, %cst_226 {dimension_numbers = #tpu.dot_dimension_numbers<[1], [0], [0], [1], [0, 0, 1, 1], [], []>} : vector<256x640xbf16>, vector<640x64xbf16>, vector<256x64xf32> -> vector<256x64xf32>
    %c0_227 = arith.constant 0 : index
    %c0_228 = arith.constant 0 : index
    %117 = vector.load %arg5[%c0_227, %c0_228] : memref<1x64xf32, #tpu.memory_space<vmem>>, vector<1x64xf32>
    %118 = vector.broadcast %117 : vector<1x64xf32> to vector<256x64xf32>
    %119 = arith.addf %116, %118 : vector<256x64xf32>
    %cst_229 = arith.constant 0.000000e+00 : f32
    %120 = vector.broadcast %cst_229 : f32 to vector<256x64xf32>
    %121 = arith.maximumf %119, %120 : vector<256x64xf32>
    %122 = vector.shape_cast %121 : vector<256x64xf32> to vector<1x16x16x64xf32>
    %c0_230 = arith.constant 0 : index
    %c1_231 = arith.constant 1 : index
    %c1_232 = arith.constant 1 : index
    %c0_233 = arith.constant 0 : index
    %123 = vector.load %arg9[%c0_230, %c1_231, %c1_232, %c0_233] : memref<1x18x18x64xf32, #tpu.memory_space<vmem>>, vector<1x16x16x64xf32>
    tpu.vector_store %arg9[%c0_230, %c1_231, %c1_232, %c0_233], %122 {strides = array<i32>} : memref<1x18x18x64xf32, #tpu.memory_space<vmem>>, vector<1x16x16x64xf32>,
    %c0_234 = arith.constant 0 : index
    %c0_235 = arith.constant 0 : index
    %c0_236 = arith.constant 0 : index
    %c0_237 = arith.constant 0 : index
    %124 = vector.load %arg1[%c0_234, %c0_235, %c0_236, %c0_237] : memref<1x16x16x64xf32, #tpu.memory_space<vmem>>, vector<1x16x16x64xf32>
    %c0_238 = arith.constant 0 : index
    %c0_239 = arith.constant 0 : index
    %c0_240 = arith.constant 0 : index
    %c0_241 = arith.constant 0 : index
    %125 = vector.load %arg9[%c0_238, %c0_239, %c0_240, %c0_241] : memref<1x18x18x64xf32, #tpu.memory_space<vmem>>, vector<1x16x16x64xf32>
    %c0_242 = arith.constant 0 : index
    %c0_243 = arith.constant 0 : index
    %c1_244 = arith.constant 1 : index
    %c0_245 = arith.constant 0 : index
    %126 = vector.load %arg9[%c0_242, %c0_243, %c1_244, %c0_245] : memref<1x18x18x64xf32, #tpu.memory_space<vmem>>, vector<1x16x16x64xf32>
    %127 = tpu.concatenate %125, %126 in 3 : vector<1x16x16x64xf32>, vector<1x16x16x64xf32> -> vector<1x16x16x128xf32>
    %128 = arith.truncf %127 : vector<1x16x16x128xf32> to vector<1x16x16x128xbf16>
    %c0_246 = arith.constant 0 : index
    %c0_247 = arith.constant 0 : index
    %c0_248 = arith.constant 0 : index
    %c0_249 = arith.constant 0 : index
    %129 = vector.load %arg10[%c0_246, %c0_247, %c0_248, %c0_249] : memref<1x16x16x640xbf16, #tpu.memory_space<vmem>>, vector<1x16x16x128xbf16>
    tpu.vector_store %arg10[%c0_246, %c0_247, %c0_248, %c0_249], %128 {strides = array<i32>} : memref<1x16x16x640xbf16, #tpu.memory_space<vmem>>, vector<1x16x16x128xbf16>,
    %c0_250 = arith.constant 0 : index
    %c0_251 = arith.constant 0 : index
    %c2_252 = arith.constant 2 : index
    %c0_253 = arith.constant 0 : index
    %130 = vector.load %arg9[%c0_250, %c0_251, %c2_252, %c0_253] : memref<1x18x18x64xf32, #tpu.memory_space<vmem>>, vector<1x16x16x64xf32>
    %c0_254 = arith.constant 0 : index
    %c1_255 = arith.constant 1 : index
    %c0_256 = arith.constant 0 : index
    %c0_257 = arith.constant 0 : index
    %131 = vector.load %arg9[%c0_254, %c1_255, %c0_256, %c0_257] : memref<1x18x18x64xf32, #tpu.memory_space<vmem>>, vector<1x16x16x64xf32>
    %132 = tpu.concatenate %130, %131 in 3 : vector<1x16x16x64xf32>, vector<1x16x16x64xf32> -> vector<1x16x16x128xf32>
    %133 = arith.truncf %132 : vector<1x16x16x128xf32> to vector<1x16x16x128xbf16>
    %c0_258 = arith.constant 0 : index
    %c0_259 = arith.constant 0 : index
    %c0_260 = arith.constant 0 : index
    %c128_261 = arith.constant 128 : index
    %134 = vector.load %arg10[%c0_258, %c0_259, %c0_260, %c128_261] : memref<1x16x16x640xbf16, #tpu.memory_space<vmem>>, vector<1x16x16x128xbf16>
    tpu.vector_store %arg10[%c0_258, %c0_259, %c0_260, %c128_261], %133 {strides = array<i32>} : memref<1x16x16x640xbf16, #tpu.memory_space<vmem>>, vector<1x16x16x128xbf16>,
    %c0_262 = arith.constant 0 : index
    %c1_263 = arith.constant 1 : index
    %c2_264 = arith.constant 2 : index
    %c0_265 = arith.constant 0 : index
    %135 = vector.load %arg9[%c0_262, %c1_263, %c2_264, %c0_265] : memref<1x18x18x64xf32, #tpu.memory_space<vmem>>, vector<1x16x16x64xf32>
    %136 = tpu.concatenate %122, %135 in 3 : vector<1x16x16x64xf32>, vector<1x16x16x64xf32> -> vector<1x16x16x128xf32>
    %137 = arith.truncf %136 : vector<1x16x16x128xf32> to vector<1x16x16x128xbf16>
    %c0_266 = arith.constant 0 : index
    %c0_267 = arith.constant 0 : index
    %c0_268 = arith.constant 0 : index
    %c256_269 = arith.constant 256 : index
    %138 = vector.load %arg10[%c0_266, %c0_267, %c0_268, %c256_269] : memref<1x16x16x640xbf16, #tpu.memory_space<vmem>>, vector<1x16x16x128xbf16>
    tpu.vector_store %arg10[%c0_266, %c0_267, %c0_268, %c256_269], %137 {strides = array<i32>} : memref<1x16x16x640xbf16, #tpu.memory_space<vmem>>, vector<1x16x16x128xbf16>,
    %c0_270 = arith.constant 0 : index
    %c2_271 = arith.constant 2 : index
    %c0_272 = arith.constant 0 : index
    %c0_273 = arith.constant 0 : index
    %139 = vector.load %arg9[%c0_270, %c2_271, %c0_272, %c0_273] : memref<1x18x18x64xf32, #tpu.memory_space<vmem>>, vector<1x16x16x64xf32>
    %c0_274 = arith.constant 0 : index
    %c2_275 = arith.constant 2 : index
    %c1_276 = arith.constant 1 : index
    %c0_277 = arith.constant 0 : index
    %140 = vector.load %arg9[%c0_274, %c2_275, %c1_276, %c0_277] : memref<1x18x18x64xf32, #tpu.memory_space<vmem>>, vector<1x16x16x64xf32>
    %141 = tpu.concatenate %139, %140 in 3 : vector<1x16x16x64xf32>, vector<1x16x16x64xf32> -> vector<1x16x16x128xf32>
    %142 = arith.truncf %141 : vector<1x16x16x128xf32> to vector<1x16x16x128xbf16>
    %c0_278 = arith.constant 0 : index
    %c0_279 = arith.constant 0 : index
    %c0_280 = arith.constant 0 : index
    %c384_281 = arith.constant 384 : index
    %143 = vector.load %arg10[%c0_278, %c0_279, %c0_280, %c384_281] : memref<1x16x16x640xbf16, #tpu.memory_space<vmem>>, vector<1x16x16x128xbf16>
    tpu.vector_store %arg10[%c0_278, %c0_279, %c0_280, %c384_281], %142 {strides = array<i32>} : memref<1x16x16x640xbf16, #tpu.memory_space<vmem>>, vector<1x16x16x128xbf16>,
    %c0_282 = arith.constant 0 : index
    %c2_283 = arith.constant 2 : index
    %c2_284 = arith.constant 2 : index
    %c0_285 = arith.constant 0 : index
    %144 = vector.load %arg9[%c0_282, %c2_283, %c2_284, %c0_285] : memref<1x18x18x64xf32, #tpu.memory_space<vmem>>, vector<1x16x16x64xf32>
    %145 = tpu.concatenate %144, %124 in 3 : vector<1x16x16x64xf32>, vector<1x16x16x64xf32> -> vector<1x16x16x128xf32>
    %146 = arith.truncf %145 : vector<1x16x16x128xf32> to vector<1x16x16x128xbf16>
    %c0_286 = arith.constant 0 : index
    %c0_287 = arith.constant 0 : index
    %c0_288 = arith.constant 0 : index
    %c512_289 = arith.constant 512 : index
    %147 = vector.load %arg10[%c0_286, %c0_287, %c0_288, %c512_289] : memref<1x16x16x640xbf16, #tpu.memory_space<vmem>>, vector<1x16x16x128xbf16>
    tpu.vector_store %arg10[%c0_286, %c0_287, %c0_288, %c512_289], %146 {strides = array<i32>} : memref<1x16x16x640xbf16, #tpu.memory_space<vmem>>, vector<1x16x16x128xbf16>,
    %c0_290 = arith.constant 0 : index
    %c0_291 = arith.constant 0 : index
    %c0_292 = arith.constant 0 : index
    %c0_293 = arith.constant 0 : index
    %148 = vector.load %arg10[%c0_290, %c0_291, %c0_292, %c0_293] : memref<1x16x16x640xbf16, #tpu.memory_space<vmem>>, vector<1x16x16x640xbf16>
    %149 = vector.shape_cast %148 : vector<1x16x16x640xbf16> to vector<256x640xbf16>
    %c0_294 = arith.constant 0 : index
    %c0_295 = arith.constant 0 : index
    %150 = vector.load %arg6[%c0_294, %c0_295] : memref<640x64xbf16, #tpu.memory_space<vmem>>, vector<640x64xbf16>
    %cst_296 = arith.constant dense<0.000000e+00> : vector<256x64xf32>
    %151 = tpu.matmul %149, %150, %cst_296 {dimension_numbers = #tpu.dot_dimension_numbers<[1], [0], [0], [1], [0, 0, 1, 1], [], []>} : vector<256x640xbf16>, vector<640x64xbf16>, vector<256x64xf32> -> vector<256x64xf32>
    %c0_297 = arith.constant 0 : index
    %c0_298 = arith.constant 0 : index
    %152 = vector.load %arg7[%c0_297, %c0_298] : memref<1x64xf32, #tpu.memory_space<vmem>>, vector<1x64xf32>
    %153 = vector.broadcast %152 : vector<1x64xf32> to vector<256x64xf32>
    %154 = arith.addf %151, %153 : vector<256x64xf32>
    %cst_299 = arith.constant 0.000000e+00 : f32
    %155 = vector.broadcast %cst_299 : f32 to vector<256x64xf32>
    %156 = arith.maximumf %154, %155 : vector<256x64xf32>
    %157 = vector.shape_cast %156 : vector<256x64xf32> to vector<1x16x16x64xf32>
    %c0_300 = arith.constant 0 : index
    %c0_301 = arith.constant 0 : index
    %c0_302 = arith.constant 0 : index
    %c0_303 = arith.constant 0 : index
    %158 = vector.load %arg8[%c0_300, %c0_301, %c0_302, %c0_303] : memref<1x16x16x64xf32, #tpu.memory_space<vmem>>, vector<1x16x16x64xf32>
    tpu.vector_store %arg8[%c0_300, %c0_301, %c0_302, %c0_303], %157 {strides = array<i32>} : memref<1x16x16x64xf32, #tpu.memory_space<vmem>>, vector<1x16x16x64xf32>,
    return
  }
  func.func @transform_0(%arg0: i32) -> (i32, i32, i32, i32) {
    %c0_i32 = arith.constant 0 : i32
    %c0_i32_0 = arith.constant 0 : i32
    %c0_i32_1 = arith.constant 0 : i32
    %c0_i32_2 = arith.constant 0 : i32
    return %arg0, %c0_i32, %c0_i32_0, %c0_i32_1 : i32, i32, i32, i32
  }
  func.func @transform_1(%arg0: i32) -> (i32, i32) {
    %c0_i32 = arith.constant 0 : i32
    %c0_i32_0 = arith.constant 0 : i32
    %c0_i32_1 = arith.constant 0 : i32
    return %c0_i32, %c0_i32_0 : i32, i32
  }
  func.func @transform_2(%arg0: i32) -> (i32, i32) {
    %c0_i32 = arith.constant 0 : i32
    %c0_i32_0 = arith.constant 0 : i32
    %c0_i32_1 = arith.constant 0 : i32
    return %c0_i32, %c0_i32_0 : i32, i32
  }
  func.func @transform_3(%arg0: i32) -> (i32, i32) {
    %c0_i32 = arith.constant 0 : i32
    %c0_i32_0 = arith.constant 0 : i32
    %c0_i32_1 = arith.constant 0 : i32
    return %c0_i32, %c0_i32_0 : i32, i32
  }
  func.func @transform_4(%arg0: i32) -> (i32, i32) {
    %c0_i32 = arith.constant 0 : i32
    %c0_i32_0 = arith.constant 0 : i32
    %c0_i32_1 = arith.constant 0 : i32
    return %c0_i32, %c0_i32_0 : i32, i32
  }
  func.func @transform_5(%arg0: i32) -> (i32, i32) {
    %c0_i32 = arith.constant 0 : i32
    %c0_i32_0 = arith.constant 0 : i32
    %c0_i32_1 = arith.constant 0 : i32
    return %c0_i32, %c0_i32_0 : i32, i32
  }
  func.func @transform_6(%arg0: i32) -> (i32, i32) {
    %c0_i32 = arith.constant 0 : i32
    %c0_i32_0 = arith.constant 0 : i32
    %c0_i32_1 = arith.constant 0 : i32
    return %c0_i32, %c0_i32_0 : i32, i32
  }
  func.func @transform_7(%arg0: i32) -> (i32, i32, i32, i32) {
    %c0_i32 = arith.constant 0 : i32
    %c0_i32_0 = arith.constant 0 : i32
    %c0_i32_1 = arith.constant 0 : i32
    %c0_i32_2 = arith.constant 0 : i32
    return %arg0, %c0_i32, %c0_i32_0, %c0_i32_1 : i32, i32, i32, i32
  }
}

</mosaic_0001>

<llo_original>
// kernel: tpu_custom_call.1
$region0: #{tpu_custom_call.1}
  #allocation0 [shape = 'u32[]', space=smem, size = 0x4, offset = 0x4, fixed_abs, tag = 'smem constant byte address 0x4 - core index']
  #allocation1 [shape = 'u32[72,128]{1,0:T(1,128)}', space=vmem, size = 0x9000, scoped, tag = 'internal scratch']
  #allocation2 [shape = 'f32[1,18,18,64]{3,2,1,0:T(8,128)}', space=vmem, size = 0x36000, scoped, tag = 'scratch operand']
  #allocation3 [shape = 'bf16[1,16,16,640]{3,2,1,0:T(8,128)(2,1)}', space=vmem, size = 0x50000, scoped, tag = 'scratch operand']
  #allocation4 [shape = 'f32[1,16,16,128]{3,2,1,0:T(8,128)}', space=vmem, size = 0x20000, scoped, tag = 'scratch operand']
  #allocation5 [shape = 'f32[1,16,16,128]{3,2,1,0:T(8,128)}', space=vmem, size = 0x20000, scoped, tag = 'scratch operand']
  %s0 = inlined_call_operand.vmem [shape: f32[2,16,16,64], index: 0, kind: input, shape index: {}]
  %s1 = inlined_call_operand.hbm [shape: bf16[640,128], index: 1, kind: input, shape index: {}]
  %s2 = inlined_call_operand.vmem [shape: f32[1,128], index: 2, kind: input, shape index: {}]
  %s3 = inlined_call_operand.vmem [shape: bf16[640,64], index: 3, kind: input, shape index: {}]
  %s4 = inlined_call_operand.vmem [shape: f32[1,64], index: 4, kind: input, shape index: {}]
  %s5 = inlined_call_operand.vmem [shape: bf16[640,64], index: 5, kind: input, shape index: {}]
  %s6 = inlined_call_operand.vmem [shape: f32[1,64], index: 6, kind: input, shape index: {}]
  %s7 = inlined_call_operand.hbm [shape: f32[2,16,16,64], index: 7, kind: output, shape index: {}]
  %s8 = sld [smem:[#allocation0]]
  $region65: #{tpu_custom_call.1} parent=0
    _
  %s10 = ssub.s32 1, %s8
  %s11 = scalar_select 0, %s10, %s8
  $region1: #{tpu_custom_call.1} parent=0
    #allocation6 [shape = 'u8[163840]{0}', space=vmem, size = 0x28000, scoped, tag = 'input window, operand 1, single buffered']
    #allocation7 [shape = 's32[2]{0}', space=sflag, size = 0x8, scoped, tag = 'scoped memory for tpu_custom_call.1']
    #allocation8 [shape = 's32[2]{0}', space=sflag, size = 0x8, scoped, tag = 'scoped memory for tpu_custom_call.1']
    #allocation9 [shape = 'u8[262144]{0}', space=vmem, size = 0x40000, scoped, tag = 'output window, operand 0']
    %12 = vsyncpa [#allocation7], 0
    %13 = vsyncpa [#allocation8], 0
    %s14 = scalar_lea.sflag [#allocation8], 1
    %15 = vsyncpa %s14, 0
    loop: start=0, step=1, limit=4
    $region2: #{tpu_custom_call.1} parent=1 // loop_pre_header
      _
    $region3: #{tpu_custom_call.1} parent=1 // loop_header
      %s17 = sphi 0, %s21
      %p18 = scmp.ge.s32.totalorder %s17, 4
      %s27 = sphi 0, %s29
      %s30 = sphi 0, %s27
      %s31 = sphi 0, %s30
      %s47 = sphi 0, %s31
      %s51 = sphi 0, %s51
      %s53 = sphi 0, %s51
      %s54 = sphi 0, %s53
      %s68 = sphi 0, %s54
      %s72 = sphi 0, %s72
      %s74 = sphi 0, %s72
      %s75 = sphi 0, %s74
      %s89 = sphi 0, %s75
      %s93 = sphi 0, %s93
      %s95 = sphi 0, %s93
      %s96 = sphi 0, %s95
      %s110 = sphi 0, %s96
      %s114 = sphi 0, %s114
      %s116 = sphi 0, %s114
      %s117 = sphi 0, %s116
      %s131 = sphi 0, %s117
      %s135 = sphi 0, %s135
      %s137 = sphi 0, %s135
      %s138 = sphi 0, %s137
      %s152 = sphi 0, %s138
      %s156 = sphi 0, %s156
      %s158 = sphi 0, %s156
      %s159 = sphi 0, %s158
      %s173 = sphi 0, %s159
      %s179 = sphi 0, %s181
      %s182 = sphi 0, %s179
      %s183 = sphi 0, %s182
      %s199 = sphi 0, %s183
    $region4: #{tpu_custom_call.1} parent=1 // loop_header_branch
      %20 = sbr.rel (%p18) target = $region8
    $region5: #{tpu_custom_call.1} parent=1 // loop_body
      %s22 = ssub.s32 %s17, 1
      %s23 = ssub.s32 %s17, 2
      %s24 = sadd.s32 %s17, 1
      %s25 = ssub.s32 %s17, %s24
      %p26 = scmp.eq.s32.totalorder %s25, 0
      %s28 = sadd.s32 %s27, 1
      %s29 = scalar_select %p26, %s27, %s28
      %p32 = pneg %p26
      %p33 = scmp.eq.s32.totalorder %s17, 1
      %p34 = por %p32, %p33
      %p35 = scmp.ne.s32.totalorder %s27, %s30
      %p36 = scmp.eq.s32.totalorder %s17, 0
      %p37 = por %p35, %p36
      %p38 = scmp.ne.s32.totalorder %s27, %s30
      %p39 = scmp.eq.s32.totalorder %s22, 1
      %p40 = por %p38, %p39
      %p41 = scmp.ne.s32.totalorder %s30, %s31
      %p42 = scmp.eq.s32.totalorder %s22, 0
      %p43 = por %p41, %p42
      %p44 = scmp.ne.s32.totalorder %s30, %s31
      %p45 = scmp.eq.s32.totalorder %s23, 1
      %p46 = por %p44, %p45
      %p48 = scmp.ne.s32.totalorder %s31, %s47
      %p49 = scmp.eq.s32.totalorder %s23, 0
      %p50 = por %p48, %p49
      %s52 = sadd.s32 %s51, 1
      %p55 = scmp.eq.s32.totalorder %s17, 1
      %p56 = scmp.ne.s32.totalorder %s51, %s53
      %p57 = scmp.eq.s32.totalorder %s17, 0
      %p58 = por %p56, %p57
      %p59 = scmp.ne.s32.totalorder %s51, %s53
      %p60 = scmp.eq.s32.totalorder %s22, 1
      %p61 = por %p59, %p60
      %p62 = scmp.ne.s32.totalorder %s53, %s54
      %p63 = scmp.eq.s32.totalorder %s22, 0
      %p64 = por %p62, %p63
      %p65 = scmp.ne.s32.totalorder %s53, %s54
      %p66 = scmp.eq.s32.totalorder %s23, 1
      %p67 = por %p65, %p66
      %p69 = scmp.ne.s32.totalorder %s54, %s68
      %p70 = scmp.eq.s32.totalorder %s23, 0
      %p71 = por %p69, %p70
      %s73 = sadd.s32 %s72, 1
      %p76 = scmp.eq.s32.totalorder %s17, 1
      %p77 = scmp.ne.s32.totalorder %s72, %s74
      %p78 = scmp.eq.s32.totalorder %s17, 0
      %p79 = por %p77, %p78
      %p80 = scmp.ne.s32.totalorder %s72, %s74
      %p81 = scmp.eq.s32.totalorder %s22, 1
      %p82 = por %p80, %p81
      %p83 = scmp.ne.s32.totalorder %s74, %s75
      %p84 = scmp.eq.s32.totalorder %s22, 0
      %p85 = por %p83, %p84
      %p86 = scmp.ne.s32.totalorder %s74, %s75
      %p87 = scmp.eq.s32.totalorder %s23, 1
      %p88 = por %p86, %p87
      %p90 = scmp.ne.s32.totalorder %s75, %s89
      %p91 = scmp.eq.s32.totalorder %s23, 0
      %p92 = por %p90, %p91
      %s94 = sadd.s32 %s93, 1
      %p97 = scmp.eq.s32.totalorder %s17, 1
      %p98 = scmp.ne.s32.totalorder %s93, %s95
      %p99 = scmp.eq.s32.totalorder %s17, 0
      %p100 = por %p98, %p99
      %p101 = scmp.ne.s32.totalorder %s93, %s95
      %p102 = scmp.eq.s32.totalorder %s22, 1
      %p103 = por %p101, %p102
      %p104 = scmp.ne.s32.totalorder %s95, %s96
      %p105 = scmp.eq.s32.totalorder %s22, 0
      %p106 = por %p104, %p105
      %p107 = scmp.ne.s32.totalorder %s95, %s96
      %p108 = scmp.eq.s32.totalorder %s23, 1
      %p109 = por %p107, %p108
      %p111 = scmp.ne.s32.totalorder %s96, %s110
      %p112 = scmp.eq.s32.totalorder %s23, 0
      %p113 = por %p111, %p112
      %s115 = sadd.s32 %s114, 1
      %p118 = scmp.eq.s32.totalorder %s17, 1
      %p119 = scmp.ne.s32.totalorder %s114, %s116
      %p120 = scmp.eq.s32.totalorder %s17, 0
      %p121 = por %p119, %p120
      %p122 = scmp.ne.s32.totalorder %s114, %s116
      %p123 = scmp.eq.s32.totalorder %s22, 1
      %p124 = por %p122, %p123
      %p125 = scmp.ne.s32.totalorder %s116, %s117
      %p126 = scmp.eq.s32.totalorder %s22, 0
      %p127 = por %p125, %p126
      %p128 = scmp.ne.s32.totalorder %s116, %s117
      %p129 = scmp.eq.s32.totalorder %s23, 1
      %p130 = por %p128, %p129
      %p132 = scmp.ne.s32.totalorder %s117, %s131
      %p133 = scmp.eq.s32.totalorder %s23, 0
      %p134 = por %p132, %p133
      %s136 = sadd.s32 %s135, 1
      %p139 = scmp.eq.s32.totalorder %s17, 1
      %p140 = scmp.ne.s32.totalorder %s135, %s137
      %p141 = scmp.eq.s32.totalorder %s17, 0
      %p142 = por %p140, %p141
      %p143 = scmp.ne.s32.totalorder %s135, %s137
      %p144 = scmp.eq.s32.totalorder %s22, 1
      %p145 = por %p143, %p144
      %p146 = scmp.ne.s32.totalorder %s137, %s138
      %p147 = scmp.eq.s32.totalorder %s22, 0
      %p148 = por %p146, %p147
      %p149 = scmp.ne.s32.totalorder %s137, %s138
      %p150 = scmp.eq.s32.totalorder %s23, 1
      %p151 = por %p149, %p150
      %p153 = scmp.ne.s32.totalorder %s138, %s152
      %p154 = scmp.eq.s32.totalorder %s23, 0
      %p155 = por %p153, %p154
      %s157 = sadd.s32 %s156, 1
      %p160 = scmp.eq.s32.totalorder %s17, 1
      %p161 = scmp.ne.s32.totalorder %s156, %s158
      %p162 = scmp.eq.s32.totalorder %s17, 0
      %p163 = por %p161, %p162
      %p164 = scmp.ne.s32.totalorder %s156, %s158
      %p165 = scmp.eq.s32.totalorder %s22, 1
      %p166 = por %p164, %p165
      %p167 = scmp.ne.s32.totalorder %s158, %s159
      %p168 = scmp.eq.s32.totalorder %s22, 0
      %p169 = por %p167, %p168
      %p170 = scmp.ne.s32.totalorder %s158, %s159
      %p171 = scmp.eq.s32.totalorder %s23, 1
      %p172 = por %p170, %p171
      %p174 = scmp.ne.s32.totalorder %s159, %s173
      %p175 = scmp.eq.s32.totalorder %s23, 0
      %p176 = por %p174, %p175
      %s177 = ssub.s32 %s17, %s24
      %p178 = scmp.eq.s32.totalorder %s177, 0
      %s180 = sadd.s32 %s179, 1
      %s181 = scalar_select %p178, %s179, %s180
      %p184 = pneg %p178
      %p185 = scmp.eq.s32.totalorder %s17, 1
      %p186 = por %p184, %p185
      %p187 = scmp.ne.s32.totalorder %s179, %s182
      %p188 = scmp.eq.s32.totalorder %s17, 0
      %p189 = por %p187, %p188
      %p190 = scmp.ne.s32.totalorder %s179, %s182
      %p191 = scmp.eq.s32.totalorder %s22, 1
      %p192 = por %p190, %p191
      %p193 = scmp.ne.s32.totalorder %s182, %s183
      %p194 = scmp.eq.s32.totalorder %s22, 0
      %p195 = por %p193, %p194
      %p196 = scmp.ne.s32.totalorder %s182, %s183
      %p197 = scmp.eq.s32.totalorder %s23, 1
      %p198 = por %p196, %p197
      %p200 = scmp.ne.s32.totalorder %s183, %s199
      %p201 = scmp.eq.s32.totalorder %s23, 0
      %p202 = por %p200, %p201
      %p203 = scmp.le.s32.totalorder 1, %s17
      %p204 = scmp.lt.s32.totalorder %s17, 3
      %p205 = pnand %p203, %p204
      %p206 = pneg %p205
      // Predicated region
      $region9: #{tpu_custom_call.1} parent=5 // pred_check
        _
      $region10: #{tpu_custom_call.1} parent=5 // pred_check_branch
        %208 = sbr.rel (%p205) target = $region12
      $region11: #{tpu_custom_call.1} parent=5 // pred_region
        %s209 = ssub.s32 %s17, 1
        // Predicated region
        $region13: #{tpu_custom_call.1} parent=11 // pred_check
          %p210 = pneg %p64
        $region14: #{tpu_custom_call.1} parent=11 // pred_check_branch
          %212 = sbr.rel (%p210) target = $region16
        $region15: #{tpu_custom_call.1} parent=11 // pred_region
          %214 = vsyncadd [#allocation7], 0
          %s215 = sshll.u32 %s1, 4
          %s216 = int_to_ptr.hbm [resolvable:$true] %s215
          %s217 = sshll.u32 [#allocation6], 4
          %s218 = int_to_ptr.vmem [resolvable:$true] %s217
          %223 = dma.hbm_to_vmem [thread:$0]  %s216, 5120, %s218, [#allocation7], 64, 64, 4
        $region16: #{tpu_custom_call.1} parent=11 // pred_fallthru
          _
        // Predicated region
        $region17: #{tpu_custom_call.1} parent=11 // pred_check
          %p224 = pneg %p85
        $region18: #{tpu_custom_call.1} parent=11 // pred_check_branch
          %226 = sbr.rel (%p224) target = $region20
        $region19: #{tpu_custom_call.1} parent=11 // pred_region
          _
        $region20: #{tpu_custom_call.1} parent=11 // pred_fallthru
          _
        // Predicated region
        $region21: #{tpu_custom_call.1} parent=11 // pred_check
          %p227 = pneg %p106
        $region22: #{tpu_custom_call.1} parent=11 // pred_check_branch
          %229 = sbr.rel (%p227) target = $region24
        $region23: #{tpu_custom_call.1} parent=11 // pred_region
          _
        $region24: #{tpu_custom_call.1} parent=11 // pred_fallthru
          _
        // Predicated region
        $region25: #{tpu_custom_call.1} parent=11 // pred_check
          %p230 = pneg %p127
        $region26: #{tpu_custom_call.1} parent=11 // pred_check_branch
          %232 = sbr.rel (%p230) target = $region28
        $region27: #{tpu_custom_call.1} parent=11 // pred_region
          _
        $region28: #{tpu_custom_call.1} parent=11 // pred_fallthru
          _
        // Predicated region
        $region29: #{tpu_custom_call.1} parent=11 // pred_check
          %p233 = pneg %p148
        $region30: #{tpu_custom_call.1} parent=11 // pred_check_branch
          %235 = sbr.rel (%p233) target = $region32
        $region31: #{tpu_custom_call.1} parent=11 // pred_region
          _
        $region32: #{tpu_custom_call.1} parent=11 // pred_fallthru
          _
        // Predicated region
        $region33: #{tpu_custom_call.1} parent=11 // pred_check
          %p236 = pneg %p169
        $region34: #{tpu_custom_call.1} parent=11 // pred_check_branch
          %238 = sbr.rel (%p236) target = $region36
        $region35: #{tpu_custom_call.1} parent=11 // pred_region
          _
        $region36: #{tpu_custom_call.1} parent=11 // pred_fallthru
          _
      $region12: #{tpu_custom_call.1} parent=5 // pred_fallthru
        _
      %p239 = scmp.lt.s32.totalorder %s17, 2
      // Predicated region
      $region37: #{tpu_custom_call.1} parent=5 // pred_check
        %p240 = pneg %p239
      $region38: #{tpu_custom_call.1} parent=5 // pred_check_branch
        %242 = sbr.rel (%p240) target = $region40
      $region39: #{tpu_custom_call.1} parent=5 // pred_region
        // Predicated region
        $region41: #{tpu_custom_call.1} parent=39 // pred_check
          %p243 = pneg %p37
        $region42: #{tpu_custom_call.1} parent=39 // pred_check_branch
          %245 = sbr.rel (%p243) target = $region44
        $region43: #{tpu_custom_call.1} parent=39 // pred_region
          %p246 = scmp.lt.s32.totalorder %s17, 1
          %s247 = scalar_select %p246, %s17, 1
          %s248 = smul.addr %s247, 32
          %s249 = smul.addr %s248, 8
          %s250 = scalar_lea.vmem %s0, %s249
        $region44: #{tpu_custom_call.1} parent=39 // pred_fallthru
          _
      $region40: #{tpu_custom_call.1} parent=5 // pred_fallthru
        _
      %p251 = scmp.le.s32.totalorder 1, %s17
      %p252 = scmp.lt.s32.totalorder %s17, 3
      %p253 = pnand %p251, %p252
      %p254 = pneg %p253
      // Predicated region
      $region45: #{tpu_custom_call.1} parent=5 // pred_check
        _
      $region46: #{tpu_custom_call.1} parent=5 // pred_check_branch
        %256 = sbr.rel (%p253) target = $region48
      $region47: #{tpu_custom_call.1} parent=5 // pred_region
        %s257 = ssub.s32 %s17, 1
        // Predicated region
        $region49: #{tpu_custom_call.1} parent=47 // pred_check
          %p258 = pneg %p64
        $region50: #{tpu_custom_call.1} parent=47 // pred_check_branch
          %260 = sbr.rel (%p258) target = $region52
        $region51: #{tpu_custom_call.1} parent=47 // pred_region
          %262 = dma.done [#allocation7], 5120
        $region52: #{tpu_custom_call.1} parent=47 // pred_fallthru
          _
        %p263 = scmp.lt.s32.totalorder %s22, 1
        %s264 = scalar_select %p263, %s22, 1
        %s265 = smul.addr %s264, 32
        %s266 = smul.addr %s265, 8
        %s267 = scalar_lea.vmem %s0, %s266
        %p268 = pneg %p43
        %p269 = pneg %p40
        %p270 = pneg %p64
        %p271 = pneg %p61
        %p272 = pneg %p85
        %p273 = pneg %p82
        %p274 = pneg %p106
        %p275 = pneg %p103
        %p276 = pneg %p127
        %p277 = pneg %p124
        %p278 = pneg %p148
        %p279 = pneg %p145
        %p280 = pneg %p169
        %p281 = pneg %p166
        %p282 = pneg %p195
        %p283 = pneg %p192
        %s284 = sand.u32 %s182, 1
        %s285 = scalar_lea.sflag [#allocation8], %s284
        %s286 = sand.u32 %s182, 1
        %s287 = smul.addr %s286, 256
        %s288 = scalar_lea.vmem [#allocation9], %s287
        %p289 = scmp.lt.s32.totalorder %s22, 1
        %s290 = scalar_select %p289, %s22, 1
        %s291 = smul.addr %s290, 32
        %s292 = smul.addr %s291, 8
        %s293 = scalar_lea.vmem %s0, %s292
        %vm294 = vcmask 523264
        %295 = vst.msk [vmem:[#allocation2] sm:$0xff] %vm294, 0.0
        %296 = vst.msk [vmem:[#allocation2 + $0x8] sm:$0xff] %vm294, 0.0
        %vm297 = vcmask 517120
        %298 = vst.msk [vmem:[#allocation2 + $0x10] sm:$0x3] %vm297, 0.0
        %s299 = scalar_lea.vmem [#allocation2], 408
        %300 = vst.msk [vmem:[%s299] sm:$0xff] %vm294, 0.0
        %301 = vst.msk [vmem:[%s299 + $0x8] sm:$0xff] %vm294, 0.0
        %302 = vst.msk [vmem:[%s299 + $0x10] sm:$0x3] %vm297, 0.0
        %s303 = scalar_lea.vmem [#allocation2], 24
        %vm304 = vcmask 516096
        %305 = vst.msk [vmem:[%s303] sm:$0x1] %vm304, 0.0
        %306 = vst.msk [vmem:[%s303 + $0x18] sm:$0x1] %vm304, 0.0
        %307 = vst.msk [vmem:[%s303 + $0x30] sm:$0x1] %vm304, 0.0
        %308 = vst.msk [vmem:[%s303 + $0x48] sm:$0x1] %vm304, 0.0
        %309 = vst.msk [vmem:[%s303 + $0x60] sm:$0x1] %vm304, 0.0
        %310 = vst.msk [vmem:[%s303 + $0x78] sm:$0x1] %vm304, 0.0
        %311 = vst.msk [vmem:[%s303 + $0x90] sm:$0x1] %vm304, 0.0
        %312 = vst.msk [vmem:[%s303 + $0xa8] sm:$0x1] %vm304, 0.0
        %313 = vst.msk [vmem:[%s303 + $0xc0] sm:$0x1] %vm304, 0.0
        %314 = vst.msk [vmem:[%s303 + $0xd8] sm:$0x1] %vm304, 0.0
        %315 = vst.msk [vmem:[%s303 + $0xf0] sm:$0x1] %vm304, 0.0
        %316 = vst.msk [vmem:[%s303 + $0x108] sm:$0x1] %vm304, 0.0
        %317 = vst.msk [vmem:[%s303 + $0x120] sm:$0x1] %vm304, 0.0
        %318 = vst.msk [vmem:[%s303 + $0x138] sm:$0x1] %vm304, 0.0
        %319 = vst.msk [vmem:[%s303 + $0x150] sm:$0x1] %vm304, 0.0
        %320 = vst.msk [vmem:[%s303 + $0x168] sm:$0x1] %vm304, 0.0
        %321 = vst.msk [vmem:[%s303 + $0x11] sm:$0x1] %vm304, 0.0
        %322 = vst.msk [vmem:[%s303 + $0x29] sm:$0x1] %vm304, 0.0
        %323 = vst.msk [vmem:[%s303 + $0x41] sm:$0x1] %vm304, 0.0
        %324 = vst.msk [vmem:[%s303 + $0x59] sm:$0x1] %vm304, 0.0
        %325 = vst.msk [vmem:[%s303 + $0x71] sm:$0x1] %vm304, 0.0
        %326 = vst.msk [vmem:[%s303 + $0x89] sm:$0x1] %vm304, 0.0
        %327 = vst.msk [vmem:[%s303 + $0xa1] sm:$0x1] %vm304, 0.0
        %328 = vst.msk [vmem:[%s303 + $0xb9] sm:$0x1] %vm304, 0.0
        %329 = vst.msk [vmem:[%s303 + $0xd1] sm:$0x1] %vm304, 0.0
        %330 = vst.msk [vmem:[%s303 + $0xe9] sm:$0x1] %vm304, 0.0
        %331 = vst.msk [vmem:[%s303 + $0x101] sm:$0x1] %vm304, 0.0
        %332 = vst.msk [vmem:[%s303 + $0x119] sm:$0x1] %vm304, 0.0
        %333 = vst.msk [vmem:[%s303 + $0x131] sm:$0x1] %vm304, 0.0
        %334 = vst.msk [vmem:[%s303 + $0x149] sm:$0x1] %vm304, 0.0
        %335 = vst.msk [vmem:[%s303 + $0x161] sm:$0x1] %vm304, 0.0
        %336 = vst.msk [vmem:[%s303 + $0x179] sm:$0x1] %vm304, 0.0
        %v337 = vld [vmem:[%s293] sm:$0xff]
        %v338 = vld [vmem:[%s293 + $0x8] sm:$0xff]
        %v339 = vld [vmem:[%s293 + $0x10] sm:$0xff]
        %v340 = vld [vmem:[%s293 + $0x18] sm:$0xff]
        %v341 = vld [vmem:[%s293 + $0x20] sm:$0xff]
        %v342 = vld [vmem:[%s293 + $0x28] sm:$0xff]
        %v343 = vld [vmem:[%s293 + $0x30] sm:$0xff]
        %v344 = vld [vmem:[%s293 + $0x38] sm:$0xff]
        %v345 = vld [vmem:[%s293 + $0x40] sm:$0xff]
        %v346 = vld [vmem:[%s293 + $0x48] sm:$0xff]
        %v347 = vld [vmem:[%s293 + $0x50] sm:$0xff]
        %v348 = vld [vmem:[%s293 + $0x58] sm:$0xff]
        %v349 = vld [vmem:[%s293 + $0x60] sm:$0xff]
        %v350 = vld [vmem:[%s293 + $0x68] sm:$0xff]
        %v351 = vld [vmem:[%s293 + $0x70] sm:$0xff]
        %v352 = vld [vmem:[%s293 + $0x78] sm:$0xff]
        %v353 = vld [vmem:[%s293 + $0x80] sm:$0xff]
        %v354 = vld [vmem:[%s293 + $0x88] sm:$0xff]
        %v355 = vld [vmem:[%s293 + $0x90] sm:$0xff]
        %v356 = vld [vmem:[%s293 + $0x98] sm:$0xff]
        %v357 = vld [vmem:[%s293 + $0xa0] sm:$0xff]
        %v358 = vld [vmem:[%s293 + $0xa8] sm:$0xff]
        %v359 = vld [vmem:[%s293 + $0xb0] sm:$0xff]
        %v360 = vld [vmem:[%s293 + $0xb8] sm:$0xff]
        %v361 = vld [vmem:[%s293 + $0xc0] sm:$0xff]
        %v362 = vld [vmem:[%s293 + $0xc8] sm:$0xff]
        %v363 = vld [vmem:[%s293 + $0xd0] sm:$0xff]
        %v364 = vld [vmem:[%s293 + $0xd8] sm:$0xff]
        %v365 = vld [vmem:[%s293 + $0xe0] sm:$0xff]
        %v366 = vld [vmem:[%s293 + $0xe8] sm:$0xff]
        %v367 = vld [vmem:[%s293 + $0xf0] sm:$0xff]
        %v368 = vld [vmem:[%s293 + $0xf8] sm:$0xff]
        %369 = vst.msk [vmem:[%s303 + $0x1] sm:$0xff] %vm294, %v337
        %370 = vst.msk [vmem:[%s303 + $0x9] sm:$0xff] %vm294, %v338
        %371 = vst.msk [vmem:[%s303 + $0x19] sm:$0xff] %vm294, %v339
        %372 = vst.msk [vmem:[%s303 + $0x21] sm:$0xff] %vm294, %v340
        %373 = vst.msk [vmem:[%s303 + $0x31] sm:$0xff] %vm294, %v341
        %374 = vst.msk [vmem:[%s303 + $0x39] sm:$0xff] %vm294, %v342
        %375 = vst.msk [vmem:[%s303 + $0x49] sm:$0xff] %vm294, %v343
        %376 = vst.msk [vmem:[%s303 + $0x51] sm:$0xff] %vm294, %v344
        %377 = vst.msk [vmem:[%s303 + $0x61] sm:$0xff] %vm294, %v345
        %378 = vst.msk [vmem:[%s303 + $0x69] sm:$0xff] %vm294, %v346
        %379 = vst.msk [vmem:[%s303 + $0x79] sm:$0xff] %vm294, %v347
        %380 = vst.msk [vmem:[%s303 + $0x81] sm:$0xff] %vm294, %v348
        %381 = vst.msk [vmem:[%s303 + $0x91] sm:$0xff] %vm294, %v349
        %382 = vst.msk [vmem:[%s303 + $0x99] sm:$0xff] %vm294, %v350
        %383 = vst.msk [vmem:[%s303 + $0xa9] sm:$0xff] %vm294, %v351
        %384 = vst.msk [vmem:[%s303 + $0xb1] sm:$0xff] %vm294, %v352
        %385 = vst.msk [vmem:[%s303 + $0xc1] sm:$0xff] %vm294, %v353
        %386 = vst.msk [vmem:[%s303 + $0xc9] sm:$0xff] %vm294, %v354
        %387 = vst.msk [vmem:[%s303 + $0xd9] sm:$0xff] %vm294, %v355
        %388 = vst.msk [vmem:[%s303 + $0xe1] sm:$0xff] %vm294, %v356
        %389 = vst.msk [vmem:[%s303 + $0xf1] sm:$0xff] %vm294, %v357
        %390 = vst.msk [vmem:[%s303 + $0xf9] sm:$0xff] %vm294, %v358
        %391 = vst.msk [vmem:[%s303 + $0x109] sm:$0xff] %vm294, %v359
        %392 = vst.msk [vmem:[%s303 + $0x111] sm:$0xff] %vm294, %v360
        %393 = vst.msk [vmem:[%s303 + $0x121] sm:$0xff] %vm294, %v361
        %394 = vst.msk [vmem:[%s303 + $0x129] sm:$0xff] %vm294, %v362
        %395 = vst.msk [vmem:[%s303 + $0x139] sm:$0xff] %vm294, %v363
        %396 = vst.msk [vmem:[%s303 + $0x141] sm:$0xff] %vm294, %v364
        %397 = vst.msk [vmem:[%s303 + $0x151] sm:$0xff] %vm294, %v365
        %398 = vst.msk [vmem:[%s303 + $0x159] sm:$0xff] %vm294, %v366
        %399 = vst.msk [vmem:[%s303 + $0x169] sm:$0xff] %vm294, %v367
        %400 = vst.msk [vmem:[%s303 + $0x171] sm:$0xff] %vm294, %v368
        %v401 = vld [vmem:[#allocation2] sm:$0xff]
        %v402 = vld [vmem:[#allocation2 + $0x8] sm:$0xff]
        %v403 = vld [vmem:[#allocation2 + $0x18] sm:$0xff]
        %v404 = vld [vmem:[#allocation2 + $0x20] sm:$0xff]
        %v405 = vld [vmem:[#allocation2 + $0x30] sm:$0xff]
        %v406 = vld [vmem:[#allocation2 + $0x38] sm:$0xff]
        %v407 = vld [vmem:[#allocation2 + $0x48] sm:$0xff]
        %v408 = vld [vmem:[#allocation2 + $0x50] sm:$0xff]
        %v409 = vld [vmem:[#allocation2 + $0x60] sm:$0xff]
        %v410 = vld [vmem:[#allocation2 + $0x68] sm:$0xff]
        %v411 = vld [vmem:[#allocation2 + $0x78] sm:$0xff]
        %v412 = vld [vmem:[#allocation2 + $0x80] sm:$0xff]
        %v413 = vld [vmem:[#allocation2 + $0x90] sm:$0xff]
        %v414 = vld [vmem:[#allocation2 + $0x98] sm:$0xff]
        %v415 = vld [vmem:[#allocation2 + $0xa8] sm:$0xff]
        %v416 = vld [vmem:[#allocation2 + $0xb0] sm:$0xff]
        %v417 = vld [vmem:[#allocation2 + $0xc0] sm:$0xff]
        %v418 = vld [vmem:[#allocation2 + $0xc8] sm:$0xff]
        %v419 = vld [vmem:[#allocation2 + $0xd8] sm:$0xff]
        %v420 = vld [vmem:[#allocation2 + $0xe0] sm:$0xff]
        %v421 = vld [vmem:[#allocation2 + $0xf0] sm:$0xff]
        %v422 = vld [vmem:[#allocation2 + $0xf8] sm:$0xff]
        %v423 = vld [vmem:[#allocation2 + $0x108] sm:$0xff]
        %v424 = vld [vmem:[#allocation2 + $0x110] sm:$0xff]
        %v425 = vld [vmem:[#allocation2 + $0x120] sm:$0xff]
        %v426 = vld [vmem:[#allocation2 + $0x128] sm:$0xff]
        %v427 = vld [vmem:[#allocation2 + $0x138] sm:$0xff]
        %v428 = vld [vmem:[#allocation2 + $0x140] sm:$0xff]
        %v429 = vld [vmem:[#allocation2 + $0x150] sm:$0xff]
        %v430 = vld [vmem:[#allocation2 + $0x158] sm:$0xff]
        %v431 = vld [vmem:[#allocation2 + $0x168] sm:$0xff]
        %v432 = vld [vmem:[#allocation2 + $0x170] sm:$0xff]
        %v433 = vld [vmem:[#allocation2 + $0x1] sm:$0xff]
        %v434 = vld [vmem:[#allocation2 + $0x9] sm:$0xff]
        %v435 = vld [vmem:[#allocation2 + $0x19] sm:$0xff]
        %v436 = vld [vmem:[#allocation2 + $0x21] sm:$0xff]
        %v437 = vld [vmem:[#allocation2 + $0x31] sm:$0xff]
        %v438 = vld [vmem:[#allocation2 + $0x39] sm:$0xff]
        %v439 = vld [vmem:[#allocation2 + $0x49] sm:$0xff]
        %v440 = vld [vmem:[#allocation2 + $0x51] sm:$0xff]
        %v441 = vld [vmem:[#allocation2 + $0x61] sm:$0xff]
        %v442 = vld [vmem:[#allocation2 + $0x69] sm:$0xff]
        %v443 = vld [vmem:[#allocation2 + $0x79] sm:$0xff]
        %v444 = vld [vmem:[#allocation2 + $0x81] sm:$0xff]
        %v445 = vld [vmem:[#allocation2 + $0x91] sm:$0xff]
        %v446 = vld [vmem:[#allocation2 + $0x99] sm:$0xff]
        %v447 = vld [vmem:[#allocation2 + $0xa9] sm:$0xff]
        %v448 = vld [vmem:[#allocation2 + $0xb1] sm:$0xff]
        %v449 = vld [vmem:[#allocation2 + $0xc1] sm:$0xff]
        %v450 = vld [vmem:[#allocation2 + $0xc9] sm:$0xff]
        %v451 = vld [vmem:[#allocation2 + $0xd9] sm:$0xff]
        %v452 = vld [vmem:[#allocation2 + $0xe1] sm:$0xff]
        %v453 = vld [vmem:[#allocation2 + $0xf1] sm:$0xff]
        %v454 = vld [vmem:[#allocation2 + $0xf9] sm:$0xff]
        %v455 = vld [vmem:[#allocation2 + $0x109] sm:$0xff]
        %v456 = vld [vmem:[#allocation2 + $0x111] sm:$0xff]
        %v457 = vld [vmem:[#allocation2 + $0x121] sm:$0xff]
        %v458 = vld [vmem:[#allocation2 + $0x129] sm:$0xff]
        %v459 = vld [vmem:[#allocation2 + $0x139] sm:$0xff]
        %v460 = vld [vmem:[#allocation2 + $0x141] sm:$0xff]
        %v461 = vld [vmem:[#allocation2 + $0x151] sm:$0xff]
        %v462 = vld [vmem:[#allocation2 + $0x159] sm:$0xff]
        %v463 = vld [vmem:[#allocation2 + $0x169] sm:$0xff]
        %v464 = vld [vmem:[#allocation2 + $0x171] sm:$0xff]
        %497 = vrot.lane.b32.xlu0 %v433, 64
        %v498 = vpop.permute.xlu0 %497
        %499 = vrot.lane.b32.xlu0 %v434, 64
        %v500 = vpop.permute.xlu0 %499
        %501 = vrot.lane.b32.xlu0 %v435, 64
        %v502 = vpop.permute.xlu0 %501
        %503 = vrot.lane.b32.xlu0 %v436, 64
        %v504 = vpop.permute.xlu0 %503
        %505 = vrot.lane.b32.xlu0 %v437, 64
        %v506 = vpop.permute.xlu0 %505
        %507 = vrot.lane.b32.xlu0 %v438, 64
        %v508 = vpop.permute.xlu0 %507
        %509 = vrot.lane.b32.xlu0 %v439, 64
        %v510 = vpop.permute.xlu0 %509
        %511 = vrot.lane.b32.xlu0 %v440, 64
        %v512 = vpop.permute.xlu0 %511
        %513 = vrot.lane.b32.xlu0 %v441, 64
        %v514 = vpop.permute.xlu0 %513
        %515 = vrot.lane.b32.xlu0 %v442, 64
        %v516 = vpop.permute.xlu0 %515
        %517 = vrot.lane.b32.xlu0 %v443, 64
        %v518 = vpop.permute.xlu0 %517
        %519 = vrot.lane.b32.xlu0 %v444, 64
        %v520 = vpop.permute.xlu0 %519
        %521 = vrot.lane.b32.xlu0 %v445, 64
        %v522 = vpop.permute.xlu0 %521
        %523 = vrot.lane.b32.xlu0 %v446, 64
        %v524 = vpop.permute.xlu0 %523
        %525 = vrot.lane.b32.xlu0 %v447, 64
        %v526 = vpop.permute.xlu0 %525
        %527 = vrot.lane.b32.xlu0 %v448, 64
        %v528 = vpop.permute.xlu0 %527
        %529 = vrot.lane.b32.xlu0 %v449, 64
        %v530 = vpop.permute.xlu0 %529
        %531 = vrot.lane.b32.xlu0 %v450, 64
        %v532 = vpop.permute.xlu0 %531
        %533 = vrot.lane.b32.xlu0 %v451, 64
        %v534 = vpop.permute.xlu0 %533
        %535 = vrot.lane.b32.xlu0 %v452, 64
        %v536 = vpop.permute.xlu0 %535
        %537 = vrot.lane.b32.xlu0 %v453, 64
        %v538 = vpop.permute.xlu0 %537
        %539 = vrot.lane.b32.xlu0 %v454, 64
        %v540 = vpop.permute.xlu0 %539
        %541 = vrot.lane.b32.xlu0 %v455, 64
        %v542 = vpop.permute.xlu0 %541
        %543 = vrot.lane.b32.xlu0 %v456, 64
        %v544 = vpop.permute.xlu0 %543
        %545 = vrot.lane.b32.xlu0 %v457, 64
        %v546 = vpop.permute.xlu0 %545
        %547 = vrot.lane.b32.xlu0 %v458, 64
        %v548 = vpop.permute.xlu0 %547
        %549 = vrot.lane.b32.xlu0 %v459, 64
        %v550 = vpop.permute.xlu0 %549
        %551 = vrot.lane.b32.xlu0 %v460, 64
        %v552 = vpop.permute.xlu0 %551
        %553 = vrot.lane.b32.xlu0 %v461, 64
        %v554 = vpop.permute.xlu0 %553
        %555 = vrot.lane.b32.xlu0 %v462, 64
        %v556 = vpop.permute.xlu0 %555
        %557 = vrot.lane.b32.xlu0 %v463, 64
        %v558 = vpop.permute.xlu0 %557
        %559 = vrot.lane.b32.xlu0 %v464, 64
        %v560 = vpop.permute.xlu0 %559
        %v593 = vsel %vm294, %v401, %v498
        %v594 = vsel %vm294, %v402, %v500
        %v595 = vsel %vm294, %v403, %v502
        %v596 = vsel %vm294, %v404, %v504
        %v597 = vsel %vm294, %v405, %v506
        %v598 = vsel %vm294, %v406, %v508
        %v599 = vsel %vm294, %v407, %v510
        %v600 = vsel %vm294, %v408, %v512
        %v601 = vsel %vm294, %v409, %v514
        %v602 = vsel %vm294, %v410, %v516
        %v603 = vsel %vm294, %v411, %v518
        %v604 = vsel %vm294, %v412, %v520
        %v605 = vsel %vm294, %v413, %v522
        %v606 = vsel %vm294, %v414, %v524
        %v607 = vsel %vm294, %v415, %v526
        %v608 = vsel %vm294, %v416, %v528
        %v609 = vsel %vm294, %v417, %v530
        %v610 = vsel %vm294, %v418, %v532
        %v611 = vsel %vm294, %v419, %v534
        %v612 = vsel %vm294, %v420, %v536
        %v613 = vsel %vm294, %v421, %v538
        %v614 = vsel %vm294, %v422, %v540
        %v615 = vsel %vm294, %v423, %v542
        %v616 = vsel %vm294, %v424, %v544
        %v617 = vsel %vm294, %v425, %v546
        %v618 = vsel %vm294, %v426, %v548
        %v619 = vsel %vm294, %v427, %v550
        %v620 = vsel %vm294, %v428, %v552
        %v621 = vsel %vm294, %v429, %v554
        %v622 = vsel %vm294, %v430, %v556
        %v623 = vsel %vm294, %v431, %v558
        %v624 = vsel %vm294, %v432, %v560
        %v625 = vpack.c.bf16 %v593, %v593
        %v626 = vpack.c.bf16 %v594, %v594
        %v627 = vpack.c.bf16 %v595, %v595
        %v628 = vpack.c.bf16 %v596, %v596
        %v629 = vpack.c.bf16 %v597, %v597
        %v630 = vpack.c.bf16 %v598, %v598
        %v631 = vpack.c.bf16 %v599, %v599
        %v632 = vpack.c.bf16 %v600, %v600
        %v633 = vpack.c.bf16 %v601, %v601
        %v634 = vpack.c.bf16 %v602, %v602
        %v635 = vpack.c.bf16 %v603, %v603
        %v636 = vpack.c.bf16 %v604, %v604
        %v637 = vpack.c.bf16 %v605, %v605
        %v638 = vpack.c.bf16 %v606, %v606
        %v639 = vpack.c.bf16 %v607, %v607
        %v640 = vpack.c.bf16 %v608, %v608
        %v641 = vpack.c.bf16 %v609, %v609
        %v642 = vpack.c.bf16 %v610, %v610
        %v643 = vpack.c.bf16 %v611, %v611
        %v644 = vpack.c.bf16 %v612, %v612
        %v645 = vpack.c.bf16 %v613, %v613
        %v646 = vpack.c.bf16 %v614, %v614
        %v647 = vpack.c.bf16 %v615, %v615
        %v648 = vpack.c.bf16 %v616, %v616
        %v649 = vpack.c.bf16 %v617, %v617
        %v650 = vpack.c.bf16 %v618, %v618
        %v651 = vpack.c.bf16 %v619, %v619
        %v652 = vpack.c.bf16 %v620, %v620
        %v653 = vpack.c.bf16 %v621, %v621
        %v654 = vpack.c.bf16 %v622, %v622
        %v655 = vpack.c.bf16 %v623, %v623
        %v656 = vpack.c.bf16 %v624, %v624
        %657 = vst [vmem:[#allocation3] sm:$0xf] %v625
        %658 = vst [vmem:[#allocation3 + $0x14] sm:$0xf] %v626
        %659 = vst [vmem:[#allocation3 + $0x28] sm:$0xf] %v627
        %660 = vst [vmem:[#allocation3 + $0x3c] sm:$0xf] %v628
        %661 = vst [vmem:[#allocation3 + $0x50] sm:$0xf] %v629
        %662 = vst [vmem:[#allocation3 + $0x64] sm:$0xf] %v630
        %663 = vst [vmem:[#allocation3 + $0x78] sm:$0xf] %v631
        %664 = vst [vmem:[#allocation3 + $0x8c] sm:$0xf] %v632
        %665 = vst [vmem:[#allocation3 + $0xa0] sm:$0xf] %v633
        %666 = vst [vmem:[#allocation3 + $0xb4] sm:$0xf] %v634
        %667 = vst [vmem:[#allocation3 + $0xc8] sm:$0xf] %v635
        %668 = vst [vmem:[#allocation3 + $0xdc] sm:$0xf] %v636
        %669 = vst [vmem:[#allocation3 + $0xf0] sm:$0xf] %v637
        %670 = vst [vmem:[#allocation3 + $0x104] sm:$0xf] %v638
        %671 = vst [vmem:[#allocation3 + $0x118] sm:$0xf] %v639
        %672 = vst [vmem:[#allocation3 + $0x12c] sm:$0xf] %v640
        %673 = vst [vmem:[#allocation3 + $0x140] sm:$0xf] %v641
        %674 = vst [vmem:[#allocation3 + $0x154] sm:$0xf] %v642
        %675 = vst [vmem:[#allocation3 + $0x168] sm:$0xf] %v643
        %676 = vst [vmem:[#allocation3 + $0x17c] sm:$0xf] %v644
        %677 = vst [vmem:[#allocation3 + $0x190] sm:$0xf] %v645
        %678 = vst [vmem:[#allocation3 + $0x1a4] sm:$0xf] %v646
        %679 = vst [vmem:[#allocation3 + $0x1b8] sm:$0xf] %v647
        %680 = vst [vmem:[#allocation3 + $0x1cc] sm:$0xf] %v648
        %681 = vst [vmem:[#allocation3 + $0x1e0] sm:$0xf] %v649
        %682 = vst [vmem:[#allocation3 + $0x1f4] sm:$0xf] %v650
        %683 = vst [vmem:[#allocation3 + $0x208] sm:$0xf] %v651
        %684 = vst [vmem:[#allocation3 + $0x21c] sm:$0xf] %v652
        %685 = vst [vmem:[#allocation3 + $0x230] sm:$0xf] %v653
        %686 = vst [vmem:[#allocation3 + $0x244] sm:$0xf] %v654
        %687 = vst [vmem:[#allocation3 + $0x258] sm:$0xf] %v655
        %688 = vst [vmem:[#allocation3 + $0x26c] sm:$0xf] %v656
        %v689 = vld [vmem:[#allocation2 + $0x2] sm:$0xff]
        %v690 = vld [vmem:[#allocation2 + $0xa] sm:$0xff]
        %v691 = vld [vmem:[#allocation2 + $0x1a] sm:$0xff]
        %v692 = vld [vmem:[#allocation2 + $0x22] sm:$0xff]
        %v693 = vld [vmem:[#allocation2 + $0x32] sm:$0xff]
        %v694 = vld [vmem:[#allocation2 + $0x3a] sm:$0xff]
        %v695 = vld [vmem:[#allocation2 + $0x4a] sm:$0xff]
        %v696 = vld [vmem:[#allocation2 + $0x52] sm:$0xff]
        %v697 = vld [vmem:[#allocation2 + $0x62] sm:$0xff]
        %v698 = vld [vmem:[#allocation2 + $0x6a] sm:$0xff]
        %v699 = vld [vmem:[#allocation2 + $0x7a] sm:$0xff]
        %v700 = vld [vmem:[#allocation2 + $0x82] sm:$0xff]
        %v701 = vld [vmem:[#allocation2 + $0x92] sm:$0xff]
        %v702 = vld [vmem:[#allocation2 + $0x9a] sm:$0xff]
        %v703 = vld [vmem:[#allocation2 + $0xaa] sm:$0xff]
        %v704 = vld [vmem:[#allocation2 + $0xb2] sm:$0xff]
        %v705 = vld [vmem:[#allocation2 + $0xc2] sm:$0xff]
        %v706 = vld [vmem:[#allocation2 + $0xca] sm:$0xff]
        %v707 = vld [vmem:[#allocation2 + $0xda] sm:$0xff]
        %v708 = vld [vmem:[#allocation2 + $0xe2] sm:$0xff]
        %v709 = vld [vmem:[#allocation2 + $0xf2] sm:$0xff]
        %v710 = vld [vmem:[#allocation2 + $0xfa] sm:$0xff]
        %v711 = vld [vmem:[#allocation2 + $0x10a] sm:$0xff]
        %v712 = vld [vmem:[#allocation2 + $0x112] sm:$0xff]
        %v713 = vld [vmem:[#allocation2 + $0x122] sm:$0xff]
        %v714 = vld [vmem:[#allocation2 + $0x12a] sm:$0xff]
        %v715 = vld [vmem:[#allocation2 + $0x13a] sm:$0xff]
        %v716 = vld [vmem:[#allocation2 + $0x142] sm:$0xff]
        %v717 = vld [vmem:[#allocation2 + $0x152] sm:$0xff]
        %v718 = vld [vmem:[#allocation2 + $0x15a] sm:$0xff]
        %v719 = vld [vmem:[#allocation2 + $0x16a] sm:$0xff]
        %v720 = vld [vmem:[#allocation2 + $0x172] sm:$0xff]
        %v721 = vld [vmem:[%s303] sm:$0xff]
        %v722 = vld [vmem:[%s303 + $0x8] sm:$0xff]
        %v723 = vld [vmem:[%s303 + $0x18] sm:$0xff]
        %v724 = vld [vmem:[%s303 + $0x20] sm:$0xff]
        %v725 = vld [vmem:[%s303 + $0x30] sm:$0xff]
        %v726 = vld [vmem:[%s303 + $0x38] sm:$0xff]
        %v727 = vld [vmem:[%s303 + $0x48] sm:$0xff]
        %v728 = vld [vmem:[%s303 + $0x50] sm:$0xff]
        %v729 = vld [vmem:[%s303 + $0x60] sm:$0xff]
        %v730 = vld [vmem:[%s303 + $0x68] sm:$0xff]
        %v731 = vld [vmem:[%s303 + $0x78] sm:$0xff]
        %v732 = vld [vmem:[%s303 + $0x80] sm:$0xff]
        %v733 = vld [vmem:[%s303 + $0x90] sm:$0xff]
        %v734 = vld [vmem:[%s303 + $0x98] sm:$0xff]
        %v735 = vld [vmem:[%s303 + $0xa8] sm:$0xff]
        %v736 = vld [vmem:[%s303 + $0xb0] sm:$0xff]
        %v737 = vld [vmem:[%s303 + $0xc0] sm:$0xff]
        %v738 = vld [vmem:[%s303 + $0xc8] sm:$0xff]
        %v739 = vld [vmem:[%s303 + $0xd8] sm:$0xff]
        %v740 = vld [vmem:[%s303 + $0xe0] sm:$0xff]
        %v741 = vld [vmem:[%s303 + $0xf0] sm:$0xff]
        %v742 = vld [vmem:[%s303 + $0xf8] sm:$0xff]
        %v743 = vld [vmem:[%s303 + $0x108] sm:$0xff]
        %v744 = vld [vmem:[%s303 + $0x110] sm:$0xff]
        %v745 = vld [vmem:[%s303 + $0x120] sm:$0xff]
        %v746 = vld [vmem:[%s303 + $0x128] sm:$0xff]
        %v747 = vld [vmem:[%s303 + $0x138] sm:$0xff]
        %v748 = vld [vmem:[%s303 + $0x140] sm:$0xff]
        %v749 = vld [vmem:[%s303 + $0x150] sm:$0xff]
        %v750 = vld [vmem:[%s303 + $0x158] sm:$0xff]
        %v751 = vld [vmem:[%s303 + $0x168] sm:$0xff]
        %v752 = vld [vmem:[%s303 + $0x170] sm:$0xff]
        %785 = vrot.lane.b32.xlu0 %v721, 64
        %v786 = vpop.permute.xlu0 %785
        %787 = vrot.lane.b32.xlu0 %v722, 64
        %v788 = vpop.permute.xlu0 %787
        %789 = vrot.lane.b32.xlu0 %v723, 64
        %v790 = vpop.permute.xlu0 %789
        %791 = vrot.lane.b32.xlu0 %v724, 64
        %v792 = vpop.permute.xlu0 %791
        %793 = vrot.lane.b32.xlu0 %v725, 64
        %v794 = vpop.permute.xlu0 %793
        %795 = vrot.lane.b32.xlu0 %v726, 64
        %v796 = vpop.permute.xlu0 %795
        %797 = vrot.lane.b32.xlu0 %v727, 64
        %v798 = vpop.permute.xlu0 %797
        %799 = vrot.lane.b32.xlu0 %v728, 64
        %v800 = vpop.permute.xlu0 %799
        %801 = vrot.lane.b32.xlu0 %v729, 64
        %v802 = vpop.permute.xlu0 %801
        %803 = vrot.lane.b32.xlu0 %v730, 64
        %v804 = vpop.permute.xlu0 %803
        %805 = vrot.lane.b32.xlu0 %v731, 64
        %v806 = vpop.permute.xlu0 %805
        %807 = vrot.lane.b32.xlu0 %v732, 64
        %v808 = vpop.permute.xlu0 %807
        %809 = vrot.lane.b32.xlu0 %v733, 64
        %v810 = vpop.permute.xlu0 %809
        %811 = vrot.lane.b32.xlu0 %v734, 64
        %v812 = vpop.permute.xlu0 %811
        %813 = vrot.lane.b32.xlu0 %v735, 64
        %v814 = vpop.permute.xlu0 %813
        %815 = vrot.lane.b32.xlu0 %v736, 64
        %v816 = vpop.permute.xlu0 %815
        %817 = vrot.lane.b32.xlu0 %v737, 64
        %v818 = vpop.permute.xlu0 %817
        %819 = vrot.lane.b32.xlu0 %v738, 64
        %v820 = vpop.permute.xlu0 %819
        %821 = vrot.lane.b32.xlu0 %v739, 64
        %v822 = vpop.permute.xlu0 %821
        %823 = vrot.lane.b32.xlu0 %v740, 64
        %v824 = vpop.permute.xlu0 %823
        %825 = vrot.lane.b32.xlu0 %v741, 64
        %v826 = vpop.permute.xlu0 %825
        %827 = vrot.lane.b32.xlu0 %v742, 64
        %v828 = vpop.permute.xlu0 %827
        %829 = vrot.lane.b32.xlu0 %v743, 64
        %v830 = vpop.permute.xlu0 %829
        %831 = vrot.lane.b32.xlu0 %v744, 64
        %v832 = vpop.permute.xlu0 %831
        %833 = vrot.lane.b32.xlu0 %v745, 64
        %v834 = vpop.permute.xlu0 %833
        %835 = vrot.lane.b32.xlu0 %v746, 64
        %v836 = vpop.permute.xlu0 %835
        %837 = vrot.lane.b32.xlu0 %v747, 64
        %v838 = vpop.permute.xlu0 %837
        %839 = vrot.lane.b32.xlu0 %v748, 64
        %v840 = vpop.permute.xlu0 %839
        %841 = vrot.lane.b32.xlu0 %v749, 64
        %v842 = vpop.permute.xlu0 %841
        %843 = vrot.lane.b32.xlu0 %v750, 64
        %v844 = vpop.permute.xlu0 %843
        %845 = vrot.lane.b32.xlu0 %v751, 64
        %v846 = vpop.permute.xlu0 %845
        %847 = vrot.lane.b32.xlu0 %v752, 64
        %v848 = vpop.permute.xlu0 %847
        %v881 = vsel %vm294, %v689, %v786
        %v882 = vsel %vm294, %v690, %v788
        %v883 = vsel %vm294, %v691, %v790
        %v884 = vsel %vm294, %v692, %v792
        %v885 = vsel %vm294, %v693, %v794
        %v886 = vsel %vm294, %v694, %v796
        %v887 = vsel %vm294, %v695, %v798
        %v888 = vsel %vm294, %v696, %v800
        %v889 = vsel %vm294, %v697, %v802
        %v890 = vsel %vm294, %v698, %v804
        %v891 = vsel %vm294, %v699, %v806
        %v892 = vsel %vm294, %v700, %v808
        %v893 = vsel %vm294, %v701, %v810
        %v894 = vsel %vm294, %v702, %v812
        %v895 = vsel %vm294, %v703, %v814
        %v896 = vsel %vm294, %v704, %v816
        %v897 = vsel %vm294, %v705, %v818
        %v898 = vsel %vm294, %v706, %v820
        %v899 = vsel %vm294, %v707, %v822
        %v900 = vsel %vm294, %v708, %v824
        %v901 = vsel %vm294, %v709, %v826
        %v902 = vsel %vm294, %v710, %v828
        %v903 = vsel %vm294, %v711, %v830
        %v904 = vsel %vm294, %v712, %v832
        %v905 = vsel %vm294, %v713, %v834
        %v906 = vsel %vm294, %v714, %v836
        %v907 = vsel %vm294, %v715, %v838
        %v908 = vsel %vm294, %v716, %v840
        %v909 = vsel %vm294, %v717, %v842
        %v910 = vsel %vm294, %v718, %v844
        %v911 = vsel %vm294, %v719, %v846
        %v912 = vsel %vm294, %v720, %v848
        %v913 = vpack.c.bf16 %v881, %v881
        %v914 = vpack.c.bf16 %v882, %v882
        %v915 = vpack.c.bf16 %v883, %v883
        %v916 = vpack.c.bf16 %v884, %v884
        %v917 = vpack.c.bf16 %v885, %v885
        %v918 = vpack.c.bf16 %v886, %v886
        %v919 = vpack.c.bf16 %v887, %v887
        %v920 = vpack.c.bf16 %v888, %v888
        %v921 = vpack.c.bf16 %v889, %v889
        %v922 = vpack.c.bf16 %v890, %v890
        %v923 = vpack.c.bf16 %v891, %v891
        %v924 = vpack.c.bf16 %v892, %v892
        %v925 = vpack.c.bf16 %v893, %v893
        %v926 = vpack.c.bf16 %v894, %v894
        %v927 = vpack.c.bf16 %v895, %v895
        %v928 = vpack.c.bf16 %v896, %v896
        %v929 = vpack.c.bf16 %v897, %v897
        %v930 = vpack.c.bf16 %v898, %v898
        %v931 = vpack.c.bf16 %v899, %v899
        %v932 = vpack.c.bf16 %v900, %v900
        %v933 = vpack.c.bf16 %v901, %v901
        %v934 = vpack.c.bf16 %v902, %v902
        %v935 = vpack.c.bf16 %v903, %v903
        %v936 = vpack.c.bf16 %v904, %v904
        %v937 = vpack.c.bf16 %v905, %v905
        %v938 = vpack.c.bf16 %v906, %v906
        %v939 = vpack.c.bf16 %v907, %v907
        %v940 = vpack.c.bf16 %v908, %v908
        %v941 = vpack.c.bf16 %v909, %v909
        %v942 = vpack.c.bf16 %v910, %v910
        %v943 = vpack.c.bf16 %v911, %v911
        %v944 = vpack.c.bf16 %v912, %v912
        %945 = vst [vmem:[#allocation3 + $0x4] sm:$0xf] %v913
        %946 = vst [vmem:[#allocation3 + $0x18] sm:$0xf] %v914
        %947 = vst [vmem:[#allocation3 + $0x2c] sm:$0xf] %v915
        %948 = vst [vmem:[#allocation3 + $0x40] sm:$0xf] %v916
        %949 = vst [vmem:[#allocation3 + $0x54] sm:$0xf] %v917
        %950 = vst [vmem:[#allocation3 + $0x68] sm:$0xf] %v918
        %951 = vst [vmem:[#allocation3 + $0x7c] sm:$0xf] %v919
        %952 = vst [vmem:[#allocation3 + $0x90] sm:$0xf] %v920
        %953 = vst [vmem:[#allocation3 + $0xa4] sm:$0xf] %v921
        %954 = vst [vmem:[#allocation3 + $0xb8] sm:$0xf] %v922
        %955 = vst [vmem:[#allocation3 + $0xcc] sm:$0xf] %v923
        %956 = vst [vmem:[#allocation3 + $0xe0] sm:$0xf] %v924
        %957 = vst [vmem:[#allocation3 + $0xf4] sm:$0xf] %v925
        %958 = vst [vmem:[#allocation3 + $0x108] sm:$0xf] %v926
        %959 = vst [vmem:[#allocation3 + $0x11c] sm:$0xf] %v927
        %960 = vst [vmem:[#allocation3 + $0x130] sm:$0xf] %v928
        %961 = vst [vmem:[#allocation3 + $0x144] sm:$0xf] %v929
        %962 = vst [vmem:[#allocation3 + $0x158] sm:$0xf] %v930
        %963 = vst [vmem:[#allocation3 + $0x16c] sm:$0xf] %v931
        %964 = vst [vmem:[#allocation3 + $0x180] sm:$0xf] %v932
        %965 = vst [vmem:[#allocation3 + $0x194] sm:$0xf] %v933
        %966 = vst [vmem:[#allocation3 + $0x1a8] sm:$0xf] %v934
        %967 = vst [vmem:[#allocation3 + $0x1bc] sm:$0xf] %v935
        %968 = vst [vmem:[#allocation3 + $0x1d0] sm:$0xf] %v936
        %969 = vst [vmem:[#allocation3 + $0x1e4] sm:$0xf] %v937
        %970 = vst [vmem:[#allocation3 + $0x1f8] sm:$0xf] %v938
        %971 = vst [vmem:[#allocation3 + $0x20c] sm:$0xf] %v939
        %972 = vst [vmem:[#allocation3 + $0x220] sm:$0xf] %v940
        %973 = vst [vmem:[#allocation3 + $0x234] sm:$0xf] %v941
        %974 = vst [vmem:[#allocation3 + $0x248] sm:$0xf] %v942
        %975 = vst [vmem:[#allocation3 + $0x25c] sm:$0xf] %v943
        %976 = vst [vmem:[#allocation3 + $0x270] sm:$0xf] %v944
        %v977 = vld [vmem:[%s303 + $0x2] sm:$0xff]
        %v978 = vld [vmem:[%s303 + $0xa] sm:$0xff]
        %v979 = vld [vmem:[%s303 + $0x1a] sm:$0xff]
        %v980 = vld [vmem:[%s303 + $0x22] sm:$0xff]
        %v981 = vld [vmem:[%s303 + $0x32] sm:$0xff]
        %v982 = vld [vmem:[%s303 + $0x3a] sm:$0xff]
        %v983 = vld [vmem:[%s303 + $0x4a] sm:$0xff]
        %v984 = vld [vmem:[%s303 + $0x52] sm:$0xff]
        %v985 = vld [vmem:[%s303 + $0x62] sm:$0xff]
        %v986 = vld [vmem:[%s303 + $0x6a] sm:$0xff]
        %v987 = vld [vmem:[%s303 + $0x7a] sm:$0xff]
        %v988 = vld [vmem:[%s303 + $0x82] sm:$0xff]
        %v989 = vld [vmem:[%s303 + $0x92] sm:$0xff]
        %v990 = vld [vmem:[%s303 + $0x9a] sm:$0xff]
        %v991 = vld [vmem:[%s303 + $0xaa] sm:$0xff]
        %v992 = vld [vmem:[%s303 + $0xb2] sm:$0xff]
        %v993 = vld [vmem:[%s303 + $0xc2] sm:$0xff]
        %v994 = vld [vmem:[%s303 + $0xca] sm:$0xff]
        %v995 = vld [vmem:[%s303 + $0xda] sm:$0xff]
        %v996 = vld [vmem:[%s303 + $0xe2] sm:$0xff]
        %v997 = vld [vmem:[%s303 + $0xf2] sm:$0xff]
        %v998 = vld [vmem:[%s303 + $0xfa] sm:$0xff]
        %v999 = vld [vmem:[%s303 + $0x10a] sm:$0xff]
        %v1000 = vld [vmem:[%s303 + $0x112] sm:$0xff]
        %v1001 = vld [vmem:[%s303 + $0x122] sm:$0xff]
        %v1002 = vld [vmem:[%s303 + $0x12a] sm:$0xff]
        %v1003 = vld [vmem:[%s303 + $0x13a] sm:$0xff]
        %v1004 = vld [vmem:[%s303 + $0x142] sm:$0xff]
        %v1005 = vld [vmem:[%s303 + $0x152] sm:$0xff]
        %v1006 = vld [vmem:[%s303 + $0x15a] sm:$0xff]
        %v1007 = vld [vmem:[%s303 + $0x16a] sm:$0xff]
        %v1008 = vld [vmem:[%s303 + $0x172] sm:$0xff]
        %1041 = vrot.lane.b32.xlu0 %v977, 64
        %v1042 = vpop.permute.xlu0 %1041
        %1043 = vrot.lane.b32.xlu0 %v978, 64
        %v1044 = vpop.permute.xlu0 %1043
        %1045 = vrot.lane.b32.xlu0 %v979, 64
        %v1046 = vpop.permute.xlu0 %1045
        %1047 = vrot.lane.b32.xlu0 %v980, 64
        %v1048 = vpop.permute.xlu0 %1047
        %1049 = vrot.lane.b32.xlu0 %v981, 64
        %v1050 = vpop.permute.xlu0 %1049
        %1051 = vrot.lane.b32.xlu0 %v982, 64
        %v1052 = vpop.permute.xlu0 %1051
        %1053 = vrot.lane.b32.xlu0 %v983, 64
        %v1054 = vpop.permute.xlu0 %1053
        %1055 = vrot.lane.b32.xlu0 %v984, 64
        %v1056 = vpop.permute.xlu0 %1055
        %1057 = vrot.lane.b32.xlu0 %v985, 64
        %v1058 = vpop.permute.xlu0 %1057
        %1059 = vrot.lane.b32.xlu0 %v986, 64
        %v1060 = vpop.permute.xlu0 %1059
        %1061 = vrot.lane.b32.xlu0 %v987, 64
        %v1062 = vpop.permute.xlu0 %1061
        %1063 = vrot.lane.b32.xlu0 %v988, 64
        %v1064 = vpop.permute.xlu0 %1063
        %1065 = vrot.lane.b32.xlu0 %v989, 64
        %v1066 = vpop.permute.xlu0 %1065
        %1067 = vrot.lane.b32.xlu0 %v990, 64
        %v1068 = vpop.permute.xlu0 %1067
        %1069 = vrot.lane.b32.xlu0 %v991, 64
        %v1070 = vpop.permute.xlu0 %1069
        %1071 = vrot.lane.b32.xlu0 %v992, 64
        %v1072 = vpop.permute.xlu0 %1071
        %1073 = vrot.lane.b32.xlu0 %v993, 64
        %v1074 = vpop.permute.xlu0 %1073
        %1075 = vrot.lane.b32.xlu0 %v994, 64
        %v1076 = vpop.permute.xlu0 %1075
        %1077 = vrot.lane.b32.xlu0 %v995, 64
        %v1078 = vpop.permute.xlu0 %1077
        %1079 = vrot.lane.b32.xlu0 %v996, 64
        %v1080 = vpop.permute.xlu0 %1079
        %1081 = vrot.lane.b32.xlu0 %v997, 64
        %v1082 = vpop.permute.xlu0 %1081
        %1083 = vrot.lane.b32.xlu0 %v998, 64
        %v1084 = vpop.permute.xlu0 %1083
        %1085 = vrot.lane.b32.xlu0 %v999, 64
        %v1086 = vpop.permute.xlu0 %1085
        %1087 = vrot.lane.b32.xlu0 %v1000, 64
        %v1088 = vpop.permute.xlu0 %1087
        %1089 = vrot.lane.b32.xlu0 %v1001, 64
        %v1090 = vpop.permute.xlu0 %1089
        %1091 = vrot.lane.b32.xlu0 %v1002, 64
        %v1092 = vpop.permute.xlu0 %1091
        %1093 = vrot.lane.b32.xlu0 %v1003, 64
        %v1094 = vpop.permute.xlu0 %1093
        %1095 = vrot.lane.b32.xlu0 %v1004, 64
        %v1096 = vpop.permute.xlu0 %1095
        %1097 = vrot.lane.b32.xlu0 %v1005, 64
        %v1098 = vpop.permute.xlu0 %1097
        %1099 = vrot.lane.b32.xlu0 %v1006, 64
        %v1100 = vpop.permute.xlu0 %1099
        %1101 = vrot.lane.b32.xlu0 %v1007, 64
        %v1102 = vpop.permute.xlu0 %1101
        %1103 = vrot.lane.b32.xlu0 %v1008, 64
        %v1104 = vpop.permute.xlu0 %1103
        %v1137 = vsel %vm294, %v337, %v1042
        %v1138 = vsel %vm294, %v338, %v1044
        %v1139 = vsel %vm294, %v339, %v1046
        %v1140 = vsel %vm294, %v340, %v1048
        %v1141 = vsel %vm294, %v341, %v1050
        %v1142 = vsel %vm294, %v342, %v1052
        %v1143 = vsel %vm294, %v343, %v1054
        %v1144 = vsel %vm294, %v344, %v1056
        %v1145 = vsel %vm294, %v345, %v1058
        %v1146 = vsel %vm294, %v346, %v1060
        %v1147 = vsel %vm294, %v347, %v1062
        %v1148 = vsel %vm294, %v348, %v1064
        %v1149 = vsel %vm294, %v349, %v1066
        %v1150 = vsel %vm294, %v350, %v1068
        %v1151 = vsel %vm294, %v351, %v1070
        %v1152 = vsel %vm294, %v352, %v1072
        %v1153 = vsel %vm294, %v353, %v1074
        %v1154 = vsel %vm294, %v354, %v1076
        %v1155 = vsel %vm294, %v355, %v1078
        %v1156 = vsel %vm294, %v356, %v1080
        %v1157 = vsel %vm294, %v357, %v1082
        %v1158 = vsel %vm294, %v358, %v1084
        %v1159 = vsel %vm294, %v359, %v1086
        %v1160 = vsel %vm294, %v360, %v1088
        %v1161 = vsel %vm294, %v361, %v1090
        %v1162 = vsel %vm294, %v362, %v1092
        %v1163 = vsel %vm294, %v363, %v1094
        %v1164 = vsel %vm294, %v364, %v1096
        %v1165 = vsel %vm294, %v365, %v1098
        %v1166 = vsel %vm294, %v366, %v1100
        %v1167 = vsel %vm294, %v367, %v1102
        %v1168 = vsel %vm294, %v368, %v1104
        %v1169 = vpack.c.bf16 %v1137, %v1137
        %v1170 = vpack.c.bf16 %v1138, %v1138
        %v1171 = vpack.c.bf16 %v1139, %v1139
        %v1172 = vpack.c.bf16 %v1140, %v1140
        %v1173 = vpack.c.bf16 %v1141, %v1141
        %v1174 = vpack.c.bf16 %v1142, %v1142
        %v1175 = vpack.c.bf16 %v1143, %v1143
        %v1176 = vpack.c.bf16 %v1144, %v1144
        %v1177 = vpack.c.bf16 %v1145, %v1145
        %v1178 = vpack.c.bf16 %v1146, %v1146
        %v1179 = vpack.c.bf16 %v1147, %v1147
        %v1180 = vpack.c.bf16 %v1148, %v1148
        %v1181 = vpack.c.bf16 %v1149, %v1149
        %v1182 = vpack.c.bf16 %v1150, %v1150
        %v1183 = vpack.c.bf16 %v1151, %v1151
        %v1184 = vpack.c.bf16 %v1152, %v1152
        %v1185 = vpack.c.bf16 %v1153, %v1153
        %v1186 = vpack.c.bf16 %v1154, %v1154
        %v1187 = vpack.c.bf16 %v1155, %v1155
        %v1188 = vpack.c.bf16 %v1156, %v1156
        %v1189 = vpack.c.bf16 %v1157, %v1157
        %v1190 = vpack.c.bf16 %v1158, %v1158
        %v1191 = vpack.c.bf16 %v1159, %v1159
        %v1192 = vpack.c.bf16 %v1160, %v1160
        %v1193 = vpack.c.bf16 %v1161, %v1161
        %v1194 = vpack.c.bf16 %v1162, %v1162
        %v1195 = vpack.c.bf16 %v1163, %v1163
        %v1196 = vpack.c.bf16 %v1164, %v1164
        %v1197 = vpack.c.bf16 %v1165, %v1165
        %v1198 = vpack.c.bf16 %v1166, %v1166
        %v1199 = vpack.c.bf16 %v1167, %v1167
        %v1200 = vpack.c.bf16 %v1168, %v1168
        %1201 = vst [vmem:[#allocation3 + $0x8] sm:$0xf] %v1169
        %1202 = vst [vmem:[#allocation3 + $0x1c] sm:$0xf] %v1170
        %1203 = vst [vmem:[#allocation3 + $0x30] sm:$0xf] %v1171
        %1204 = vst [vmem:[#allocation3 + $0x44] sm:$0xf] %v1172
        %1205 = vst [vmem:[#allocation3 + $0x58] sm:$0xf] %v1173
        %1206 = vst [vmem:[#allocation3 + $0x6c] sm:$0xf] %v1174
        %1207 = vst [vmem:[#allocation3 + $0x80] sm:$0xf] %v1175
        %1208 = vst [vmem:[#allocation3 + $0x94] sm:$0xf] %v1176
        %1209 = vst [vmem:[#allocation3 + $0xa8] sm:$0xf] %v1177
        %1210 = vst [vmem:[#allocation3 + $0xbc] sm:$0xf] %v1178
        %1211 = vst [vmem:[#allocation3 + $0xd0] sm:$0xf] %v1179
        %1212 = vst [vmem:[#allocation3 + $0xe4] sm:$0xf] %v1180
        %1213 = vst [vmem:[#allocation3 + $0xf8] sm:$0xf] %v1181
        %1214 = vst [vmem:[#allocation3 + $0x10c] sm:$0xf] %v1182
        %1215 = vst [vmem:[#allocation3 + $0x120] sm:$0xf] %v1183
        %1216 = vst [vmem:[#allocation3 + $0x134] sm:$0xf] %v1184
        %1217 = vst [vmem:[#allocation3 + $0x148] sm:$0xf] %v1185
        %1218 = vst [vmem:[#allocation3 + $0x15c] sm:$0xf] %v1186
        %1219 = vst [vmem:[#allocation3 + $0x170] sm:$0xf] %v1187
        %1220 = vst [vmem:[#allocation3 + $0x184] sm:$0xf] %v1188
        %1221 = vst [vmem:[#allocation3 + $0x198] sm:$0xf] %v1189
        %1222 = vst [vmem:[#allocation3 + $0x1ac] sm:$0xf] %v1190
        %1223 = vst [vmem:[#allocation3 + $0x1c0] sm:$0xf] %v1191
        %1224 = vst [vmem:[#allocation3 + $0x1d4] sm:$0xf] %v1192
        %1225 = vst [vmem:[#allocation3 + $0x1e8] sm:$0xf] %v1193
        %1226 = vst [vmem:[#allocation3 + $0x1fc] sm:$0xf] %v1194
        %1227 = vst [vmem:[#allocation3 + $0x210] sm:$0xf] %v1195
        %1228 = vst [vmem:[#allocation3 + $0x224] sm:$0xf] %v1196
        %1229 = vst [vmem:[#allocation3 + $0x238] sm:$0xf] %v1197
        %1230 = vst [vmem:[#allocation3 + $0x24c] sm:$0xf] %v1198
        %1231 = vst [vmem:[#allocation3 + $0x260] sm:$0xf] %v1199
        %1232 = vst [vmem:[#allocation3 + $0x274] sm:$0xf] %v1200
        %s1233 = scalar_lea.vmem [#allocation2], 48
        %v1234 = vld [vmem:[%s1233] sm:$0xff]
        %v1235 = vld [vmem:[%s1233 + $0x8] sm:$0xff]
        %v1236 = vld [vmem:[%s1233 + $0x18] sm:$0xff]
        %v1237 = vld [vmem:[%s1233 + $0x20] sm:$0xff]
        %v1238 = vld [vmem:[%s1233 + $0x30] sm:$0xff]
        %v1239 = vld [vmem:[%s1233 + $0x38] sm:$0xff]
        %v1240 = vld [vmem:[%s1233 + $0x48] sm:$0xff]
        %v1241 = vld [vmem:[%s1233 + $0x50] sm:$0xff]
        %v1242 = vld [vmem:[%s1233 + $0x60] sm:$0xff]
        %v1243 = vld [vmem:[%s1233 + $0x68] sm:$0xff]
        %v1244 = vld [vmem:[%s1233 + $0x78] sm:$0xff]
        %v1245 = vld [vmem:[%s1233 + $0x80] sm:$0xff]
        %v1246 = vld [vmem:[%s1233 + $0x90] sm:$0xff]
        %v1247 = vld [vmem:[%s1233 + $0x98] sm:$0xff]
        %v1248 = vld [vmem:[%s1233 + $0xa8] sm:$0xff]
        %v1249 = vld [vmem:[%s1233 + $0xb0] sm:$0xff]
        %v1250 = vld [vmem:[%s1233 + $0xc0] sm:$0xff]
        %v1251 = vld [vmem:[%s1233 + $0xc8] sm:$0xff]
        %v1252 = vld [vmem:[%s1233 + $0xd8] sm:$0xff]
        %v1253 = vld [vmem:[%s1233 + $0xe0] sm:$0xff]
        %v1254 = vld [vmem:[%s1233 + $0xf0] sm:$0xff]
        %v1255 = vld [vmem:[%s1233 + $0xf8] sm:$0xff]
        %v1256 = vld [vmem:[%s1233 + $0x108] sm:$0xff]
        %v1257 = vld [vmem:[%s1233 + $0x110] sm:$0xff]
        %v1258 = vld [vmem:[%s1233 + $0x120] sm:$0xff]
        %v1259 = vld [vmem:[%s1233 + $0x128] sm:$0xff]
        %v1260 = vld [vmem:[%s1233 + $0x138] sm:$0xff]
        %v1261 = vld [vmem:[%s1233 + $0x140] sm:$0xff]
        %v1262 = vld [vmem:[%s1233 + $0x150] sm:$0xff]
        %v1263 = vld [vmem:[%s1233 + $0x158] sm:$0xff]
        %v1264 = vld [vmem:[%s1233 + $0x168] sm:$0xff]
        %v1265 = vld [vmem:[%s1233 + $0x170] sm:$0xff]
        %v1266 = vld [vmem:[%s1233 + $0x1] sm:$0xff]
        %v1267 = vld [vmem:[%s1233 + $0x9] sm:$0xff]
        %v1268 = vld [vmem:[%s1233 + $0x19] sm:$0xff]
        %v1269 = vld [vmem:[%s1233 + $0x21] sm:$0xff]
        %v1270 = vld [vmem:[%s1233 + $0x31] sm:$0xff]
        %v1271 = vld [vmem:[%s1233 + $0x39] sm:$0xff]
        %v1272 = vld [vmem:[%s1233 + $0x49] sm:$0xff]
        %v1273 = vld [vmem:[%s1233 + $0x51] sm:$0xff]
        %v1274 = vld [vmem:[%s1233 + $0x61] sm:$0xff]
        %v1275 = vld [vmem:[%s1233 + $0x69] sm:$0xff]
        %v1276 = vld [vmem:[%s1233 + $0x79] sm:$0xff]
        %v1277 = vld [vmem:[%s1233 + $0x81] sm:$0xff]
        %v1278 = vld [vmem:[%s1233 + $0x91] sm:$0xff]
        %v1279 = vld [vmem:[%s1233 + $0x99] sm:$0xff]
        %v1280 = vld [vmem:[%s1233 + $0xa9] sm:$0xff]
        %v1281 = vld [vmem:[%s1233 + $0xb1] sm:$0xff]
        %v1282 = vld [vmem:[%s1233 + $0xc1] sm:$0xff]
        %v1283 = vld [vmem:[%s1233 + $0xc9] sm:$0xff]
        %v1284 = vld [vmem:[%s1233 + $0xd9] sm:$0xff]
        %v1285 = vld [vmem:[%s1233 + $0xe1] sm:$0xff]
        %v1286 = vld [vmem:[%s1233 + $0xf1] sm:$0xff]
        %v1287 = vld [vmem:[%s1233 + $0xf9] sm:$0xff]
        %v1288 = vld [vmem:[%s1233 + $0x109] sm:$0xff]
        %v1289 = vld [vmem:[%s1233 + $0x111] sm:$0xff]
        %v1290 = vld [vmem:[%s1233 + $0x121] sm:$0xff]
        %v1291 = vld [vmem:[%s1233 + $0x129] sm:$0xff]
        %v1292 = vld [vmem:[%s1233 + $0x139] sm:$0xff]
        %v1293 = vld [vmem:[%s1233 + $0x141] sm:$0xff]
        %v1294 = vld [vmem:[%s1233 + $0x151] sm:$0xff]
        %v1295 = vld [vmem:[%s1233 + $0x159] sm:$0xff]
        %v1296 = vld [vmem:[%s1233 + $0x169] sm:$0xff]
        %v1297 = vld [vmem:[%s1233 + $0x171] sm:$0xff]
        %1330 = vrot.lane.b32.xlu0 %v1266, 64
        %v1331 = vpop.permute.xlu0 %1330
        %1332 = vrot.lane.b32.xlu0 %v1267, 64
        %v1333 = vpop.permute.xlu0 %1332
        %1334 = vrot.lane.b32.xlu0 %v1268, 64
        %v1335 = vpop.permute.xlu0 %1334
        %1336 = vrot.lane.b32.xlu0 %v1269, 64
        %v1337 = vpop.permute.xlu0 %1336
        %1338 = vrot.lane.b32.xlu0 %v1270, 64
        %v1339 = vpop.permute.xlu0 %1338
        %1340 = vrot.lane.b32.xlu0 %v1271, 64
        %v1341 = vpop.permute.xlu0 %1340
        %1342 = vrot.lane.b32.xlu0 %v1272, 64
        %v1343 = vpop.permute.xlu0 %1342
        %1344 = vrot.lane.b32.xlu0 %v1273, 64
        %v1345 = vpop.permute.xlu0 %1344
        %1346 = vrot.lane.b32.xlu0 %v1274, 64
        %v1347 = vpop.permute.xlu0 %1346
        %1348 = vrot.lane.b32.xlu0 %v1275, 64
        %v1349 = vpop.permute.xlu0 %1348
        %1350 = vrot.lane.b32.xlu0 %v1276, 64
        %v1351 = vpop.permute.xlu0 %1350
        %1352 = vrot.lane.b32.xlu0 %v1277, 64
        %v1353 = vpop.permute.xlu0 %1352
        %1354 = vrot.lane.b32.xlu0 %v1278, 64
        %v1355 = vpop.permute.xlu0 %1354
        %1356 = vrot.lane.b32.xlu0 %v1279, 64
        %v1357 = vpop.permute.xlu0 %1356
        %1358 = vrot.lane.b32.xlu0 %v1280, 64
        %v1359 = vpop.permute.xlu0 %1358
        %1360 = vrot.lane.b32.xlu0 %v1281, 64
        %v1361 = vpop.permute.xlu0 %1360
        %1362 = vrot.lane.b32.xlu0 %v1282, 64
        %v1363 = vpop.permute.xlu0 %1362
        %1364 = vrot.lane.b32.xlu0 %v1283, 64
        %v1365 = vpop.permute.xlu0 %1364
        %1366 = vrot.lane.b32.xlu0 %v1284, 64
        %v1367 = vpop.permute.xlu0 %1366
        %1368 = vrot.lane.b32.xlu0 %v1285, 64
        %v1369 = vpop.permute.xlu0 %1368
        %1370 = vrot.lane.b32.xlu0 %v1286, 64
        %v1371 = vpop.permute.xlu0 %1370
        %1372 = vrot.lane.b32.xlu0 %v1287, 64
        %v1373 = vpop.permute.xlu0 %1372
        %1374 = vrot.lane.b32.xlu0 %v1288, 64
        %v1375 = vpop.permute.xlu0 %1374
        %1376 = vrot.lane.b32.xlu0 %v1289, 64
        %v1377 = vpop.permute.xlu0 %1376
        %1378 = vrot.lane.b32.xlu0 %v1290, 64
        %v1379 = vpop.permute.xlu0 %1378
        %1380 = vrot.lane.b32.xlu0 %v1291, 64
        %v1381 = vpop.permute.xlu0 %1380
        %1382 = vrot.lane.b32.xlu0 %v1292, 64
        %v1383 = vpop.permute.xlu0 %1382
        %1384 = vrot.lane.b32.xlu0 %v1293, 64
        %v1385 = vpop.permute.xlu0 %1384
        %1386 = vrot.lane.b32.xlu0 %v1294, 64
        %v1387 = vpop.permute.xlu0 %1386
        %1388 = vrot.lane.b32.xlu0 %v1295, 64
        %v1389 = vpop.permute.xlu0 %1388
        %1390 = vrot.lane.b32.xlu0 %v1296, 64
        %v1391 = vpop.permute.xlu0 %1390
        %1392 = vrot.lane.b32.xlu0 %v1297, 64
        %v1393 = vpop.permute.xlu0 %1392
        %v1426 = vsel %vm294, %v1234, %v1331
        %v1427 = vsel %vm294, %v1235, %v1333
        %v1428 = vsel %vm294, %v1236, %v1335
        %v1429 = vsel %vm294, %v1237, %v1337
        %v1430 = vsel %vm294, %v1238, %v1339
        %v1431 = vsel %vm294, %v1239, %v1341
        %v1432 = vsel %vm294, %v1240, %v1343
        %v1433 = vsel %vm294, %v1241, %v1345
        %v1434 = vsel %vm294, %v1242, %v1347
        %v1435 = vsel %vm294, %v1243, %v1349
        %v1436 = vsel %vm294, %v1244, %v1351
        %v1437 = vsel %vm294, %v1245, %v1353
        %v1438 = vsel %vm294, %v1246, %v1355
        %v1439 = vsel %vm294, %v1247, %v1357
        %v1440 = vsel %vm294, %v1248, %v1359
        %v1441 = vsel %vm294, %v1249, %v1361
        %v1442 = vsel %vm294, %v1250, %v1363
        %v1443 = vsel %vm294, %v1251, %v1365
        %v1444 = vsel %vm294, %v1252, %v1367
        %v1445 = vsel %vm294, %v1253, %v1369
        %v1446 = vsel %vm294, %v1254, %v1371
        %v1447 = vsel %vm294, %v1255, %v1373
        %v1448 = vsel %vm294, %v1256, %v1375
        %v1449 = vsel %vm294, %v1257, %v1377
        %v1450 = vsel %vm294, %v1258, %v1379
        %v1451 = vsel %vm294, %v1259, %v1381
        %v1452 = vsel %vm294, %v1260, %v1383
        %v1453 = vsel %vm294, %v1261, %v1385
        %v1454 = vsel %vm294, %v1262, %v1387
        %v1455 = vsel %vm294, %v1263, %v1389
        %v1456 = vsel %vm294, %v1264, %v1391
        %v1457 = vsel %vm294, %v1265, %v1393
        %v1458 = vpack.c.bf16 %v1426, %v1426
        %v1459 = vpack.c.bf16 %v1427, %v1427
        %v1460 = vpack.c.bf16 %v1428, %v1428
        %v1461 = vpack.c.bf16 %v1429, %v1429
        %v1462 = vpack.c.bf16 %v1430, %v1430
        %v1463 = vpack.c.bf16 %v1431, %v1431
        %v1464 = vpack.c.bf16 %v1432, %v1432
        %v1465 = vpack.c.bf16 %v1433, %v1433
        %v1466 = vpack.c.bf16 %v1434, %v1434
        %v1467 = vpack.c.bf16 %v1435, %v1435
        %v1468 = vpack.c.bf16 %v1436, %v1436
        %v1469 = vpack.c.bf16 %v1437, %v1437
        %v1470 = vpack.c.bf16 %v1438, %v1438
        %v1471 = vpack.c.bf16 %v1439, %v1439
        %v1472 = vpack.c.bf16 %v1440, %v1440
        %v1473 = vpack.c.bf16 %v1441, %v1441
        %v1474 = vpack.c.bf16 %v1442, %v1442
        %v1475 = vpack.c.bf16 %v1443, %v1443
        %v1476 = vpack.c.bf16 %v1444, %v1444
        %v1477 = vpack.c.bf16 %v1445, %v1445
        %v1478 = vpack.c.bf16 %v1446, %v1446
        %v1479 = vpack.c.bf16 %v1447, %v1447
        %v1480 = vpack.c.bf16 %v1448, %v1448
        %v1481 = vpack.c.bf16 %v1449, %v1449
        %v1482 = vpack.c.bf16 %v1450, %v1450
        %v1483 = vpack.c.bf16 %v1451, %v1451
        %v1484 = vpack.c.bf16 %v1452, %v1452
        %v1485 = vpack.c.bf16 %v1453, %v1453
        %v1486 = vpack.c.bf16 %v1454, %v1454
        %v1487 = vpack.c.bf16 %v1455, %v1455
        %v1488 = vpack.c.bf16 %v1456, %v1456
        %v1489 = vpack.c.bf16 %v1457, %v1457
        %1490 = vst [vmem:[#allocation3 + $0xc] sm:$0xf] %v1458
        %1491 = vst [vmem:[#allocation3 + $0x20] sm:$0xf] %v1459
        %1492 = vst [vmem:[#allocation3 + $0x34] sm:$0xf] %v1460
        %1493 = vst [vmem:[#allocation3 + $0x48] sm:$0xf] %v1461
        %1494 = vst [vmem:[#allocation3 + $0x5c] sm:$0xf] %v1462
        %1495 = vst [vmem:[#allocation3 + $0x70] sm:$0xf] %v1463
        %1496 = vst [vmem:[#allocation3 + $0x84] sm:$0xf] %v1464
        %1497 = vst [vmem:[#allocation3 + $0x98] sm:$0xf] %v1465
        %1498 = vst [vmem:[#allocation3 + $0xac] sm:$0xf] %v1466
        %1499 = vst [vmem:[#allocation3 + $0xc0] sm:$0xf] %v1467
        %1500 = vst [vmem:[#allocation3 + $0xd4] sm:$0xf] %v1468
        %1501 = vst [vmem:[#allocation3 + $0xe8] sm:$0xf] %v1469
        %1502 = vst [vmem:[#allocation3 + $0xfc] sm:$0xf] %v1470
        %1503 = vst [vmem:[#allocation3 + $0x110] sm:$0xf] %v1471
        %1504 = vst [vmem:[#allocation3 + $0x124] sm:$0xf] %v1472
        %1505 = vst [vmem:[#allocation3 + $0x138] sm:$0xf] %v1473
        %1506 = vst [vmem:[#allocation3 + $0x14c] sm:$0xf] %v1474
        %1507 = vst [vmem:[#allocation3 + $0x160] sm:$0xf] %v1475
        %1508 = vst [vmem:[#allocation3 + $0x174] sm:$0xf] %v1476
        %1509 = vst [vmem:[#allocation3 + $0x188] sm:$0xf] %v1477
        %1510 = vst [vmem:[#allocation3 + $0x19c] sm:$0xf] %v1478
        %1511 = vst [vmem:[#allocation3 + $0x1b0] sm:$0xf] %v1479
        %1512 = vst [vmem:[#allocation3 + $0x1c4] sm:$0xf] %v1480
        %1513 = vst [vmem:[#allocation3 + $0x1d8] sm:$0xf] %v1481
        %1514 = vst [vmem:[#allocation3 + $0x1ec] sm:$0xf] %v1482
        %1515 = vst [vmem:[#allocation3 + $0x200] sm:$0xf] %v1483
        %1516 = vst [vmem:[#allocation3 + $0x214] sm:$0xf] %v1484
        %1517 = vst [vmem:[#allocation3 + $0x228] sm:$0xf] %v1485
        %1518 = vst [vmem:[#allocation3 + $0x23c] sm:$0xf] %v1486
        %1519 = vst [vmem:[#allocation3 + $0x250] sm:$0xf] %v1487
        %1520 = vst [vmem:[#allocation3 + $0x264] sm:$0xf] %v1488
        %1521 = vst [vmem:[#allocation3 + $0x278] sm:$0xf] %v1489
        %v1522 = vld [vmem:[%s1233 + $0x2] sm:$0xff]
        %v1523 = vld [vmem:[%s1233 + $0xa] sm:$0xff]
        %v1524 = vld [vmem:[%s1233 + $0x1a] sm:$0xff]
        %v1525 = vld [vmem:[%s1233 + $0x22] sm:$0xff]
        %v1526 = vld [vmem:[%s1233 + $0x32] sm:$0xff]
        %v1527 = vld [vmem:[%s1233 + $0x3a] sm:$0xff]
        %v1528 = vld [vmem:[%s1233 + $0x4a] sm:$0xff]
        %v1529 = vld [vmem:[%s1233 + $0x52] sm:$0xff]
        %v1530 = vld [vmem:[%s1233 + $0x62] sm:$0xff]
        %v1531 = vld [vmem:[%s1233 + $0x6a] sm:$0xff]
        %v1532 = vld [vmem:[%s1233 + $0x7a] sm:$0xff]
        %v1533 = vld [vmem:[%s1233 + $0x82] sm:$0xff]
        %v1534 = vld [vmem:[%s1233 + $0x92] sm:$0xff]
        %v1535 = vld [vmem:[%s1233 + $0x9a] sm:$0xff]
        %v1536 = vld [vmem:[%s1233 + $0xaa] sm:$0xff]
        %v1537 = vld [vmem:[%s1233 + $0xb2] sm:$0xff]
        %v1538 = vld [vmem:[%s1233 + $0xc2] sm:$0xff]
        %v1539 = vld [vmem:[%s1233 + $0xca] sm:$0xff]
        %v1540 = vld [vmem:[%s1233 + $0xda] sm:$0xff]
        %v1541 = vld [vmem:[%s1233 + $0xe2] sm:$0xff]
        %v1542 = vld [vmem:[%s1233 + $0xf2] sm:$0xff]
        %v1543 = vld [vmem:[%s1233 + $0xfa] sm:$0xff]
        %v1544 = vld [vmem:[%s1233 + $0x10a] sm:$0xff]
        %v1545 = vld [vmem:[%s1233 + $0x112] sm:$0xff]
        %v1546 = vld [vmem:[%s1233 + $0x122] sm:$0xff]
        %v1547 = vld [vmem:[%s1233 + $0x12a] sm:$0xff]
        %v1548 = vld [vmem:[%s1233 + $0x13a] sm:$0xff]
        %v1549 = vld [vmem:[%s1233 + $0x142] sm:$0xff]
        %v1550 = vld [vmem:[%s1233 + $0x152] sm:$0xff]
        %v1551 = vld [vmem:[%s1233 + $0x15a] sm:$0xff]
        %v1552 = vld [vmem:[%s1233 + $0x16a] sm:$0xff]
        %v1553 = vld [vmem:[%s1233 + $0x172] sm:$0xff]
        %1586 = vrot.lane.b32.xlu0 %v337, 64
        %v1587 = vpop.permute.xlu0 %1586
        %1588 = vrot.lane.b32.xlu0 %v338, 64
        %v1589 = vpop.permute.xlu0 %1588
        %1590 = vrot.lane.b32.xlu0 %v339, 64
        %v1591 = vpop.permute.xlu0 %1590
        %1592 = vrot.lane.b32.xlu0 %v340, 64
        %v1593 = vpop.permute.xlu0 %1592
        %1594 = vrot.lane.b32.xlu0 %v341, 64
        %v1595 = vpop.permute.xlu0 %1594
        %1596 = vrot.lane.b32.xlu0 %v342, 64
        %v1597 = vpop.permute.xlu0 %1596
        %1598 = vrot.lane.b32.xlu0 %v343, 64
        %v1599 = vpop.permute.xlu0 %1598
        %1600 = vrot.lane.b32.xlu0 %v344, 64
        %v1601 = vpop.permute.xlu0 %1600
        %1602 = vrot.lane.b32.xlu0 %v345, 64
        %v1603 = vpop.permute.xlu0 %1602
        %1604 = vrot.lane.b32.xlu0 %v346, 64
        %v1605 = vpop.permute.xlu0 %1604
        %1606 = vrot.lane.b32.xlu0 %v347, 64
        %v1607 = vpop.permute.xlu0 %1606
        %1608 = vrot.lane.b32.xlu0 %v348, 64
        %v1609 = vpop.permute.xlu0 %1608
        %1610 = vrot.lane.b32.xlu0 %v349, 64
        %v1611 = vpop.permute.xlu0 %1610
        %1612 = vrot.lane.b32.xlu0 %v350, 64
        %v1613 = vpop.permute.xlu0 %1612
        %1614 = vrot.lane.b32.xlu0 %v351, 64
        %v1615 = vpop.permute.xlu0 %1614
        %1616 = vrot.lane.b32.xlu0 %v352, 64
        %v1617 = vpop.permute.xlu0 %1616
        %1618 = vrot.lane.b32.xlu0 %v353, 64
        %v1619 = vpop.permute.xlu0 %1618
        %1620 = vrot.lane.b32.xlu0 %v354, 64
        %v1621 = vpop.permute.xlu0 %1620
        %1622 = vrot.lane.b32.xlu0 %v355, 64
        %v1623 = vpop.permute.xlu0 %1622
        %1624 = vrot.lane.b32.xlu0 %v356, 64
        %v1625 = vpop.permute.xlu0 %1624
        %1626 = vrot.lane.b32.xlu0 %v357, 64
        %v1627 = vpop.permute.xlu0 %1626
        %1628 = vrot.lane.b32.xlu0 %v358, 64
        %v1629 = vpop.permute.xlu0 %1628
        %1630 = vrot.lane.b32.xlu0 %v359, 64
        %v1631 = vpop.permute.xlu0 %1630
        %1632 = vrot.lane.b32.xlu0 %v360, 64
        %v1633 = vpop.permute.xlu0 %1632
        %1634 = vrot.lane.b32.xlu0 %v361, 64
        %v1635 = vpop.permute.xlu0 %1634
        %1636 = vrot.lane.b32.xlu0 %v362, 64
        %v1637 = vpop.permute.xlu0 %1636
        %1638 = vrot.lane.b32.xlu0 %v363, 64
        %v1639 = vpop.permute.xlu0 %1638
        %1640 = vrot.lane.b32.xlu0 %v364, 64
        %v1641 = vpop.permute.xlu0 %1640
        %1642 = vrot.lane.b32.xlu0 %v365, 64
        %v1643 = vpop.permute.xlu0 %1642
        %1644 = vrot.lane.b32.xlu0 %v366, 64
        %v1645 = vpop.permute.xlu0 %1644
        %1646 = vrot.lane.b32.xlu0 %v367, 64
        %v1647 = vpop.permute.xlu0 %1646
        %1648 = vrot.lane.b32.xlu0 %v368, 64
        %v1649 = vpop.permute.xlu0 %1648
        %v1682 = vsel %vm294, %v1522, %v1587
        %v1683 = vsel %vm294, %v1523, %v1589
        %v1684 = vsel %vm294, %v1524, %v1591
        %v1685 = vsel %vm294, %v1525, %v1593
        %v1686 = vsel %vm294, %v1526, %v1595
        %v1687 = vsel %vm294, %v1527, %v1597
        %v1688 = vsel %vm294, %v1528, %v1599
        %v1689 = vsel %vm294, %v1529, %v1601
        %v1690 = vsel %vm294, %v1530, %v1603
        %v1691 = vsel %vm294, %v1531, %v1605
        %v1692 = vsel %vm294, %v1532, %v1607
        %v1693 = vsel %vm294, %v1533, %v1609
        %v1694 = vsel %vm294, %v1534, %v1611
        %v1695 = vsel %vm294, %v1535, %v1613
        %v1696 = vsel %vm294, %v1536, %v1615
        %v1697 = vsel %vm294, %v1537, %v1617
        %v1698 = vsel %vm294, %v1538, %v1619
        %v1699 = vsel %vm294, %v1539, %v1621
        %v1700 = vsel %vm294, %v1540, %v1623
        %v1701 = vsel %vm294, %v1541, %v1625
        %v1702 = vsel %vm294, %v1542, %v1627
        %v1703 = vsel %vm294, %v1543, %v1629
        %v1704 = vsel %vm294, %v1544, %v1631
        %v1705 = vsel %vm294, %v1545, %v1633
        %v1706 = vsel %vm294, %v1546, %v1635
        %v1707 = vsel %vm294, %v1547, %v1637
        %v1708 = vsel %vm294, %v1548, %v1639
        %v1709 = vsel %vm294, %v1549, %v1641
        %v1710 = vsel %vm294, %v1550, %v1643
        %v1711 = vsel %vm294, %v1551, %v1645
        %v1712 = vsel %vm294, %v1552, %v1647
        %v1713 = vsel %vm294, %v1553, %v1649
        %v1714 = vpack.c.bf16 %v1682, %v1682
        %v1715 = vpack.c.bf16 %v1683, %v1683
        %v1716 = vpack.c.bf16 %v1684, %v1684
        %v1717 = vpack.c.bf16 %v1685, %v1685
        %v1718 = vpack.c.bf16 %v1686, %v1686
        %v1719 = vpack.c.bf16 %v1687, %v1687
        %v1720 = vpack.c.bf16 %v1688, %v1688
        %v1721 = vpack.c.bf16 %v1689, %v1689
        %v1722 = vpack.c.bf16 %v1690, %v1690
        %v1723 = vpack.c.bf16 %v1691, %v1691
        %v1724 = vpack.c.bf16 %v1692, %v1692
        %v1725 = vpack.c.bf16 %v1693, %v1693
        %v1726 = vpack.c.bf16 %v1694, %v1694
        %v1727 = vpack.c.bf16 %v1695, %v1695
        %v1728 = vpack.c.bf16 %v1696, %v1696
        %v1729 = vpack.c.bf16 %v1697, %v1697
        %v1730 = vpack.c.bf16 %v1698, %v1698
        %v1731 = vpack.c.bf16 %v1699, %v1699
        %v1732 = vpack.c.bf16 %v1700, %v1700
        %v1733 = vpack.c.bf16 %v1701, %v1701
        %v1734 = vpack.c.bf16 %v1702, %v1702
        %v1735 = vpack.c.bf16 %v1703, %v1703
        %v1736 = vpack.c.bf16 %v1704, %v1704
        %v1737 = vpack.c.bf16 %v1705, %v1705
        %v1738 = vpack.c.bf16 %v1706, %v1706
        %v1739 = vpack.c.bf16 %v1707, %v1707
        %v1740 = vpack.c.bf16 %v1708, %v1708
        %v1741 = vpack.c.bf16 %v1709, %v1709
        %v1742 = vpack.c.bf16 %v1710, %v1710
        %v1743 = vpack.c.bf16 %v1711, %v1711
        %v1744 = vpack.c.bf16 %v1712, %v1712
        %v1745 = vpack.c.bf16 %v1713, %v1713
        %1746 = vst [vmem:[#allocation3 + $0x10] sm:$0xf] %v1714
        %1747 = vst [vmem:[#allocation3 + $0x24] sm:$0xf] %v1715
        %1748 = vst [vmem:[#allocation3 + $0x38] sm:$0xf] %v1716
        %1749 = vst [vmem:[#allocation3 + $0x4c] sm:$0xf] %v1717
        %1750 = vst [vmem:[#allocation3 + $0x60] sm:$0xf] %v1718
        %1751 = vst [vmem:[#allocation3 + $0x74] sm:$0xf] %v1719
        %1752 = vst [vmem:[#allocation3 + $0x88] sm:$0xf] %v1720
        %1753 = vst [vmem:[#allocation3 + $0x9c] sm:$0xf] %v1721
        %1754 = vst [vmem:[#allocation3 + $0xb0] sm:$0xf] %v1722
        %1755 = vst [vmem:[#allocation3 + $0xc4] sm:$0xf] %v1723
        %1756 = vst [vmem:[#allocation3 + $0xd8] sm:$0xf] %v1724
        %1757 = vst [vmem:[#allocation3 + $0xec] sm:$0xf] %v1725
        %1758 = vst [vmem:[#allocation3 + $0x100] sm:$0xf] %v1726
        %1759 = vst [vmem:[#allocation3 + $0x114] sm:$0xf] %v1727
        %1760 = vst [vmem:[#allocation3 + $0x128] sm:$0xf] %v1728
        %1761 = vst [vmem:[#allocation3 + $0x13c] sm:$0xf] %v1729
        %1762 = vst [vmem:[#allocation3 + $0x150] sm:$0xf] %v1730
        %1763 = vst [vmem:[#allocation3 + $0x164] sm:$0xf] %v1731
        %1764 = vst [vmem:[#allocation3 + $0x178] sm:$0xf] %v1732
        %1765 = vst [vmem:[#allocation3 + $0x18c] sm:$0xf] %v1733
        %1766 = vst [vmem:[#allocation3 + $0x1a0] sm:$0xf] %v1734
        %1767 = vst [vmem:[#allocation3 + $0x1b4] sm:$0xf] %v1735
        %1768 = vst [vmem:[#allocation3 + $0x1c8] sm:$0xf] %v1736
        %1769 = vst [vmem:[#allocation3 + $0x1dc] sm:$0xf] %v1737
        %1770 = vst [vmem:[#allocation3 + $0x1f0] sm:$0xf] %v1738
        %1771 = vst [vmem:[#allocation3 + $0x204] sm:$0xf] %v1739
        %1772 = vst [vmem:[#allocation3 + $0x218] sm:$0xf] %v1740
        %1773 = vst [vmem:[#allocation3 + $0x22c] sm:$0xf] %v1741
        %1774 = vst [vmem:[#allocation3 + $0x240] sm:$0xf] %v1742
        %1775 = vst [vmem:[#allocation3 + $0x254] sm:$0xf] %v1743
        %1776 = vst [vmem:[#allocation3 + $0x268] sm:$0xf] %v1744
        %1777 = vst [vmem:[#allocation3 + $0x27c] sm:$0xf] %v1745
        %v1778 = vld [vmem:[#allocation3] sm:$0xff]
        %v1779 = vld [vmem:[#allocation3 + $0x8] sm:$0xff]
        %v1780 = vld [vmem:[#allocation3 + $0x10] sm:$0xf]
        %v1781 = vld [vmem:[#allocation3 + $0x14] sm:$0xff]
        %v1782 = vld [vmem:[#allocation3 + $0x1c] sm:$0xff]
        %v1783 = vld [vmem:[#allocation3 + $0x24] sm:$0xf]
        %v1784 = vld [vmem:[#allocation3 + $0x28] sm:$0xff]
        %v1785 = vld [vmem:[#allocation3 + $0x30] sm:$0xff]
        %v1786 = vld [vmem:[#allocation3 + $0x38] sm:$0xf]
        %v1787 = vld [vmem:[#allocation3 + $0x3c] sm:$0xff]
        %v1788 = vld [vmem:[#allocation3 + $0x44] sm:$0xff]
        %v1789 = vld [vmem:[#allocation3 + $0x4c] sm:$0xf]
        %v1790 = vld [vmem:[#allocation3 + $0x50] sm:$0xff]
        %v1791 = vld [vmem:[#allocation3 + $0x58] sm:$0xff]
        %v1792 = vld [vmem:[#allocation3 + $0x60] sm:$0xf]
        %v1793 = vld [vmem:[#allocation3 + $0x64] sm:$0xff]
        %v1794 = vld [vmem:[#allocation3 + $0x6c] sm:$0xff]
        %v1795 = vld [vmem:[#allocation3 + $0x74] sm:$0xf]
        %v1796 = vld [vmem:[#allocation3 + $0x78] sm:$0xff]
        %v1797 = vld [vmem:[#allocation3 + $0x80] sm:$0xff]
        %v1798 = vld [vmem:[#allocation3 + $0x88] sm:$0xf]
        %v1799 = vld [vmem:[#allocation3 + $0x8c] sm:$0xff]
        %v1800 = vld [vmem:[#allocation3 + $0x94] sm:$0xff]
        %v1801 = vld [vmem:[#allocation3 + $0x9c] sm:$0xf]
        %v1802 = vld [vmem:[#allocation3 + $0xa0] sm:$0xff]
        %v1803 = vld [vmem:[#allocation3 + $0xa8] sm:$0xff]
        %v1804 = vld [vmem:[#allocation3 + $0xb0] sm:$0xf]
        %v1805 = vld [vmem:[#allocation3 + $0xb4] sm:$0xff]
        %v1806 = vld [vmem:[#allocation3 + $0xbc] sm:$0xff]
        %v1807 = vld [vmem:[#allocation3 + $0xc4] sm:$0xf]
        %v1808 = vld [vmem:[#allocation3 + $0xc8] sm:$0xff]
        %v1809 = vld [vmem:[#allocation3 + $0xd0] sm:$0xff]
        %v1810 = vld [vmem:[#allocation3 + $0xd8] sm:$0xf]
        %v1811 = vld [vmem:[#allocation3 + $0xdc] sm:$0xff]
        %v1812 = vld [vmem:[#allocation3 + $0xe4] sm:$0xff]
        %v1813 = vld [vmem:[#allocation3 + $0xec] sm:$0xf]
        %v1814 = vld [vmem:[#allocation3 + $0xf0] sm:$0xff]
        %v1815 = vld [vmem:[#allocation3 + $0xf8] sm:$0xff]
        %v1816 = vld [vmem:[#allocation3 + $0x100] sm:$0xf]
        %v1817 = vld [vmem:[#allocation3 + $0x104] sm:$0xff]
        %v1818 = vld [vmem:[#allocation3 + $0x10c] sm:$0xff]
        %v1819 = vld [vmem:[#allocation3 + $0x114] sm:$0xf]
        %v1820 = vld [vmem:[#allocation3 + $0x118] sm:$0xff]
        %v1821 = vld [vmem:[#allocation3 + $0x120] sm:$0xff]
        %v1822 = vld [vmem:[#allocation3 + $0x128] sm:$0xf]
        %v1823 = vld [vmem:[#allocation3 + $0x12c] sm:$0xff]
        %v1824 = vld [vmem:[#allocation3 + $0x134] sm:$0xff]
        %v1825 = vld [vmem:[#allocation3 + $0x13c] sm:$0xf]
        %v1826 = vld [vmem:[#allocation3 + $0x140] sm:$0xff]
        %v1827 = vld [vmem:[#allocation3 + $0x148] sm:$0xff]
        %v1828 = vld [vmem:[#allocation3 + $0x150] sm:$0xf]
        %v1829 = vld [vmem:[#allocation3 + $0x154] sm:$0xff]
        %v1830 = vld [vmem:[#allocation3 + $0x15c] sm:$0xff]
        %v1831 = vld [vmem:[#allocation3 + $0x164] sm:$0xf]
        %v1832 = vld [vmem:[#allocation3 + $0x168] sm:$0xff]
        %v1833 = vld [vmem:[#allocation3 + $0x170] sm:$0xff]
        %v1834 = vld [vmem:[#allocation3 + $0x178] sm:$0xf]
        %v1835 = vld [vmem:[#allocation3 + $0x17c] sm:$0xff]
        %v1836 = vld [vmem:[#allocation3 + $0x184] sm:$0xff]
        %v1837 = vld [vmem:[#allocation3 + $0x18c] sm:$0xf]
        %v1838 = vld [vmem:[#allocation3 + $0x190] sm:$0xff]
        %v1839 = vld [vmem:[#allocation3 + $0x198] sm:$0xff]
        %v1840 = vld [vmem:[#allocation3 + $0x1a0] sm:$0xf]
        %v1841 = vld [vmem:[#allocation3 + $0x1a4] sm:$0xff]
        %v1842 = vld [vmem:[#allocation3 + $0x1ac] sm:$0xff]
        %v1843 = vld [vmem:[#allocation3 + $0x1b4] sm:$0xf]
        %v1844 = vld [vmem:[#allocation3 + $0x1b8] sm:$0xff]
        %v1845 = vld [vmem:[#allocation3 + $0x1c0] sm:$0xff]
        %v1846 = vld [vmem:[#allocation3 + $0x1c8] sm:$0xf]
        %v1847 = vld [vmem:[#allocation3 + $0x1cc] sm:$0xff]
        %v1848 = vld [vmem:[#allocation3 + $0x1d4] sm:$0xff]
        %v1849 = vld [vmem:[#allocation3 + $0x1dc] sm:$0xf]
        %v1850 = vld [vmem:[#allocation3 + $0x1e0] sm:$0xff]
        %v1851 = vld [vmem:[#allocation3 + $0x1e8] sm:$0xff]
        %v1852 = vld [vmem:[#allocation3 + $0x1f0] sm:$0xf]
        %v1853 = vld [vmem:[#allocation3 + $0x1f4] sm:$0xff]
        %v1854 = vld [vmem:[#allocation3 + $0x1fc] sm:$0xff]
        %v1855 = vld [vmem:[#allocation3 + $0x204] sm:$0xf]
        %v1856 = vld [vmem:[#allocation3 + $0x208] sm:$0xff]
        %v1857 = vld [vmem:[#allocation3 + $0x210] sm:$0xff]
        %v1858 = vld [vmem:[#allocation3 + $0x218] sm:$0xf]
        %v1859 = vld [vmem:[#allocation3 + $0x21c] sm:$0xff]
        %v1860 = vld [vmem:[#allocation3 + $0x224] sm:$0xff]
        %v1861 = vld [vmem:[#allocation3 + $0x22c] sm:$0xf]
        %v1862 = vld [vmem:[#allocation3 + $0x230] sm:$0xff]
        %v1863 = vld [vmem:[#allocation3 + $0x238] sm:$0xff]
        %v1864 = vld [vmem:[#allocation3 + $0x240] sm:$0xf]
        %v1865 = vld [vmem:[#allocation3 + $0x244] sm:$0xff]
        %v1866 = vld [vmem:[#allocation3 + $0x24c] sm:$0xff]
        %v1867 = vld [vmem:[#allocation3 + $0x254] sm:$0xf]
        %v1868 = vld [vmem:[#allocation3 + $0x258] sm:$0xff]
        %v1869 = vld [vmem:[#allocation3 + $0x260] sm:$0xff]
        %v1870 = vld [vmem:[#allocation3 + $0x268] sm:$0xf]
        %v1871 = vld [vmem:[#allocation3 + $0x26c] sm:$0xff]
        %v1872 = vld [vmem:[#allocation3 + $0x274] sm:$0xff]
        %v1873 = vld [vmem:[#allocation3 + $0x27c] sm:$0xf]
        %v1874 = vld [vmem:[#allocation6] sm:$0xf]
        %v1875 = vld [vmem:[#allocation6 + $0x4] sm:$0xf]
        %v1876 = vld [vmem:[#allocation6 + $0x8] sm:$0xf]
        %v1877 = vld [vmem:[#allocation6 + $0xc] sm:$0xf]
        %v1878 = vld [vmem:[#allocation6 + $0x10] sm:$0xf]
        %v1879 = vld [vmem:[#allocation6 + $0x14] sm:$0xf]
        %v1880 = vld [vmem:[#allocation6 + $0x18] sm:$0xf]
        %v1881 = vld [vmem:[#allocation6 + $0x1c] sm:$0xf]
        %v1882 = vld [vmem:[#allocation6 + $0x20] sm:$0xf]
        %v1883 = vld [vmem:[#allocation6 + $0x24] sm:$0xf]
        %v1884 = vld [vmem:[#allocation6 + $0x28] sm:$0xf]
        %v1885 = vld [vmem:[#allocation6 + $0x2c] sm:$0xf]
        %v1886 = vld [vmem:[#allocation6 + $0x30] sm:$0xf]
        %v1887 = vld [vmem:[#allocation6 + $0x34] sm:$0xf]
        %v1888 = vld [vmem:[#allocation6 + $0x38] sm:$0xf]
        %v1889 = vld [vmem:[#allocation6 + $0x3c] sm:$0xf]
        %v1890 = vld [vmem:[#allocation6 + $0x40] sm:$0xf]
        %v1891 = vld [vmem:[#allocation6 + $0x44] sm:$0xf]
        %v1892 = vld [vmem:[#allocation6 + $0x48] sm:$0xf]
        %v1893 = vld [vmem:[#allocation6 + $0x4c] sm:$0xf]
        %v1894 = vld [vmem:[#allocation6 + $0x50] sm:$0xf]
        %v1895 = vld [vmem:[#allocation6 + $0x54] sm:$0xf]
        %v1896 = vld [vmem:[#allocation6 + $0x58] sm:$0xf]
        %v1897 = vld [vmem:[#allocation6 + $0x5c] sm:$0xf]
        %v1898 = vld [vmem:[#allocation6 + $0x60] sm:$0xf]
        %v1899 = vld [vmem:[#allocation6 + $0x64] sm:$0xf]
        %v1900 = vld [vmem:[#allocation6 + $0x68] sm:$0xf]
        %v1901 = vld [vmem:[#allocation6 + $0x6c] sm:$0xf]
        %v1902 = vld [vmem:[#allocation6 + $0x70] sm:$0xf]
        %v1903 = vld [vmem:[#allocation6 + $0x74] sm:$0xf]
        %v1904 = vld [vmem:[#allocation6 + $0x78] sm:$0xf]
        %v1905 = vld [vmem:[#allocation6 + $0x7c] sm:$0xf]
        %v1906 = vld [vmem:[#allocation6 + $0x80] sm:$0xf]
        %v1907 = vld [vmem:[#allocation6 + $0x84] sm:$0xf]
        %v1908 = vld [vmem:[#allocation6 + $0x88] sm:$0xf]
        %v1909 = vld [vmem:[#allocation6 + $0x8c] sm:$0xf]
        %v1910 = vld [vmem:[#allocation6 + $0x90] sm:$0xf]
        %v1911 = vld [vmem:[#allocation6 + $0x94] sm:$0xf]
        %v1912 = vld [vmem:[#allocation6 + $0x98] sm:$0xf]
        %v1913 = vld [vmem:[#allocation6 + $0x9c] sm:$0xf]
        %v1914 = vld [vmem:[#allocation6 + $0xa0] sm:$0xf]
        %v1915 = vld [vmem:[#allocation6 + $0xa4] sm:$0xf]
        %v1916 = vld [vmem:[#allocation6 + $0xa8] sm:$0xf]
        %v1917 = vld [vmem:[#allocation6 + $0xac] sm:$0xf]
        %v1918 = vld [vmem:[#allocation6 + $0xb0] sm:$0xf]
        %v1919 = vld [vmem:[#allocation6 + $0xb4] sm:$0xf]
        %v1920 = vld [vmem:[#allocation6 + $0xb8] sm:$0xf]
        %v1921 = vld [vmem:[#allocation6 + $0xbc] sm:$0xf]
        %v1922 = vld [vmem:[#allocation6 + $0xc0] sm:$0xf]
        %v1923 = vld [vmem:[#allocation6 + $0xc4] sm:$0xf]
        %v1924 = vld [vmem:[#allocation6 + $0xc8] sm:$0xf]
        %v1925 = vld [vmem:[#allocation6 + $0xcc] sm:$0xf]
        %v1926 = vld [vmem:[#allocation6 + $0xd0] sm:$0xf]
        %v1927 = vld [vmem:[#allocation6 + $0xd4] sm:$0xf]
        %v1928 = vld [vmem:[#allocation6 + $0xd8] sm:$0xf]
        %v1929 = vld [vmem:[#allocation6 + $0xdc] sm:$0xf]
        %v1930 = vld [vmem:[#allocation6 + $0xe0] sm:$0xf]
        %v1931 = vld [vmem:[#allocation6 + $0xe4] sm:$0xf]
        %v1932 = vld [vmem:[#allocation6 + $0xe8] sm:$0xf]
        %v1933 = vld [vmem:[#allocation6 + $0xec] sm:$0xf]
        %v1934 = vld [vmem:[#allocation6 + $0xf0] sm:$0xf]
        %v1935 = vld [vmem:[#allocation6 + $0xf4] sm:$0xf]
        %v1936 = vld [vmem:[#allocation6 + $0xf8] sm:$0xf]
        %v1937 = vld [vmem:[#allocation6 + $0xfc] sm:$0xf]
        %v1938 = vld [vmem:[#allocation6 + $0x100] sm:$0xf]
        %v1939 = vld [vmem:[#allocation6 + $0x104] sm:$0xf]
        %v1940 = vld [vmem:[#allocation6 + $0x108] sm:$0xf]
        %v1941 = vld [vmem:[#allocation6 + $0x10c] sm:$0xf]
        %v1942 = vld [vmem:[#allocation6 + $0x110] sm:$0xf]
        %v1943 = vld [vmem:[#allocation6 + $0x114] sm:$0xf]
        %v1944 = vld [vmem:[#allocation6 + $0x118] sm:$0xf]
        %v1945 = vld [vmem:[#allocation6 + $0x11c] sm:$0xf]
        %v1946 = vld [vmem:[#allocation6 + $0x120] sm:$0xf]
        %v1947 = vld [vmem:[#allocation6 + $0x124] sm:$0xf]
        %v1948 = vld [vmem:[#allocation6 + $0x128] sm:$0xf]
        %v1949 = vld [vmem:[#allocation6 + $0x12c] sm:$0xf]
        %v1950 = vld [vmem:[#allocation6 + $0x130] sm:$0xf]
        %v1951 = vld [vmem:[#allocation6 + $0x134] sm:$0xf]
        %v1952 = vld [vmem:[#allocation6 + $0x138] sm:$0xf]
        %v1953 = vld [vmem:[#allocation6 + $0x13c] sm:$0xf]
        %v1954 = vld [vmem:[%s2] sm:$0x1]
        %v1956 = vperm.slane %v1954, 0
        %v2054 = vunpack.c.l.b16 %v1778
        %v2055 = vunpack.c.h.b16 %v1778
        %v2056 = vunpack.c.l.b16 %v1779
        %v2057 = vunpack.c.h.b16 %v1779
        %v2058 = vunpack.c.l.b16 %v1780
        %v2059 = vunpack.c.l.b16 %v1781
        %v2060 = vunpack.c.h.b16 %v1781
        %v2061 = vunpack.c.l.b16 %v1782
        %v2062 = vunpack.c.h.b16 %v1782
        %v2063 = vunpack.c.l.b16 %v1783
        %v2064 = vunpack.c.l.b16 %v1784
        %v2065 = vunpack.c.h.b16 %v1784
        %v2066 = vunpack.c.l.b16 %v1785
        %v2067 = vunpack.c.h.b16 %v1785
        %v2068 = vunpack.c.l.b16 %v1786
        %v2069 = vunpack.c.l.b16 %v1787
        %v2070 = vunpack.c.h.b16 %v1787
        %v2071 = vunpack.c.l.b16 %v1788
        %v2072 = vunpack.c.h.b16 %v1788
        %v2073 = vunpack.c.l.b16 %v1789
        %v2074 = vunpack.c.l.b16 %v1790
        %v2075 = vunpack.c.h.b16 %v1790
        %v2076 = vunpack.c.l.b16 %v1791
        %v2077 = vunpack.c.h.b16 %v1791
        %v2078 = vunpack.c.l.b16 %v1792
        %v2079 = vunpack.c.l.b16 %v1793
        %v2080 = vunpack.c.h.b16 %v1793
        %v2081 = vunpack.c.l.b16 %v1794
        %v2082 = vunpack.c.h.b16 %v1794
        %v2083 = vunpack.c.l.b16 %v1795
        %v2084 = vunpack.c.l.b16 %v1796
        %v2085 = vunpack.c.h.b16 %v1796
        %v2086 = vunpack.c.l.b16 %v1797
        %v2087 = vunpack.c.h.b16 %v1797
        %v2088 = vunpack.c.l.b16 %v1798
        %v2089 = vunpack.c.l.b16 %v1799
        %v2090 = vunpack.c.h.b16 %v1799
        %v2091 = vunpack.c.l.b16 %v1800
        %v2092 = vunpack.c.h.b16 %v1800
        %v2093 = vunpack.c.l.b16 %v1801
        %v2094 = vunpack.c.l.b16 %v1802
        %v2095 = vunpack.c.h.b16 %v1802
        %v2096 = vunpack.c.l.b16 %v1803
        %v2097 = vunpack.c.h.b16 %v1803
        %v2098 = vunpack.c.l.b16 %v1804
        %v2099 = vunpack.c.l.b16 %v1805
        %v2100 = vunpack.c.h.b16 %v1805
        %v2101 = vunpack.c.l.b16 %v1806
        %v2102 = vunpack.c.h.b16 %v1806
        %v2103 = vunpack.c.l.b16 %v1807
        %v2104 = vunpack.c.l.b16 %v1808
        %v2105 = vunpack.c.h.b16 %v1808
        %v2106 = vunpack.c.l.b16 %v1809
        %v2107 = vunpack.c.h.b16 %v1809
        %v2108 = vunpack.c.l.b16 %v1810
        %v2109 = vunpack.c.l.b16 %v1811
        %v2110 = vunpack.c.h.b16 %v1811
        %v2111 = vunpack.c.l.b16 %v1812
        %v2112 = vunpack.c.h.b16 %v1812
        %v2113 = vunpack.c.l.b16 %v1813
        %v2114 = vunpack.c.l.b16 %v1814
        %v2115 = vunpack.c.h.b16 %v1814
        %v2116 = vunpack.c.l.b16 %v1815
        %v2117 = vunpack.c.h.b16 %v1815
        %v2118 = vunpack.c.l.b16 %v1816
        %v2119 = vunpack.c.l.b16 %v1817
        %v2120 = vunpack.c.h.b16 %v1817
        %v2121 = vunpack.c.l.b16 %v1818
        %v2122 = vunpack.c.h.b16 %v1818
        %v2123 = vunpack.c.l.b16 %v1819
        %v2124 = vunpack.c.l.b16 %v1820
        %v2125 = vunpack.c.h.b16 %v1820
        %v2126 = vunpack.c.l.b16 %v1821
        %v2127 = vunpack.c.h.b16 %v1821
        %v2128 = vunpack.c.l.b16 %v1822
        %v2129 = vunpack.c.l.b16 %v1823
        %v2130 = vunpack.c.h.b16 %v1823
        %v2131 = vunpack.c.l.b16 %v1824
        %v2132 = vunpack.c.h.b16 %v1824
        %v2133 = vunpack.c.l.b16 %v1825
        %v2134 = vunpack.c.l.b16 %v1826
        %v2135 = vunpack.c.h.b16 %v1826
        %v2136 = vunpack.c.l.b16 %v1827
        %v2137 = vunpack.c.h.b16 %v1827
        %v2138 = vunpack.c.l.b16 %v1828
        %v2139 = vunpack.c.l.b16 %v1829
        %v2140 = vunpack.c.h.b16 %v1829
        %v2141 = vunpack.c.l.b16 %v1830
        %v2142 = vunpack.c.h.b16 %v1830
        %v2143 = vunpack.c.l.b16 %v1831
        %v2144 = vunpack.c.l.b16 %v1832
        %v2145 = vunpack.c.h.b16 %v1832
        %v2146 = vunpack.c.l.b16 %v1833
        %v2147 = vunpack.c.h.b16 %v1833
        %v2148 = vunpack.c.l.b16 %v1834
        %v2149 = vunpack.c.l.b16 %v1835
        %v2150 = vunpack.c.h.b16 %v1835
        %v2151 = vunpack.c.l.b16 %v1836
        %v2152 = vunpack.c.h.b16 %v1836
        %v2153 = vunpack.c.l.b16 %v1837
        %v2154 = vunpack.c.l.b16 %v1838
        %v2155 = vunpack.c.h.b16 %v1838
        %v2156 = vunpack.c.l.b16 %v1839
        %v2157 = vunpack.c.h.b16 %v1839
        %v2158 = vunpack.c.l.b16 %v1840
        %v2159 = vunpack.c.l.b16 %v1841
        %v2160 = vunpack.c.h.b16 %v1841
        %v2161 = vunpack.c.l.b16 %v1842
        %v2162 = vunpack.c.h.b16 %v1842
        %v2163 = vunpack.c.l.b16 %v1843
        %v2164 = vunpack.c.l.b16 %v1844
        %v2165 = vunpack.c.h.b16 %v1844
        %v2166 = vunpack.c.l.b16 %v1845
        %v2167 = vunpack.c.h.b16 %v1845
        %v2168 = vunpack.c.l.b16 %v1846
        %v2169 = vunpack.c.l.b16 %v1847
        %v2170 = vunpack.c.h.b16 %v1847
        %v2171 = vunpack.c.l.b16 %v1848
        %v2172 = vunpack.c.h.b16 %v1848
        %v2173 = vunpack.c.l.b16 %v1849
        %v2174 = vunpack.c.l.b16 %v1850
        %v2175 = vunpack.c.h.b16 %v1850
        %v2176 = vunpack.c.l.b16 %v1851
        %v2177 = vunpack.c.h.b16 %v1851
        %v2178 = vunpack.c.l.b16 %v1852
        %v2179 = vunpack.c.l.b16 %v1853
        %v2180 = vunpack.c.h.b16 %v1853
        %v2181 = vunpack.c.l.b16 %v1854
        %v2182 = vunpack.c.h.b16 %v1854
        %v2183 = vunpack.c.l.b16 %v1855
        %v2184 = vunpack.c.l.b16 %v1856
        %v2185 = vunpack.c.h.b16 %v1856
        %v2186 = vunpack.c.l.b16 %v1857
        %v2187 = vunpack.c.h.b16 %v1857
        %v2188 = vunpack.c.l.b16 %v1858
        %v2189 = vunpack.c.l.b16 %v1859
        %v2190 = vunpack.c.h.b16 %v1859
        %v2191 = vunpack.c.l.b16 %v1860
        %v2192 = vunpack.c.h.b16 %v1860
        %v2193 = vunpack.c.l.b16 %v1861
        %v2194 = vunpack.c.l.b16 %v1862
        %v2195 = vunpack.c.h.b16 %v1862
        %v2196 = vunpack.c.l.b16 %v1863
        %v2197 = vunpack.c.h.b16 %v1863
        %v2198 = vunpack.c.l.b16 %v1864
        %v2199 = vunpack.c.l.b16 %v1865
        %v2200 = vunpack.c.h.b16 %v1865
        %v2201 = vunpack.c.l.b16 %v1866
        %v2202 = vunpack.c.h.b16 %v1866
        %v2203 = vunpack.c.l.b16 %v1867
        %v2204 = vunpack.c.l.b16 %v1868
        %v2205 = vunpack.c.h.b16 %v1868
        %v2206 = vunpack.c.l.b16 %v1869
        %v2207 = vunpack.c.h.b16 %v1869
        %v2208 = vunpack.c.l.b16 %v1870
        %v2209 = vunpack.c.l.b16 %v1871
        %v2210 = vunpack.c.h.b16 %v1871
        %v2211 = vunpack.c.l.b16 %v1872
        %v2212 = vunpack.c.h.b16 %v1872
        %v2213 = vunpack.c.l.b16 %v1873
        %v2214 = vpack.c.b16 %v2059, %v2054
        %v2215 = vpack.c.b16 %v2060, %v2055
        %v2216 = vpack.c.b16 %v2061, %v2056
        %v2217 = vpack.c.b16 %v2062, %v2057
        %v2218 = vpack.c.b16 %v2063, %v2058
        %v2219 = vpack.c.b16 %v2069, %v2064
        %v2220 = vpack.c.b16 %v2070, %v2065
        %v2221 = vpack.c.b16 %v2071, %v2066
        %v2222 = vpack.c.b16 %v2072, %v2067
        %v2223 = vpack.c.b16 %v2073, %v2068
        %v2224 = vpack.c.b16 %v2079, %v2074
        %v2225 = vpack.c.b16 %v2080, %v2075
        %v2226 = vpack.c.b16 %v2081, %v2076
        %v2227 = vpack.c.b16 %v2082, %v2077
        %v2228 = vpack.c.b16 %v2083, %v2078
        %v2229 = vpack.c.b16 %v2089, %v2084
        %v2230 = vpack.c.b16 %v2090, %v2085
        %v2231 = vpack.c.b16 %v2091, %v2086
        %v2232 = vpack.c.b16 %v2092, %v2087
        %v2233 = vpack.c.b16 %v2093, %v2088
        %v2234 = vpack.c.b16 %v2099, %v2094
        %v2235 = vpack.c.b16 %v2100, %v2095
        %v2236 = vpack.c.b16 %v2101, %v2096
        %v2237 = vpack.c.b16 %v2102, %v2097
        %v2238 = vpack.c.b16 %v2103, %v2098
        %v2239 = vpack.c.b16 %v2109, %v2104
        %v2240 = vpack.c.b16 %v2110, %v2105
        %v2241 = vpack.c.b16 %v2111, %v2106
        %v2242 = vpack.c.b16 %v2112, %v2107
        %v2243 = vpack.c.b16 %v2113, %v2108
        %v2244 = vpack.c.b16 %v2119, %v2114
        %v2245 = vpack.c.b16 %v2120, %v2115
        %v2246 = vpack.c.b16 %v2121, %v2116
        %v2247 = vpack.c.b16 %v2122, %v2117
        %v2248 = vpack.c.b16 %v2123, %v2118
        %v2249 = vpack.c.b16 %v2129, %v2124
        %v2250 = vpack.c.b16 %v2130, %v2125
        %v2251 = vpack.c.b16 %v2131, %v2126
        %v2252 = vpack.c.b16 %v2132, %v2127
        %v2253 = vpack.c.b16 %v2133, %v2128
        %v2254 = vpack.c.b16 %v2139, %v2134
        %v2255 = vpack.c.b16 %v2140, %v2135
        %v2256 = vpack.c.b16 %v2141, %v2136
        %v2257 = vpack.c.b16 %v2142, %v2137
        %v2258 = vpack.c.b16 %v2143, %v2138
        %v2259 = vpack.c.b16 %v2149, %v2144
        %v2260 = vpack.c.b16 %v2150, %v2145
        %v2261 = vpack.c.b16 %v2151, %v2146
        %v2262 = vpack.c.b16 %v2152, %v2147
        %v2263 = vpack.c.b16 %v2153, %v2148
        %v2264 = vpack.c.b16 %v2159, %v2154
        %v2265 = vpack.c.b16 %v2160, %v2155
        %v2266 = vpack.c.b16 %v2161, %v2156
        %v2267 = vpack.c.b16 %v2162, %v2157
        %v2268 = vpack.c.b16 %v2163, %v2158
        %v2269 = vpack.c.b16 %v2169, %v2164
        %v2270 = vpack.c.b16 %v2170, %v2165
        %v2271 = vpack.c.b16 %v2171, %v2166
        %v2272 = vpack.c.b16 %v2172, %v2167
        %v2273 = vpack.c.b16 %v2173, %v2168
        %v2274 = vpack.c.b16 %v2179, %v2174
        %v2275 = vpack.c.b16 %v2180, %v2175
        %v2276 = vpack.c.b16 %v2181, %v2176
        %v2277 = vpack.c.b16 %v2182, %v2177
        %v2278 = vpack.c.b16 %v2183, %v2178
        %v2279 = vpack.c.b16 %v2189, %v2184
        %v2280 = vpack.c.b16 %v2190, %v2185
        %v2281 = vpack.c.b16 %v2191, %v2186
        %v2282 = vpack.c.b16 %v2192, %v2187
        %v2283 = vpack.c.b16 %v2193, %v2188
        %v2284 = vpack.c.b16 %v2199, %v2194
        %v2285 = vpack.c.b16 %v2200, %v2195
        %v2286 = vpack.c.b16 %v2201, %v2196
        %v2287 = vpack.c.b16 %v2202, %v2197
        %v2288 = vpack.c.b16 %v2203, %v2198
        %v2289 = vpack.c.b16 %v2209, %v2204
        %v2290 = vpack.c.b16 %v2210, %v2205
        %v2291 = vpack.c.b16 %v2211, %v2206
        %v2292 = vpack.c.b16 %v2212, %v2207
        %v2293 = vpack.c.b16 %v2213, %v2208
        %v2454 = vunpack.c.l.b16 %v1874
        %v2455 = vunpack.c.l.b16 %v1875
        %v2456 = vunpack.c.l.b16 %v1876
        %v2457 = vunpack.c.l.b16 %v1877
        %v2458 = vunpack.c.l.b16 %v1878
        %v2459 = vunpack.c.l.b16 %v1879
        %v2460 = vunpack.c.l.b16 %v1880
        %v2461 = vunpack.c.l.b16 %v1881
        %v2462 = vunpack.c.l.b16 %v1882
        %v2463 = vunpack.c.l.b16 %v1883
        %v2464 = vunpack.c.l.b16 %v1884
        %v2465 = vunpack.c.l.b16 %v1885
        %v2466 = vunpack.c.l.b16 %v1886
        %v2467 = vunpack.c.l.b16 %v1887
        %v2468 = vunpack.c.l.b16 %v1888
        %v2469 = vunpack.c.l.b16 %v1889
        %v2470 = vunpack.c.l.b16 %v1890
        %v2471 = vunpack.c.l.b16 %v1891
        %v2472 = vunpack.c.l.b16 %v1892
        %v2473 = vunpack.c.l.b16 %v1893
        %v2474 = vunpack.c.l.b16 %v1894
        %v2475 = vunpack.c.l.b16 %v1895
        %v2476 = vunpack.c.l.b16 %v1896
        %v2477 = vunpack.c.l.b16 %v1897
        %v2478 = vunpack.c.l.b16 %v1898
        %v2479 = vunpack.c.l.b16 %v1899
        %v2480 = vunpack.c.l.b16 %v1900
        %v2481 = vunpack.c.l.b16 %v1901
        %v2482 = vunpack.c.l.b16 %v1902
        %v2483 = vunpack.c.l.b16 %v1903
        %v2484 = vunpack.c.l.b16 %v1904
        %v2485 = vunpack.c.l.b16 %v1905
        %v2486 = vunpack.c.l.b16 %v1906
        %v2487 = vunpack.c.l.b16 %v1907
        %v2488 = vunpack.c.l.b16 %v1908
        %v2489 = vunpack.c.l.b16 %v1909
        %v2490 = vunpack.c.l.b16 %v1910
        %v2491 = vunpack.c.l.b16 %v1911
        %v2492 = vunpack.c.l.b16 %v1912
        %v2493 = vunpack.c.l.b16 %v1913
        %v2494 = vunpack.c.l.b16 %v1914
        %v2495 = vunpack.c.l.b16 %v1915
        %v2496 = vunpack.c.l.b16 %v1916
        %v2497 = vunpack.c.l.b16 %v1917
        %v2498 = vunpack.c.l.b16 %v1918
        %v2499 = vunpack.c.l.b16 %v1919
        %v2500 = vunpack.c.l.b16 %v1920
        %v2501 = vunpack.c.l.b16 %v1921
        %v2502 = vunpack.c.l.b16 %v1922
        %v2503 = vunpack.c.l.b16 %v1923
        %v2504 = vunpack.c.l.b16 %v1924
        %v2505 = vunpack.c.l.b16 %v1925
        %v2506 = vunpack.c.l.b16 %v1926
        %v2507 = vunpack.c.l.b16 %v1927
        %v2508 = vunpack.c.l.b16 %v1928
        %v2509 = vunpack.c.l.b16 %v1929
        %v2510 = vunpack.c.l.b16 %v1930
        %v2511 = vunpack.c.l.b16 %v1931
        %v2512 = vunpack.c.l.b16 %v1932
        %v2513 = vunpack.c.l.b16 %v1933
        %v2514 = vunpack.c.l.b16 %v1934
        %v2515 = vunpack.c.l.b16 %v1935
        %v2516 = vunpack.c.l.b16 %v1936
        %v2517 = vunpack.c.l.b16 %v1937
        %v2518 = vunpack.c.l.b16 %v1938
        %v2519 = vunpack.c.l.b16 %v1939
        %v2520 = vunpack.c.l.b16 %v1940
        %v2521 = vunpack.c.l.b16 %v1941
        %v2522 = vunpack.c.l.b16 %v1942
        %v2523 = vunpack.c.l.b16 %v1943
        %v2524 = vunpack.c.l.b16 %v1944
        %v2525 = vunpack.c.l.b16 %v1945
        %v2526 = vunpack.c.l.b16 %v1946
        %v2527 = vunpack.c.l.b16 %v1947
        %v2528 = vunpack.c.l.b16 %v1948
        %v2529 = vunpack.c.l.b16 %v1949
        %v2530 = vunpack.c.l.b16 %v1950
        %v2531 = vunpack.c.l.b16 %v1951
        %v2532 = vunpack.c.l.b16 %v1952
        %v2533 = vunpack.c.l.b16 %v1953
        %v2534 = vpack.c.b16 %v2455, %v2454
        %v2535 = vpack.c.b16 %v2457, %v2456
        %v2536 = vpack.c.b16 %v2459, %v2458
        %v2537 = vpack.c.b16 %v2461, %v2460
        %v2538 = vpack.c.b16 %v2463, %v2462
        %v2539 = vpack.c.b16 %v2465, %v2464
        %v2540 = vpack.c.b16 %v2467, %v2466
        %v2541 = vpack.c.b16 %v2469, %v2468
        %v2542 = vpack.c.b16 %v2471, %v2470
        %v2543 = vpack.c.b16 %v2473, %v2472
        %v2544 = vpack.c.b16 %v2475, %v2474
        %v2545 = vpack.c.b16 %v2477, %v2476
        %v2546 = vpack.c.b16 %v2479, %v2478
        %v2547 = vpack.c.b16 %v2481, %v2480
        %v2548 = vpack.c.b16 %v2483, %v2482
        %v2549 = vpack.c.b16 %v2485, %v2484
        %v2550 = vpack.c.b16 %v2487, %v2486
        %v2551 = vpack.c.b16 %v2489, %v2488
        %v2552 = vpack.c.b16 %v2491, %v2490
        %v2553 = vpack.c.b16 %v2493, %v2492
        %v2554 = vpack.c.b16 %v2495, %v2494
        %v2555 = vpack.c.b16 %v2497, %v2496
        %v2556 = vpack.c.b16 %v2499, %v2498
        %v2557 = vpack.c.b16 %v2501, %v2500
        %v2558 = vpack.c.b16 %v2503, %v2502
        %v2559 = vpack.c.b16 %v2505, %v2504
        %v2560 = vpack.c.b16 %v2507, %v2506
        %v2561 = vpack.c.b16 %v2509, %v2508
        %v2562 = vpack.c.b16 %v2511, %v2510
        %v2563 = vpack.c.b16 %v2513, %v2512
        %v2564 = vpack.c.b16 %v2515, %v2514
        %v2565 = vpack.c.b16 %v2517, %v2516
        %v2566 = vpack.c.b16 %v2519, %v2518
        %v2567 = vpack.c.b16 %v2521, %v2520
        %v2568 = vpack.c.b16 %v2523, %v2522
        %v2569 = vpack.c.b16 %v2525, %v2524
        %v2570 = vpack.c.b16 %v2527, %v2526
        %v2571 = vpack.c.b16 %v2529, %v2528
        %v2572 = vpack.c.b16 %v2531, %v2530
        %v2573 = vpack.c.b16 %v2533, %v2532
        %2614 = vmatpush.bf16.msra.mxu0 %v2541
        %2615 = vmatpush.bf16.msra.mxu0 %v2540
        %2616 = vmatpush.bf16.msra.mxu0 %v2539
        %2617 = vmatpush.bf16.msra.mxu0 %v2538
        %2618 = vmatpush.bf16.msra.mxu0 %v2537
        %2619 = vmatpush.bf16.msra.mxu0 %v2536
        %2620 = vmatpush.bf16.msra.mxu0 %v2535
        %2621 = vmatpush.bf16.msra.mxu0 %v2534
        %2622 = vmatmul.bf16.gmra.mxu0 %v2214
        %v2623 = vpop.f32.mrf.mxu0
        %v2624 = vadd.f32 %v1956, %v2623
        %v2625 = vpop.f32.mrf.mxu0
        %v2626 = vadd.f32 %v1956, %v2625
        %2627 = vmatmul.bf16.gmra.mxu0 %v2219
        %v2628 = vpop.f32.mrf.mxu0
        %v2629 = vadd.f32 %v1956, %v2628
        %v2630 = vpop.f32.mrf.mxu0
        %v2631 = vadd.f32 %v1956, %v2630
        %2632 = vmatmul.bf16.gmra.mxu0 %v2224
        %v2633 = vpop.f32.mrf.mxu0
        %v2634 = vadd.f32 %v1956, %v2633
        %v2635 = vpop.f32.mrf.mxu0
        %v2636 = vadd.f32 %v1956, %v2635
        %2637 = vmatmul.bf16.gmra.mxu0 %v2229
        %v2638 = vpop.f32.mrf.mxu0
        %v2639 = vadd.f32 %v1956, %v2638
        %v2640 = vpop.f32.mrf.mxu0
        %v2641 = vadd.f32 %v1956, %v2640
        %2642 = vmatmul.bf16.gmra.mxu0 %v2234
        %v2643 = vpop.f32.mrf.mxu0
        %v2644 = vadd.f32 %v1956, %v2643
        %v2645 = vpop.f32.mrf.mxu0
        %v2646 = vadd.f32 %v1956, %v2645
        %2647 = vmatmul.bf16.gmra.mxu0 %v2239
        %v2648 = vpop.f32.mrf.mxu0
        %v2649 = vadd.f32 %v1956, %v2648
        %v2650 = vpop.f32.mrf.mxu0
        %v2651 = vadd.f32 %v1956, %v2650
        %2652 = vmatmul.bf16.gmra.mxu0 %v2244
        %v2653 = vpop.f32.mrf.mxu0
        %v2654 = vadd.f32 %v1956, %v2653
        %v2655 = vpop.f32.mrf.mxu0
        %v2656 = vadd.f32 %v1956, %v2655
        %2657 = vmatmul.bf16.gmra.mxu0 %v2249
        %v2658 = vpop.f32.mrf.mxu0
        %v2659 = vadd.f32 %v1956, %v2658
        %v2660 = vpop.f32.mrf.mxu0
        %v2661 = vadd.f32 %v1956, %v2660
        %2662 = vmatmul.bf16.gmra.mxu0 %v2254
        %v2663 = vpop.f32.mrf.mxu0
        %v2664 = vadd.f32 %v1956, %v2663
        %v2665 = vpop.f32.mrf.mxu0
        %v2666 = vadd.f32 %v1956, %v2665
        %2667 = vmatmul.bf16.gmra.mxu0 %v2259
        %v2668 = vpop.f32.mrf.mxu0
        %v2669 = vadd.f32 %v1956, %v2668
        %v2670 = vpop.f32.mrf.mxu0
        %v2671 = vadd.f32 %v1956, %v2670
        %2672 = vmatmul.bf16.gmra.mxu0 %v2264
        %v2673 = vpop.f32.mrf.mxu0
        %v2674 = vadd.f32 %v1956, %v2673
        %v2675 = vpop.f32.mrf.mxu0
        %v2676 = vadd.f32 %v1956, %v2675
        %2677 = vmatmul.bf16.gmra.mxu0 %v2269
        %v2678 = vpop.f32.mrf.mxu0
        %v2679 = vadd.f32 %v1956, %v2678
        %v2680 = vpop.f32.mrf.mxu0
        %v2681 = vadd.f32 %v1956, %v2680
        %2682 = vmatmul.bf16.gmra.mxu0 %v2274
        %v2683 = vpop.f32.mrf.mxu0
        %v2684 = vadd.f32 %v1956, %v2683
        %v2685 = vpop.f32.mrf.mxu0
        %v2686 = vadd.f32 %v1956, %v2685
        %2687 = vmatmul.bf16.gmra.mxu0 %v2279
        %v2688 = vpop.f32.mrf.mxu0
        %v2689 = vadd.f32 %v1956, %v2688
        %v2690 = vpop.f32.mrf.mxu0
        %v2691 = vadd.f32 %v1956, %v2690
        %2692 = vmatmul.bf16.gmra.mxu0 %v2284
        %v2693 = vpop.f32.mrf.mxu0
        %v2694 = vadd.f32 %v1956, %v2693
        %v2695 = vpop.f32.mrf.mxu0
        %v2696 = vadd.f32 %v1956, %v2695
        %2697 = vmatmul.bf16.gmra.mxu0 %v2289
        %v2698 = vpop.f32.mrf.mxu0
        %v2699 = vadd.f32 %v1956, %v2698
        %v2700 = vpop.f32.mrf.mxu0
        %v2701 = vadd.f32 %v1956, %v2700
        %2702 = vdwg.mxu0
        %2703 = vmatpush.bf16.msra.mxu0 %v2549
        %2704 = vmatpush.bf16.msra.mxu0 %v2548
        %2705 = vmatpush.bf16.msra.mxu0 %v2547
        %2706 = vmatpush.bf16.msra.mxu0 %v2546
        %2707 = vmatpush.bf16.msra.mxu0 %v2545
        %2708 = vmatpush.bf16.msra.mxu0 %v2544
        %2709 = vmatpush.bf16.msra.mxu0 %v2543
        %2710 = vmatpush.bf16.msra.mxu0 %v2542
        %2711 = vmatmul.bf16.gmra.mxu0 %v2215
        %v2712 = vpop.f32.mrf.mxu0
        %v2713 = vadd.f32 %v2624, %v2712
        %v2714 = vpop.f32.mrf.mxu0
        %v2715 = vadd.f32 %v2626, %v2714
        %2716 = vmatmul.bf16.gmra.mxu0 %v2220
        %v2717 = vpop.f32.mrf.mxu0
        %v2718 = vadd.f32 %v2629, %v2717
        %v2719 = vpop.f32.mrf.mxu0
        %v2720 = vadd.f32 %v2631, %v2719
        %2721 = vmatmul.bf16.gmra.mxu0 %v2225
        %v2722 = vpop.f32.mrf.mxu0
        %v2723 = vadd.f32 %v2634, %v2722
        %v2724 = vpop.f32.mrf.mxu0
        %v2725 = vadd.f32 %v2636, %v2724
        %2726 = vmatmul.bf16.gmra.mxu0 %v2230
        %v2727 = vpop.f32.mrf.mxu0
        %v2728 = vadd.f32 %v2639, %v2727
        %v2729 = vpop.f32.mrf.mxu0
        %v2730 = vadd.f32 %v2641, %v2729
        %2731 = vmatmul.bf16.gmra.mxu0 %v2235
        %v2732 = vpop.f32.mrf.mxu0
        %v2733 = vadd.f32 %v2644, %v2732
        %v2734 = vpop.f32.mrf.mxu0
        %v2735 = vadd.f32 %v2646, %v2734
        %2736 = vmatmul.bf16.gmra.mxu0 %v2240
        %v2737 = vpop.f32.mrf.mxu0
        %v2738 = vadd.f32 %v2649, %v2737
        %v2739 = vpop.f32.mrf.mxu0
        %v2740 = vadd.f32 %v2651, %v2739
        %2741 = vmatmul.bf16.gmra.mxu0 %v2245
        %v2742 = vpop.f32.mrf.mxu0
        %v2743 = vadd.f32 %v2654, %v2742
        %v2744 = vpop.f32.mrf.mxu0
        %v2745 = vadd.f32 %v2656, %v2744
        %2746 = vmatmul.bf16.gmra.mxu0 %v2250
        %v2747 = vpop.f32.mrf.mxu0
        %v2748 = vadd.f32 %v2659, %v2747
        %v2749 = vpop.f32.mrf.mxu0
        %v2750 = vadd.f32 %v2661, %v2749
        %2751 = vmatmul.bf16.gmra.mxu0 %v2255
        %v2752 = vpop.f32.mrf.mxu0
        %v2753 = vadd.f32 %v2664, %v2752
        %v2754 = vpop.f32.mrf.mxu0
        %v2755 = vadd.f32 %v2666, %v2754
        %2756 = vmatmul.bf16.gmra.mxu0 %v2260
        %v2757 = vpop.f32.mrf.mxu0
        %v2758 = vadd.f32 %v2669, %v2757
        %v2759 = vpop.f32.mrf.mxu0
        %v2760 = vadd.f32 %v2671, %v2759
        %2761 = vmatmul.bf16.gmra.mxu0 %v2265
        %v2762 = vpop.f32.mrf.mxu0
        %v2763 = vadd.f32 %v2674, %v2762
        %v2764 = vpop.f32.mrf.mxu0
        %v2765 = vadd.f32 %v2676, %v2764
        %2766 = vmatmul.bf16.gmra.mxu0 %v2270
        %v2767 = vpop.f32.mrf.mxu0
        %v2768 = vadd.f32 %v2679, %v2767
        %v2769 = vpop.f32.mrf.mxu0
        %v2770 = vadd.f32 %v2681, %v2769
        %2771 = vmatmul.bf16.gmra.mxu0 %v2275
        %v2772 = vpop.f32.mrf.mxu0
        %v2773 = vadd.f32 %v2684, %v2772
        %v2774 = vpop.f32.mrf.mxu0
        %v2775 = vadd.f32 %v2686, %v2774
        %2776 = vmatmul.bf16.gmra.mxu0 %v2280
        %v2777 = vpop.f32.mrf.mxu0
        %v2778 = vadd.f32 %v2689, %v2777
        %v2779 = vpop.f32.mrf.mxu0
        %v2780 = vadd.f32 %v2691, %v2779
        %2781 = vmatmul.bf16.gmra.mxu0 %v2285
        %v2782 = vpop.f32.mrf.mxu0
        %v2783 = vadd.f32 %v2694, %v2782
        %v2784 = vpop.f32.mrf.mxu0
        %v2785 = vadd.f32 %v2696, %v2784
        %2786 = vmatmul.bf16.gmra.mxu0 %v2290
        %v2787 = vpop.f32.mrf.mxu0
        %v2788 = vadd.f32 %v2699, %v2787
        %v2789 = vpop.f32.mrf.mxu0
        %v2790 = vadd.f32 %v2701, %v2789
        %2791 = vdwg.mxu0
        %2792 = vmatpush.bf16.msra.mxu0 %v2557
        %2793 = vmatpush.bf16.msra.mxu0 %v2556
        %2794 = vmatpush.bf16.msra.mxu0 %v2555
        %2795 = vmatpush.bf16.msra.mxu0 %v2554
        %2796 = vmatpush.bf16.msra.mxu0 %v2553
        %2797 = vmatpush.bf16.msra.mxu0 %v2552
        %2798 = vmatpush.bf16.msra.mxu0 %v2551
        %2799 = vmatpush.bf16.msra.mxu0 %v2550
        %2800 = vmatmul.bf16.gmra.mxu0 %v2216
        %v2801 = vpop.f32.mrf.mxu0
        %v2802 = vadd.f32 %v2713, %v2801
        %v2803 = vpop.f32.mrf.mxu0
        %v2804 = vadd.f32 %v2715, %v2803
        %2805 = vmatmul.bf16.gmra.mxu0 %v2221
        %v2806 = vpop.f32.mrf.mxu0
        %v2807 = vadd.f32 %v2718, %v2806
        %v2808 = vpop.f32.mrf.mxu0
        %v2809 = vadd.f32 %v2720, %v2808
        %2810 = vmatmul.bf16.gmra.mxu0 %v2226
        %v2811 = vpop.f32.mrf.mxu0
        %v2812 = vadd.f32 %v2723, %v2811
        %v2813 = vpop.f32.mrf.mxu0
        %v2814 = vadd.f32 %v2725, %v2813
        %2815 = vmatmul.bf16.gmra.mxu0 %v2231
        %v2816 = vpop.f32.mrf.mxu0
        %v2817 = vadd.f32 %v2728, %v2816
        %v2818 = vpop.f32.mrf.mxu0
        %v2819 = vadd.f32 %v2730, %v2818
        %2820 = vmatmul.bf16.gmra.mxu0 %v2236
        %v2821 = vpop.f32.mrf.mxu0
        %v2822 = vadd.f32 %v2733, %v2821
        %v2823 = vpop.f32.mrf.mxu0
        %v2824 = vadd.f32 %v2735, %v2823
        %2825 = vmatmul.bf16.gmra.mxu0 %v2241
        %v2826 = vpop.f32.mrf.mxu0
        %v2827 = vadd.f32 %v2738, %v2826
        %v2828 = vpop.f32.mrf.mxu0
        %v2829 = vadd.f32 %v2740, %v2828
        %2830 = vmatmul.bf16.gmra.mxu0 %v2246
        %v2831 = vpop.f32.mrf.mxu0
        %v2832 = vadd.f32 %v2743, %v2831
        %v2833 = vpop.f32.mrf.mxu0
        %v2834 = vadd.f32 %v2745, %v2833
        %2835 = vmatmul.bf16.gmra.mxu0 %v2251
        %v2836 = vpop.f32.mrf.mxu0
        %v2837 = vadd.f32 %v2748, %v2836
        %v2838 = vpop.f32.mrf.mxu0
        %v2839 = vadd.f32 %v2750, %v2838
        %2840 = vmatmul.bf16.gmra.mxu0 %v2256
        %v2841 = vpop.f32.mrf.mxu0
        %v2842 = vadd.f32 %v2753, %v2841
        %v2843 = vpop.f32.mrf.mxu0
        %v2844 = vadd.f32 %v2755, %v2843
        %2845 = vmatmul.bf16.gmra.mxu0 %v2261
        %v2846 = vpop.f32.mrf.mxu0
        %v2847 = vadd.f32 %v2758, %v2846
        %v2848 = vpop.f32.mrf.mxu0
        %v2849 = vadd.f32 %v2760, %v2848
        %2850 = vmatmul.bf16.gmra.mxu0 %v2266
        %v2851 = vpop.f32.mrf.mxu0
        %v2852 = vadd.f32 %v2763, %v2851
        %v2853 = vpop.f32.mrf.mxu0
        %v2854 = vadd.f32 %v2765, %v2853
        %2855 = vmatmul.bf16.gmra.mxu0 %v2271
        %v2856 = vpop.f32.mrf.mxu0
        %v2857 = vadd.f32 %v2768, %v2856
        %v2858 = vpop.f32.mrf.mxu0
        %v2859 = vadd.f32 %v2770, %v2858
        %2860 = vmatmul.bf16.gmra.mxu0 %v2276
        %v2861 = vpop.f32.mrf.mxu0
        %v2862 = vadd.f32 %v2773, %v2861
        %v2863 = vpop.f32.mrf.mxu0
        %v2864 = vadd.f32 %v2775, %v2863
        %2865 = vmatmul.bf16.gmra.mxu0 %v2281
        %v2866 = vpop.f32.mrf.mxu0
        %v2867 = vadd.f32 %v2778, %v2866
        %v2868 = vpop.f32.mrf.mxu0
        %v2869 = vadd.f32 %v2780, %v2868
        %2870 = vmatmul.bf16.gmra.mxu0 %v2286
        %v2871 = vpop.f32.mrf.mxu0
        %v2872 = vadd.f32 %v2783, %v2871
        %v2873 = vpop.f32.mrf.mxu0
        %v2874 = vadd.f32 %v2785, %v2873
        %2875 = vmatmul.bf16.gmra.mxu0 %v2291
        %v2876 = vpop.f32.mrf.mxu0
        %v2877 = vadd.f32 %v2788, %v2876
        %v2878 = vpop.f32.mrf.mxu0
        %v2879 = vadd.f32 %v2790, %v2878
        %2880 = vdwg.mxu0
        %2881 = vmatpush.bf16.msra.mxu0 %v2565
        %2882 = vmatpush.bf16.msra.mxu0 %v2564
        %2883 = vmatpush.bf16.msra.mxu0 %v2563
        %2884 = vmatpush.bf16.msra.mxu0 %v2562
        %2885 = vmatpush.bf16.msra.mxu0 %v2561
        %2886 = vmatpush.bf16.msra.mxu0 %v2560
        %2887 = vmatpush.bf16.msra.mxu0 %v2559
        %2888 = vmatpush.bf16.msra.mxu0 %v2558
        %2889 = vmatmul.bf16.gmra.mxu0 %v2217
        %v2890 = vpop.f32.mrf.mxu0
        %v2891 = vadd.f32 %v2802, %v2890
        %v2892 = vpop.f32.mrf.mxu0
        %v2893 = vadd.f32 %v2804, %v2892
        %2894 = vmatmul.bf16.gmra.mxu0 %v2222
        %v2895 = vpop.f32.mrf.mxu0
        %v2896 = vadd.f32 %v2807, %v2895
        %v2897 = vpop.f32.mrf.mxu0
        %v2898 = vadd.f32 %v2809, %v2897
        %2899 = vmatmul.bf16.gmra.mxu0 %v2227
        %v2900 = vpop.f32.mrf.mxu0
        %v2901 = vadd.f32 %v2812, %v2900
        %v2902 = vpop.f32.mrf.mxu0
        %v2903 = vadd.f32 %v2814, %v2902
        %2904 = vmatmul.bf16.gmra.mxu0 %v2232
        %v2905 = vpop.f32.mrf.mxu0
        %v2906 = vadd.f32 %v2817, %v2905
        %v2907 = vpop.f32.mrf.mxu0
        %v2908 = vadd.f32 %v2819, %v2907
        %2909 = vmatmul.bf16.gmra.mxu0 %v2237
        %v2910 = vpop.f32.mrf.mxu0
        %v2911 = vadd.f32 %v2822, %v2910
        %v2912 = vpop.f32.mrf.mxu0
        %v2913 = vadd.f32 %v2824, %v2912
        %2914 = vmatmul.bf16.gmra.mxu0 %v2242
        %v2915 = vpop.f32.mrf.mxu0
        %v2916 = vadd.f32 %v2827, %v2915
        %v2917 = vpop.f32.mrf.mxu0
        %v2918 = vadd.f32 %v2829, %v2917
        %2919 = vmatmul.bf16.gmra.mxu0 %v2247
        %v2920 = vpop.f32.mrf.mxu0
        %v2921 = vadd.f32 %v2832, %v2920
        %v2922 = vpop.f32.mrf.mxu0
        %v2923 = vadd.f32 %v2834, %v2922
        %2924 = vmatmul.bf16.gmra.mxu0 %v2252
        %v2925 = vpop.f32.mrf.mxu0
        %v2926 = vadd.f32 %v2837, %v2925
        %v2927 = vpop.f32.mrf.mxu0
        %v2928 = vadd.f32 %v2839, %v2927
        %2929 = vmatmul.bf16.gmra.mxu0 %v2257
        %v2930 = vpop.f32.mrf.mxu0
        %v2931 = vadd.f32 %v2842, %v2930
        %v2932 = vpop.f32.mrf.mxu0
        %v2933 = vadd.f32 %v2844, %v2932
        %2934 = vmatmul.bf16.gmra.mxu0 %v2262
        %v2935 = vpop.f32.mrf.mxu0
        %v2936 = vadd.f32 %v2847, %v2935
        %v2937 = vpop.f32.mrf.mxu0
        %v2938 = vadd.f32 %v2849, %v2937
        %2939 = vmatmul.bf16.gmra.mxu0 %v2267
        %v2940 = vpop.f32.mrf.mxu0
        %v2941 = vadd.f32 %v2852, %v2940
        %v2942 = vpop.f32.mrf.mxu0
        %v2943 = vadd.f32 %v2854, %v2942
        %2944 = vmatmul.bf16.gmra.mxu0 %v2272
        %v2945 = vpop.f32.mrf.mxu0
        %v2946 = vadd.f32 %v2857, %v2945
        %v2947 = vpop.f32.mrf.mxu0
        %v2948 = vadd.f32 %v2859, %v2947
        %2949 = vmatmul.bf16.gmra.mxu0 %v2277
        %v2950 = vpop.f32.mrf.mxu0
        %v2951 = vadd.f32 %v2862, %v2950
        %v2952 = vpop.f32.mrf.mxu0
        %v2953 = vadd.f32 %v2864, %v2952
        %2954 = vmatmul.bf16.gmra.mxu0 %v2282
        %v2955 = vpop.f32.mrf.mxu0
        %v2956 = vadd.f32 %v2867, %v2955
        %v2957 = vpop.f32.mrf.mxu0
        %v2958 = vadd.f32 %v2869, %v2957
        %2959 = vmatmul.bf16.gmra.mxu0 %v2287
        %v2960 = vpop.f32.mrf.mxu0
        %v2961 = vadd.f32 %v2872, %v2960
        %v2962 = vpop.f32.mrf.mxu0
        %v2963 = vadd.f32 %v2874, %v2962
        %2964 = vmatmul.bf16.gmra.mxu0 %v2292
        %v2965 = vpop.f32.mrf.mxu0
        %v2966 = vadd.f32 %v2877, %v2965
        %v2967 = vpop.f32.mrf.mxu0
        %v2968 = vadd.f32 %v2879, %v2967
        %2969 = vdwg.mxu0
        %2970 = vmatpush.bf16.msra.mxu0 %v2573
        %2971 = vmatpush.bf16.msra.mxu0 %v2572
        %2972 = vmatpush.bf16.msra.mxu0 %v2571
        %2973 = vmatpush.bf16.msra.mxu0 %v2570
        %2974 = vmatpush.bf16.msra.mxu0 %v2569
        %2975 = vmatpush.bf16.msra.mxu0 %v2568
        %2976 = vmatpush.bf16.msra.mxu0 %v2567
        %2977 = vmatpush.bf16.msra.mxu0 %v2566
        %2978 = vmatmul.bf16.gmra.mxu0 %v2218
        %v2979 = vpop.f32.mrf.mxu0
        %v2980 = vadd.f32 %v2891, %v2979
        %v2981 = vpop.f32.mrf.mxu0
        %v2982 = vadd.f32 %v2893, %v2981
        %2983 = vmatmul.bf16.gmra.mxu0 %v2223
        %v2984 = vpop.f32.mrf.mxu0
        %v2985 = vadd.f32 %v2896, %v2984
        %v2986 = vpop.f32.mrf.mxu0
        %v2987 = vadd.f32 %v2898, %v2986
        %2988 = vmatmul.bf16.gmra.mxu0 %v2228
        %v2989 = vpop.f32.mrf.mxu0
        %v2990 = vadd.f32 %v2901, %v2989
        %v2991 = vpop.f32.mrf.mxu0
        %v2992 = vadd.f32 %v2903, %v2991
        %2993 = vmatmul.bf16.gmra.mxu0 %v2233
        %v2994 = vpop.f32.mrf.mxu0
        %v2995 = vadd.f32 %v2906, %v2994
        %v2996 = vpop.f32.mrf.mxu0
        %v2997 = vadd.f32 %v2908, %v2996
        %2998 = vmatmul.bf16.gmra.mxu0 %v2238
        %v2999 = vpop.f32.mrf.mxu0
        %v3000 = vadd.f32 %v2911, %v2999
        %v3001 = vpop.f32.mrf.mxu0
        %v3002 = vadd.f32 %v2913, %v3001
        %3003 = vmatmul.bf16.gmra.mxu0 %v2243
        %v3004 = vpop.f32.mrf.mxu0
        %v3005 = vadd.f32 %v2916, %v3004
        %v3006 = vpop.f32.mrf.mxu0
        %v3007 = vadd.f32 %v2918, %v3006
        %3008 = vmatmul.bf16.gmra.mxu0 %v2248
        %v3009 = vpop.f32.mrf.mxu0
        %v3010 = vadd.f32 %v2921, %v3009
        %v3011 = vpop.f32.mrf.mxu0
        %v3012 = vadd.f32 %v2923, %v3011
        %3013 = vmatmul.bf16.gmra.mxu0 %v2253
        %v3014 = vpop.f32.mrf.mxu0
        %v3015 = vadd.f32 %v2926, %v3014
        %v3016 = vpop.f32.mrf.mxu0
        %v3017 = vadd.f32 %v2928, %v3016
        %3018 = vmatmul.bf16.gmra.mxu0 %v2258
        %v3019 = vpop.f32.mrf.mxu0
        %v3020 = vadd.f32 %v2931, %v3019
        %v3021 = vpop.f32.mrf.mxu0
        %v3022 = vadd.f32 %v2933, %v3021
        %3023 = vmatmul.bf16.gmra.mxu0 %v2263
        %v3024 = vpop.f32.mrf.mxu0
        %v3025 = vadd.f32 %v2936, %v3024
        %v3026 = vpop.f32.mrf.mxu0
        %v3027 = vadd.f32 %v2938, %v3026
        %3028 = vmatmul.bf16.gmra.mxu0 %v2268
        %v3029 = vpop.f32.mrf.mxu0
        %v3030 = vadd.f32 %v2941, %v3029
        %v3031 = vpop.f32.mrf.mxu0
        %v3032 = vadd.f32 %v2943, %v3031
        %3033 = vmatmul.bf16.gmra.mxu0 %v2273
        %v3034 = vpop.f32.mrf.mxu0
        %v3035 = vadd.f32 %v2946, %v3034
        %v3036 = vpop.f32.mrf.mxu0
        %v3037 = vadd.f32 %v2948, %v3036
        %3038 = vmatmul.bf16.gmra.mxu0 %v2278
        %v3039 = vpop.f32.mrf.mxu0
        %v3040 = vadd.f32 %v2951, %v3039
        %v3041 = vpop.f32.mrf.mxu0
        %v3042 = vadd.f32 %v2953, %v3041
        %3043 = vmatmul.bf16.gmra.mxu0 %v2283
        %v3044 = vpop.f32.mrf.mxu0
        %v3045 = vadd.f32 %v2956, %v3044
        %v3046 = vpop.f32.mrf.mxu0
        %v3047 = vadd.f32 %v2958, %v3046
        %3048 = vmatmul.bf16.gmra.mxu0 %v2288
        %v3049 = vpop.f32.mrf.mxu0
        %v3050 = vadd.f32 %v2961, %v3049
        %v3051 = vpop.f32.mrf.mxu0
        %v3052 = vadd.f32 %v2963, %v3051
        %3053 = vmatmul.bf16.gmra.mxu0 %v2293
        %v3054 = vpop.f32.mrf.mxu0
        %v3055 = vadd.f32 %v2966, %v3054
        %v3056 = vpop.f32.mrf.mxu0
        %v3057 = vadd.f32 %v2968, %v3056
        %3058 = vdwg.mxu0
        %v3059 = vmax.f32 %v2980, 0.0
        %v3060 = vmax.f32 %v2982, 0.0
        %v3061 = vmax.f32 %v2985, 0.0
        %v3062 = vmax.f32 %v2987, 0.0
        %v3063 = vmax.f32 %v2990, 0.0
        %v3064 = vmax.f32 %v2992, 0.0
        %v3065 = vmax.f32 %v2995, 0.0
        %v3066 = vmax.f32 %v2997, 0.0
        %v3067 = vmax.f32 %v3000, 0.0
        %v3068 = vmax.f32 %v3002, 0.0
        %v3069 = vmax.f32 %v3005, 0.0
        %v3070 = vmax.f32 %v3007, 0.0
        %v3071 = vmax.f32 %v3010, 0.0
        %v3072 = vmax.f32 %v3012, 0.0
        %v3073 = vmax.f32 %v3015, 0.0
        %v3074 = vmax.f32 %v3017, 0.0
        %v3075 = vmax.f32 %v3020, 0.0
        %v3076 = vmax.f32 %v3022, 0.0
        %v3077 = vmax.f32 %v3025, 0.0
        %v3078 = vmax.f32 %v3027, 0.0
        %v3079 = vmax.f32 %v3030, 0.0
        %v3080 = vmax.f32 %v3032, 0.0
        %v3081 = vmax.f32 %v3035, 0.0
        %v3082 = vmax.f32 %v3037, 0.0
        %v3083 = vmax.f32 %v3040, 0.0
        %v3084 = vmax.f32 %v3042, 0.0
        %v3085 = vmax.f32 %v3045, 0.0
        %v3086 = vmax.f32 %v3047, 0.0
        %v3087 = vmax.f32 %v3050, 0.0
        %v3088 = vmax.f32 %v3052, 0.0
        %v3089 = vmax.f32 %v3055, 0.0
        %v3090 = vmax.f32 %v3057, 0.0
        %3091 = vst [vmem:[#allocation4] sm:$0xff] %v3059
        %3092 = vst [vmem:[#allocation4 + $0x8] sm:$0xff] %v3060
        %3093 = vst [vmem:[#allocation4 + $0x10] sm:$0xff] %v3061
        %3094 = vst [vmem:[#allocation4 + $0x18] sm:$0xff] %v3062
        %3095 = vst [vmem:[#allocation4 + $0x20] sm:$0xff] %v3063
        %3096 = vst [vmem:[#allocation4 + $0x28] sm:$0xff] %v3064
        %3097 = vst [vmem:[#allocation4 + $0x30] sm:$0xff] %v3065
        %3098 = vst [vmem:[#allocation4 + $0x38] sm:$0xff] %v3066
        %3099 = vst [vmem:[#allocation4 + $0x40] sm:$0xff] %v3067
        %3100 = vst [vmem:[#allocation4 + $0x48] sm:$0xff] %v3068
        %3101 = vst [vmem:[#allocation4 + $0x50] sm:$0xff] %v3069
        %3102 = vst [vmem:[#allocation4 + $0x58] sm:$0xff] %v3070
        %3103 = vst [vmem:[#allocation4 + $0x60] sm:$0xff] %v3071
        %3104 = vst [vmem:[#allocation4 + $0x68] sm:$0xff] %v3072
        %3105 = vst [vmem:[#allocation4 + $0x70] sm:$0xff] %v3073
        %3106 = vst [vmem:[#allocation4 + $0x78] sm:$0xff] %v3074
        %3107 = vst [vmem:[#allocation4 + $0x80] sm:$0xff] %v3075
        %3108 = vst [vmem:[#allocation4 + $0x88] sm:$0xff] %v3076
        %3109 = vst [vmem:[#allocation4 + $0x90] sm:$0xff] %v3077
        %3110 = vst [vmem:[#allocation4 + $0x98] sm:$0xff] %v3078
        %3111 = vst [vmem:[#allocation4 + $0xa0] sm:$0xff] %v3079
        %3112 = vst [vmem:[#allocation4 + $0xa8] sm:$0xff] %v3080
        %3113 = vst [vmem:[#allocation4 + $0xb0] sm:$0xff] %v3081
        %3114 = vst [vmem:[#allocation4 + $0xb8] sm:$0xff] %v3082
        %3115 = vst [vmem:[#allocation4 + $0xc0] sm:$0xff] %v3083
        %3116 = vst [vmem:[#allocation4 + $0xc8] sm:$0xff] %v3084
        %3117 = vst [vmem:[#allocation4 + $0xd0] sm:$0xff] %v3085
        %3118 = vst [vmem:[#allocation4 + $0xd8] sm:$0xff] %v3086
        %3119 = vst [vmem:[#allocation4 + $0xe0] sm:$0xff] %v3087
        %3120 = vst [vmem:[#allocation4 + $0xe8] sm:$0xff] %v3088
        %3121 = vst [vmem:[#allocation4 + $0xf0] sm:$0xff] %v3089
        %3122 = vst [vmem:[#allocation4 + $0xf8] sm:$0xff] %v3090
        %3123 = vst [vmem:[#allocation5] sm:$0xff] %v3059
        %3124 = vst [vmem:[#allocation5 + $0x8] sm:$0xff] %v3060
        %3125 = vst [vmem:[#allocation5 + $0x10] sm:$0xff] %v3061
        %3126 = vst [vmem:[#allocation5 + $0x18] sm:$0xff] %v3062
        %3127 = vst [vmem:[#allocation5 + $0x20] sm:$0xff] %v3063
        %3128 = vst [vmem:[#allocation5 + $0x28] sm:$0xff] %v3064
        %3129 = vst [vmem:[#allocation5 + $0x30] sm:$0xff] %v3065
        %3130 = vst [vmem:[#allocation5 + $0x38] sm:$0xff] %v3066
        %3131 = vst [vmem:[#allocation5 + $0x40] sm:$0xff] %v3067
        %3132 = vst [vmem:[#allocation5 + $0x48] sm:$0xff] %v3068
        %3133 = vst [vmem:[#allocation5 + $0x50] sm:$0xff] %v3069
        %3134 = vst [vmem:[#allocation5 + $0x58] sm:$0xff] %v3070
        %3135 = vst [vmem:[#allocation5 + $0x60] sm:$0xff] %v3071
        %3136 = vst [vmem:[#allocation5 + $0x68] sm:$0xff] %v3072
        %3137 = vst [vmem:[#allocation5 + $0x70] sm:$0xff] %v3073
        %3138 = vst [vmem:[#allocation5 + $0x78] sm:$0xff] %v3074
        %3139 = vst [vmem:[#allocation5 + $0x80] sm:$0xff] %v3075
        %3140 = vst [vmem:[#allocation5 + $0x88] sm:$0xff] %v3076
        %3141 = vst [vmem:[#allocation5 + $0x90] sm:$0xff] %v3077
        %3142 = vst [vmem:[#allocation5 + $0x98] sm:$0xff] %v3078
        %3143 = vst [vmem:[#allocation5 + $0xa0] sm:$0xff] %v3079
        %3144 = vst [vmem:[#allocation5 + $0xa8] sm:$0xff] %v3080
        %3145 = vst [vmem:[#allocation5 + $0xb0] sm:$0xff] %v3081
        %3146 = vst [vmem:[#allocation5 + $0xb8] sm:$0xff] %v3082
        %3147 = vst [vmem:[#allocation5 + $0xc0] sm:$0xff] %v3083
        %3148 = vst [vmem:[#allocation5 + $0xc8] sm:$0xff] %v3084
        %3149 = vst [vmem:[#allocation5 + $0xd0] sm:$0xff] %v3085
        %3150 = vst [vmem:[#allocation5 + $0xd8] sm:$0xff] %v3086
        %3151 = vst [vmem:[#allocation5 + $0xe0] sm:$0xff] %v3087
        %3152 = vst [vmem:[#allocation5 + $0xe8] sm:$0xff] %v3088
        %3153 = vst [vmem:[#allocation5 + $0xf0] sm:$0xff] %v3089
        %3154 = vst [vmem:[#allocation5 + $0xf8] sm:$0xff] %v3090
        %v3155 = vld [vmem:[#allocation4] sm:$0xff]
        %v3156 = vld [vmem:[#allocation4 + $0x8] sm:$0xff]
        %v3157 = vld [vmem:[#allocation4 + $0x10] sm:$0xff]
        %v3158 = vld [vmem:[#allocation4 + $0x18] sm:$0xff]
        %v3159 = vld [vmem:[#allocation4 + $0x20] sm:$0xff]
        %v3160 = vld [vmem:[#allocation4 + $0x28] sm:$0xff]
        %v3161 = vld [vmem:[#allocation4 + $0x30] sm:$0xff]
        %v3162 = vld [vmem:[#allocation4 + $0x38] sm:$0xff]
        %v3163 = vld [vmem:[#allocation4 + $0x40] sm:$0xff]
        %v3164 = vld [vmem:[#allocation4 + $0x48] sm:$0xff]
        %v3165 = vld [vmem:[#allocation4 + $0x50] sm:$0xff]
        %v3166 = vld [vmem:[#allocation4 + $0x58] sm:$0xff]
        %v3167 = vld [vmem:[#allocation4 + $0x60] sm:$0xff]
        %v3168 = vld [vmem:[#allocation4 + $0x68] sm:$0xff]
        %v3169 = vld [vmem:[#allocation4 + $0x70] sm:$0xff]
        %v3170 = vld [vmem:[#allocation4 + $0x78] sm:$0xff]
        %v3171 = vld [vmem:[#allocation4 + $0x80] sm:$0xff]
        %v3172 = vld [vmem:[#allocation4 + $0x88] sm:$0xff]
        %v3173 = vld [vmem:[#allocation4 + $0x90] sm:$0xff]
        %v3174 = vld [vmem:[#allocation4 + $0x98] sm:$0xff]
        %v3175 = vld [vmem:[#allocation4 + $0xa0] sm:$0xff]
        %v3176 = vld [vmem:[#allocation4 + $0xa8] sm:$0xff]
        %v3177 = vld [vmem:[#allocation4 + $0xb0] sm:$0xff]
        %v3178 = vld [vmem:[#allocation4 + $0xb8] sm:$0xff]
        %v3179 = vld [vmem:[#allocation4 + $0xc0] sm:$0xff]
        %v3180 = vld [vmem:[#allocation4 + $0xc8] sm:$0xff]
        %v3181 = vld [vmem:[#allocation4 + $0xd0] sm:$0xff]
        %v3182 = vld [vmem:[#allocation4 + $0xd8] sm:$0xff]
        %v3183 = vld [vmem:[#allocation4 + $0xe0] sm:$0xff]
        %v3184 = vld [vmem:[#allocation4 + $0xe8] sm:$0xff]
        %v3185 = vld [vmem:[#allocation4 + $0xf0] sm:$0xff]
        %v3186 = vld [vmem:[#allocation4 + $0xf8] sm:$0xff]
        %v3187 = vmax.f32 %v3155, %v3157
        %v3188 = vmax.f32 %v3156, %v3158
        %v3189 = vmax.f32 %v3157, %v3159
        %v3190 = vmax.f32 %v3158, %v3160
        %v3191 = vmax.f32 %v3159, %v3161
        %v3192 = vmax.f32 %v3160, %v3162
        %v3193 = vmax.f32 %v3161, %v3163
        %v3194 = vmax.f32 %v3162, %v3164
        %v3195 = vmax.f32 %v3163, %v3165
        %v3196 = vmax.f32 %v3164, %v3166
        %v3197 = vmax.f32 %v3165, %v3167
        %v3198 = vmax.f32 %v3166, %v3168
        %v3199 = vmax.f32 %v3167, %v3169
        %v3200 = vmax.f32 %v3168, %v3170
        %v3201 = vmax.f32 %v3169, %v3171
        %v3202 = vmax.f32 %v3170, %v3172
        %v3203 = vmax.f32 %v3171, %v3173
        %v3204 = vmax.f32 %v3172, %v3174
        %v3205 = vmax.f32 %v3173, %v3175
        %v3206 = vmax.f32 %v3174, %v3176
        %v3207 = vmax.f32 %v3175, %v3177
        %v3208 = vmax.f32 %v3176, %v3178
        %v3209 = vmax.f32 %v3177, %v3179
        %v3210 = vmax.f32 %v3178, %v3180
        %v3211 = vmax.f32 %v3179, %v3181
        %v3212 = vmax.f32 %v3180, %v3182
        %v3213 = vmax.f32 %v3181, %v3183
        %v3214 = vmax.f32 %v3182, %v3184
        %v3215 = vmax.f32 %v3183, %v3185
        %v3216 = vmax.f32 %v3184, %v3186
        %3217 = vst [vmem:[#allocation4] sm:$0xff] %v3187
        %3218 = vst [vmem:[#allocation4 + $0x8] sm:$0xff] %v3188
        %3219 = vst [vmem:[#allocation4 + $0x10] sm:$0xff] %v3189
        %3220 = vst [vmem:[#allocation4 + $0x18] sm:$0xff] %v3190
        %3221 = vst [vmem:[#allocation4 + $0x20] sm:$0xff] %v3191
        %3222 = vst [vmem:[#allocation4 + $0x28] sm:$0xff] %v3192
        %3223 = vst [vmem:[#allocation4 + $0x30] sm:$0xff] %v3193
        %3224 = vst [vmem:[#allocation4 + $0x38] sm:$0xff] %v3194
        %3225 = vst [vmem:[#allocation4 + $0x40] sm:$0xff] %v3195
        %3226 = vst [vmem:[#allocation4 + $0x48] sm:$0xff] %v3196
        %3227 = vst [vmem:[#allocation4 + $0x50] sm:$0xff] %v3197
        %3228 = vst [vmem:[#allocation4 + $0x58] sm:$0xff] %v3198
        %3229 = vst [vmem:[#allocation4 + $0x60] sm:$0xff] %v3199
        %3230 = vst [vmem:[#allocation4 + $0x68] sm:$0xff] %v3200
        %3231 = vst [vmem:[#allocation4 + $0x70] sm:$0xff] %v3201
        %3232 = vst [vmem:[#allocation4 + $0x78] sm:$0xff] %v3202
        %3233 = vst [vmem:[#allocation4 + $0x80] sm:$0xff] %v3203
        %3234 = vst [vmem:[#allocation4 + $0x88] sm:$0xff] %v3204
        %3235 = vst [vmem:[#allocation4 + $0x90] sm:$0xff] %v3205
        %3236 = vst [vmem:[#allocation4 + $0x98] sm:$0xff] %v3206
        %3237 = vst [vmem:[#allocation4 + $0xa0] sm:$0xff] %v3207
        %3238 = vst [vmem:[#allocation4 + $0xa8] sm:$0xff] %v3208
        %3239 = vst [vmem:[#allocation4 + $0xb0] sm:$0xff] %v3209
        %3240 = vst [vmem:[#allocation4 + $0xb8] sm:$0xff] %v3210
        %3241 = vst [vmem:[#allocation4 + $0xc0] sm:$0xff] %v3211
        %3242 = vst [vmem:[#allocation4 + $0xc8] sm:$0xff] %v3212
        %3243 = vst [vmem:[#allocation4 + $0xd0] sm:$0xff] %v3213
        %3244 = vst [vmem:[#allocation4 + $0xd8] sm:$0xff] %v3214
        %3245 = vst [vmem:[#allocation4 + $0xe0] sm:$0xff] %v3215
        %3246 = vst [vmem:[#allocation4 + $0xe8] sm:$0xff] %v3216
        %v3247 = vld [vmem:[#allocation4] sm:$0xff]
        %v3248 = vld [vmem:[#allocation4 + $0x8] sm:$0xff]
        %v3249 = vld [vmem:[#allocation4 + $0x10] sm:$0xff]
        %v3250 = vld [vmem:[#allocation4 + $0x18] sm:$0xff]
        %v3251 = vld [vmem:[#allocation4 + $0x20] sm:$0xff]
        %v3252 = vld [vmem:[#allocation4 + $0x28] sm:$0xff]
        %v3253 = vld [vmem:[#allocation4 + $0x30] sm:$0xff]
        %v3254 = vld [vmem:[#allocation4 + $0x38] sm:$0xff]
        %v3255 = vld [vmem:[#allocation4 + $0x40] sm:$0xff]
        %v3256 = vld [vmem:[#allocation4 + $0x48] sm:$0xff]
        %v3257 = vld [vmem:[#allocation4 + $0x50] sm:$0xff]
        %v3258 = vld [vmem:[#allocation4 + $0x58] sm:$0xff]
        %v3259 = vld [vmem:[#allocation4 + $0x60] sm:$0xff]
        %v3260 = vld [vmem:[#allocation4 + $0x68] sm:$0xff]
        %v3261 = vld [vmem:[#allocation4 + $0x70] sm:$0xff]
        %v3262 = vld [vmem:[#allocation4 + $0x78] sm:$0xff]
        %v3263 = vld [vmem:[#allocation4 + $0x80] sm:$0xff]
        %v3264 = vld [vmem:[#allocation4 + $0x88] sm:$0xff]
        %v3265 = vld [vmem:[#allocation4 + $0x90] sm:$0xff]
        %v3266 = vld [vmem:[#allocation4 + $0x98] sm:$0xff]
        %v3267 = vld [vmem:[#allocation4 + $0xa0] sm:$0xff]
        %v3268 = vld [vmem:[#allocation4 + $0xa8] sm:$0xff]
        %v3269 = vld [vmem:[#allocation4 + $0xb0] sm:$0xff]
        %v3270 = vld [vmem:[#allocation4 + $0xb8] sm:$0xff]
        %v3271 = vld [vmem:[#allocation4 + $0xc0] sm:$0xff]
        %v3272 = vld [vmem:[#allocation4 + $0xc8] sm:$0xff]
        %v3273 = vld [vmem:[#allocation4 + $0xd0] sm:$0xff]
        %v3274 = vld [vmem:[#allocation4 + $0xd8] sm:$0xff]
        %v3275 = vld [vmem:[#allocation4 + $0xe0] sm:$0xff]
        %v3276 = vld [vmem:[#allocation4 + $0xe8] sm:$0xff]
        %v3277 = vld [vmem:[#allocation4 + $0xf0] sm:$0xff]
        %v3278 = vld [vmem:[#allocation4 + $0xf8] sm:$0xff]
        %v3279 = vmax.f32 %v3247, %v3251
        %v3280 = vmax.f32 %v3248, %v3252
        %v3281 = vmax.f32 %v3249, %v3253
        %v3282 = vmax.f32 %v3250, %v3254
        %v3283 = vmax.f32 %v3251, %v3255
        %v3284 = vmax.f32 %v3252, %v3256
        %v3285 = vmax.f32 %v3253, %v3257
        %v3286 = vmax.f32 %v3254, %v3258
        %v3287 = vmax.f32 %v3255, %v3259
        %v3288 = vmax.f32 %v3256, %v3260
        %v3289 = vmax.f32 %v3257, %v3261
        %v3290 = vmax.f32 %v3258, %v3262
        %v3291 = vmax.f32 %v3259, %v3263
        %v3292 = vmax.f32 %v3260, %v3264
        %v3293 = vmax.f32 %v3261, %v3265
        %v3294 = vmax.f32 %v3262, %v3266
        %v3295 = vmax.f32 %v3263, %v3267
        %v3296 = vmax.f32 %v3264, %v3268
        %v3297 = vmax.f32 %v3265, %v3269
        %v3298 = vmax.f32 %v3266, %v3270
        %v3299 = vmax.f32 %v3267, %v3271
        %v3300 = vmax.f32 %v3268, %v3272
        %v3301 = vmax.f32 %v3269, %v3273
        %v3302 = vmax.f32 %v3270, %v3274
        %v3303 = vmax.f32 %v3271, %v3275
        %v3304 = vmax.f32 %v3272, %v3276
        %v3305 = vmax.f32 %v3273, %v3277
        %v3306 = vmax.f32 %v3274, %v3278
        %3307 = vst [vmem:[#allocation4] sm:$0xff] %v3279
        %3308 = vst [vmem:[#allocation4 + $0x8] sm:$0xff] %v3280
        %3309 = vst [vmem:[#allocation4 + $0x10] sm:$0xff] %v3281
        %3310 = vst [vmem:[#allocation4 + $0x18] sm:$0xff] %v3282
        %3311 = vst [vmem:[#allocation4 + $0x20] sm:$0xff] %v3283
        %3312 = vst [vmem:[#allocation4 + $0x28] sm:$0xff] %v3284
        %3313 = vst [vmem:[#allocation4 + $0x30] sm:$0xff] %v3285
        %3314 = vst [vmem:[#allocation4 + $0x38] sm:$0xff] %v3286
        %3315 = vst [vmem:[#allocation4 + $0x40] sm:$0xff] %v3287
        %3316 = vst [vmem:[#allocation4 + $0x48] sm:$0xff] %v3288
        %3317 = vst [vmem:[#allocation4 + $0x50] sm:$0xff] %v3289
        %3318 = vst [vmem:[#allocation4 + $0x58] sm:$0xff] %v3290
        %3319 = vst [vmem:[#allocation4 + $0x60] sm:$0xff] %v3291
        %3320 = vst [vmem:[#allocation4 + $0x68] sm:$0xff] %v3292
        %3321 = vst [vmem:[#allocation4 + $0x70] sm:$0xff] %v3293
        %3322 = vst [vmem:[#allocation4 + $0x78] sm:$0xff] %v3294
        %3323 = vst [vmem:[#allocation4 + $0x80] sm:$0xff] %v3295
        %3324 = vst [vmem:[#allocation4 + $0x88] sm:$0xff] %v3296
        %3325 = vst [vmem:[#allocation4 + $0x90] sm:$0xff] %v3297
        %3326 = vst [vmem:[#allocation4 + $0x98] sm:$0xff] %v3298
        %3327 = vst [vmem:[#allocation4 + $0xa0] sm:$0xff] %v3299
        %3328 = vst [vmem:[#allocation4 + $0xa8] sm:$0xff] %v3300
        %3329 = vst [vmem:[#allocation4 + $0xb0] sm:$0xff] %v3301
        %3330 = vst [vmem:[#allocation4 + $0xb8] sm:$0xff] %v3302
        %3331 = vst [vmem:[#allocation4 + $0xc0] sm:$0xff] %v3303
        %3332 = vst [vmem:[#allocation4 + $0xc8] sm:$0xff] %v3304
        %3333 = vst [vmem:[#allocation4 + $0xd0] sm:$0xff] %v3305
        %3334 = vst [vmem:[#allocation4 + $0xd8] sm:$0xff] %v3306
        %v3335 = vld [vmem:[#allocation4] sm:$0xff]
        %v3336 = vld [vmem:[#allocation4 + $0x8] sm:$0xff]
        %v3337 = vld [vmem:[#allocation4 + $0x10] sm:$0xff]
        %v3338 = vld [vmem:[#allocation4 + $0x18] sm:$0xff]
        %v3339 = vld [vmem:[#allocation4 + $0x20] sm:$0xff]
        %v3340 = vld [vmem:[#allocation4 + $0x28] sm:$0xff]
        %v3341 = vld [vmem:[#allocation4 + $0x30] sm:$0xff]
        %v3342 = vld [vmem:[#allocation4 + $0x38] sm:$0xff]
        %v3343 = vld [vmem:[#allocation4 + $0x40] sm:$0xff]
        %v3344 = vld [vmem:[#allocation4 + $0x48] sm:$0xff]
        %v3345 = vld [vmem:[#allocation4 + $0x50] sm:$0xff]
        %v3346 = vld [vmem:[#allocation4 + $0x58] sm:$0xff]
        %v3347 = vld [vmem:[#allocation4 + $0x60] sm:$0xff]
        %v3348 = vld [vmem:[#allocation4 + $0x68] sm:$0xff]
        %v3349 = vld [vmem:[#allocation4 + $0x70] sm:$0xff]
        %v3350 = vld [vmem:[#allocation4 + $0x78] sm:$0xff]
        %v3351 = vld [vmem:[#allocation4 + $0x80] sm:$0xff]
        %v3352 = vld [vmem:[#allocation4 + $0x88] sm:$0xff]
        %v3353 = vld [vmem:[#allocation4 + $0x90] sm:$0xff]
        %v3354 = vld [vmem:[#allocation4 + $0x98] sm:$0xff]
        %v3355 = vld [vmem:[#allocation4 + $0xa0] sm:$0xff]
        %v3356 = vld [vmem:[#allocation4 + $0xa8] sm:$0xff]
        %v3357 = vld [vmem:[#allocation4 + $0xb0] sm:$0xff]
        %v3358 = vld [vmem:[#allocation4 + $0xb8] sm:$0xff]
        %v3359 = vld [vmem:[#allocation4 + $0xc0] sm:$0xff]
        %v3360 = vld [vmem:[#allocation4 + $0xc8] sm:$0xff]
        %v3361 = vld [vmem:[#allocation4 + $0xd0] sm:$0xff]
        %v3362 = vld [vmem:[#allocation4 + $0xd8] sm:$0xff]
        %v3363 = vld [vmem:[#allocation4 + $0xe0] sm:$0xff]
        %v3364 = vld [vmem:[#allocation4 + $0xe8] sm:$0xff]
        %v3365 = vld [vmem:[#allocation4 + $0xf0] sm:$0xff]
        %v3366 = vld [vmem:[#allocation4 + $0xf8] sm:$0xff]
        %v3367 = vmax.f32 %v3335, %v3343
        %v3368 = vmax.f32 %v3336, %v3344
        %v3369 = vmax.f32 %v3337, %v3345
        %v3370 = vmax.f32 %v3338, %v3346
        %v3371 = vmax.f32 %v3339, %v3347
        %v3372 = vmax.f32 %v3340, %v3348
        %v3373 = vmax.f32 %v3341, %v3349
        %v3374 = vmax.f32 %v3342, %v3350
        %v3375 = vmax.f32 %v3343, %v3351
        %v3376 = vmax.f32 %v3344, %v3352
        %v3377 = vmax.f32 %v3345, %v3353
        %v3378 = vmax.f32 %v3346, %v3354
        %v3379 = vmax.f32 %v3347, %v3355
        %v3380 = vmax.f32 %v3348, %v3356
        %v3381 = vmax.f32 %v3349, %v3357
        %v3382 = vmax.f32 %v3350, %v3358
        %v3383 = vmax.f32 %v3351, %v3359
        %v3384 = vmax.f32 %v3352, %v3360
        %v3385 = vmax.f32 %v3353, %v3361
        %v3386 = vmax.f32 %v3354, %v3362
        %v3387 = vmax.f32 %v3355, %v3363
        %v3388 = vmax.f32 %v3356, %v3364
        %v3389 = vmax.f32 %v3357, %v3365
        %v3390 = vmax.f32 %v3358, %v3366
        %3391 = vst [vmem:[#allocation4] sm:$0xff] %v3367
        %3392 = vst [vmem:[#allocation4 + $0x8] sm:$0xff] %v3368
        %3393 = vst [vmem:[#allocation4 + $0x10] sm:$0xff] %v3369
        %3394 = vst [vmem:[#allocation4 + $0x18] sm:$0xff] %v3370
        %3395 = vst [vmem:[#allocation4 + $0x20] sm:$0xff] %v3371
        %3396 = vst [vmem:[#allocation4 + $0x28] sm:$0xff] %v3372
        %3397 = vst [vmem:[#allocation4 + $0x30] sm:$0xff] %v3373
        %3398 = vst [vmem:[#allocation4 + $0x38] sm:$0xff] %v3374
        %3399 = vst [vmem:[#allocation4 + $0x40] sm:$0xff] %v3375
        %3400 = vst [vmem:[#allocation4 + $0x48] sm:$0xff] %v3376
        %3401 = vst [vmem:[#allocation4 + $0x50] sm:$0xff] %v3377
        %3402 = vst [vmem:[#allocation4 + $0x58] sm:$0xff] %v3378
        %3403 = vst [vmem:[#allocation4 + $0x60] sm:$0xff] %v3379
        %3404 = vst [vmem:[#allocation4 + $0x68] sm:$0xff] %v3380
        %3405 = vst [vmem:[#allocation4 + $0x70] sm:$0xff] %v3381
        %3406 = vst [vmem:[#allocation4 + $0x78] sm:$0xff] %v3382
        %3407 = vst [vmem:[#allocation4 + $0x80] sm:$0xff] %v3383
        %3408 = vst [vmem:[#allocation4 + $0x88] sm:$0xff] %v3384
        %3409 = vst [vmem:[#allocation4 + $0x90] sm:$0xff] %v3385
        %3410 = vst [vmem:[#allocation4 + $0x98] sm:$0xff] %v3386
        %3411 = vst [vmem:[#allocation4 + $0xa0] sm:$0xff] %v3387
        %3412 = vst [vmem:[#allocation4 + $0xa8] sm:$0xff] %v3388
        %3413 = vst [vmem:[#allocation4 + $0xb0] sm:$0xff] %v3389
        %3414 = vst [vmem:[#allocation4 + $0xb8] sm:$0xff] %v3390
        %v3415 = vld [vmem:[#allocation4] sm:$0xff]
        %v3416 = vld [vmem:[#allocation4 + $0x8] sm:$0xff]
        %v3417 = vld [vmem:[#allocation4 + $0x10] sm:$0xff]
        %v3418 = vld [vmem:[#allocation4 + $0x18] sm:$0xff]
        %v3419 = vld [vmem:[#allocation4 + $0x20] sm:$0xff]
        %v3420 = vld [vmem:[#allocation4 + $0x28] sm:$0xff]
        %v3421 = vld [vmem:[#allocation4 + $0x30] sm:$0xff]
        %v3422 = vld [vmem:[#allocation4 + $0x38] sm:$0xff]
        %v3423 = vld [vmem:[#allocation4 + $0x40] sm:$0xff]
        %v3424 = vld [vmem:[#allocation4 + $0x48] sm:$0xff]
        %v3425 = vld [vmem:[#allocation4 + $0x50] sm:$0xff]
        %v3426 = vld [vmem:[#allocation4 + $0x58] sm:$0xff]
        %v3427 = vld [vmem:[#allocation4 + $0x60] sm:$0xff]
        %v3428 = vld [vmem:[#allocation4 + $0x68] sm:$0xff]
        %v3429 = vld [vmem:[#allocation4 + $0x70] sm:$0xff]
        %v3430 = vld [vmem:[#allocation4 + $0x78] sm:$0xff]
        %v3431 = vld [vmem:[#allocation4 + $0x80] sm:$0xff]
        %v3432 = vld [vmem:[#allocation4 + $0x88] sm:$0xff]
        %v3433 = vld [vmem:[#allocation4 + $0x90] sm:$0xff]
        %v3434 = vld [vmem:[#allocation4 + $0x98] sm:$0xff]
        %v3435 = vld [vmem:[#allocation4 + $0xa0] sm:$0xff]
        %v3436 = vld [vmem:[#allocation4 + $0xa8] sm:$0xff]
        %v3437 = vld [vmem:[#allocation4 + $0xb0] sm:$0xff]
        %v3438 = vld [vmem:[#allocation4 + $0xb8] sm:$0xff]
        %v3439 = vld [vmem:[#allocation4 + $0xc0] sm:$0xff]
        %v3440 = vld [vmem:[#allocation4 + $0xc8] sm:$0xff]
        %v3441 = vld [vmem:[#allocation4 + $0xd0] sm:$0xff]
        %v3442 = vld [vmem:[#allocation4 + $0xd8] sm:$0xff]
        %v3443 = vld [vmem:[#allocation4 + $0xe0] sm:$0xff]
        %v3444 = vld [vmem:[#allocation4 + $0xe8] sm:$0xff]
        %v3445 = vld [vmem:[#allocation4 + $0xf0] sm:$0xff]
        %v3446 = vld [vmem:[#allocation4 + $0xf8] sm:$0xff]
        %v3447 = vmax.f32 %v3415, %v3431
        %v3448 = vmax.f32 %v3416, %v3432
        %v3449 = vmax.f32 %v3417, %v3433
        %v3450 = vmax.f32 %v3418, %v3434
        %v3451 = vmax.f32 %v3419, %v3435
        %v3452 = vmax.f32 %v3420, %v3436
        %v3453 = vmax.f32 %v3421, %v3437
        %v3454 = vmax.f32 %v3422, %v3438
        %v3455 = vmax.f32 %v3423, %v3439
        %v3456 = vmax.f32 %v3424, %v3440
        %v3457 = vmax.f32 %v3425, %v3441
        %v3458 = vmax.f32 %v3426, %v3442
        %v3459 = vmax.f32 %v3427, %v3443
        %v3460 = vmax.f32 %v3428, %v3444
        %v3461 = vmax.f32 %v3429, %v3445
        %v3462 = vmax.f32 %v3430, %v3446
        %3463 = vst [vmem:[#allocation4] sm:$0xff] %v3447
        %3464 = vst [vmem:[#allocation4 + $0x8] sm:$0xff] %v3448
        %3465 = vst [vmem:[#allocation4 + $0x10] sm:$0xff] %v3449
        %3466 = vst [vmem:[#allocation4 + $0x18] sm:$0xff] %v3450
        %3467 = vst [vmem:[#allocation4 + $0x20] sm:$0xff] %v3451
        %3468 = vst [vmem:[#allocation4 + $0x28] sm:$0xff] %v3452
        %3469 = vst [vmem:[#allocation4 + $0x30] sm:$0xff] %v3453
        %3470 = vst [vmem:[#allocation4 + $0x38] sm:$0xff] %v3454
        %3471 = vst [vmem:[#allocation4 + $0x40] sm:$0xff] %v3455
        %3472 = vst [vmem:[#allocation4 + $0x48] sm:$0xff] %v3456
        %3473 = vst [vmem:[#allocation4 + $0x50] sm:$0xff] %v3457
        %3474 = vst [vmem:[#allocation4 + $0x58] sm:$0xff] %v3458
        %3475 = vst [vmem:[#allocation4 + $0x60] sm:$0xff] %v3459
        %3476 = vst [vmem:[#allocation4 + $0x68] sm:$0xff] %v3460
        %3477 = vst [vmem:[#allocation4 + $0x70] sm:$0xff] %v3461
        %3478 = vst [vmem:[#allocation4 + $0x78] sm:$0xff] %v3462
        %v3479 = vld [vmem:[#allocation5] sm:$0xff]
        %v3480 = vld [vmem:[#allocation5 + $0x8] sm:$0xff]
        %v3481 = vld [vmem:[#allocation5 + $0x10] sm:$0xff]
        %v3482 = vld [vmem:[#allocation5 + $0x18] sm:$0xff]
        %v3483 = vld [vmem:[#allocation5 + $0x20] sm:$0xff]
        %v3484 = vld [vmem:[#allocation5 + $0x28] sm:$0xff]
        %v3485 = vld [vmem:[#allocation5 + $0x30] sm:$0xff]
        %v3486 = vld [vmem:[#allocation5 + $0x38] sm:$0xff]
        %v3487 = vld [vmem:[#allocation5 + $0x40] sm:$0xff]
        %v3488 = vld [vmem:[#allocation5 + $0x48] sm:$0xff]
        %v3489 = vld [vmem:[#allocation5 + $0x50] sm:$0xff]
        %v3490 = vld [vmem:[#allocation5 + $0x58] sm:$0xff]
        %v3491 = vld [vmem:[#allocation5 + $0x60] sm:$0xff]
        %v3492 = vld [vmem:[#allocation5 + $0x68] sm:$0xff]
        %v3493 = vld [vmem:[#allocation5 + $0x70] sm:$0xff]
        %v3494 = vld [vmem:[#allocation5 + $0x78] sm:$0xff]
        %v3495 = vld [vmem:[#allocation5 + $0x80] sm:$0xff]
        %v3496 = vld [vmem:[#allocation5 + $0x88] sm:$0xff]
        %v3497 = vld [vmem:[#allocation5 + $0x90] sm:$0xff]
        %v3498 = vld [vmem:[#allocation5 + $0x98] sm:$0xff]
        %v3499 = vld [vmem:[#allocation5 + $0xa0] sm:$0xff]
        %v3500 = vld [vmem:[#allocation5 + $0xa8] sm:$0xff]
        %v3501 = vld [vmem:[#allocation5 + $0xb0] sm:$0xff]
        %v3502 = vld [vmem:[#allocation5 + $0xb8] sm:$0xff]
        %v3503 = vld [vmem:[#allocation5 + $0xc0] sm:$0xff]
        %v3504 = vld [vmem:[#allocation5 + $0xc8] sm:$0xff]
        %v3505 = vld [vmem:[#allocation5 + $0xd0] sm:$0xff]
        %v3506 = vld [vmem:[#allocation5 + $0xd8] sm:$0xff]
        %v3507 = vld [vmem:[#allocation5 + $0xe0] sm:$0xff]
        %v3508 = vld [vmem:[#allocation5 + $0xe8] sm:$0xff]
        %v3509 = vld [vmem:[#allocation5 + $0xf0] sm:$0xff]
        %v3510 = vld [vmem:[#allocation5 + $0xf8] sm:$0xff]
        %vm3543 = vcmask 1046528
        %v3544 = vrot.slane %v3479, 1
        %v3545 = vrot.slane %v3480, 1
        %v3546 = vsel %vm3543, %v3544, %v3545
        %v3547 = vrot.slane %v3481, 1
        %v3548 = vrot.slane %v3482, 1
        %v3549 = vsel %vm3543, %v3547, %v3548
        %v3550 = vrot.slane %v3483, 1
        %v3551 = vrot.slane %v3484, 1
        %v3552 = vsel %vm3543, %v3550, %v3551
        %v3553 = vrot.slane %v3485, 1
        %v3554 = vrot.slane %v3486, 1
        %v3555 = vsel %vm3543, %v3553, %v3554
        %v3556 = vrot.slane %v3487, 1
        %v3557 = vrot.slane %v3488, 1
        %v3558 = vsel %vm3543, %v3556, %v3557
        %v3559 = vrot.slane %v3489, 1
        %v3560 = vrot.slane %v3490, 1
        %v3561 = vsel %vm3543, %v3559, %v3560
        %v3562 = vrot.slane %v3491, 1
        %v3563 = vrot.slane %v3492, 1
        %v3564 = vsel %vm3543, %v3562, %v3563
        %v3565 = vrot.slane %v3493, 1
        %v3566 = vrot.slane %v3494, 1
        %v3567 = vsel %vm3543, %v3565, %v3566
        %v3568 = vrot.slane %v3495, 1
        %v3569 = vrot.slane %v3496, 1
        %v3570 = vsel %vm3543, %v3568, %v3569
        %v3571 = vrot.slane %v3497, 1
        %v3572 = vrot.slane %v3498, 1
        %v3573 = vsel %vm3543, %v3571, %v3572
        %v3574 = vrot.slane %v3499, 1
        %v3575 = vrot.slane %v3500, 1
        %v3576 = vsel %vm3543, %v3574, %v3575
        %v3577 = vrot.slane %v3501, 1
        %v3578 = vrot.slane %v3502, 1
        %v3579 = vsel %vm3543, %v3577, %v3578
        %v3580 = vrot.slane %v3503, 1
        %v3581 = vrot.slane %v3504, 1
        %v3582 = vsel %vm3543, %v3580, %v3581
        %v3583 = vrot.slane %v3505, 1
        %v3584 = vrot.slane %v3506, 1
        %v3585 = vsel %vm3543, %v3583, %v3584
        %v3586 = vrot.slane %v3507, 1
        %v3587 = vrot.slane %v3508, 1
        %v3588 = vsel %vm3543, %v3586, %v3587
        %v3589 = vrot.slane %v3509, 1
        %v3590 = vrot.slane %v3510, 1
        %v3591 = vsel %vm3543, %v3589, %v3590
        %v3624 = vmax.f32 %v3479, %v3546
        %v3625 = vmax.f32 %v3480, %v3545
        %v3626 = vmax.f32 %v3481, %v3549
        %v3627 = vmax.f32 %v3482, %v3548
        %v3628 = vmax.f32 %v3483, %v3552
        %v3629 = vmax.f32 %v3484, %v3551
        %v3630 = vmax.f32 %v3485, %v3555
        %v3631 = vmax.f32 %v3486, %v3554
        %v3632 = vmax.f32 %v3487, %v3558
        %v3633 = vmax.f32 %v3488, %v3557
        %v3634 = vmax.f32 %v3489, %v3561
        %v3635 = vmax.f32 %v3490, %v3560
        %v3636 = vmax.f32 %v3491, %v3564
        %v3637 = vmax.f32 %v3492, %v3563
        %v3638 = vmax.f32 %v3493, %v3567
        %v3639 = vmax.f32 %v3494, %v3566
        %v3640 = vmax.f32 %v3495, %v3570
        %v3641 = vmax.f32 %v3496, %v3569
        %v3642 = vmax.f32 %v3497, %v3573
        %v3643 = vmax.f32 %v3498, %v3572
        %v3644 = vmax.f32 %v3499, %v3576
        %v3645 = vmax.f32 %v3500, %v3575
        %v3646 = vmax.f32 %v3501, %v3579
        %v3647 = vmax.f32 %v3502, %v3578
        %v3648 = vmax.f32 %v3503, %v3582
        %v3649 = vmax.f32 %v3504, %v3581
        %v3650 = vmax.f32 %v3505, %v3585
        %v3651 = vmax.f32 %v3506, %v3584
        %v3652 = vmax.f32 %v3507, %v3588
        %v3653 = vmax.f32 %v3508, %v3587
        %v3654 = vmax.f32 %v3509, %v3591
        %v3655 = vmax.f32 %v3510, %v3590
        %3656 = vst [vmem:[#allocation5] sm:$0xff] %v3624
        %3657 = vst [vmem:[#allocation5 + $0x8] sm:$0x7f] %v3625
        %3658 = vst [vmem:[#allocation5 + $0x10] sm:$0xff] %v3626
        %3659 = vst [vmem:[#allocation5 + $0x18] sm:$0x7f] %v3627
        %3660 = vst [vmem:[#allocation5 + $0x20] sm:$0xff] %v3628
        %3661 = vst [vmem:[#allocation5 + $0x28] sm:$0x7f] %v3629
        %3662 = vst [vmem:[#allocation5 + $0x30] sm:$0xff] %v3630
        %3663 = vst [vmem:[#allocation5 + $0x38] sm:$0x7f] %v3631
        %3664 = vst [vmem:[#allocation5 + $0x40] sm:$0xff] %v3632
        %3665 = vst [vmem:[#allocation5 + $0x48] sm:$0x7f] %v3633
        %3666 = vst [vmem:[#allocation5 + $0x50] sm:$0xff] %v3634
        %3667 = vst [vmem:[#allocation5 + $0x58] sm:$0x7f] %v3635
        %3668 = vst [vmem:[#allocation5 + $0x60] sm:$0xff] %v3636
        %3669 = vst [vmem:[#allocation5 + $0x68] sm:$0x7f] %v3637
        %3670 = vst [vmem:[#allocation5 + $0x70] sm:$0xff] %v3638
        %3671 = vst [vmem:[#allocation5 + $0x78] sm:$0x7f] %v3639
        %3672 = vst [vmem:[#allocation5 + $0x80] sm:$0xff] %v3640
        %3673 = vst [vmem:[#allocation5 + $0x88] sm:$0x7f] %v3641
        %3674 = vst [vmem:[#allocation5 + $0x90] sm:$0xff] %v3642
        %3675 = vst [vmem:[#allocation5 + $0x98] sm:$0x7f] %v3643
        %3676 = vst [vmem:[#allocation5 + $0xa0] sm:$0xff] %v3644
        %3677 = vst [vmem:[#allocation5 + $0xa8] sm:$0x7f] %v3645
        %3678 = vst [vmem:[#allocation5 + $0xb0] sm:$0xff] %v3646
        %3679 = vst [vmem:[#allocation5 + $0xb8] sm:$0x7f] %v3647
        %3680 = vst [vmem:[#allocation5 + $0xc0] sm:$0xff] %v3648
        %3681 = vst [vmem:[#allocation5 + $0xc8] sm:$0x7f] %v3649
        %3682 = vst [vmem:[#allocation5 + $0xd0] sm:$0xff] %v3650
        %3683 = vst [vmem:[#allocation5 + $0xd8] sm:$0x7f] %v3651
        %3684 = vst [vmem:[#allocation5 + $0xe0] sm:$0xff] %v3652
        %3685 = vst [vmem:[#allocation5 + $0xe8] sm:$0x7f] %v3653
        %3686 = vst [vmem:[#allocation5 + $0xf0] sm:$0xff] %v3654
        %3687 = vst [vmem:[#allocation5 + $0xf8] sm:$0x7f] %v3655
        %v3688 = vld [vmem:[#allocation5] sm:$0xff]
        %v3689 = vld [vmem:[#allocation5 + $0x8] sm:$0xff]
        %v3690 = vld [vmem:[#allocation5 + $0x10] sm:$0xff]
        %v3691 = vld [vmem:[#allocation5 + $0x18] sm:$0xff]
        %v3692 = vld [vmem:[#allocation5 + $0x20] sm:$0xff]
        %v3693 = vld [vmem:[#allocation5 + $0x28] sm:$0xff]
        %v3694 = vld [vmem:[#allocation5 + $0x30] sm:$0xff]
        %v3695 = vld [vmem:[#allocation5 + $0x38] sm:$0xff]
        %v3696 = vld [vmem:[#allocation5 + $0x40] sm:$0xff]
        %v3697 = vld [vmem:[#allocation5 + $0x48] sm:$0xff]
        %v3698 = vld [vmem:[#allocation5 + $0x50] sm:$0xff]
        %v3699 = vld [vmem:[#allocation5 + $0x58] sm:$0xff]
        %v3700 = vld [vmem:[#allocation5 + $0x60] sm:$0xff]
        %v3701 = vld [vmem:[#allocation5 + $0x68] sm:$0xff]
        %v3702 = vld [vmem:[#allocation5 + $0x70] sm:$0xff]
        %v3703 = vld [vmem:[#allocation5 + $0x78] sm:$0xff]
        %v3704 = vld [vmem:[#allocation5 + $0x80] sm:$0xff]
        %v3705 = vld [vmem:[#allocation5 + $0x88] sm:$0xff]
        %v3706 = vld [vmem:[#allocation5 + $0x90] sm:$0xff]
        %v3707 = vld [vmem:[#allocation5 + $0x98] sm:$0xff]
        %v3708 = vld [vmem:[#allocation5 + $0xa0] sm:$0xff]
        %v3709 = vld [vmem:[#allocation5 + $0xa8] sm:$0xff]
        %v3710 = vld [vmem:[#allocation5 + $0xb0] sm:$0xff]
        %v3711 = vld [vmem:[#allocation5 + $0xb8] sm:$0xff]
        %v3712 = vld [vmem:[#allocation5 + $0xc0] sm:$0xff]
        %v3713 = vld [vmem:[#allocation5 + $0xc8] sm:$0xff]
        %v3714 = vld [vmem:[#allocation5 + $0xd0] sm:$0xff]
        %v3715 = vld [vmem:[#allocation5 + $0xd8] sm:$0xff]
        %v3716 = vld [vmem:[#allocation5 + $0xe0] sm:$0xff]
        %v3717 = vld [vmem:[#allocation5 + $0xe8] sm:$0xff]
        %v3718 = vld [vmem:[#allocation5 + $0xf0] sm:$0xff]
        %v3719 = vld [vmem:[#allocation5 + $0xf8] sm:$0xff]
        %vm3752 = vcmask 1045504
        %v3753 = vrot.slane %v3688, 2
        %v3754 = vrot.slane %v3689, 2
        %v3755 = vsel %vm3752, %v3753, %v3754
        %v3756 = vrot.slane %v3690, 2
        %v3757 = vrot.slane %v3691, 2
        %v3758 = vsel %vm3752, %v3756, %v3757
        %v3759 = vrot.slane %v3692, 2
        %v3760 = vrot.slane %v3693, 2
        %v3761 = vsel %vm3752, %v3759, %v3760
        %v3762 = vrot.slane %v3694, 2
        %v3763 = vrot.slane %v3695, 2
        %v3764 = vsel %vm3752, %v3762, %v3763
        %v3765 = vrot.slane %v3696, 2
        %v3766 = vrot.slane %v3697, 2
        %v3767 = vsel %vm3752, %v3765, %v3766
        %v3768 = vrot.slane %v3698, 2
        %v3769 = vrot.slane %v3699, 2
        %v3770 = vsel %vm3752, %v3768, %v3769
        %v3771 = vrot.slane %v3700, 2
        %v3772 = vrot.slane %v3701, 2
        %v3773 = vsel %vm3752, %v3771, %v3772
        %v3774 = vrot.slane %v3702, 2
        %v3775 = vrot.slane %v3703, 2
        %v3776 = vsel %vm3752, %v3774, %v3775
        %v3777 = vrot.slane %v3704, 2
        %v3778 = vrot.slane %v3705, 2
        %v3779 = vsel %vm3752, %v3777, %v3778
        %v3780 = vrot.slane %v3706, 2
        %v3781 = vrot.slane %v3707, 2
        %v3782 = vsel %vm3752, %v3780, %v3781
        %v3783 = vrot.slane %v3708, 2
        %v3784 = vrot.slane %v3709, 2
        %v3785 = vsel %vm3752, %v3783, %v3784
        %v3786 = vrot.slane %v3710, 2
        %v3787 = vrot.slane %v3711, 2
        %v3788 = vsel %vm3752, %v3786, %v3787
        %v3789 = vrot.slane %v3712, 2
        %v3790 = vrot.slane %v3713, 2
        %v3791 = vsel %vm3752, %v3789, %v3790
        %v3792 = vrot.slane %v3714, 2
        %v3793 = vrot.slane %v3715, 2
        %v3794 = vsel %vm3752, %v3792, %v3793
        %v3795 = vrot.slane %v3716, 2
        %v3796 = vrot.slane %v3717, 2
        %v3797 = vsel %vm3752, %v3795, %v3796
        %v3798 = vrot.slane %v3718, 2
        %v3799 = vrot.slane %v3719, 2
        %v3800 = vsel %vm3752, %v3798, %v3799
        %v3833 = vmax.f32 %v3688, %v3755
        %v3834 = vmax.f32 %v3689, %v3754
        %v3835 = vmax.f32 %v3690, %v3758
        %v3836 = vmax.f32 %v3691, %v3757
        %v3837 = vmax.f32 %v3692, %v3761
        %v3838 = vmax.f32 %v3693, %v3760
        %v3839 = vmax.f32 %v3694, %v3764
        %v3840 = vmax.f32 %v3695, %v3763
        %v3841 = vmax.f32 %v3696, %v3767
        %v3842 = vmax.f32 %v3697, %v3766
        %v3843 = vmax.f32 %v3698, %v3770
        %v3844 = vmax.f32 %v3699, %v3769
        %v3845 = vmax.f32 %v3700, %v3773
        %v3846 = vmax.f32 %v3701, %v3772
        %v3847 = vmax.f32 %v3702, %v3776
        %v3848 = vmax.f32 %v3703, %v3775
        %v3849 = vmax.f32 %v3704, %v3779
        %v3850 = vmax.f32 %v3705, %v3778
        %v3851 = vmax.f32 %v3706, %v3782
        %v3852 = vmax.f32 %v3707, %v3781
        %v3853 = vmax.f32 %v3708, %v3785
        %v3854 = vmax.f32 %v3709, %v3784
        %v3855 = vmax.f32 %v3710, %v3788
        %v3856 = vmax.f32 %v3711, %v3787
        %v3857 = vmax.f32 %v3712, %v3791
        %v3858 = vmax.f32 %v3713, %v3790
        %v3859 = vmax.f32 %v3714, %v3794
        %v3860 = vmax.f32 %v3715, %v3793
        %v3861 = vmax.f32 %v3716, %v3797
        %v3862 = vmax.f32 %v3717, %v3796
        %v3863 = vmax.f32 %v3718, %v3800
        %v3864 = vmax.f32 %v3719, %v3799
        %3865 = vst [vmem:[#allocation5] sm:$0xff] %v3833
        %3866 = vst [vmem:[#allocation5 + $0x8] sm:$0x3f] %v3834
        %3867 = vst [vmem:[#allocation5 + $0x10] sm:$0xff] %v3835
        %3868 = vst [vmem:[#allocation5 + $0x18] sm:$0x3f] %v3836
        %3869 = vst [vmem:[#allocation5 + $0x20] sm:$0xff] %v3837
        %3870 = vst [vmem:[#allocation5 + $0x28] sm:$0x3f] %v3838
        %3871 = vst [vmem:[#allocation5 + $0x30] sm:$0xff] %v3839
        %3872 = vst [vmem:[#allocation5 + $0x38] sm:$0x3f] %v3840
        %3873 = vst [vmem:[#allocation5 + $0x40] sm:$0xff] %v3841
        %3874 = vst [vmem:[#allocation5 + $0x48] sm:$0x3f] %v3842
        %3875 = vst [vmem:[#allocation5 + $0x50] sm:$0xff] %v3843
        %3876 = vst [vmem:[#allocation5 + $0x58] sm:$0x3f] %v3844
        %3877 = vst [vmem:[#allocation5 + $0x60] sm:$0xff] %v3845
        %3878 = vst [vmem:[#allocation5 + $0x68] sm:$0x3f] %v3846
        %3879 = vst [vmem:[#allocation5 + $0x70] sm:$0xff] %v3847
        %3880 = vst [vmem:[#allocation5 + $0x78] sm:$0x3f] %v3848
        %3881 = vst [vmem:[#allocation5 + $0x80] sm:$0xff] %v3849
        %3882 = vst [vmem:[#allocation5 + $0x88] sm:$0x3f] %v3850
        %3883 = vst [vmem:[#allocation5 + $0x90] sm:$0xff] %v3851
        %3884 = vst [vmem:[#allocation5 + $0x98] sm:$0x3f] %v3852
        %3885 = vst [vmem:[#allocation5 + $0xa0] sm:$0xff] %v3853
        %3886 = vst [vmem:[#allocation5 + $0xa8] sm:$0x3f] %v3854
        %3887 = vst [vmem:[#allocation5 + $0xb0] sm:$0xff] %v3855
        %3888 = vst [vmem:[#allocation5 + $0xb8] sm:$0x3f] %v3856
        %3889 = vst [vmem:[#allocation5 + $0xc0] sm:$0xff] %v3857
        %3890 = vst [vmem:[#allocation5 + $0xc8] sm:$0x3f] %v3858
        %3891 = vst [vmem:[#allocation5 + $0xd0] sm:$0xff] %v3859
        %3892 = vst [vmem:[#allocation5 + $0xd8] sm:$0x3f] %v3860
        %3893 = vst [vmem:[#allocation5 + $0xe0] sm:$0xff] %v3861
        %3894 = vst [vmem:[#allocation5 + $0xe8] sm:$0x3f] %v3862
        %3895 = vst [vmem:[#allocation5 + $0xf0] sm:$0xff] %v3863
        %3896 = vst [vmem:[#allocation5 + $0xf8] sm:$0x3f] %v3864
        %v3897 = vld [vmem:[#allocation5] sm:$0xff]
        %v3898 = vld [vmem:[#allocation5 + $0x8] sm:$0xff]
        %v3899 = vld [vmem:[#allocation5 + $0x10] sm:$0xff]
        %v3900 = vld [vmem:[#allocation5 + $0x18] sm:$0xff]
        %v3901 = vld [vmem:[#allocation5 + $0x20] sm:$0xff]
        %v3902 = vld [vmem:[#allocation5 + $0x28] sm:$0xff]
        %v3903 = vld [vmem:[#allocation5 + $0x30] sm:$0xff]
        %v3904 = vld [vmem:[#allocation5 + $0x38] sm:$0xff]
        %v3905 = vld [vmem:[#allocation5 + $0x40] sm:$0xff]
        %v3906 = vld [vmem:[#allocation5 + $0x48] sm:$0xff]
        %v3907 = vld [vmem:[#allocation5 + $0x50] sm:$0xff]
        %v3908 = vld [vmem:[#allocation5 + $0x58] sm:$0xff]
        %v3909 = vld [vmem:[#allocation5 + $0x60] sm:$0xff]
        %v3910 = vld [vmem:[#allocation5 + $0x68] sm:$0xff]
        %v3911 = vld [vmem:[#allocation5 + $0x70] sm:$0xff]
        %v3912 = vld [vmem:[#allocation5 + $0x78] sm:$0xff]
        %v3913 = vld [vmem:[#allocation5 + $0x80] sm:$0xff]
        %v3914 = vld [vmem:[#allocation5 + $0x88] sm:$0xff]
        %v3915 = vld [vmem:[#allocation5 + $0x90] sm:$0xff]
        %v3916 = vld [vmem:[#allocation5 + $0x98] sm:$0xff]
        %v3917 = vld [vmem:[#allocation5 + $0xa0] sm:$0xff]
        %v3918 = vld [vmem:[#allocation5 + $0xa8] sm:$0xff]
        %v3919 = vld [vmem:[#allocation5 + $0xb0] sm:$0xff]
        %v3920 = vld [vmem:[#allocation5 + $0xb8] sm:$0xff]
        %v3921 = vld [vmem:[#allocation5 + $0xc0] sm:$0xff]
        %v3922 = vld [vmem:[#allocation5 + $0xc8] sm:$0xff]
        %v3923 = vld [vmem:[#allocation5 + $0xd0] sm:$0xff]
        %v3924 = vld [vmem:[#allocation5 + $0xd8] sm:$0xff]
        %v3925 = vld [vmem:[#allocation5 + $0xe0] sm:$0xff]
        %v3926 = vld [vmem:[#allocation5 + $0xe8] sm:$0xff]
        %v3927 = vld [vmem:[#allocation5 + $0xf0] sm:$0xff]
        %v3928 = vld [vmem:[#allocation5 + $0xf8] sm:$0xff]
        %vm3961 = vcmask 1043456
        %v3962 = vrot.slane %v3897, 4
        %v3963 = vrot.slane %v3898, 4
        %v3964 = vsel %vm3961, %v3962, %v3963
        %v3965 = vrot.slane %v3899, 4
        %v3966 = vrot.slane %v3900, 4
        %v3967 = vsel %vm3961, %v3965, %v3966
        %v3968 = vrot.slane %v3901, 4
        %v3969 = vrot.slane %v3902, 4
        %v3970 = vsel %vm3961, %v3968, %v3969
        %v3971 = vrot.slane %v3903, 4
        %v3972 = vrot.slane %v3904, 4
        %v3973 = vsel %vm3961, %v3971, %v3972
        %v3974 = vrot.slane %v3905, 4
        %v3975 = vrot.slane %v3906, 4
        %v3976 = vsel %vm3961, %v3974, %v3975
        %v3977 = vrot.slane %v3907, 4
        %v3978 = vrot.slane %v3908, 4
        %v3979 = vsel %vm3961, %v3977, %v3978
        %v3980 = vrot.slane %v3909, 4
        %v3981 = vrot.slane %v3910, 4
        %v3982 = vsel %vm3961, %v3980, %v3981
        %v3983 = vrot.slane %v3911, 4
        %v3984 = vrot.slane %v3912, 4
        %v3985 = vsel %vm3961, %v3983, %v3984
        %v3986 = vrot.slane %v3913, 4
        %v3987 = vrot.slane %v3914, 4
        %v3988 = vsel %vm3961, %v3986, %v3987
        %v3989 = vrot.slane %v3915, 4
        %v3990 = vrot.slane %v3916, 4
        %v3991 = vsel %vm3961, %v3989, %v3990
        %v3992 = vrot.slane %v3917, 4
        %v3993 = vrot.slane %v3918, 4
        %v3994 = vsel %vm3961, %v3992, %v3993
        %v3995 = vrot.slane %v3919, 4
        %v3996 = vrot.slane %v3920, 4
        %v3997 = vsel %vm3961, %v3995, %v3996
        %v3998 = vrot.slane %v3921, 4
        %v3999 = vrot.slane %v3922, 4
        %v4000 = vsel %vm3961, %v3998, %v3999
        %v4001 = vrot.slane %v3923, 4
        %v4002 = vrot.slane %v3924, 4
        %v4003 = vsel %vm3961, %v4001, %v4002
        %v4004 = vrot.slane %v3925, 4
        %v4005 = vrot.slane %v3926, 4
        %v4006 = vsel %vm3961, %v4004, %v4005
        %v4007 = vrot.slane %v3927, 4
        %v4008 = vrot.slane %v3928, 4
        %v4009 = vsel %vm3961, %v4007, %v4008
        %v4042 = vmax.f32 %v3897, %v3964
        %v4043 = vmax.f32 %v3898, %v3963
        %v4044 = vmax.f32 %v3899, %v3967
        %v4045 = vmax.f32 %v3900, %v3966
        %v4046 = vmax.f32 %v3901, %v3970
        %v4047 = vmax.f32 %v3902, %v3969
        %v4048 = vmax.f32 %v3903, %v3973
        %v4049 = vmax.f32 %v3904, %v3972
        %v4050 = vmax.f32 %v3905, %v3976
        %v4051 = vmax.f32 %v3906, %v3975
        %v4052 = vmax.f32 %v3907, %v3979
        %v4053 = vmax.f32 %v3908, %v3978
        %v4054 = vmax.f32 %v3909, %v3982
        %v4055 = vmax.f32 %v3910, %v3981
        %v4056 = vmax.f32 %v3911, %v3985
        %v4057 = vmax.f32 %v3912, %v3984
        %v4058 = vmax.f32 %v3913, %v3988
        %v4059 = vmax.f32 %v3914, %v3987
        %v4060 = vmax.f32 %v3915, %v3991
        %v4061 = vmax.f32 %v3916, %v3990
        %v4062 = vmax.f32 %v3917, %v3994
        %v4063 = vmax.f32 %v3918, %v3993
        %v4064 = vmax.f32 %v3919, %v3997
        %v4065 = vmax.f32 %v3920, %v3996
        %v4066 = vmax.f32 %v3921, %v4000
        %v4067 = vmax.f32 %v3922, %v3999
        %v4068 = vmax.f32 %v3923, %v4003
        %v4069 = vmax.f32 %v3924, %v4002
        %v4070 = vmax.f32 %v3925, %v4006
        %v4071 = vmax.f32 %v3926, %v4005
        %v4072 = vmax.f32 %v3927, %v4009
        %v4073 = vmax.f32 %v3928, %v4008
        %4074 = vst [vmem:[#allocation5] sm:$0xff] %v4042
        %4075 = vst [vmem:[#allocation5 + $0x8] sm:$0xf] %v4043
        %4076 = vst [vmem:[#allocation5 + $0x10] sm:$0xff] %v4044
        %4077 = vst [vmem:[#allocation5 + $0x18] sm:$0xf] %v4045
        %4078 = vst [vmem:[#allocation5 + $0x20] sm:$0xff] %v4046
        %4079 = vst [vmem:[#allocation5 + $0x28] sm:$0xf] %v4047
        %4080 = vst [vmem:[#allocation5 + $0x30] sm:$0xff] %v4048
        %4081 = vst [vmem:[#allocation5 + $0x38] sm:$0xf] %v4049
        %4082 = vst [vmem:[#allocation5 + $0x40] sm:$0xff] %v4050
        %4083 = vst [vmem:[#allocation5 + $0x48] sm:$0xf] %v4051
        %4084 = vst [vmem:[#allocation5 + $0x50] sm:$0xff] %v4052
        %4085 = vst [vmem:[#allocation5 + $0x58] sm:$0xf] %v4053
        %4086 = vst [vmem:[#allocation5 + $0x60] sm:$0xff] %v4054
        %4087 = vst [vmem:[#allocation5 + $0x68] sm:$0xf] %v4055
        %4088 = vst [vmem:[#allocation5 + $0x70] sm:$0xff] %v4056
        %4089 = vst [vmem:[#allocation5 + $0x78] sm:$0xf] %v4057
        %4090 = vst [vmem:[#allocation5 + $0x80] sm:$0xff] %v4058
        %4091 = vst [vmem:[#allocation5 + $0x88] sm:$0xf] %v4059
        %4092 = vst [vmem:[#allocation5 + $0x90] sm:$0xff] %v4060
        %4093 = vst [vmem:[#allocation5 + $0x98] sm:$0xf] %v4061
        %4094 = vst [vmem:[#allocation5 + $0xa0] sm:$0xff] %v4062
        %4095 = vst [vmem:[#allocation5 + $0xa8] sm:$0xf] %v4063
        %4096 = vst [vmem:[#allocation5 + $0xb0] sm:$0xff] %v4064
        %4097 = vst [vmem:[#allocation5 + $0xb8] sm:$0xf] %v4065
        %4098 = vst [vmem:[#allocation5 + $0xc0] sm:$0xff] %v4066
        %4099 = vst [vmem:[#allocation5 + $0xc8] sm:$0xf] %v4067
        %4100 = vst [vmem:[#allocation5 + $0xd0] sm:$0xff] %v4068
        %4101 = vst [vmem:[#allocation5 + $0xd8] sm:$0xf] %v4069
        %4102 = vst [vmem:[#allocation5 + $0xe0] sm:$0xff] %v4070
        %4103 = vst [vmem:[#allocation5 + $0xe8] sm:$0xf] %v4071
        %4104 = vst [vmem:[#allocation5 + $0xf0] sm:$0xff] %v4072
        %4105 = vst [vmem:[#allocation5 + $0xf8] sm:$0xf] %v4073
        %v4106 = vld [vmem:[#allocation5] sm:$0xff]
        %v4107 = vld [vmem:[#allocation5 + $0x8] sm:$0xff]
        %v4108 = vld [vmem:[#allocation5 + $0x10] sm:$0xff]
        %v4109 = vld [vmem:[#allocation5 + $0x18] sm:$0xff]
        %v4110 = vld [vmem:[#allocation5 + $0x20] sm:$0xff]
        %v4111 = vld [vmem:[#allocation5 + $0x28] sm:$0xff]
        %v4112 = vld [vmem:[#allocation5 + $0x30] sm:$0xff]
        %v4113 = vld [vmem:[#allocation5 + $0x38] sm:$0xff]
        %v4114 = vld [vmem:[#allocation5 + $0x40] sm:$0xff]
        %v4115 = vld [vmem:[#allocation5 + $0x48] sm:$0xff]
        %v4116 = vld [vmem:[#allocation5 + $0x50] sm:$0xff]
        %v4117 = vld [vmem:[#allocation5 + $0x58] sm:$0xff]
        %v4118 = vld [vmem:[#allocation5 + $0x60] sm:$0xff]
        %v4119 = vld [vmem:[#allocation5 + $0x68] sm:$0xff]
        %v4120 = vld [vmem:[#allocation5 + $0x70] sm:$0xff]
        %v4121 = vld [vmem:[#allocation5 + $0x78] sm:$0xff]
        %v4122 = vld [vmem:[#allocation5 + $0x80] sm:$0xff]
        %v4123 = vld [vmem:[#allocation5 + $0x88] sm:$0xff]
        %v4124 = vld [vmem:[#allocation5 + $0x90] sm:$0xff]
        %v4125 = vld [vmem:[#allocation5 + $0x98] sm:$0xff]
        %v4126 = vld [vmem:[#allocation5 + $0xa0] sm:$0xff]
        %v4127 = vld [vmem:[#allocation5 + $0xa8] sm:$0xff]
        %v4128 = vld [vmem:[#allocation5 + $0xb0] sm:$0xff]
        %v4129 = vld [vmem:[#allocation5 + $0xb8] sm:$0xff]
        %v4130 = vld [vmem:[#allocation5 + $0xc0] sm:$0xff]
        %v4131 = vld [vmem:[#allocation5 + $0xc8] sm:$0xff]
        %v4132 = vld [vmem:[#allocation5 + $0xd0] sm:$0xff]
        %v4133 = vld [vmem:[#allocation5 + $0xd8] sm:$0xff]
        %v4134 = vld [vmem:[#allocation5 + $0xe0] sm:$0xff]
        %v4135 = vld [vmem:[#allocation5 + $0xe8] sm:$0xff]
        %v4136 = vld [vmem:[#allocation5 + $0xf0] sm:$0xff]
        %v4137 = vld [vmem:[#allocation5 + $0xf8] sm:$0xff]
        %v4138 = vmax.f32 %v4106, %v4107
        %v4139 = vmax.f32 %v4108, %v4109
        %v4140 = vmax.f32 %v4110, %v4111
        %v4141 = vmax.f32 %v4112, %v4113
        %v4142 = vmax.f32 %v4114, %v4115
        %v4143 = vmax.f32 %v4116, %v4117
        %v4144 = vmax.f32 %v4118, %v4119
        %v4145 = vmax.f32 %v4120, %v4121
        %v4146 = vmax.f32 %v4122, %v4123
        %v4147 = vmax.f32 %v4124, %v4125
        %v4148 = vmax.f32 %v4126, %v4127
        %v4149 = vmax.f32 %v4128, %v4129
        %v4150 = vmax.f32 %v4130, %v4131
        %v4151 = vmax.f32 %v4132, %v4133
        %v4152 = vmax.f32 %v4134, %v4135
        %v4153 = vmax.f32 %v4136, %v4137
        %4154 = vst [vmem:[#allocation5] sm:$0xff] %v4138
        %4155 = vst [vmem:[#allocation5 + $0x10] sm:$0xff] %v4139
        %4156 = vst [vmem:[#allocation5 + $0x20] sm:$0xff] %v4140
        %4157 = vst [vmem:[#allocation5 + $0x30] sm:$0xff] %v4141
        %4158 = vst [vmem:[#allocation5 + $0x40] sm:$0xff] %v4142
        %4159 = vst [vmem:[#allocation5 + $0x50] sm:$0xff] %v4143
        %4160 = vst [vmem:[#allocation5 + $0x60] sm:$0xff] %v4144
        %4161 = vst [vmem:[#allocation5 + $0x70] sm:$0xff] %v4145
        %4162 = vst [vmem:[#allocation5 + $0x80] sm:$0xff] %v4146
        %4163 = vst [vmem:[#allocation5 + $0x90] sm:$0xff] %v4147
        %4164 = vst [vmem:[#allocation5 + $0xa0] sm:$0xff] %v4148
        %4165 = vst [vmem:[#allocation5 + $0xb0] sm:$0xff] %v4149
        %4166 = vst [vmem:[#allocation5 + $0xc0] sm:$0xff] %v4150
        %4167 = vst [vmem:[#allocation5 + $0xd0] sm:$0xff] %v4151
        %4168 = vst [vmem:[#allocation5 + $0xe0] sm:$0xff] %v4152
        %4169 = vst [vmem:[#allocation5 + $0xf0] sm:$0xff] %v4153
        %v4170 = vld [vmem:[#allocation4] sm:$0xff]
        %v4171 = vld [vmem:[#allocation4 + $0x8] sm:$0xff]
        %v4172 = vld [vmem:[#allocation4 + $0x10] sm:$0xff]
        %v4173 = vld [vmem:[#allocation4 + $0x18] sm:$0xff]
        %v4174 = vld [vmem:[#allocation4 + $0x20] sm:$0xff]
        %v4175 = vld [vmem:[#allocation4 + $0x28] sm:$0xff]
        %v4176 = vld [vmem:[#allocation4 + $0x30] sm:$0xff]
        %v4177 = vld [vmem:[#allocation4 + $0x38] sm:$0xff]
        %v4178 = vld [vmem:[#allocation4 + $0x40] sm:$0xff]
        %v4179 = vld [vmem:[#allocation4 + $0x48] sm:$0xff]
        %v4180 = vld [vmem:[#allocation4 + $0x50] sm:$0xff]
        %v4181 = vld [vmem:[#allocation4 + $0x58] sm:$0xff]
        %v4182 = vld [vmem:[#allocation4 + $0x60] sm:$0xff]
        %v4183 = vld [vmem:[#allocation4 + $0x68] sm:$0xff]
        %v4184 = vld [vmem:[#allocation4 + $0x70] sm:$0xff]
        %v4185 = vld [vmem:[#allocation4 + $0x78] sm:$0xff]
        %v4186 = vld [vmem:[#allocation4 + $0x80] sm:$0xff]
        %v4187 = vld [vmem:[#allocation4 + $0x88] sm:$0xff]
        %v4188 = vld [vmem:[#allocation4 + $0x90] sm:$0xff]
        %v4189 = vld [vmem:[#allocation4 + $0x98] sm:$0xff]
        %v4190 = vld [vmem:[#allocation4 + $0xa0] sm:$0xff]
        %v4191 = vld [vmem:[#allocation4 + $0xa8] sm:$0xff]
        %v4192 = vld [vmem:[#allocation4 + $0xb0] sm:$0xff]
        %v4193 = vld [vmem:[#allocation4 + $0xb8] sm:$0xff]
        %v4194 = vld [vmem:[#allocation4 + $0xc0] sm:$0xff]
        %v4195 = vld [vmem:[#allocation4 + $0xc8] sm:$0xff]
        %v4196 = vld [vmem:[#allocation4 + $0xd0] sm:$0xff]
        %v4197 = vld [vmem:[#allocation4 + $0xd8] sm:$0xff]
        %v4198 = vld [vmem:[#allocation4 + $0xe0] sm:$0xff]
        %v4199 = vld [vmem:[#allocation4 + $0xe8] sm:$0xff]
        %v4200 = vld [vmem:[#allocation4 + $0xf0] sm:$0xff]
        %v4201 = vld [vmem:[#allocation4 + $0xf8] sm:$0xff]
        %v4202 = vld [vmem:[#allocation5] sm:$0xff]
        %v4203 = vld [vmem:[#allocation5 + $0x8] sm:$0xff]
        %v4204 = vld [vmem:[#allocation5 + $0x10] sm:$0xff]
        %v4205 = vld [vmem:[#allocation5 + $0x18] sm:$0xff]
        %v4206 = vld [vmem:[#allocation5 + $0x20] sm:$0xff]
        %v4207 = vld [vmem:[#allocation5 + $0x28] sm:$0xff]
        %v4208 = vld [vmem:[#allocation5 + $0x30] sm:$0xff]
        %v4209 = vld [vmem:[#allocation5 + $0x38] sm:$0xff]
        %v4210 = vld [vmem:[#allocation5 + $0x40] sm:$0xff]
        %v4211 = vld [vmem:[#allocation5 + $0x48] sm:$0xff]
        %v4212 = vld [vmem:[#allocation5 + $0x50] sm:$0xff]
        %v4213 = vld [vmem:[#allocation5 + $0x58] sm:$0xff]
        %v4214 = vld [vmem:[#allocation5 + $0x60] sm:$0xff]
        %v4215 = vld [vmem:[#allocation5 + $0x68] sm:$0xff]
        %v4216 = vld [vmem:[#allocation5 + $0x70] sm:$0xff]
        %v4217 = vld [vmem:[#allocation5 + $0x78] sm:$0xff]
        %v4218 = vld [vmem:[#allocation5 + $0x80] sm:$0xff]
        %v4219 = vld [vmem:[#allocation5 + $0x88] sm:$0xff]
        %v4220 = vld [vmem:[#allocation5 + $0x90] sm:$0xff]
        %v4221 = vld [vmem:[#allocation5 + $0x98] sm:$0xff]
        %v4222 = vld [vmem:[#allocation5 + $0xa0] sm:$0xff]
        %v4223 = vld [vmem:[#allocation5 + $0xa8] sm:$0xff]
        %v4224 = vld [vmem:[#allocation5 + $0xb0] sm:$0xff]
        %v4225 = vld [vmem:[#allocation5 + $0xb8] sm:$0xff]
        %v4226 = vld [vmem:[#allocation5 + $0xc0] sm:$0xff]
        %v4227 = vld [vmem:[#allocation5 + $0xc8] sm:$0xff]
        %v4228 = vld [vmem:[#allocation5 + $0xd0] sm:$0xff]
        %v4229 = vld [vmem:[#allocation5 + $0xd8] sm:$0xff]
        %v4230 = vld [vmem:[#allocation5 + $0xe0] sm:$0xff]
        %v4231 = vld [vmem:[#allocation5 + $0xe8] sm:$0xff]
        %v4232 = vld [vmem:[#allocation5 + $0xf0] sm:$0xff]
        %v4233 = vld [vmem:[#allocation5 + $0xf8] sm:$0xff]
        %4266 = vrot.lane.b32.xlu0 %v4202, 64
        %v4267 = vpop.permute.xlu0 %4266
        %4268 = vrot.lane.b32.xlu0 %v4203, 64
        %v4269 = vpop.permute.xlu0 %4268
        %4270 = vrot.lane.b32.xlu0 %v4204, 64
        %v4271 = vpop.permute.xlu0 %4270
        %4272 = vrot.lane.b32.xlu0 %v4205, 64
        %v4273 = vpop.permute.xlu0 %4272
        %4274 = vrot.lane.b32.xlu0 %v4206, 64
        %v4275 = vpop.permute.xlu0 %4274
        %4276 = vrot.lane.b32.xlu0 %v4207, 64
        %v4277 = vpop.permute.xlu0 %4276
        %4278 = vrot.lane.b32.xlu0 %v4208, 64
        %v4279 = vpop.permute.xlu0 %4278
        %4280 = vrot.lane.b32.xlu0 %v4209, 64
        %v4281 = vpop.permute.xlu0 %4280
        %4282 = vrot.lane.b32.xlu0 %v4210, 64
        %v4283 = vpop.permute.xlu0 %4282
        %4284 = vrot.lane.b32.xlu0 %v4211, 64
        %v4285 = vpop.permute.xlu0 %4284
        %4286 = vrot.lane.b32.xlu0 %v4212, 64
        %v4287 = vpop.permute.xlu0 %4286
        %4288 = vrot.lane.b32.xlu0 %v4213, 64
        %v4289 = vpop.permute.xlu0 %4288
        %4290 = vrot.lane.b32.xlu0 %v4214, 64
        %v4291 = vpop.permute.xlu0 %4290
        %4292 = vrot.lane.b32.xlu0 %v4215, 64
        %v4293 = vpop.permute.xlu0 %4292
        %4294 = vrot.lane.b32.xlu0 %v4216, 64
        %v4295 = vpop.permute.xlu0 %4294
        %4296 = vrot.lane.b32.xlu0 %v4217, 64
        %v4297 = vpop.permute.xlu0 %4296
        %4298 = vrot.lane.b32.xlu0 %v4218, 64
        %v4299 = vpop.permute.xlu0 %4298
        %4300 = vrot.lane.b32.xlu0 %v4219, 64
        %v4301 = vpop.permute.xlu0 %4300
        %4302 = vrot.lane.b32.xlu0 %v4220, 64
        %v4303 = vpop.permute.xlu0 %4302
        %4304 = vrot.lane.b32.xlu0 %v4221, 64
        %v4305 = vpop.permute.xlu0 %4304
        %4306 = vrot.lane.b32.xlu0 %v4222, 64
        %v4307 = vpop.permute.xlu0 %4306
        %4308 = vrot.lane.b32.xlu0 %v4223, 64
        %v4309 = vpop.permute.xlu0 %4308
        %4310 = vrot.lane.b32.xlu0 %v4224, 64
        %v4311 = vpop.permute.xlu0 %4310
        %4312 = vrot.lane.b32.xlu0 %v4225, 64
        %v4313 = vpop.permute.xlu0 %4312
        %4314 = vrot.lane.b32.xlu0 %v4226, 64
        %v4315 = vpop.permute.xlu0 %4314
        %4316 = vrot.lane.b32.xlu0 %v4227, 64
        %v4317 = vpop.permute.xlu0 %4316
        %4318 = vrot.lane.b32.xlu0 %v4228, 64
        %v4319 = vpop.permute.xlu0 %4318
        %4320 = vrot.lane.b32.xlu0 %v4229, 64
        %v4321 = vpop.permute.xlu0 %4320
        %4322 = vrot.lane.b32.xlu0 %v4230, 64
        %v4323 = vpop.permute.xlu0 %4322
        %4324 = vrot.lane.b32.xlu0 %v4231, 64
        %v4325 = vpop.permute.xlu0 %4324
        %4326 = vrot.lane.b32.xlu0 %v4232, 64
        %v4327 = vpop.permute.xlu0 %4326
        %4328 = vrot.lane.b32.xlu0 %v4233, 64
        %v4329 = vpop.permute.xlu0 %4328
        %v4362 = vadd.f32 %v4170, %v4267
        %v4363 = vadd.f32 %v4171, %v4269
        %v4364 = vadd.f32 %v4172, %v4271
        %v4365 = vadd.f32 %v4173, %v4273
        %v4366 = vadd.f32 %v4174, %v4275
        %v4367 = vadd.f32 %v4175, %v4277
        %v4368 = vadd.f32 %v4176, %v4279
        %v4369 = vadd.f32 %v4177, %v4281
        %v4370 = vadd.f32 %v4178, %v4283
        %v4371 = vadd.f32 %v4179, %v4285
        %v4372 = vadd.f32 %v4180, %v4287
        %v4373 = vadd.f32 %v4181, %v4289
        %v4374 = vadd.f32 %v4182, %v4291
        %v4375 = vadd.f32 %v4183, %v4293
        %v4376 = vadd.f32 %v4184, %v4295
        %v4377 = vadd.f32 %v4185, %v4297
        %v4378 = vadd.f32 %v4186, %v4299
        %v4379 = vadd.f32 %v4187, %v4301
        %v4380 = vadd.f32 %v4188, %v4303
        %v4381 = vadd.f32 %v4189, %v4305
        %v4382 = vadd.f32 %v4190, %v4307
        %v4383 = vadd.f32 %v4191, %v4309
        %v4384 = vadd.f32 %v4192, %v4311
        %v4385 = vadd.f32 %v4193, %v4313
        %v4386 = vadd.f32 %v4194, %v4315
        %v4387 = vadd.f32 %v4195, %v4317
        %v4388 = vadd.f32 %v4196, %v4319
        %v4389 = vadd.f32 %v4197, %v4321
        %v4390 = vadd.f32 %v4198, %v4323
        %v4391 = vadd.f32 %v4199, %v4325
        %v4392 = vadd.f32 %v4200, %v4327
        %v4393 = vadd.f32 %v4201, %v4329
        %4394 = vst.msk [vmem:[%s303 + $0x1] sm:$0xff] %vm294, %v4362
        %4395 = vst.msk [vmem:[%s303 + $0x9] sm:$0xff] %vm294, %v4363
        %4396 = vst.msk [vmem:[%s303 + $0x19] sm:$0xff] %vm294, %v4364
        %4397 = vst.msk [vmem:[%s303 + $0x21] sm:$0xff] %vm294, %v4365
        %4398 = vst.msk [vmem:[%s303 + $0x31] sm:$0xff] %vm294, %v4366
        %4399 = vst.msk [vmem:[%s303 + $0x39] sm:$0xff] %vm294, %v4367
        %4400 = vst.msk [vmem:[%s303 + $0x49] sm:$0xff] %vm294, %v4368
        %4401 = vst.msk [vmem:[%s303 + $0x51] sm:$0xff] %vm294, %v4369
        %4402 = vst.msk [vmem:[%s303 + $0x61] sm:$0xff] %vm294, %v4370
        %4403 = vst.msk [vmem:[%s303 + $0x69] sm:$0xff] %vm294, %v4371
        %4404 = vst.msk [vmem:[%s303 + $0x79] sm:$0xff] %vm294, %v4372
        %4405 = vst.msk [vmem:[%s303 + $0x81] sm:$0xff] %vm294, %v4373
        %4406 = vst.msk [vmem:[%s303 + $0x91] sm:$0xff] %vm294, %v4374
        %4407 = vst.msk [vmem:[%s303 + $0x99] sm:$0xff] %vm294, %v4375
        %4408 = vst.msk [vmem:[%s303 + $0xa9] sm:$0xff] %vm294, %v4376
        %4409 = vst.msk [vmem:[%s303 + $0xb1] sm:$0xff] %vm294, %v4377
        %4410 = vst.msk [vmem:[%s303 + $0xc1] sm:$0xff] %vm294, %v4378
        %4411 = vst.msk [vmem:[%s303 + $0xc9] sm:$0xff] %vm294, %v4379
        %4412 = vst.msk [vmem:[%s303 + $0xd9] sm:$0xff] %vm294, %v4380
        %4413 = vst.msk [vmem:[%s303 + $0xe1] sm:$0xff] %vm294, %v4381
        %4414 = vst.msk [vmem:[%s303 + $0xf1] sm:$0xff] %vm294, %v4382
        %4415 = vst.msk [vmem:[%s303 + $0xf9] sm:$0xff] %vm294, %v4383
        %4416 = vst.msk [vmem:[%s303 + $0x109] sm:$0xff] %vm294, %v4384
        %4417 = vst.msk [vmem:[%s303 + $0x111] sm:$0xff] %vm294, %v4385
        %4418 = vst.msk [vmem:[%s303 + $0x121] sm:$0xff] %vm294, %v4386
        %4419 = vst.msk [vmem:[%s303 + $0x129] sm:$0xff] %vm294, %v4387
        %4420 = vst.msk [vmem:[%s303 + $0x139] sm:$0xff] %vm294, %v4388
        %4421 = vst.msk [vmem:[%s303 + $0x141] sm:$0xff] %vm294, %v4389
        %4422 = vst.msk [vmem:[%s303 + $0x151] sm:$0xff] %vm294, %v4390
        %4423 = vst.msk [vmem:[%s303 + $0x159] sm:$0xff] %vm294, %v4391
        %4424 = vst.msk [vmem:[%s303 + $0x169] sm:$0xff] %vm294, %v4392
        %4425 = vst.msk [vmem:[%s303 + $0x171] sm:$0xff] %vm294, %v4393
        %v4426 = vld [vmem:[%s293] sm:$0xff]
        %v4427 = vld [vmem:[%s293 + $0x8] sm:$0xff]
        %v4428 = vld [vmem:[%s293 + $0x10] sm:$0xff]
        %v4429 = vld [vmem:[%s293 + $0x18] sm:$0xff]
        %v4430 = vld [vmem:[%s293 + $0x20] sm:$0xff]
        %v4431 = vld [vmem:[%s293 + $0x28] sm:$0xff]
        %v4432 = vld [vmem:[%s293 + $0x30] sm:$0xff]
        %v4433 = vld [vmem:[%s293 + $0x38] sm:$0xff]
        %v4434 = vld [vmem:[%s293 + $0x40] sm:$0xff]
        %v4435 = vld [vmem:[%s293 + $0x48] sm:$0xff]
        %v4436 = vld [vmem:[%s293 + $0x50] sm:$0xff]
        %v4437 = vld [vmem:[%s293 + $0x58] sm:$0xff]
        %v4438 = vld [vmem:[%s293 + $0x60] sm:$0xff]
        %v4439 = vld [vmem:[%s293 + $0x68] sm:$0xff]
        %v4440 = vld [vmem:[%s293 + $0x70] sm:$0xff]
        %v4441 = vld [vmem:[%s293 + $0x78] sm:$0xff]
        %v4442 = vld [vmem:[%s293 + $0x80] sm:$0xff]
        %v4443 = vld [vmem:[%s293 + $0x88] sm:$0xff]
        %v4444 = vld [vmem:[%s293 + $0x90] sm:$0xff]
        %v4445 = vld [vmem:[%s293 + $0x98] sm:$0xff]
        %v4446 = vld [vmem:[%s293 + $0xa0] sm:$0xff]
        %v4447 = vld [vmem:[%s293 + $0xa8] sm:$0xff]
        %v4448 = vld [vmem:[%s293 + $0xb0] sm:$0xff]
        %v4449 = vld [vmem:[%s293 + $0xb8] sm:$0xff]
        %v4450 = vld [vmem:[%s293 + $0xc0] sm:$0xff]
        %v4451 = vld [vmem:[%s293 + $0xc8] sm:$0xff]
        %v4452 = vld [vmem:[%s293 + $0xd0] sm:$0xff]
        %v4453 = vld [vmem:[%s293 + $0xd8] sm:$0xff]
        %v4454 = vld [vmem:[%s293 + $0xe0] sm:$0xff]
        %v4455 = vld [vmem:[%s293 + $0xe8] sm:$0xff]
        %v4456 = vld [vmem:[%s293 + $0xf0] sm:$0xff]
        %v4457 = vld [vmem:[%s293 + $0xf8] sm:$0xff]
        %v4458 = vld [vmem:[#allocation2] sm:$0xff]
        %v4459 = vld [vmem:[#allocation2 + $0x8] sm:$0xff]
        %v4460 = vld [vmem:[#allocation2 + $0x18] sm:$0xff]
        %v4461 = vld [vmem:[#allocation2 + $0x20] sm:$0xff]
        %v4462 = vld [vmem:[#allocation2 + $0x30] sm:$0xff]
        %v4463 = vld [vmem:[#allocation2 + $0x38] sm:$0xff]
        %v4464 = vld [vmem:[#allocation2 + $0x48] sm:$0xff]
        %v4465 = vld [vmem:[#allocation2 + $0x50] sm:$0xff]
        %v4466 = vld [vmem:[#allocation2 + $0x60] sm:$0xff]
        %v4467 = vld [vmem:[#allocation2 + $0x68] sm:$0xff]
        %v4468 = vld [vmem:[#allocation2 + $0x78] sm:$0xff]
        %v4469 = vld [vmem:[#allocation2 + $0x80] sm:$0xff]
        %v4470 = vld [vmem:[#allocation2 + $0x90] sm:$0xff]
        %v4471 = vld [vmem:[#allocation2 + $0x98] sm:$0xff]
        %v4472 = vld [vmem:[#allocation2 + $0xa8] sm:$0xff]
        %v4473 = vld [vmem:[#allocation2 + $0xb0] sm:$0xff]
        %v4474 = vld [vmem:[#allocation2 + $0xc0] sm:$0xff]
        %v4475 = vld [vmem:[#allocation2 + $0xc8] sm:$0xff]
        %v4476 = vld [vmem:[#allocation2 + $0xd8] sm:$0xff]
        %v4477 = vld [vmem:[#allocation2 + $0xe0] sm:$0xff]
        %v4478 = vld [vmem:[#allocation2 + $0xf0] sm:$0xff]
        %v4479 = vld [vmem:[#allocation2 + $0xf8] sm:$0xff]
        %v4480 = vld [vmem:[#allocation2 + $0x108] sm:$0xff]
        %v4481 = vld [vmem:[#allocation2 + $0x110] sm:$0xff]
        %v4482 = vld [vmem:[#allocation2 + $0x120] sm:$0xff]
        %v4483 = vld [vmem:[#allocation2 + $0x128] sm:$0xff]
        %v4484 = vld [vmem:[#allocation2 + $0x138] sm:$0xff]
        %v4485 = vld [vmem:[#allocation2 + $0x140] sm:$0xff]
        %v4486 = vld [vmem:[#allocation2 + $0x150] sm:$0xff]
        %v4487 = vld [vmem:[#allocation2 + $0x158] sm:$0xff]
        %v4488 = vld [vmem:[#allocation2 + $0x168] sm:$0xff]
        %v4489 = vld [vmem:[#allocation2 + $0x170] sm:$0xff]
        %v4490 = vld [vmem:[#allocation2 + $0x1] sm:$0xff]
        %v4491 = vld [vmem:[#allocation2 + $0x9] sm:$0xff]
        %v4492 = vld [vmem:[#allocation2 + $0x19] sm:$0xff]
        %v4493 = vld [vmem:[#allocation2 + $0x21] sm:$0xff]
        %v4494 = vld [vmem:[#allocation2 + $0x31] sm:$0xff]
        %v4495 = vld [vmem:[#allocation2 + $0x39] sm:$0xff]
        %v4496 = vld [vmem:[#allocation2 + $0x49] sm:$0xff]
        %v4497 = vld [vmem:[#allocation2 + $0x51] sm:$0xff]
        %v4498 = vld [vmem:[#allocation2 + $0x61] sm:$0xff]
        %v4499 = vld [vmem:[#allocation2 + $0x69] sm:$0xff]
        %v4500 = vld [vmem:[#allocation2 + $0x79] sm:$0xff]
        %v4501 = vld [vmem:[#allocation2 + $0x81] sm:$0xff]
        %v4502 = vld [vmem:[#allocation2 + $0x91] sm:$0xff]
        %v4503 = vld [vmem:[#allocation2 + $0x99] sm:$0xff]
        %v4504 = vld [vmem:[#allocation2 + $0xa9] sm:$0xff]
        %v4505 = vld [vmem:[#allocation2 + $0xb1] sm:$0xff]
        %v4506 = vld [vmem:[#allocation2 + $0xc1] sm:$0xff]
        %v4507 = vld [vmem:[#allocation2 + $0xc9] sm:$0xff]
        %v4508 = vld [vmem:[#allocation2 + $0xd9] sm:$0xff]
        %v4509 = vld [vmem:[#allocation2 + $0xe1] sm:$0xff]
        %v4510 = vld [vmem:[#allocation2 + $0xf1] sm:$0xff]
        %v4511 = vld [vmem:[#allocation2 + $0xf9] sm:$0xff]
        %v4512 = vld [vmem:[#allocation2 + $0x109] sm:$0xff]
        %v4513 = vld [vmem:[#allocation2 + $0x111] sm:$0xff]
        %v4514 = vld [vmem:[#allocation2 + $0x121] sm:$0xff]
        %v4515 = vld [vmem:[#allocation2 + $0x129] sm:$0xff]
        %v4516 = vld [vmem:[#allocation2 + $0x139] sm:$0xff]
        %v4517 = vld [vmem:[#allocation2 + $0x141] sm:$0xff]
        %v4518 = vld [vmem:[#allocation2 + $0x151] sm:$0xff]
        %v4519 = vld [vmem:[#allocation2 + $0x159] sm:$0xff]
        %v4520 = vld [vmem:[#allocation2 + $0x169] sm:$0xff]
        %v4521 = vld [vmem:[#allocation2 + $0x171] sm:$0xff]
        %4554 = vrot.lane.b32.xlu0 %v4490, 64
        %v4555 = vpop.permute.xlu0 %4554
        %4556 = vrot.lane.b32.xlu0 %v4491, 64
        %v4557 = vpop.permute.xlu0 %4556
        %4558 = vrot.lane.b32.xlu0 %v4492, 64
        %v4559 = vpop.permute.xlu0 %4558
        %4560 = vrot.lane.b32.xlu0 %v4493, 64
        %v4561 = vpop.permute.xlu0 %4560
        %4562 = vrot.lane.b32.xlu0 %v4494, 64
        %v4563 = vpop.permute.xlu0 %4562
        %4564 = vrot.lane.b32.xlu0 %v4495, 64
        %v4565 = vpop.permute.xlu0 %4564
        %4566 = vrot.lane.b32.xlu0 %v4496, 64
        %v4567 = vpop.permute.xlu0 %4566
        %4568 = vrot.lane.b32.xlu0 %v4497, 64
        %v4569 = vpop.permute.xlu0 %4568
        %4570 = vrot.lane.b32.xlu0 %v4498, 64
        %v4571 = vpop.permute.xlu0 %4570
        %4572 = vrot.lane.b32.xlu0 %v4499, 64
        %v4573 = vpop.permute.xlu0 %4572
        %4574 = vrot.lane.b32.xlu0 %v4500, 64
        %v4575 = vpop.permute.xlu0 %4574
        %4576 = vrot.lane.b32.xlu0 %v4501, 64
        %v4577 = vpop.permute.xlu0 %4576
        %4578 = vrot.lane.b32.xlu0 %v4502, 64
        %v4579 = vpop.permute.xlu0 %4578
        %4580 = vrot.lane.b32.xlu0 %v4503, 64
        %v4581 = vpop.permute.xlu0 %4580
        %4582 = vrot.lane.b32.xlu0 %v4504, 64
        %v4583 = vpop.permute.xlu0 %4582
        %4584 = vrot.lane.b32.xlu0 %v4505, 64
        %v4585 = vpop.permute.xlu0 %4584
        %4586 = vrot.lane.b32.xlu0 %v4506, 64
        %v4587 = vpop.permute.xlu0 %4586
        %4588 = vrot.lane.b32.xlu0 %v4507, 64
        %v4589 = vpop.permute.xlu0 %4588
        %4590 = vrot.lane.b32.xlu0 %v4508, 64
        %v4591 = vpop.permute.xlu0 %4590
        %4592 = vrot.lane.b32.xlu0 %v4509, 64
        %v4593 = vpop.permute.xlu0 %4592
        %4594 = vrot.lane.b32.xlu0 %v4510, 64
        %v4595 = vpop.permute.xlu0 %4594
        %4596 = vrot.lane.b32.xlu0 %v4511, 64
        %v4597 = vpop.permute.xlu0 %4596
        %4598 = vrot.lane.b32.xlu0 %v4512, 64
        %v4599 = vpop.permute.xlu0 %4598
        %4600 = vrot.lane.b32.xlu0 %v4513, 64
        %v4601 = vpop.permute.xlu0 %4600
        %4602 = vrot.lane.b32.xlu0 %v4514, 64
        %v4603 = vpop.permute.xlu0 %4602
        %4604 = vrot.lane.b32.xlu0 %v4515, 64
        %v4605 = vpop.permute.xlu0 %4604
        %4606 = vrot.lane.b32.xlu0 %v4516, 64
        %v4607 = vpop.permute.xlu0 %4606
        %4608 = vrot.lane.b32.xlu0 %v4517, 64
        %v4609 = vpop.permute.xlu0 %4608
        %4610 = vrot.lane.b32.xlu0 %v4518, 64
        %v4611 = vpop.permute.xlu0 %4610
        %4612 = vrot.lane.b32.xlu0 %v4519, 64
        %v4613 = vpop.permute.xlu0 %4612
        %4614 = vrot.lane.b32.xlu0 %v4520, 64
        %v4615 = vpop.permute.xlu0 %4614
        %4616 = vrot.lane.b32.xlu0 %v4521, 64
        %v4617 = vpop.permute.xlu0 %4616
        %v4650 = vsel %vm294, %v4458, %v4555
        %v4651 = vsel %vm294, %v4459, %v4557
        %v4652 = vsel %vm294, %v4460, %v4559
        %v4653 = vsel %vm294, %v4461, %v4561
        %v4654 = vsel %vm294, %v4462, %v4563
        %v4655 = vsel %vm294, %v4463, %v4565
        %v4656 = vsel %vm294, %v4464, %v4567
        %v4657 = vsel %vm294, %v4465, %v4569
        %v4658 = vsel %vm294, %v4466, %v4571
        %v4659 = vsel %vm294, %v4467, %v4573
        %v4660 = vsel %vm294, %v4468, %v4575
        %v4661 = vsel %vm294, %v4469, %v4577
        %v4662 = vsel %vm294, %v4470, %v4579
        %v4663 = vsel %vm294, %v4471, %v4581
        %v4664 = vsel %vm294, %v4472, %v4583
        %v4665 = vsel %vm294, %v4473, %v4585
        %v4666 = vsel %vm294, %v4474, %v4587
        %v4667 = vsel %vm294, %v4475, %v4589
        %v4668 = vsel %vm294, %v4476, %v4591
        %v4669 = vsel %vm294, %v4477, %v4593
        %v4670 = vsel %vm294, %v4478, %v4595
        %v4671 = vsel %vm294, %v4479, %v4597
        %v4672 = vsel %vm294, %v4480, %v4599
        %v4673 = vsel %vm294, %v4481, %v4601
        %v4674 = vsel %vm294, %v4482, %v4603
        %v4675 = vsel %vm294, %v4483, %v4605
        %v4676 = vsel %vm294, %v4484, %v4607
        %v4677 = vsel %vm294, %v4485, %v4609
        %v4678 = vsel %vm294, %v4486, %v4611
        %v4679 = vsel %vm294, %v4487, %v4613
        %v4680 = vsel %vm294, %v4488, %v4615
        %v4681 = vsel %vm294, %v4489, %v4617
        %v4682 = vpack.c.bf16 %v4650, %v4650
        %v4683 = vpack.c.bf16 %v4651, %v4651
        %v4684 = vpack.c.bf16 %v4652, %v4652
        %v4685 = vpack.c.bf16 %v4653, %v4653
        %v4686 = vpack.c.bf16 %v4654, %v4654
        %v4687 = vpack.c.bf16 %v4655, %v4655
        %v4688 = vpack.c.bf16 %v4656, %v4656
        %v4689 = vpack.c.bf16 %v4657, %v4657
        %v4690 = vpack.c.bf16 %v4658, %v4658
        %v4691 = vpack.c.bf16 %v4659, %v4659
        %v4692 = vpack.c.bf16 %v4660, %v4660
        %v4693 = vpack.c.bf16 %v4661, %v4661
        %v4694 = vpack.c.bf16 %v4662, %v4662
        %v4695 = vpack.c.bf16 %v4663, %v4663
        %v4696 = vpack.c.bf16 %v4664, %v4664
        %v4697 = vpack.c.bf16 %v4665, %v4665
        %v4698 = vpack.c.bf16 %v4666, %v4666
        %v4699 = vpack.c.bf16 %v4667, %v4667
        %v4700 = vpack.c.bf16 %v4668, %v4668
        %v4701 = vpack.c.bf16 %v4669, %v4669
        %v4702 = vpack.c.bf16 %v4670, %v4670
        %v4703 = vpack.c.bf16 %v4671, %v4671
        %v4704 = vpack.c.bf16 %v4672, %v4672
        %v4705 = vpack.c.bf16 %v4673, %v4673
        %v4706 = vpack.c.bf16 %v4674, %v4674
        %v4707 = vpack.c.bf16 %v4675, %v4675
        %v4708 = vpack.c.bf16 %v4676, %v4676
        %v4709 = vpack.c.bf16 %v4677, %v4677
        %v4710 = vpack.c.bf16 %v4678, %v4678
        %v4711 = vpack.c.bf16 %v4679, %v4679
        %v4712 = vpack.c.bf16 %v4680, %v4680
        %v4713 = vpack.c.bf16 %v4681, %v4681
        %4714 = vst [vmem:[#allocation3] sm:$0xf] %v4682
        %4715 = vst [vmem:[#allocation3 + $0x14] sm:$0xf] %v4683
        %4716 = vst [vmem:[#allocation3 + $0x28] sm:$0xf] %v4684
        %4717 = vst [vmem:[#allocation3 + $0x3c] sm:$0xf] %v4685
        %4718 = vst [vmem:[#allocation3 + $0x50] sm:$0xf] %v4686
        %4719 = vst [vmem:[#allocation3 + $0x64] sm:$0xf] %v4687
        %4720 = vst [vmem:[#allocation3 + $0x78] sm:$0xf] %v4688
        %4721 = vst [vmem:[#allocation3 + $0x8c] sm:$0xf] %v4689
        %4722 = vst [vmem:[#allocation3 + $0xa0] sm:$0xf] %v4690
        %4723 = vst [vmem:[#allocation3 + $0xb4] sm:$0xf] %v4691
        %4724 = vst [vmem:[#allocation3 + $0xc8] sm:$0xf] %v4692
        %4725 = vst [vmem:[#allocation3 + $0xdc] sm:$0xf] %v4693
        %4726 = vst [vmem:[#allocation3 + $0xf0] sm:$0xf] %v4694
        %4727 = vst [vmem:[#allocation3 + $0x104] sm:$0xf] %v4695
        %4728 = vst [vmem:[#allocation3 + $0x118] sm:$0xf] %v4696
        %4729 = vst [vmem:[#allocation3 + $0x12c] sm:$0xf] %v4697
        %4730 = vst [vmem:[#allocation3 + $0x140] sm:$0xf] %v4698
        %4731 = vst [vmem:[#allocation3 + $0x154] sm:$0xf] %v4699
        %4732 = vst [vmem:[#allocation3 + $0x168] sm:$0xf] %v4700
        %4733 = vst [vmem:[#allocation3 + $0x17c] sm:$0xf] %v4701
        %4734 = vst [vmem:[#allocation3 + $0x190] sm:$0xf] %v4702
        %4735 = vst [vmem:[#allocation3 + $0x1a4] sm:$0xf] %v4703
        %4736 = vst [vmem:[#allocation3 + $0x1b8] sm:$0xf] %v4704
        %4737 = vst [vmem:[#allocation3 + $0x1cc] sm:$0xf] %v4705
        %4738 = vst [vmem:[#allocation3 + $0x1e0] sm:$0xf] %v4706
        %4739 = vst [vmem:[#allocation3 + $0x1f4] sm:$0xf] %v4707
        %4740 = vst [vmem:[#allocation3 + $0x208] sm:$0xf] %v4708
        %4741 = vst [vmem:[#allocation3 + $0x21c] sm:$0xf] %v4709
        %4742 = vst [vmem:[#allocation3 + $0x230] sm:$0xf] %v4710
        %4743 = vst [vmem:[#allocation3 + $0x244] sm:$0xf] %v4711
        %4744 = vst [vmem:[#allocation3 + $0x258] sm:$0xf] %v4712
        %4745 = vst [vmem:[#allocation3 + $0x26c] sm:$0xf] %v4713
        %v4746 = vld [vmem:[#allocation2 + $0x2] sm:$0xff]
        %v4747 = vld [vmem:[#allocation2 + $0xa] sm:$0xff]
        %v4748 = vld [vmem:[#allocation2 + $0x1a] sm:$0xff]
        %v4749 = vld [vmem:[#allocation2 + $0x22] sm:$0xff]
        %v4750 = vld [vmem:[#allocation2 + $0x32] sm:$0xff]
        %v4751 = vld [vmem:[#allocation2 + $0x3a] sm:$0xff]
        %v4752 = vld [vmem:[#allocation2 + $0x4a] sm:$0xff]
        %v4753 = vld [vmem:[#allocation2 + $0x52] sm:$0xff]
        %v4754 = vld [vmem:[#allocation2 + $0x62] sm:$0xff]
        %v4755 = vld [vmem:[#allocation2 + $0x6a] sm:$0xff]
        %v4756 = vld [vmem:[#allocation2 + $0x7a] sm:$0xff]
        %v4757 = vld [vmem:[#allocation2 + $0x82] sm:$0xff]
        %v4758 = vld [vmem:[#allocation2 + $0x92] sm:$0xff]
        %v4759 = vld [vmem:[#allocation2 + $0x9a] sm:$0xff]
        %v4760 = vld [vmem:[#allocation2 + $0xaa] sm:$0xff]
        %v4761 = vld [vmem:[#allocation2 + $0xb2] sm:$0xff]
        %v4762 = vld [vmem:[#allocation2 + $0xc2] sm:$0xff]
        %v4763 = vld [vmem:[#allocation2 + $0xca] sm:$0xff]
        %v4764 = vld [vmem:[#allocation2 + $0xda] sm:$0xff]
        %v4765 = vld [vmem:[#allocation2 + $0xe2] sm:$0xff]
        %v4766 = vld [vmem:[#allocation2 + $0xf2] sm:$0xff]
        %v4767 = vld [vmem:[#allocation2 + $0xfa] sm:$0xff]
        %v4768 = vld [vmem:[#allocation2 + $0x10a] sm:$0xff]
        %v4769 = vld [vmem:[#allocation2 + $0x112] sm:$0xff]
        %v4770 = vld [vmem:[#allocation2 + $0x122] sm:$0xff]
        %v4771 = vld [vmem:[#allocation2 + $0x12a] sm:$0xff]
        %v4772 = vld [vmem:[#allocation2 + $0x13a] sm:$0xff]
        %v4773 = vld [vmem:[#allocation2 + $0x142] sm:$0xff]
        %v4774 = vld [vmem:[#allocation2 + $0x152] sm:$0xff]
        %v4775 = vld [vmem:[#allocation2 + $0x15a] sm:$0xff]
        %v4776 = vld [vmem:[#allocation2 + $0x16a] sm:$0xff]
        %v4777 = vld [vmem:[#allocation2 + $0x172] sm:$0xff]
        %v4778 = vld [vmem:[%s303] sm:$0xff]
        %v4779 = vld [vmem:[%s303 + $0x8] sm:$0xff]
        %v4780 = vld [vmem:[%s303 + $0x18] sm:$0xff]
        %v4781 = vld [vmem:[%s303 + $0x20] sm:$0xff]
        %v4782 = vld [vmem:[%s303 + $0x30] sm:$0xff]
        %v4783 = vld [vmem:[%s303 + $0x38] sm:$0xff]
        %v4784 = vld [vmem:[%s303 + $0x48] sm:$0xff]
        %v4785 = vld [vmem:[%s303 + $0x50] sm:$0xff]
        %v4786 = vld [vmem:[%s303 + $0x60] sm:$0xff]
        %v4787 = vld [vmem:[%s303 + $0x68] sm:$0xff]
        %v4788 = vld [vmem:[%s303 + $0x78] sm:$0xff]
        %v4789 = vld [vmem:[%s303 + $0x80] sm:$0xff]
        %v4790 = vld [vmem:[%s303 + $0x90] sm:$0xff]
        %v4791 = vld [vmem:[%s303 + $0x98] sm:$0xff]
        %v4792 = vld [vmem:[%s303 + $0xa8] sm:$0xff]
        %v4793 = vld [vmem:[%s303 + $0xb0] sm:$0xff]
        %v4794 = vld [vmem:[%s303 + $0xc0] sm:$0xff]
        %v4795 = vld [vmem:[%s303 + $0xc8] sm:$0xff]
        %v4796 = vld [vmem:[%s303 + $0xd8] sm:$0xff]
        %v4797 = vld [vmem:[%s303 + $0xe0] sm:$0xff]
        %v4798 = vld [vmem:[%s303 + $0xf0] sm:$0xff]
        %v4799 = vld [vmem:[%s303 + $0xf8] sm:$0xff]
        %v4800 = vld [vmem:[%s303 + $0x108] sm:$0xff]
        %v4801 = vld [vmem:[%s303 + $0x110] sm:$0xff]
        %v4802 = vld [vmem:[%s303 + $0x120] sm:$0xff]
        %v4803 = vld [vmem:[%s303 + $0x128] sm:$0xff]
        %v4804 = vld [vmem:[%s303 + $0x138] sm:$0xff]
        %v4805 = vld [vmem:[%s303 + $0x140] sm:$0xff]
        %v4806 = vld [vmem:[%s303 + $0x150] sm:$0xff]
        %v4807 = vld [vmem:[%s303 + $0x158] sm:$0xff]
        %v4808 = vld [vmem:[%s303 + $0x168] sm:$0xff]
        %v4809 = vld [vmem:[%s303 + $0x170] sm:$0xff]
        %4842 = vrot.lane.b32.xlu0 %v4778, 64
        %v4843 = vpop.permute.xlu0 %4842
        %4844 = vrot.lane.b32.xlu0 %v4779, 64
        %v4845 = vpop.permute.xlu0 %4844
        %4846 = vrot.lane.b32.xlu0 %v4780, 64
        %v4847 = vpop.permute.xlu0 %4846
        %4848 = vrot.lane.b32.xlu0 %v4781, 64
        %v4849 = vpop.permute.xlu0 %4848
        %4850 = vrot.lane.b32.xlu0 %v4782, 64
        %v4851 = vpop.permute.xlu0 %4850
        %4852 = vrot.lane.b32.xlu0 %v4783, 64
        %v4853 = vpop.permute.xlu0 %4852
        %4854 = vrot.lane.b32.xlu0 %v4784, 64
        %v4855 = vpop.permute.xlu0 %4854
        %4856 = vrot.lane.b32.xlu0 %v4785, 64
        %v4857 = vpop.permute.xlu0 %4856
        %4858 = vrot.lane.b32.xlu0 %v4786, 64
        %v4859 = vpop.permute.xlu0 %4858
        %4860 = vrot.lane.b32.xlu0 %v4787, 64
        %v4861 = vpop.permute.xlu0 %4860
        %4862 = vrot.lane.b32.xlu0 %v4788, 64
        %v4863 = vpop.permute.xlu0 %4862
        %4864 = vrot.lane.b32.xlu0 %v4789, 64
        %v4865 = vpop.permute.xlu0 %4864
        %4866 = vrot.lane.b32.xlu0 %v4790, 64
        %v4867 = vpop.permute.xlu0 %4866
        %4868 = vrot.lane.b32.xlu0 %v4791, 64
        %v4869 = vpop.permute.xlu0 %4868
        %4870 = vrot.lane.b32.xlu0 %v4792, 64
        %v4871 = vpop.permute.xlu0 %4870
        %4872 = vrot.lane.b32.xlu0 %v4793, 64
        %v4873 = vpop.permute.xlu0 %4872
        %4874 = vrot.lane.b32.xlu0 %v4794, 64
        %v4875 = vpop.permute.xlu0 %4874
        %4876 = vrot.lane.b32.xlu0 %v4795, 64
        %v4877 = vpop.permute.xlu0 %4876
        %4878 = vrot.lane.b32.xlu0 %v4796, 64
        %v4879 = vpop.permute.xlu0 %4878
        %4880 = vrot.lane.b32.xlu0 %v4797, 64
        %v4881 = vpop.permute.xlu0 %4880
        %4882 = vrot.lane.b32.xlu0 %v4798, 64
        %v4883 = vpop.permute.xlu0 %4882
        %4884 = vrot.lane.b32.xlu0 %v4799, 64
        %v4885 = vpop.permute.xlu0 %4884
        %4886 = vrot.lane.b32.xlu0 %v4800, 64
        %v4887 = vpop.permute.xlu0 %4886
        %4888 = vrot.lane.b32.xlu0 %v4801, 64
        %v4889 = vpop.permute.xlu0 %4888
        %4890 = vrot.lane.b32.xlu0 %v4802, 64
        %v4891 = vpop.permute.xlu0 %4890
        %4892 = vrot.lane.b32.xlu0 %v4803, 64
        %v4893 = vpop.permute.xlu0 %4892
        %4894 = vrot.lane.b32.xlu0 %v4804, 64
        %v4895 = vpop.permute.xlu0 %4894
        %4896 = vrot.lane.b32.xlu0 %v4805, 64
        %v4897 = vpop.permute.xlu0 %4896
        %4898 = vrot.lane.b32.xlu0 %v4806, 64
        %v4899 = vpop.permute.xlu0 %4898
        %4900 = vrot.lane.b32.xlu0 %v4807, 64
        %v4901 = vpop.permute.xlu0 %4900
        %4902 = vrot.lane.b32.xlu0 %v4808, 64
        %v4903 = vpop.permute.xlu0 %4902
        %4904 = vrot.lane.b32.xlu0 %v4809, 64
        %v4905 = vpop.permute.xlu0 %4904
        %v4938 = vsel %vm294, %v4746, %v4843
        %v4939 = vsel %vm294, %v4747, %v4845
        %v4940 = vsel %vm294, %v4748, %v4847
        %v4941 = vsel %vm294, %v4749, %v4849
        %v4942 = vsel %vm294, %v4750, %v4851
        %v4943 = vsel %vm294, %v4751, %v4853
        %v4944 = vsel %vm294, %v4752, %v4855
        %v4945 = vsel %vm294, %v4753, %v4857
        %v4946 = vsel %vm294, %v4754, %v4859
        %v4947 = vsel %vm294, %v4755, %v4861
        %v4948 = vsel %vm294, %v4756, %v4863
        %v4949 = vsel %vm294, %v4757, %v4865
        %v4950 = vsel %vm294, %v4758, %v4867
        %v4951 = vsel %vm294, %v4759, %v4869
        %v4952 = vsel %vm294, %v4760, %v4871
        %v4953 = vsel %vm294, %v4761, %v4873
        %v4954 = vsel %vm294, %v4762, %v4875
        %v4955 = vsel %vm294, %v4763, %v4877
        %v4956 = vsel %vm294, %v4764, %v4879
        %v4957 = vsel %vm294, %v4765, %v4881
        %v4958 = vsel %vm294, %v4766, %v4883
        %v4959 = vsel %vm294, %v4767, %v4885
        %v4960 = vsel %vm294, %v4768, %v4887
        %v4961 = vsel %vm294, %v4769, %v4889
        %v4962 = vsel %vm294, %v4770, %v4891
        %v4963 = vsel %vm294, %v4771, %v4893
        %v4964 = vsel %vm294, %v4772, %v4895
        %v4965 = vsel %vm294, %v4773, %v4897
        %v4966 = vsel %vm294, %v4774, %v4899
        %v4967 = vsel %vm294, %v4775, %v4901
        %v4968 = vsel %vm294, %v4776, %v4903
        %v4969 = vsel %vm294, %v4777, %v4905
        %v4970 = vpack.c.bf16 %v4938, %v4938
        %v4971 = vpack.c.bf16 %v4939, %v4939
        %v4972 = vpack.c.bf16 %v4940, %v4940
        %v4973 = vpack.c.bf16 %v4941, %v4941
        %v4974 = vpack.c.bf16 %v4942, %v4942
        %v4975 = vpack.c.bf16 %v4943, %v4943
        %v4976 = vpack.c.bf16 %v4944, %v4944
        %v4977 = vpack.c.bf16 %v4945, %v4945
        %v4978 = vpack.c.bf16 %v4946, %v4946
        %v4979 = vpack.c.bf16 %v4947, %v4947
        %v4980 = vpack.c.bf16 %v4948, %v4948
        %v4981 = vpack.c.bf16 %v4949, %v4949
        %v4982 = vpack.c.bf16 %v4950, %v4950
        %v4983 = vpack.c.bf16 %v4951, %v4951
        %v4984 = vpack.c.bf16 %v4952, %v4952
        %v4985 = vpack.c.bf16 %v4953, %v4953
        %v4986 = vpack.c.bf16 %v4954, %v4954
        %v4987 = vpack.c.bf16 %v4955, %v4955
        %v4988 = vpack.c.bf16 %v4956, %v4956
        %v4989 = vpack.c.bf16 %v4957, %v4957
        %v4990 = vpack.c.bf16 %v4958, %v4958
        %v4991 = vpack.c.bf16 %v4959, %v4959
        %v4992 = vpack.c.bf16 %v4960, %v4960
        %v4993 = vpack.c.bf16 %v4961, %v4961
        %v4994 = vpack.c.bf16 %v4962, %v4962
        %v4995 = vpack.c.bf16 %v4963, %v4963
        %v4996 = vpack.c.bf16 %v4964, %v4964
        %v4997 = vpack.c.bf16 %v4965, %v4965
        %v4998 = vpack.c.bf16 %v4966, %v4966
        %v4999 = vpack.c.bf16 %v4967, %v4967
        %v5000 = vpack.c.bf16 %v4968, %v4968
        %v5001 = vpack.c.bf16 %v4969, %v4969
        %5002 = vst [vmem:[#allocation3 + $0x4] sm:$0xf] %v4970
        %5003 = vst [vmem:[#allocation3 + $0x18] sm:$0xf] %v4971
        %5004 = vst [vmem:[#allocation3 + $0x2c] sm:$0xf] %v4972
        %5005 = vst [vmem:[#allocation3 + $0x40] sm:$0xf] %v4973
        %5006 = vst [vmem:[#allocation3 + $0x54] sm:$0xf] %v4974
        %5007 = vst [vmem:[#allocation3 + $0x68] sm:$0xf] %v4975
        %5008 = vst [vmem:[#allocation3 + $0x7c] sm:$0xf] %v4976
        %5009 = vst [vmem:[#allocation3 + $0x90] sm:$0xf] %v4977
        %5010 = vst [vmem:[#allocation3 + $0xa4] sm:$0xf] %v4978
        %5011 = vst [vmem:[#allocation3 + $0xb8] sm:$0xf] %v4979
        %5012 = vst [vmem:[#allocation3 + $0xcc] sm:$0xf] %v4980
        %5013 = vst [vmem:[#allocation3 + $0xe0] sm:$0xf] %v4981
        %5014 = vst [vmem:[#allocation3 + $0xf4] sm:$0xf] %v4982
        %5015 = vst [vmem:[#allocation3 + $0x108] sm:$0xf] %v4983
        %5016 = vst [vmem:[#allocation3 + $0x11c] sm:$0xf] %v4984
        %5017 = vst [vmem:[#allocation3 + $0x130] sm:$0xf] %v4985
        %5018 = vst [vmem:[#allocation3 + $0x144] sm:$0xf] %v4986
        %5019 = vst [vmem:[#allocation3 + $0x158] sm:$0xf] %v4987
        %5020 = vst [vmem:[#allocation3 + $0x16c] sm:$0xf] %v4988
        %5021 = vst [vmem:[#allocation3 + $0x180] sm:$0xf] %v4989
        %5022 = vst [vmem:[#allocation3 + $0x194] sm:$0xf] %v4990
        %5023 = vst [vmem:[#allocation3 + $0x1a8] sm:$0xf] %v4991
        %5024 = vst [vmem:[#allocation3 + $0x1bc] sm:$0xf] %v4992
        %5025 = vst [vmem:[#allocation3 + $0x1d0] sm:$0xf] %v4993
        %5026 = vst [vmem:[#allocation3 + $0x1e4] sm:$0xf] %v4994
        %5027 = vst [vmem:[#allocation3 + $0x1f8] sm:$0xf] %v4995
        %5028 = vst [vmem:[#allocation3 + $0x20c] sm:$0xf] %v4996
        %5029 = vst [vmem:[#allocation3 + $0x220] sm:$0xf] %v4997
        %5030 = vst [vmem:[#allocation3 + $0x234] sm:$0xf] %v4998
        %5031 = vst [vmem:[#allocation3 + $0x248] sm:$0xf] %v4999
        %5032 = vst [vmem:[#allocation3 + $0x25c] sm:$0xf] %v5000
        %5033 = vst [vmem:[#allocation3 + $0x270] sm:$0xf] %v5001
        %v5034 = vld [vmem:[%s303 + $0x2] sm:$0xff]
        %v5035 = vld [vmem:[%s303 + $0xa] sm:$0xff]
        %v5036 = vld [vmem:[%s303 + $0x1a] sm:$0xff]
        %v5037 = vld [vmem:[%s303 + $0x22] sm:$0xff]
        %v5038 = vld [vmem:[%s303 + $0x32] sm:$0xff]
        %v5039 = vld [vmem:[%s303 + $0x3a] sm:$0xff]
        %v5040 = vld [vmem:[%s303 + $0x4a] sm:$0xff]
        %v5041 = vld [vmem:[%s303 + $0x52] sm:$0xff]
        %v5042 = vld [vmem:[%s303 + $0x62] sm:$0xff]
        %v5043 = vld [vmem:[%s303 + $0x6a] sm:$0xff]
        %v5044 = vld [vmem:[%s303 + $0x7a] sm:$0xff]
        %v5045 = vld [vmem:[%s303 + $0x82] sm:$0xff]
        %v5046 = vld [vmem:[%s303 + $0x92] sm:$0xff]
        %v5047 = vld [vmem:[%s303 + $0x9a] sm:$0xff]
        %v5048 = vld [vmem:[%s303 + $0xaa] sm:$0xff]
        %v5049 = vld [vmem:[%s303 + $0xb2] sm:$0xff]
        %v5050 = vld [vmem:[%s303 + $0xc2] sm:$0xff]
        %v5051 = vld [vmem:[%s303 + $0xca] sm:$0xff]
        %v5052 = vld [vmem:[%s303 + $0xda] sm:$0xff]
        %v5053 = vld [vmem:[%s303 + $0xe2] sm:$0xff]
        %v5054 = vld [vmem:[%s303 + $0xf2] sm:$0xff]
        %v5055 = vld [vmem:[%s303 + $0xfa] sm:$0xff]
        %v5056 = vld [vmem:[%s303 + $0x10a] sm:$0xff]
        %v5057 = vld [vmem:[%s303 + $0x112] sm:$0xff]
        %v5058 = vld [vmem:[%s303 + $0x122] sm:$0xff]
        %v5059 = vld [vmem:[%s303 + $0x12a] sm:$0xff]
        %v5060 = vld [vmem:[%s303 + $0x13a] sm:$0xff]
        %v5061 = vld [vmem:[%s303 + $0x142] sm:$0xff]
        %v5062 = vld [vmem:[%s303 + $0x152] sm:$0xff]
        %v5063 = vld [vmem:[%s303 + $0x15a] sm:$0xff]
        %v5064 = vld [vmem:[%s303 + $0x16a] sm:$0xff]
        %v5065 = vld [vmem:[%s303 + $0x172] sm:$0xff]
        %5098 = vrot.lane.b32.xlu0 %v5034, 64
        %v5099 = vpop.permute.xlu0 %5098
        %5100 = vrot.lane.b32.xlu0 %v5035, 64
        %v5101 = vpop.permute.xlu0 %5100
        %5102 = vrot.lane.b32.xlu0 %v5036, 64
        %v5103 = vpop.permute.xlu0 %5102
        %5104 = vrot.lane.b32.xlu0 %v5037, 64
        %v5105 = vpop.permute.xlu0 %5104
        %5106 = vrot.lane.b32.xlu0 %v5038, 64
        %v5107 = vpop.permute.xlu0 %5106
        %5108 = vrot.lane.b32.xlu0 %v5039, 64
        %v5109 = vpop.permute.xlu0 %5108
        %5110 = vrot.lane.b32.xlu0 %v5040, 64
        %v5111 = vpop.permute.xlu0 %5110
        %5112 = vrot.lane.b32.xlu0 %v5041, 64
        %v5113 = vpop.permute.xlu0 %5112
        %5114 = vrot.lane.b32.xlu0 %v5042, 64
        %v5115 = vpop.permute.xlu0 %5114
        %5116 = vrot.lane.b32.xlu0 %v5043, 64
        %v5117 = vpop.permute.xlu0 %5116
        %5118 = vrot.lane.b32.xlu0 %v5044, 64
        %v5119 = vpop.permute.xlu0 %5118
        %5120 = vrot.lane.b32.xlu0 %v5045, 64
        %v5121 = vpop.permute.xlu0 %5120
        %5122 = vrot.lane.b32.xlu0 %v5046, 64
        %v5123 = vpop.permute.xlu0 %5122
        %5124 = vrot.lane.b32.xlu0 %v5047, 64
        %v5125 = vpop.permute.xlu0 %5124
        %5126 = vrot.lane.b32.xlu0 %v5048, 64
        %v5127 = vpop.permute.xlu0 %5126
        %5128 = vrot.lane.b32.xlu0 %v5049, 64
        %v5129 = vpop.permute.xlu0 %5128
        %5130 = vrot.lane.b32.xlu0 %v5050, 64
        %v5131 = vpop.permute.xlu0 %5130
        %5132 = vrot.lane.b32.xlu0 %v5051, 64
        %v5133 = vpop.permute.xlu0 %5132
        %5134 = vrot.lane.b32.xlu0 %v5052, 64
        %v5135 = vpop.permute.xlu0 %5134
        %5136 = vrot.lane.b32.xlu0 %v5053, 64
        %v5137 = vpop.permute.xlu0 %5136
        %5138 = vrot.lane.b32.xlu0 %v5054, 64
        %v5139 = vpop.permute.xlu0 %5138
        %5140 = vrot.lane.b32.xlu0 %v5055, 64
        %v5141 = vpop.permute.xlu0 %5140
        %5142 = vrot.lane.b32.xlu0 %v5056, 64
        %v5143 = vpop.permute.xlu0 %5142
        %5144 = vrot.lane.b32.xlu0 %v5057, 64
        %v5145 = vpop.permute.xlu0 %5144
        %5146 = vrot.lane.b32.xlu0 %v5058, 64
        %v5147 = vpop.permute.xlu0 %5146
        %5148 = vrot.lane.b32.xlu0 %v5059, 64
        %v5149 = vpop.permute.xlu0 %5148
        %5150 = vrot.lane.b32.xlu0 %v5060, 64
        %v5151 = vpop.permute.xlu0 %5150
        %5152 = vrot.lane.b32.xlu0 %v5061, 64
        %v5153 = vpop.permute.xlu0 %5152
        %5154 = vrot.lane.b32.xlu0 %v5062, 64
        %v5155 = vpop.permute.xlu0 %5154
        %5156 = vrot.lane.b32.xlu0 %v5063, 64
        %v5157 = vpop.permute.xlu0 %5156
        %5158 = vrot.lane.b32.xlu0 %v5064, 64
        %v5159 = vpop.permute.xlu0 %5158
        %5160 = vrot.lane.b32.xlu0 %v5065, 64
        %v5161 = vpop.permute.xlu0 %5160
        %v5194 = vsel %vm294, %v4362, %v5099
        %v5195 = vsel %vm294, %v4363, %v5101
        %v5196 = vsel %vm294, %v4364, %v5103
        %v5197 = vsel %vm294, %v4365, %v5105
        %v5198 = vsel %vm294, %v4366, %v5107
        %v5199 = vsel %vm294, %v4367, %v5109
        %v5200 = vsel %vm294, %v4368, %v5111
        %v5201 = vsel %vm294, %v4369, %v5113
        %v5202 = vsel %vm294, %v4370, %v5115
        %v5203 = vsel %vm294, %v4371, %v5117
        %v5204 = vsel %vm294, %v4372, %v5119
        %v5205 = vsel %vm294, %v4373, %v5121
        %v5206 = vsel %vm294, %v4374, %v5123
        %v5207 = vsel %vm294, %v4375, %v5125
        %v5208 = vsel %vm294, %v4376, %v5127
        %v5209 = vsel %vm294, %v4377, %v5129
        %v5210 = vsel %vm294, %v4378, %v5131
        %v5211 = vsel %vm294, %v4379, %v5133
        %v5212 = vsel %vm294, %v4380, %v5135
        %v5213 = vsel %vm294, %v4381, %v5137
        %v5214 = vsel %vm294, %v4382, %v5139
        %v5215 = vsel %vm294, %v4383, %v5141
        %v5216 = vsel %vm294, %v4384, %v5143
        %v5217 = vsel %vm294, %v4385, %v5145
        %v5218 = vsel %vm294, %v4386, %v5147
        %v5219 = vsel %vm294, %v4387, %v5149
        %v5220 = vsel %vm294, %v4388, %v5151
        %v5221 = vsel %vm294, %v4389, %v5153
        %v5222 = vsel %vm294, %v4390, %v5155
        %v5223 = vsel %vm294, %v4391, %v5157
        %v5224 = vsel %vm294, %v4392, %v5159
        %v5225 = vsel %vm294, %v4393, %v5161
        %v5226 = vpack.c.bf16 %v5194, %v5194
        %v5227 = vpack.c.bf16 %v5195, %v5195
        %v5228 = vpack.c.bf16 %v5196, %v5196
        %v5229 = vpack.c.bf16 %v5197, %v5197
        %v5230 = vpack.c.bf16 %v5198, %v5198
        %v5231 = vpack.c.bf16 %v5199, %v5199
        %v5232 = vpack.c.bf16 %v5200, %v5200
        %v5233 = vpack.c.bf16 %v5201, %v5201
        %v5234 = vpack.c.bf16 %v5202, %v5202
        %v5235 = vpack.c.bf16 %v5203, %v5203
        %v5236 = vpack.c.bf16 %v5204, %v5204
        %v5237 = vpack.c.bf16 %v5205, %v5205
        %v5238 = vpack.c.bf16 %v5206, %v5206
        %v5239 = vpack.c.bf16 %v5207, %v5207
        %v5240 = vpack.c.bf16 %v5208, %v5208
        %v5241 = vpack.c.bf16 %v5209, %v5209
        %v5242 = vpack.c.bf16 %v5210, %v5210
        %v5243 = vpack.c.bf16 %v5211, %v5211
        %v5244 = vpack.c.bf16 %v5212, %v5212
        %v5245 = vpack.c.bf16 %v5213, %v5213
        %v5246 = vpack.c.bf16 %v5214, %v5214
        %v5247 = vpack.c.bf16 %v5215, %v5215
        %v5248 = vpack.c.bf16 %v5216, %v5216
        %v5249 = vpack.c.bf16 %v5217, %v5217
        %v5250 = vpack.c.bf16 %v5218, %v5218
        %v5251 = vpack.c.bf16 %v5219, %v5219
        %v5252 = vpack.c.bf16 %v5220, %v5220
        %v5253 = vpack.c.bf16 %v5221, %v5221
        %v5254 = vpack.c.bf16 %v5222, %v5222
        %v5255 = vpack.c.bf16 %v5223, %v5223
        %v5256 = vpack.c.bf16 %v5224, %v5224
        %v5257 = vpack.c.bf16 %v5225, %v5225
        %5258 = vst [vmem:[#allocation3 + $0x8] sm:$0xf] %v5226
        %5259 = vst [vmem:[#allocation3 + $0x1c] sm:$0xf] %v5227
        %5260 = vst [vmem:[#allocation3 + $0x30] sm:$0xf] %v5228
        %5261 = vst [vmem:[#allocation3 + $0x44] sm:$0xf] %v5229
        %5262 = vst [vmem:[#allocation3 + $0x58] sm:$0xf] %v5230
        %5263 = vst [vmem:[#allocation3 + $0x6c] sm:$0xf] %v5231
        %5264 = vst [vmem:[#allocation3 + $0x80] sm:$0xf] %v5232
        %5265 = vst [vmem:[#allocation3 + $0x94] sm:$0xf] %v5233
        %5266 = vst [vmem:[#allocation3 + $0xa8] sm:$0xf] %v5234
        %5267 = vst [vmem:[#allocation3 + $0xbc] sm:$0xf] %v5235
        %5268 = vst [vmem:[#allocation3 + $0xd0] sm:$0xf] %v5236
        %5269 = vst [vmem:[#allocation3 + $0xe4] sm:$0xf] %v5237
        %5270 = vst [vmem:[#allocation3 + $0xf8] sm:$0xf] %v5238
        %5271 = vst [vmem:[#allocation3 + $0x10c] sm:$0xf] %v5239
        %5272 = vst [vmem:[#allocation3 + $0x120] sm:$0xf] %v5240
        %5273 = vst [vmem:[#allocation3 + $0x134] sm:$0xf] %v5241
        %5274 = vst [vmem:[#allocation3 + $0x148] sm:$0xf] %v5242
        %5275 = vst [vmem:[#allocation3 + $0x15c] sm:$0xf] %v5243
        %5276 = vst [vmem:[#allocation3 + $0x170] sm:$0xf] %v5244
        %5277 = vst [vmem:[#allocation3 + $0x184] sm:$0xf] %v5245
        %5278 = vst [vmem:[#allocation3 + $0x198] sm:$0xf] %v5246
        %5279 = vst [vmem:[#allocation3 + $0x1ac] sm:$0xf] %v5247
        %5280 = vst [vmem:[#allocation3 + $0x1c0] sm:$0xf] %v5248
        %5281 = vst [vmem:[#allocation3 + $0x1d4] sm:$0xf] %v5249
        %5282 = vst [vmem:[#allocation3 + $0x1e8] sm:$0xf] %v5250
        %5283 = vst [vmem:[#allocation3 + $0x1fc] sm:$0xf] %v5251
        %5284 = vst [vmem:[#allocation3 + $0x210] sm:$0xf] %v5252
        %5285 = vst [vmem:[#allocation3 + $0x224] sm:$0xf] %v5253
        %5286 = vst [vmem:[#allocation3 + $0x238] sm:$0xf] %v5254
        %5287 = vst [vmem:[#allocation3 + $0x24c] sm:$0xf] %v5255
        %5288 = vst [vmem:[#allocation3 + $0x260] sm:$0xf] %v5256
        %5289 = vst [vmem:[#allocation3 + $0x274] sm:$0xf] %v5257
        %v5290 = vld [vmem:[%s1233] sm:$0xff]
        %v5291 = vld [vmem:[%s1233 + $0x8] sm:$0xff]
        %v5292 = vld [vmem:[%s1233 + $0x18] sm:$0xff]
        %v5293 = vld [vmem:[%s1233 + $0x20] sm:$0xff]
        %v5294 = vld [vmem:[%s1233 + $0x30] sm:$0xff]
        %v5295 = vld [vmem:[%s1233 + $0x38] sm:$0xff]
        %v5296 = vld [vmem:[%s1233 + $0x48] sm:$0xff]
        %v5297 = vld [vmem:[%s1233 + $0x50] sm:$0xff]
        %v5298 = vld [vmem:[%s1233 + $0x60] sm:$0xff]
        %v5299 = vld [vmem:[%s1233 + $0x68] sm:$0xff]
        %v5300 = vld [vmem:[%s1233 + $0x78] sm:$0xff]
        %v5301 = vld [vmem:[%s1233 + $0x80] sm:$0xff]
        %v5302 = vld [vmem:[%s1233 + $0x90] sm:$0xff]
        %v5303 = vld [vmem:[%s1233 + $0x98] sm:$0xff]
        %v5304 = vld [vmem:[%s1233 + $0xa8] sm:$0xff]
        %v5305 = vld [vmem:[%s1233 + $0xb0] sm:$0xff]
        %v5306 = vld [vmem:[%s1233 + $0xc0] sm:$0xff]
        %v5307 = vld [vmem:[%s1233 + $0xc8] sm:$0xff]
        %v5308 = vld [vmem:[%s1233 + $0xd8] sm:$0xff]
        %v5309 = vld [vmem:[%s1233 + $0xe0] sm:$0xff]
        %v5310 = vld [vmem:[%s1233 + $0xf0] sm:$0xff]
        %v5311 = vld [vmem:[%s1233 + $0xf8] sm:$0xff]
        %v5312 = vld [vmem:[%s1233 + $0x108] sm:$0xff]
        %v5313 = vld [vmem:[%s1233 + $0x110] sm:$0xff]
        %v5314 = vld [vmem:[%s1233 + $0x120] sm:$0xff]
        %v5315 = vld [vmem:[%s1233 + $0x128] sm:$0xff]
        %v5316 = vld [vmem:[%s1233 + $0x138] sm:$0xff]
        %v5317 = vld [vmem:[%s1233 + $0x140] sm:$0xff]
        %v5318 = vld [vmem:[%s1233 + $0x150] sm:$0xff]
        %v5319 = vld [vmem:[%s1233 + $0x158] sm:$0xff]
        %v5320 = vld [vmem:[%s1233 + $0x168] sm:$0xff]
        %v5321 = vld [vmem:[%s1233 + $0x170] sm:$0xff]
        %v5322 = vld [vmem:[%s1233 + $0x1] sm:$0xff]
        %v5323 = vld [vmem:[%s1233 + $0x9] sm:$0xff]
        %v5324 = vld [vmem:[%s1233 + $0x19] sm:$0xff]
        %v5325 = vld [vmem:[%s1233 + $0x21] sm:$0xff]
        %v5326 = vld [vmem:[%s1233 + $0x31] sm:$0xff]
        %v5327 = vld [vmem:[%s1233 + $0x39] sm:$0xff]
        %v5328 = vld [vmem:[%s1233 + $0x49] sm:$0xff]
        %v5329 = vld [vmem:[%s1233 + $0x51] sm:$0xff]
        %v5330 = vld [vmem:[%s1233 + $0x61] sm:$0xff]
        %v5331 = vld [vmem:[%s1233 + $0x69] sm:$0xff]
        %v5332 = vld [vmem:[%s1233 + $0x79] sm:$0xff]
        %v5333 = vld [vmem:[%s1233 + $0x81] sm:$0xff]
        %v5334 = vld [vmem:[%s1233 + $0x91] sm:$0xff]
        %v5335 = vld [vmem:[%s1233 + $0x99] sm:$0xff]
        %v5336 = vld [vmem:[%s1233 + $0xa9] sm:$0xff]
        %v5337 = vld [vmem:[%s1233 + $0xb1] sm:$0xff]
        %v5338 = vld [vmem:[%s1233 + $0xc1] sm:$0xff]
        %v5339 = vld [vmem:[%s1233 + $0xc9] sm:$0xff]
        %v5340 = vld [vmem:[%s1233 + $0xd9] sm:$0xff]
        %v5341 = vld [vmem:[%s1233 + $0xe1] sm:$0xff]
        %v5342 = vld [vmem:[%s1233 + $0xf1] sm:$0xff]
        %v5343 = vld [vmem:[%s1233 + $0xf9] sm:$0xff]
        %v5344 = vld [vmem:[%s1233 + $0x109] sm:$0xff]
        %v5345 = vld [vmem:[%s1233 + $0x111] sm:$0xff]
        %v5346 = vld [vmem:[%s1233 + $0x121] sm:$0xff]
        %v5347 = vld [vmem:[%s1233 + $0x129] sm:$0xff]
        %v5348 = vld [vmem:[%s1233 + $0x139] sm:$0xff]
        %v5349 = vld [vmem:[%s1233 + $0x141] sm:$0xff]
        %v5350 = vld [vmem:[%s1233 + $0x151] sm:$0xff]
        %v5351 = vld [vmem:[%s1233 + $0x159] sm:$0xff]
        %v5352 = vld [vmem:[%s1233 + $0x169] sm:$0xff]
        %v5353 = vld [vmem:[%s1233 + $0x171] sm:$0xff]
        %5386 = vrot.lane.b32.xlu0 %v5322, 64
        %v5387 = vpop.permute.xlu0 %5386
        %5388 = vrot.lane.b32.xlu0 %v5323, 64
        %v5389 = vpop.permute.xlu0 %5388
        %5390 = vrot.lane.b32.xlu0 %v5324, 64
        %v5391 = vpop.permute.xlu0 %5390
        %5392 = vrot.lane.b32.xlu0 %v5325, 64
        %v5393 = vpop.permute.xlu0 %5392
        %5394 = vrot.lane.b32.xlu0 %v5326, 64
        %v5395 = vpop.permute.xlu0 %5394
        %5396 = vrot.lane.b32.xlu0 %v5327, 64
        %v5397 = vpop.permute.xlu0 %5396
        %5398 = vrot.lane.b32.xlu0 %v5328, 64
        %v5399 = vpop.permute.xlu0 %5398
        %5400 = vrot.lane.b32.xlu0 %v5329, 64
        %v5401 = vpop.permute.xlu0 %5400
        %5402 = vrot.lane.b32.xlu0 %v5330, 64
        %v5403 = vpop.permute.xlu0 %5402
        %5404 = vrot.lane.b32.xlu0 %v5331, 64
        %v5405 = vpop.permute.xlu0 %5404
        %5406 = vrot.lane.b32.xlu0 %v5332, 64
        %v5407 = vpop.permute.xlu0 %5406
        %5408 = vrot.lane.b32.xlu0 %v5333, 64
        %v5409 = vpop.permute.xlu0 %5408
        %5410 = vrot.lane.b32.xlu0 %v5334, 64
        %v5411 = vpop.permute.xlu0 %5410
        %5412 = vrot.lane.b32.xlu0 %v5335, 64
        %v5413 = vpop.permute.xlu0 %5412
        %5414 = vrot.lane.b32.xlu0 %v5336, 64
        %v5415 = vpop.permute.xlu0 %5414
        %5416 = vrot.lane.b32.xlu0 %v5337, 64
        %v5417 = vpop.permute.xlu0 %5416
        %5418 = vrot.lane.b32.xlu0 %v5338, 64
        %v5419 = vpop.permute.xlu0 %5418
        %5420 = vrot.lane.b32.xlu0 %v5339, 64
        %v5421 = vpop.permute.xlu0 %5420
        %5422 = vrot.lane.b32.xlu0 %v5340, 64
        %v5423 = vpop.permute.xlu0 %5422
        %5424 = vrot.lane.b32.xlu0 %v5341, 64
        %v5425 = vpop.permute.xlu0 %5424
        %5426 = vrot.lane.b32.xlu0 %v5342, 64
        %v5427 = vpop.permute.xlu0 %5426
        %5428 = vrot.lane.b32.xlu0 %v5343, 64
        %v5429 = vpop.permute.xlu0 %5428
        %5430 = vrot.lane.b32.xlu0 %v5344, 64
        %v5431 = vpop.permute.xlu0 %5430
        %5432 = vrot.lane.b32.xlu0 %v5345, 64
        %v5433 = vpop.permute.xlu0 %5432
        %5434 = vrot.lane.b32.xlu0 %v5346, 64
        %v5435 = vpop.permute.xlu0 %5434
        %5436 = vrot.lane.b32.xlu0 %v5347, 64
        %v5437 = vpop.permute.xlu0 %5436
        %5438 = vrot.lane.b32.xlu0 %v5348, 64
        %v5439 = vpop.permute.xlu0 %5438
        %5440 = vrot.lane.b32.xlu0 %v5349, 64
        %v5441 = vpop.permute.xlu0 %5440
        %5442 = vrot.lane.b32.xlu0 %v5350, 64
        %v5443 = vpop.permute.xlu0 %5442
        %5444 = vrot.lane.b32.xlu0 %v5351, 64
        %v5445 = vpop.permute.xlu0 %5444
        %5446 = vrot.lane.b32.xlu0 %v5352, 64
        %v5447 = vpop.permute.xlu0 %5446
        %5448 = vrot.lane.b32.xlu0 %v5353, 64
        %v5449 = vpop.permute.xlu0 %5448
        %v5482 = vsel %vm294, %v5290, %v5387
        %v5483 = vsel %vm294, %v5291, %v5389
        %v5484 = vsel %vm294, %v5292, %v5391
        %v5485 = vsel %vm294, %v5293, %v5393
        %v5486 = vsel %vm294, %v5294, %v5395
        %v5487 = vsel %vm294, %v5295, %v5397
        %v5488 = vsel %vm294, %v5296, %v5399
        %v5489 = vsel %vm294, %v5297, %v5401
        %v5490 = vsel %vm294, %v5298, %v5403
        %v5491 = vsel %vm294, %v5299, %v5405
        %v5492 = vsel %vm294, %v5300, %v5407
        %v5493 = vsel %vm294, %v5301, %v5409
        %v5494 = vsel %vm294, %v5302, %v5411
        %v5495 = vsel %vm294, %v5303, %v5413
        %v5496 = vsel %vm294, %v5304, %v5415
        %v5497 = vsel %vm294, %v5305, %v5417
        %v5498 = vsel %vm294, %v5306, %v5419
        %v5499 = vsel %vm294, %v5307, %v5421
        %v5500 = vsel %vm294, %v5308, %v5423
        %v5501 = vsel %vm294, %v5309, %v5425
        %v5502 = vsel %vm294, %v5310, %v5427
        %v5503 = vsel %vm294, %v5311, %v5429
        %v5504 = vsel %vm294, %v5312, %v5431
        %v5505 = vsel %vm294, %v5313, %v5433
        %v5506 = vsel %vm294, %v5314, %v5435
        %v5507 = vsel %vm294, %v5315, %v5437
        %v5508 = vsel %vm294, %v5316, %v5439
        %v5509 = vsel %vm294, %v5317, %v5441
        %v5510 = vsel %vm294, %v5318, %v5443
        %v5511 = vsel %vm294, %v5319, %v5445
        %v5512 = vsel %vm294, %v5320, %v5447
        %v5513 = vsel %vm294, %v5321, %v5449
        %v5514 = vpack.c.bf16 %v5482, %v5482
        %v5515 = vpack.c.bf16 %v5483, %v5483
        %v5516 = vpack.c.bf16 %v5484, %v5484
        %v5517 = vpack.c.bf16 %v5485, %v5485
        %v5518 = vpack.c.bf16 %v5486, %v5486
        %v5519 = vpack.c.bf16 %v5487, %v5487
        %v5520 = vpack.c.bf16 %v5488, %v5488
        %v5521 = vpack.c.bf16 %v5489, %v5489
        %v5522 = vpack.c.bf16 %v5490, %v5490
        %v5523 = vpack.c.bf16 %v5491, %v5491
        %v5524 = vpack.c.bf16 %v5492, %v5492
        %v5525 = vpack.c.bf16 %v5493, %v5493
        %v5526 = vpack.c.bf16 %v5494, %v5494
        %v5527 = vpack.c.bf16 %v5495, %v5495
        %v5528 = vpack.c.bf16 %v5496, %v5496
        %v5529 = vpack.c.bf16 %v5497, %v5497
        %v5530 = vpack.c.bf16 %v5498, %v5498
        %v5531 = vpack.c.bf16 %v5499, %v5499
        %v5532 = vpack.c.bf16 %v5500, %v5500
        %v5533 = vpack.c.bf16 %v5501, %v5501
        %v5534 = vpack.c.bf16 %v5502, %v5502
        %v5535 = vpack.c.bf16 %v5503, %v5503
        %v5536 = vpack.c.bf16 %v5504, %v5504
        %v5537 = vpack.c.bf16 %v5505, %v5505
        %v5538 = vpack.c.bf16 %v5506, %v5506
        %v5539 = vpack.c.bf16 %v5507, %v5507
        %v5540 = vpack.c.bf16 %v5508, %v5508
        %v5541 = vpack.c.bf16 %v5509, %v5509
        %v5542 = vpack.c.bf16 %v5510, %v5510
        %v5543 = vpack.c.bf16 %v5511, %v5511
        %v5544 = vpack.c.bf16 %v5512, %v5512
        %v5545 = vpack.c.bf16 %v5513, %v5513
        %5546 = vst [vmem:[#allocation3 + $0xc] sm:$0xf] %v5514
        %5547 = vst [vmem:[#allocation3 + $0x20] sm:$0xf] %v5515
        %5548 = vst [vmem:[#allocation3 + $0x34] sm:$0xf] %v5516
        %5549 = vst [vmem:[#allocation3 + $0x48] sm:$0xf] %v5517
        %5550 = vst [vmem:[#allocation3 + $0x5c] sm:$0xf] %v5518
        %5551 = vst [vmem:[#allocation3 + $0x70] sm:$0xf] %v5519
        %5552 = vst [vmem:[#allocation3 + $0x84] sm:$0xf] %v5520
        %5553 = vst [vmem:[#allocation3 + $0x98] sm:$0xf] %v5521
        %5554 = vst [vmem:[#allocation3 + $0xac] sm:$0xf] %v5522
        %5555 = vst [vmem:[#allocation3 + $0xc0] sm:$0xf] %v5523
        %5556 = vst [vmem:[#allocation3 + $0xd4] sm:$0xf] %v5524
        %5557 = vst [vmem:[#allocation3 + $0xe8] sm:$0xf] %v5525
        %5558 = vst [vmem:[#allocation3 + $0xfc] sm:$0xf] %v5526
        %5559 = vst [vmem:[#allocation3 + $0x110] sm:$0xf] %v5527
        %5560 = vst [vmem:[#allocation3 + $0x124] sm:$0xf] %v5528
        %5561 = vst [vmem:[#allocation3 + $0x138] sm:$0xf] %v5529
        %5562 = vst [vmem:[#allocation3 + $0x14c] sm:$0xf] %v5530
        %5563 = vst [vmem:[#allocation3 + $0x160] sm:$0xf] %v5531
        %5564 = vst [vmem:[#allocation3 + $0x174] sm:$0xf] %v5532
        %5565 = vst [vmem:[#allocation3 + $0x188] sm:$0xf] %v5533
        %5566 = vst [vmem:[#allocation3 + $0x19c] sm:$0xf] %v5534
        %5567 = vst [vmem:[#allocation3 + $0x1b0] sm:$0xf] %v5535
        %5568 = vst [vmem:[#allocation3 + $0x1c4] sm:$0xf] %v5536
        %5569 = vst [vmem:[#allocation3 + $0x1d8] sm:$0xf] %v5537
        %5570 = vst [vmem:[#allocation3 + $0x1ec] sm:$0xf] %v5538
        %5571 = vst [vmem:[#allocation3 + $0x200] sm:$0xf] %v5539
        %5572 = vst [vmem:[#allocation3 + $0x214] sm:$0xf] %v5540
        %5573 = vst [vmem:[#allocation3 + $0x228] sm:$0xf] %v5541
        %5574 = vst [vmem:[#allocation3 + $0x23c] sm:$0xf] %v5542
        %5575 = vst [vmem:[#allocation3 + $0x250] sm:$0xf] %v5543
        %5576 = vst [vmem:[#allocation3 + $0x264] sm:$0xf] %v5544
        %5577 = vst [vmem:[#allocation3 + $0x278] sm:$0xf] %v5545
        %v5578 = vld [vmem:[%s1233 + $0x2] sm:$0xff]
        %v5579 = vld [vmem:[%s1233 + $0xa] sm:$0xff]
        %v5580 = vld [vmem:[%s1233 + $0x1a] sm:$0xff]
        %v5581 = vld [vmem:[%s1233 + $0x22] sm:$0xff]
        %v5582 = vld [vmem:[%s1233 + $0x32] sm:$0xff]
        %v5583 = vld [vmem:[%s1233 + $0x3a] sm:$0xff]
        %v5584 = vld [vmem:[%s1233 + $0x4a] sm:$0xff]
        %v5585 = vld [vmem:[%s1233 + $0x52] sm:$0xff]
        %v5586 = vld [vmem:[%s1233 + $0x62] sm:$0xff]
        %v5587 = vld [vmem:[%s1233 + $0x6a] sm:$0xff]
        %v5588 = vld [vmem:[%s1233 + $0x7a] sm:$0xff]
        %v5589 = vld [vmem:[%s1233 + $0x82] sm:$0xff]
        %v5590 = vld [vmem:[%s1233 + $0x92] sm:$0xff]
        %v5591 = vld [vmem:[%s1233 + $0x9a] sm:$0xff]
        %v5592 = vld [vmem:[%s1233 + $0xaa] sm:$0xff]
        %v5593 = vld [vmem:[%s1233 + $0xb2] sm:$0xff]
        %v5594 = vld [vmem:[%s1233 + $0xc2] sm:$0xff]
        %v5595 = vld [vmem:[%s1233 + $0xca] sm:$0xff]
        %v5596 = vld [vmem:[%s1233 + $0xda] sm:$0xff]
        %v5597 = vld [vmem:[%s1233 + $0xe2] sm:$0xff]
        %v5598 = vld [vmem:[%s1233 + $0xf2] sm:$0xff]
        %v5599 = vld [vmem:[%s1233 + $0xfa] sm:$0xff]
        %v5600 = vld [vmem:[%s1233 + $0x10a] sm:$0xff]
        %v5601 = vld [vmem:[%s1233 + $0x112] sm:$0xff]
        %v5602 = vld [vmem:[%s1233 + $0x122] sm:$0xff]
        %v5603 = vld [vmem:[%s1233 + $0x12a] sm:$0xff]
        %v5604 = vld [vmem:[%s1233 + $0x13a] sm:$0xff]
        %v5605 = vld [vmem:[%s1233 + $0x142] sm:$0xff]
        %v5606 = vld [vmem:[%s1233 + $0x152] sm:$0xff]
        %v5607 = vld [vmem:[%s1233 + $0x15a] sm:$0xff]
        %v5608 = vld [vmem:[%s1233 + $0x16a] sm:$0xff]
        %v5609 = vld [vmem:[%s1233 + $0x172] sm:$0xff]
        %5642 = vrot.lane.b32.xlu0 %v4426, 64
        %v5643 = vpop.permute.xlu0 %5642
        %5644 = vrot.lane.b32.xlu0 %v4427, 64
        %v5645 = vpop.permute.xlu0 %5644
        %5646 = vrot.lane.b32.xlu0 %v4428, 64
        %v5647 = vpop.permute.xlu0 %5646
        %5648 = vrot.lane.b32.xlu0 %v4429, 64
        %v5649 = vpop.permute.xlu0 %5648
        %5650 = vrot.lane.b32.xlu0 %v4430, 64
        %v5651 = vpop.permute.xlu0 %5650
        %5652 = vrot.lane.b32.xlu0 %v4431, 64
        %v5653 = vpop.permute.xlu0 %5652
        %5654 = vrot.lane.b32.xlu0 %v4432, 64
        %v5655 = vpop.permute.xlu0 %5654
        %5656 = vrot.lane.b32.xlu0 %v4433, 64
        %v5657 = vpop.permute.xlu0 %5656
        %5658 = vrot.lane.b32.xlu0 %v4434, 64
        %v5659 = vpop.permute.xlu0 %5658
        %5660 = vrot.lane.b32.xlu0 %v4435, 64
        %v5661 = vpop.permute.xlu0 %5660
        %5662 = vrot.lane.b32.xlu0 %v4436, 64
        %v5663 = vpop.permute.xlu0 %5662
        %5664 = vrot.lane.b32.xlu0 %v4437, 64
        %v5665 = vpop.permute.xlu0 %5664
        %5666 = vrot.lane.b32.xlu0 %v4438, 64
        %v5667 = vpop.permute.xlu0 %5666
        %5668 = vrot.lane.b32.xlu0 %v4439, 64
        %v5669 = vpop.permute.xlu0 %5668
        %5670 = vrot.lane.b32.xlu0 %v4440, 64
        %v5671 = vpop.permute.xlu0 %5670
        %5672 = vrot.lane.b32.xlu0 %v4441, 64
        %v5673 = vpop.permute.xlu0 %5672
        %5674 = vrot.lane.b32.xlu0 %v4442, 64
        %v5675 = vpop.permute.xlu0 %5674
        %5676 = vrot.lane.b32.xlu0 %v4443, 64
        %v5677 = vpop.permute.xlu0 %5676
        %5678 = vrot.lane.b32.xlu0 %v4444, 64
        %v5679 = vpop.permute.xlu0 %5678
        %5680 = vrot.lane.b32.xlu0 %v4445, 64
        %v5681 = vpop.permute.xlu0 %5680
        %5682 = vrot.lane.b32.xlu0 %v4446, 64
        %v5683 = vpop.permute.xlu0 %5682
        %5684 = vrot.lane.b32.xlu0 %v4447, 64
        %v5685 = vpop.permute.xlu0 %5684
        %5686 = vrot.lane.b32.xlu0 %v4448, 64
        %v5687 = vpop.permute.xlu0 %5686
        %5688 = vrot.lane.b32.xlu0 %v4449, 64
        %v5689 = vpop.permute.xlu0 %5688
        %5690 = vrot.lane.b32.xlu0 %v4450, 64
        %v5691 = vpop.permute.xlu0 %5690
        %5692 = vrot.lane.b32.xlu0 %v4451, 64
        %v5693 = vpop.permute.xlu0 %5692
        %5694 = vrot.lane.b32.xlu0 %v4452, 64
        %v5695 = vpop.permute.xlu0 %5694
        %5696 = vrot.lane.b32.xlu0 %v4453, 64
        %v5697 = vpop.permute.xlu0 %5696
        %5698 = vrot.lane.b32.xlu0 %v4454, 64
        %v5699 = vpop.permute.xlu0 %5698
        %5700 = vrot.lane.b32.xlu0 %v4455, 64
        %v5701 = vpop.permute.xlu0 %5700
        %5702 = vrot.lane.b32.xlu0 %v4456, 64
        %v5703 = vpop.permute.xlu0 %5702
        %5704 = vrot.lane.b32.xlu0 %v4457, 64
        %v5705 = vpop.permute.xlu0 %5704
        %v5738 = vsel %vm294, %v5578, %v5643
        %v5739 = vsel %vm294, %v5579, %v5645
        %v5740 = vsel %vm294, %v5580, %v5647
        %v5741 = vsel %vm294, %v5581, %v5649
        %v5742 = vsel %vm294, %v5582, %v5651
        %v5743 = vsel %vm294, %v5583, %v5653
        %v5744 = vsel %vm294, %v5584, %v5655
        %v5745 = vsel %vm294, %v5585, %v5657
        %v5746 = vsel %vm294, %v5586, %v5659
        %v5747 = vsel %vm294, %v5587, %v5661
        %v5748 = vsel %vm294, %v5588, %v5663
        %v5749 = vsel %vm294, %v5589, %v5665
        %v5750 = vsel %vm294, %v5590, %v5667
        %v5751 = vsel %vm294, %v5591, %v5669
        %v5752 = vsel %vm294, %v5592, %v5671
        %v5753 = vsel %vm294, %v5593, %v5673
        %v5754 = vsel %vm294, %v5594, %v5675
        %v5755 = vsel %vm294, %v5595, %v5677
        %v5756 = vsel %vm294, %v5596, %v5679
        %v5757 = vsel %vm294, %v5597, %v5681
        %v5758 = vsel %vm294, %v5598, %v5683
        %v5759 = vsel %vm294, %v5599, %v5685
        %v5760 = vsel %vm294, %v5600, %v5687
        %v5761 = vsel %vm294, %v5601, %v5689
        %v5762 = vsel %vm294, %v5602, %v5691
        %v5763 = vsel %vm294, %v5603, %v5693
        %v5764 = vsel %vm294, %v5604, %v5695
        %v5765 = vsel %vm294, %v5605, %v5697
        %v5766 = vsel %vm294, %v5606, %v5699
        %v5767 = vsel %vm294, %v5607, %v5701
        %v5768 = vsel %vm294, %v5608, %v5703
        %v5769 = vsel %vm294, %v5609, %v5705
        %v5770 = vpack.c.bf16 %v5738, %v5738
        %v5771 = vpack.c.bf16 %v5739, %v5739
        %v5772 = vpack.c.bf16 %v5740, %v5740
        %v5773 = vpack.c.bf16 %v5741, %v5741
        %v5774 = vpack.c.bf16 %v5742, %v5742
        %v5775 = vpack.c.bf16 %v5743, %v5743
        %v5776 = vpack.c.bf16 %v5744, %v5744
        %v5777 = vpack.c.bf16 %v5745, %v5745
        %v5778 = vpack.c.bf16 %v5746, %v5746
        %v5779 = vpack.c.bf16 %v5747, %v5747
        %v5780 = vpack.c.bf16 %v5748, %v5748
        %v5781 = vpack.c.bf16 %v5749, %v5749
        %v5782 = vpack.c.bf16 %v5750, %v5750
        %v5783 = vpack.c.bf16 %v5751, %v5751
        %v5784 = vpack.c.bf16 %v5752, %v5752
        %v5785 = vpack.c.bf16 %v5753, %v5753
        %v5786 = vpack.c.bf16 %v5754, %v5754
        %v5787 = vpack.c.bf16 %v5755, %v5755
        %v5788 = vpack.c.bf16 %v5756, %v5756
        %v5789 = vpack.c.bf16 %v5757, %v5757
        %v5790 = vpack.c.bf16 %v5758, %v5758
        %v5791 = vpack.c.bf16 %v5759, %v5759
        %v5792 = vpack.c.bf16 %v5760, %v5760
        %v5793 = vpack.c.bf16 %v5761, %v5761
        %v5794 = vpack.c.bf16 %v5762, %v5762
        %v5795 = vpack.c.bf16 %v5763, %v5763
        %v5796 = vpack.c.bf16 %v5764, %v5764
        %v5797 = vpack.c.bf16 %v5765, %v5765
        %v5798 = vpack.c.bf16 %v5766, %v5766
        %v5799 = vpack.c.bf16 %v5767, %v5767
        %v5800 = vpack.c.bf16 %v5768, %v5768
        %v5801 = vpack.c.bf16 %v5769, %v5769
        %5802 = vst [vmem:[#allocation3 + $0x10] sm:$0xf] %v5770
        %5803 = vst [vmem:[#allocation3 + $0x24] sm:$0xf] %v5771
        %5804 = vst [vmem:[#allocation3 + $0x38] sm:$0xf] %v5772
        %5805 = vst [vmem:[#allocation3 + $0x4c] sm:$0xf] %v5773
        %5806 = vst [vmem:[#allocation3 + $0x60] sm:$0xf] %v5774
        %5807 = vst [vmem:[#allocation3 + $0x74] sm:$0xf] %v5775
        %5808 = vst [vmem:[#allocation3 + $0x88] sm:$0xf] %v5776
        %5809 = vst [vmem:[#allocation3 + $0x9c] sm:$0xf] %v5777
        %5810 = vst [vmem:[#allocation3 + $0xb0] sm:$0xf] %v5778
        %5811 = vst [vmem:[#allocation3 + $0xc4] sm:$0xf] %v5779
        %5812 = vst [vmem:[#allocation3 + $0xd8] sm:$0xf] %v5780
        %5813 = vst [vmem:[#allocation3 + $0xec] sm:$0xf] %v5781
        %5814 = vst [vmem:[#allocation3 + $0x100] sm:$0xf] %v5782
        %5815 = vst [vmem:[#allocation3 + $0x114] sm:$0xf] %v5783
        %5816 = vst [vmem:[#allocation3 + $0x128] sm:$0xf] %v5784
        %5817 = vst [vmem:[#allocation3 + $0x13c] sm:$0xf] %v5785
        %5818 = vst [vmem:[#allocation3 + $0x150] sm:$0xf] %v5786
        %5819 = vst [vmem:[#allocation3 + $0x164] sm:$0xf] %v5787
        %5820 = vst [vmem:[#allocation3 + $0x178] sm:$0xf] %v5788
        %5821 = vst [vmem:[#allocation3 + $0x18c] sm:$0xf] %v5789
        %5822 = vst [vmem:[#allocation3 + $0x1a0] sm:$0xf] %v5790
        %5823 = vst [vmem:[#allocation3 + $0x1b4] sm:$0xf] %v5791
        %5824 = vst [vmem:[#allocation3 + $0x1c8] sm:$0xf] %v5792
        %5825 = vst [vmem:[#allocation3 + $0x1dc] sm:$0xf] %v5793
        %5826 = vst [vmem:[#allocation3 + $0x1f0] sm:$0xf] %v5794
        %5827 = vst [vmem:[#allocation3 + $0x204] sm:$0xf] %v5795
        %5828 = vst [vmem:[#allocation3 + $0x218] sm:$0xf] %v5796
        %5829 = vst [vmem:[#allocation3 + $0x22c] sm:$0xf] %v5797
        %5830 = vst [vmem:[#allocation3 + $0x240] sm:$0xf] %v5798
        %5831 = vst [vmem:[#allocation3 + $0x254] sm:$0xf] %v5799
        %5832 = vst [vmem:[#allocation3 + $0x268] sm:$0xf] %v5800
        %5833 = vst [vmem:[#allocation3 + $0x27c] sm:$0xf] %v5801
        %v5834 = vld [vmem:[#allocation3] sm:$0xff]
        %v5835 = vld [vmem:[#allocation3 + $0x8] sm:$0xff]
        %v5836 = vld [vmem:[#allocation3 + $0x10] sm:$0xf]
        %v5837 = vld [vmem:[#allocation3 + $0x14] sm:$0xff]
        %v5838 = vld [vmem:[#allocation3 + $0x1c] sm:$0xff]
        %v5839 = vld [vmem:[#allocation3 + $0x24] sm:$0xf]
        %v5840 = vld [vmem:[#allocation3 + $0x28] sm:$0xff]
        %v5841 = vld [vmem:[#allocation3 + $0x30] sm:$0xff]
        %v5842 = vld [vmem:[#allocation3 + $0x38] sm:$0xf]
        %v5843 = vld [vmem:[#allocation3 + $0x3c] sm:$0xff]
        %v5844 = vld [vmem:[#allocation3 + $0x44] sm:$0xff]
        %v5845 = vld [vmem:[#allocation3 + $0x4c] sm:$0xf]
        %v5846 = vld [vmem:[#allocation3 + $0x50] sm:$0xff]
        %v5847 = vld [vmem:[#allocation3 + $0x58] sm:$0xff]
        %v5848 = vld [vmem:[#allocation3 + $0x60] sm:$0xf]
        %v5849 = vld [vmem:[#allocation3 + $0x64] sm:$0xff]
        %v5850 = vld [vmem:[#allocation3 + $0x6c] sm:$0xff]
        %v5851 = vld [vmem:[#allocation3 + $0x74] sm:$0xf]
        %v5852 = vld [vmem:[#allocation3 + $0x78] sm:$0xff]
        %v5853 = vld [vmem:[#allocation3 + $0x80] sm:$0xff]
        %v5854 = vld [vmem:[#allocation3 + $0x88] sm:$0xf]
        %v5855 = vld [vmem:[#allocation3 + $0x8c] sm:$0xff]
        %v5856 = vld [vmem:[#allocation3 + $0x94] sm:$0xff]
        %v5857 = vld [vmem:[#allocation3 + $0x9c] sm:$0xf]
        %v5858 = vld [vmem:[#allocation3 + $0xa0] sm:$0xff]
        %v5859 = vld [vmem:[#allocation3 + $0xa8] sm:$0xff]
        %v5860 = vld [vmem:[#allocation3 + $0xb0] sm:$0xf]
        %v5861 = vld [vmem:[#allocation3 + $0xb4] sm:$0xff]
        %v5862 = vld [vmem:[#allocation3 + $0xbc] sm:$0xff]
        %v5863 = vld [vmem:[#allocation3 + $0xc4] sm:$0xf]
        %v5864 = vld [vmem:[#allocation3 + $0xc8] sm:$0xff]
        %v5865 = vld [vmem:[#allocation3 + $0xd0] sm:$0xff]
        %v5866 = vld [vmem:[#allocation3 + $0xd8] sm:$0xf]
        %v5867 = vld [vmem:[#allocation3 + $0xdc] sm:$0xff]
        %v5868 = vld [vmem:[#allocation3 + $0xe4] sm:$0xff]
        %v5869 = vld [vmem:[#allocation3 + $0xec] sm:$0xf]
        %v5870 = vld [vmem:[#allocation3 + $0xf0] sm:$0xff]
        %v5871 = vld [vmem:[#allocation3 + $0xf8] sm:$0xff]
        %v5872 = vld [vmem:[#allocation3 + $0x100] sm:$0xf]
        %v5873 = vld [vmem:[#allocation3 + $0x104] sm:$0xff]
        %v5874 = vld [vmem:[#allocation3 + $0x10c] sm:$0xff]
        %v5875 = vld [vmem:[#allocation3 + $0x114] sm:$0xf]
        %v5876 = vld [vmem:[#allocation3 + $0x118] sm:$0xff]
        %v5877 = vld [vmem:[#allocation3 + $0x120] sm:$0xff]
        %v5878 = vld [vmem:[#allocation3 + $0x128] sm:$0xf]
        %v5879 = vld [vmem:[#allocation3 + $0x12c] sm:$0xff]
        %v5880 = vld [vmem:[#allocation3 + $0x134] sm:$0xff]
        %v5881 = vld [vmem:[#allocation3 + $0x13c] sm:$0xf]
        %v5882 = vld [vmem:[#allocation3 + $0x140] sm:$0xff]
        %v5883 = vld [vmem:[#allocation3 + $0x148] sm:$0xff]
        %v5884 = vld [vmem:[#allocation3 + $0x150] sm:$0xf]
        %v5885 = vld [vmem:[#allocation3 + $0x154] sm:$0xff]
        %v5886 = vld [vmem:[#allocation3 + $0x15c] sm:$0xff]
        %v5887 = vld [vmem:[#allocation3 + $0x164] sm:$0xf]
        %v5888 = vld [vmem:[#allocation3 + $0x168] sm:$0xff]
        %v5889 = vld [vmem:[#allocation3 + $0x170] sm:$0xff]
        %v5890 = vld [vmem:[#allocation3 + $0x178] sm:$0xf]
        %v5891 = vld [vmem:[#allocation3 + $0x17c] sm:$0xff]
        %v5892 = vld [vmem:[#allocation3 + $0x184] sm:$0xff]
        %v5893 = vld [vmem:[#allocation3 + $0x18c] sm:$0xf]
        %v5894 = vld [vmem:[#allocation3 + $0x190] sm:$0xff]
        %v5895 = vld [vmem:[#allocation3 + $0x198] sm:$0xff]
        %v5896 = vld [vmem:[#allocation3 + $0x1a0] sm:$0xf]
        %v5897 = vld [vmem:[#allocation3 + $0x1a4] sm:$0xff]
        %v5898 = vld [vmem:[#allocation3 + $0x1ac] sm:$0xff]
        %v5899 = vld [vmem:[#allocation3 + $0x1b4] sm:$0xf]
        %v5900 = vld [vmem:[#allocation3 + $0x1b8] sm:$0xff]
        %v5901 = vld [vmem:[#allocation3 + $0x1c0] sm:$0xff]
        %v5902 = vld [vmem:[#allocation3 + $0x1c8] sm:$0xf]
        %v5903 = vld [vmem:[#allocation3 + $0x1cc] sm:$0xff]
        %v5904 = vld [vmem:[#allocation3 + $0x1d4] sm:$0xff]
        %v5905 = vld [vmem:[#allocation3 + $0x1dc] sm:$0xf]
        %v5906 = vld [vmem:[#allocation3 + $0x1e0] sm:$0xff]
        %v5907 = vld [vmem:[#allocation3 + $0x1e8] sm:$0xff]
        %v5908 = vld [vmem:[#allocation3 + $0x1f0] sm:$0xf]
        %v5909 = vld [vmem:[#allocation3 + $0x1f4] sm:$0xff]
        %v5910 = vld [vmem:[#allocation3 + $0x1fc] sm:$0xff]
        %v5911 = vld [vmem:[#allocation3 + $0x204] sm:$0xf]
        %v5912 = vld [vmem:[#allocation3 + $0x208] sm:$0xff]
        %v5913 = vld [vmem:[#allocation3 + $0x210] sm:$0xff]
        %v5914 = vld [vmem:[#allocation3 + $0x218] sm:$0xf]
        %v5915 = vld [vmem:[#allocation3 + $0x21c] sm:$0xff]
        %v5916 = vld [vmem:[#allocation3 + $0x224] sm:$0xff]
        %v5917 = vld [vmem:[#allocation3 + $0x22c] sm:$0xf]
        %v5918 = vld [vmem:[#allocation3 + $0x230] sm:$0xff]
        %v5919 = vld [vmem:[#allocation3 + $0x238] sm:$0xff]
        %v5920 = vld [vmem:[#allocation3 + $0x240] sm:$0xf]
        %v5921 = vld [vmem:[#allocation3 + $0x244] sm:$0xff]
        %v5922 = vld [vmem:[#allocation3 + $0x24c] sm:$0xff]
        %v5923 = vld [vmem:[#allocation3 + $0x254] sm:$0xf]
        %v5924 = vld [vmem:[#allocation3 + $0x258] sm:$0xff]
        %v5925 = vld [vmem:[#allocation3 + $0x260] sm:$0xff]
        %v5926 = vld [vmem:[#allocation3 + $0x268] sm:$0xf]
        %v5927 = vld [vmem:[#allocation3 + $0x26c] sm:$0xff]
        %v5928 = vld [vmem:[#allocation3 + $0x274] sm:$0xff]
        %v5929 = vld [vmem:[#allocation3 + $0x27c] sm:$0xf]
        %v5930 = vld [vmem:[%s3] sm:$0xf]
        %v5931 = vld [vmem:[%s3 + $0x4] sm:$0xf]
        %v5932 = vld [vmem:[%s3 + $0x8] sm:$0xf]
        %v5933 = vld [vmem:[%s3 + $0xc] sm:$0xf]
        %v5934 = vld [vmem:[%s3 + $0x10] sm:$0xf]
        %v5935 = vld [vmem:[%s3 + $0x14] sm:$0xf]
        %v5936 = vld [vmem:[%s3 + $0x18] sm:$0xf]
        %v5937 = vld [vmem:[%s3 + $0x1c] sm:$0xf]
        %v5938 = vld [vmem:[%s3 + $0x20] sm:$0xf]
        %v5939 = vld [vmem:[%s3 + $0x24] sm:$0xf]
        %v5940 = vld [vmem:[%s3 + $0x28] sm:$0xf]
        %v5941 = vld [vmem:[%s3 + $0x2c] sm:$0xf]
        %v5942 = vld [vmem:[%s3 + $0x30] sm:$0xf]
        %v5943 = vld [vmem:[%s3 + $0x34] sm:$0xf]
        %v5944 = vld [vmem:[%s3 + $0x38] sm:$0xf]
        %v5945 = vld [vmem:[%s3 + $0x3c] sm:$0xf]
        %v5946 = vld [vmem:[%s3 + $0x40] sm:$0xf]
        %v5947 = vld [vmem:[%s3 + $0x44] sm:$0xf]
        %v5948 = vld [vmem:[%s3 + $0x48] sm:$0xf]
        %v5949 = vld [vmem:[%s3 + $0x4c] sm:$0xf]
        %v5950 = vld [vmem:[%s3 + $0x50] sm:$0xf]
        %v5951 = vld [vmem:[%s3 + $0x54] sm:$0xf]
        %v5952 = vld [vmem:[%s3 + $0x58] sm:$0xf]
        %v5953 = vld [vmem:[%s3 + $0x5c] sm:$0xf]
        %v5954 = vld [vmem:[%s3 + $0x60] sm:$0xf]
        %v5955 = vld [vmem:[%s3 + $0x64] sm:$0xf]
        %v5956 = vld [vmem:[%s3 + $0x68] sm:$0xf]
        %v5957 = vld [vmem:[%s3 + $0x6c] sm:$0xf]
        %v5958 = vld [vmem:[%s3 + $0x70] sm:$0xf]
        %v5959 = vld [vmem:[%s3 + $0x74] sm:$0xf]
        %v5960 = vld [vmem:[%s3 + $0x78] sm:$0xf]
        %v5961 = vld [vmem:[%s3 + $0x7c] sm:$0xf]
        %v5962 = vld [vmem:[%s3 + $0x80] sm:$0xf]
        %v5963 = vld [vmem:[%s3 + $0x84] sm:$0xf]
        %v5964 = vld [vmem:[%s3 + $0x88] sm:$0xf]
        %v5965 = vld [vmem:[%s3 + $0x8c] sm:$0xf]
        %v5966 = vld [vmem:[%s3 + $0x90] sm:$0xf]
        %v5967 = vld [vmem:[%s3 + $0x94] sm:$0xf]
        %v5968 = vld [vmem:[%s3 + $0x98] sm:$0xf]
        %v5969 = vld [vmem:[%s3 + $0x9c] sm:$0xf]
        %v5970 = vld [vmem:[%s3 + $0xa0] sm:$0xf]
        %v5971 = vld [vmem:[%s3 + $0xa4] sm:$0xf]
        %v5972 = vld [vmem:[%s3 + $0xa8] sm:$0xf]
        %v5973 = vld [vmem:[%s3 + $0xac] sm:$0xf]
        %v5974 = vld [vmem:[%s3 + $0xb0] sm:$0xf]
        %v5975 = vld [vmem:[%s3 + $0xb4] sm:$0xf]
        %v5976 = vld [vmem:[%s3 + $0xb8] sm:$0xf]
        %v5977 = vld [vmem:[%s3 + $0xbc] sm:$0xf]
        %v5978 = vld [vmem:[%s3 + $0xc0] sm:$0xf]
        %v5979 = vld [vmem:[%s3 + $0xc4] sm:$0xf]
        %v5980 = vld [vmem:[%s3 + $0xc8] sm:$0xf]
        %v5981 = vld [vmem:[%s3 + $0xcc] sm:$0xf]
        %v5982 = vld [vmem:[%s3 + $0xd0] sm:$0xf]
        %v5983 = vld [vmem:[%s3 + $0xd4] sm:$0xf]
        %v5984 = vld [vmem:[%s3 + $0xd8] sm:$0xf]
        %v5985 = vld [vmem:[%s3 + $0xdc] sm:$0xf]
        %v5986 = vld [vmem:[%s3 + $0xe0] sm:$0xf]
        %v5987 = vld [vmem:[%s3 + $0xe4] sm:$0xf]
        %v5988 = vld [vmem:[%s3 + $0xe8] sm:$0xf]
        %v5989 = vld [vmem:[%s3 + $0xec] sm:$0xf]
        %v5990 = vld [vmem:[%s3 + $0xf0] sm:$0xf]
        %v5991 = vld [vmem:[%s3 + $0xf4] sm:$0xf]
        %v5992 = vld [vmem:[%s3 + $0xf8] sm:$0xf]
        %v5993 = vld [vmem:[%s3 + $0xfc] sm:$0xf]
        %v5994 = vld [vmem:[%s3 + $0x100] sm:$0xf]
        %v5995 = vld [vmem:[%s3 + $0x104] sm:$0xf]
        %v5996 = vld [vmem:[%s3 + $0x108] sm:$0xf]
        %v5997 = vld [vmem:[%s3 + $0x10c] sm:$0xf]
        %v5998 = vld [vmem:[%s3 + $0x110] sm:$0xf]
        %v5999 = vld [vmem:[%s3 + $0x114] sm:$0xf]
        %v6000 = vld [vmem:[%s3 + $0x118] sm:$0xf]
        %v6001 = vld [vmem:[%s3 + $0x11c] sm:$0xf]
        %v6002 = vld [vmem:[%s3 + $0x120] sm:$0xf]
        %v6003 = vld [vmem:[%s3 + $0x124] sm:$0xf]
        %v6004 = vld [vmem:[%s3 + $0x128] sm:$0xf]
        %v6005 = vld [vmem:[%s3 + $0x12c] sm:$0xf]
        %v6006 = vld [vmem:[%s3 + $0x130] sm:$0xf]
        %v6007 = vld [vmem:[%s3 + $0x134] sm:$0xf]
        %v6008 = vld [vmem:[%s3 + $0x138] sm:$0xf]
        %v6009 = vld [vmem:[%s3 + $0x13c] sm:$0xf]
        %v6010 = vld [vmem:[%s4] sm:$0x1]
        %v6012 = vperm.slane %v6010, 0
        %v6110 = vunpack.c.l.b16 %v5834
        %v6111 = vunpack.c.h.b16 %v5834
        %v6112 = vunpack.c.l.b16 %v5835
        %v6113 = vunpack.c.h.b16 %v5835
        %v6114 = vunpack.c.l.b16 %v5836
        %v6115 = vunpack.c.l.b16 %v5837
        %v6116 = vunpack.c.h.b16 %v5837
        %v6117 = vunpack.c.l.b16 %v5838
        %v6118 = vunpack.c.h.b16 %v5838
        %v6119 = vunpack.c.l.b16 %v5839
        %v6120 = vunpack.c.l.b16 %v5840
        %v6121 = vunpack.c.h.b16 %v5840
        %v6122 = vunpack.c.l.b16 %v5841
        %v6123 = vunpack.c.h.b16 %v5841
        %v6124 = vunpack.c.l.b16 %v5842
        %v6125 = vunpack.c.l.b16 %v5843
        %v6126 = vunpack.c.h.b16 %v5843
        %v6127 = vunpack.c.l.b16 %v5844
        %v6128 = vunpack.c.h.b16 %v5844
        %v6129 = vunpack.c.l.b16 %v5845
        %v6130 = vunpack.c.l.b16 %v5846
        %v6131 = vunpack.c.h.b16 %v5846
        %v6132 = vunpack.c.l.b16 %v5847
        %v6133 = vunpack.c.h.b16 %v5847
        %v6134 = vunpack.c.l.b16 %v5848
        %v6135 = vunpack.c.l.b16 %v5849
        %v6136 = vunpack.c.h.b16 %v5849
        %v6137 = vunpack.c.l.b16 %v5850
        %v6138 = vunpack.c.h.b16 %v5850
        %v6139 = vunpack.c.l.b16 %v5851
        %v6140 = vunpack.c.l.b16 %v5852
        %v6141 = vunpack.c.h.b16 %v5852
        %v6142 = vunpack.c.l.b16 %v5853
        %v6143 = vunpack.c.h.b16 %v5853
        %v6144 = vunpack.c.l.b16 %v5854
        %v6145 = vunpack.c.l.b16 %v5855
        %v6146 = vunpack.c.h.b16 %v5855
        %v6147 = vunpack.c.l.b16 %v5856
        %v6148 = vunpack.c.h.b16 %v5856
        %v6149 = vunpack.c.l.b16 %v5857
        %v6150 = vunpack.c.l.b16 %v5858
        %v6151 = vunpack.c.h.b16 %v5858
        %v6152 = vunpack.c.l.b16 %v5859
        %v6153 = vunpack.c.h.b16 %v5859
        %v6154 = vunpack.c.l.b16 %v5860
        %v6155 = vunpack.c.l.b16 %v5861
        %v6156 = vunpack.c.h.b16 %v5861
        %v6157 = vunpack.c.l.b16 %v5862
        %v6158 = vunpack.c.h.b16 %v5862
        %v6159 = vunpack.c.l.b16 %v5863
        %v6160 = vunpack.c.l.b16 %v5864
        %v6161 = vunpack.c.h.b16 %v5864
        %v6162 = vunpack.c.l.b16 %v5865
        %v6163 = vunpack.c.h.b16 %v5865
        %v6164 = vunpack.c.l.b16 %v5866
        %v6165 = vunpack.c.l.b16 %v5867
        %v6166 = vunpack.c.h.b16 %v5867
        %v6167 = vunpack.c.l.b16 %v5868
        %v6168 = vunpack.c.h.b16 %v5868
        %v6169 = vunpack.c.l.b16 %v5869
        %v6170 = vunpack.c.l.b16 %v5870
        %v6171 = vunpack.c.h.b16 %v5870
        %v6172 = vunpack.c.l.b16 %v5871
        %v6173 = vunpack.c.h.b16 %v5871
        %v6174 = vunpack.c.l.b16 %v5872
        %v6175 = vunpack.c.l.b16 %v5873
        %v6176 = vunpack.c.h.b16 %v5873
        %v6177 = vunpack.c.l.b16 %v5874
        %v6178 = vunpack.c.h.b16 %v5874
        %v6179 = vunpack.c.l.b16 %v5875
        %v6180 = vunpack.c.l.b16 %v5876
        %v6181 = vunpack.c.h.b16 %v5876
        %v6182 = vunpack.c.l.b16 %v5877
        %v6183 = vunpack.c.h.b16 %v5877
        %v6184 = vunpack.c.l.b16 %v5878
        %v6185 = vunpack.c.l.b16 %v5879
        %v6186 = vunpack.c.h.b16 %v5879
        %v6187 = vunpack.c.l.b16 %v5880
        %v6188 = vunpack.c.h.b16 %v5880
        %v6189 = vunpack.c.l.b16 %v5881
        %v6190 = vunpack.c.l.b16 %v5882
        %v6191 = vunpack.c.h.b16 %v5882
        %v6192 = vunpack.c.l.b16 %v5883
        %v6193 = vunpack.c.h.b16 %v5883
        %v6194 = vunpack.c.l.b16 %v5884
        %v6195 = vunpack.c.l.b16 %v5885
        %v6196 = vunpack.c.h.b16 %v5885
        %v6197 = vunpack.c.l.b16 %v5886
        %v6198 = vunpack.c.h.b16 %v5886
        %v6199 = vunpack.c.l.b16 %v5887
        %v6200 = vunpack.c.l.b16 %v5888
        %v6201 = vunpack.c.h.b16 %v5888
        %v6202 = vunpack.c.l.b16 %v5889
        %v6203 = vunpack.c.h.b16 %v5889
        %v6204 = vunpack.c.l.b16 %v5890
        %v6205 = vunpack.c.l.b16 %v5891
        %v6206 = vunpack.c.h.b16 %v5891
        %v6207 = vunpack.c.l.b16 %v5892
        %v6208 = vunpack.c.h.b16 %v5892
        %v6209 = vunpack.c.l.b16 %v5893
        %v6210 = vunpack.c.l.b16 %v5894
        %v6211 = vunpack.c.h.b16 %v5894
        %v6212 = vunpack.c.l.b16 %v5895
        %v6213 = vunpack.c.h.b16 %v5895
        %v6214 = vunpack.c.l.b16 %v5896
        %v6215 = vunpack.c.l.b16 %v5897
        %v6216 = vunpack.c.h.b16 %v5897
        %v6217 = vunpack.c.l.b16 %v5898
        %v6218 = vunpack.c.h.b16 %v5898
        %v6219 = vunpack.c.l.b16 %v5899
        %v6220 = vunpack.c.l.b16 %v5900
        %v6221 = vunpack.c.h.b16 %v5900
        %v6222 = vunpack.c.l.b16 %v5901
        %v6223 = vunpack.c.h.b16 %v5901
        %v6224 = vunpack.c.l.b16 %v5902
        %v6225 = vunpack.c.l.b16 %v5903
        %v6226 = vunpack.c.h.b16 %v5903
        %v6227 = vunpack.c.l.b16 %v5904
        %v6228 = vunpack.c.h.b16 %v5904
        %v6229 = vunpack.c.l.b16 %v5905
        %v6230 = vunpack.c.l.b16 %v5906
        %v6231 = vunpack.c.h.b16 %v5906
        %v6232 = vunpack.c.l.b16 %v5907
        %v6233 = vunpack.c.h.b16 %v5907
        %v6234 = vunpack.c.l.b16 %v5908
        %v6235 = vunpack.c.l.b16 %v5909
        %v6236 = vunpack.c.h.b16 %v5909
        %v6237 = vunpack.c.l.b16 %v5910
        %v6238 = vunpack.c.h.b16 %v5910
        %v6239 = vunpack.c.l.b16 %v5911
        %v6240 = vunpack.c.l.b16 %v5912
        %v6241 = vunpack.c.h.b16 %v5912
        %v6242 = vunpack.c.l.b16 %v5913
        %v6243 = vunpack.c.h.b16 %v5913
        %v6244 = vunpack.c.l.b16 %v5914
        %v6245 = vunpack.c.l.b16 %v5915
        %v6246 = vunpack.c.h.b16 %v5915
        %v6247 = vunpack.c.l.b16 %v5916
        %v6248 = vunpack.c.h.b16 %v5916
        %v6249 = vunpack.c.l.b16 %v5917
        %v6250 = vunpack.c.l.b16 %v5918
        %v6251 = vunpack.c.h.b16 %v5918
        %v6252 = vunpack.c.l.b16 %v5919
        %v6253 = vunpack.c.h.b16 %v5919
        %v6254 = vunpack.c.l.b16 %v5920
        %v6255 = vunpack.c.l.b16 %v5921
        %v6256 = vunpack.c.h.b16 %v5921
        %v6257 = vunpack.c.l.b16 %v5922
        %v6258 = vunpack.c.h.b16 %v5922
        %v6259 = vunpack.c.l.b16 %v5923
        %v6260 = vunpack.c.l.b16 %v5924
        %v6261 = vunpack.c.h.b16 %v5924
        %v6262 = vunpack.c.l.b16 %v5925
        %v6263 = vunpack.c.h.b16 %v5925
        %v6264 = vunpack.c.l.b16 %v5926
        %v6265 = vunpack.c.l.b16 %v5927
        %v6266 = vunpack.c.h.b16 %v5927
        %v6267 = vunpack.c.l.b16 %v5928
        %v6268 = vunpack.c.h.b16 %v5928
        %v6269 = vunpack.c.l.b16 %v5929
        %v6270 = vpack.c.b16 %v6115, %v6110
        %v6271 = vpack.c.b16 %v6116, %v6111
        %v6272 = vpack.c.b16 %v6117, %v6112
        %v6273 = vpack.c.b16 %v6118, %v6113
        %v6274 = vpack.c.b16 %v6119, %v6114
        %v6275 = vpack.c.b16 %v6125, %v6120
        %v6276 = vpack.c.b16 %v6126, %v6121
        %v6277 = vpack.c.b16 %v6127, %v6122
        %v6278 = vpack.c.b16 %v6128, %v6123
        %v6279 = vpack.c.b16 %v6129, %v6124
        %v6280 = vpack.c.b16 %v6135, %v6130
        %v6281 = vpack.c.b16 %v6136, %v6131
        %v6282 = vpack.c.b16 %v6137, %v6132
        %v6283 = vpack.c.b16 %v6138, %v6133
        %v6284 = vpack.c.b16 %v6139, %v6134
        %v6285 = vpack.c.b16 %v6145, %v6140
        %v6286 = vpack.c.b16 %v6146, %v6141
        %v6287 = vpack.c.b16 %v6147, %v6142
        %v6288 = vpack.c.b16 %v6148, %v6143
        %v6289 = vpack.c.b16 %v6149, %v6144
        %v6290 = vpack.c.b16 %v6155, %v6150
        %v6291 = vpack.c.b16 %v6156, %v6151
        %v6292 = vpack.c.b16 %v6157, %v6152
        %v6293 = vpack.c.b16 %v6158, %v6153
        %v6294 = vpack.c.b16 %v6159, %v6154
        %v6295 = vpack.c.b16 %v6165, %v6160
        %v6296 = vpack.c.b16 %v6166, %v6161
        %v6297 = vpack.c.b16 %v6167, %v6162
        %v6298 = vpack.c.b16 %v6168, %v6163
        %v6299 = vpack.c.b16 %v6169, %v6164
        %v6300 = vpack.c.b16 %v6175, %v6170
        %v6301 = vpack.c.b16 %v6176, %v6171
        %v6302 = vpack.c.b16 %v6177, %v6172
        %v6303 = vpack.c.b16 %v6178, %v6173
        %v6304 = vpack.c.b16 %v6179, %v6174
        %v6305 = vpack.c.b16 %v6185, %v6180
        %v6306 = vpack.c.b16 %v6186, %v6181
        %v6307 = vpack.c.b16 %v6187, %v6182
        %v6308 = vpack.c.b16 %v6188, %v6183
        %v6309 = vpack.c.b16 %v6189, %v6184
        %v6310 = vpack.c.b16 %v6195, %v6190
        %v6311 = vpack.c.b16 %v6196, %v6191
        %v6312 = vpack.c.b16 %v6197, %v6192
        %v6313 = vpack.c.b16 %v6198, %v6193
        %v6314 = vpack.c.b16 %v6199, %v6194
        %v6315 = vpack.c.b16 %v6205, %v6200
        %v6316 = vpack.c.b16 %v6206, %v6201
        %v6317 = vpack.c.b16 %v6207, %v6202
        %v6318 = vpack.c.b16 %v6208, %v6203
        %v6319 = vpack.c.b16 %v6209, %v6204
        %v6320 = vpack.c.b16 %v6215, %v6210
        %v6321 = vpack.c.b16 %v6216, %v6211
        %v6322 = vpack.c.b16 %v6217, %v6212
        %v6323 = vpack.c.b16 %v6218, %v6213
        %v6324 = vpack.c.b16 %v6219, %v6214
        %v6325 = vpack.c.b16 %v6225, %v6220
        %v6326 = vpack.c.b16 %v6226, %v6221
        %v6327 = vpack.c.b16 %v6227, %v6222
        %v6328 = vpack.c.b16 %v6228, %v6223
        %v6329 = vpack.c.b16 %v6229, %v6224
        %v6330 = vpack.c.b16 %v6235, %v6230
        %v6331 = vpack.c.b16 %v6236, %v6231
        %v6332 = vpack.c.b16 %v6237, %v6232
        %v6333 = vpack.c.b16 %v6238, %v6233
        %v6334 = vpack.c.b16 %v6239, %v6234
        %v6335 = vpack.c.b16 %v6245, %v6240
        %v6336 = vpack.c.b16 %v6246, %v6241
        %v6337 = vpack.c.b16 %v6247, %v6242
        %v6338 = vpack.c.b16 %v6248, %v6243
        %v6339 = vpack.c.b16 %v6249, %v6244
        %v6340 = vpack.c.b16 %v6255, %v6250
        %v6341 = vpack.c.b16 %v6256, %v6251
        %v6342 = vpack.c.b16 %v6257, %v6252
        %v6343 = vpack.c.b16 %v6258, %v6253
        %v6344 = vpack.c.b16 %v6259, %v6254
        %v6345 = vpack.c.b16 %v6265, %v6260
        %v6346 = vpack.c.b16 %v6266, %v6261
        %v6347 = vpack.c.b16 %v6267, %v6262
        %v6348 = vpack.c.b16 %v6268, %v6263
        %v6349 = vpack.c.b16 %v6269, %v6264
        %v6510 = vunpack.c.l.b16 %v5930
        %v6511 = vunpack.c.l.b16 %v5931
        %v6512 = vunpack.c.l.b16 %v5932
        %v6513 = vunpack.c.l.b16 %v5933
        %v6514 = vunpack.c.l.b16 %v5934
        %v6515 = vunpack.c.l.b16 %v5935
        %v6516 = vunpack.c.l.b16 %v5936
        %v6517 = vunpack.c.l.b16 %v5937
        %v6518 = vunpack.c.l.b16 %v5938
        %v6519 = vunpack.c.l.b16 %v5939
        %v6520 = vunpack.c.l.b16 %v5940
        %v6521 = vunpack.c.l.b16 %v5941
        %v6522 = vunpack.c.l.b16 %v5942
        %v6523 = vunpack.c.l.b16 %v5943
        %v6524 = vunpack.c.l.b16 %v5944
        %v6525 = vunpack.c.l.b16 %v5945
        %v6526 = vunpack.c.l.b16 %v5946
        %v6527 = vunpack.c.l.b16 %v5947
        %v6528 = vunpack.c.l.b16 %v5948
        %v6529 = vunpack.c.l.b16 %v5949
        %v6530 = vunpack.c.l.b16 %v5950
        %v6531 = vunpack.c.l.b16 %v5951
        %v6532 = vunpack.c.l.b16 %v5952
        %v6533 = vunpack.c.l.b16 %v5953
        %v6534 = vunpack.c.l.b16 %v5954
        %v6535 = vunpack.c.l.b16 %v5955
        %v6536 = vunpack.c.l.b16 %v5956
        %v6537 = vunpack.c.l.b16 %v5957
        %v6538 = vunpack.c.l.b16 %v5958
        %v6539 = vunpack.c.l.b16 %v5959
        %v6540 = vunpack.c.l.b16 %v5960
        %v6541 = vunpack.c.l.b16 %v5961
        %v6542 = vunpack.c.l.b16 %v5962
        %v6543 = vunpack.c.l.b16 %v5963
        %v6544 = vunpack.c.l.b16 %v5964
        %v6545 = vunpack.c.l.b16 %v5965
        %v6546 = vunpack.c.l.b16 %v5966
        %v6547 = vunpack.c.l.b16 %v5967
        %v6548 = vunpack.c.l.b16 %v5968
        %v6549 = vunpack.c.l.b16 %v5969
        %v6550 = vunpack.c.l.b16 %v5970
        %v6551 = vunpack.c.l.b16 %v5971
        %v6552 = vunpack.c.l.b16 %v5972
        %v6553 = vunpack.c.l.b16 %v5973
        %v6554 = vunpack.c.l.b16 %v5974
        %v6555 = vunpack.c.l.b16 %v5975
        %v6556 = vunpack.c.l.b16 %v5976
        %v6557 = vunpack.c.l.b16 %v5977
        %v6558 = vunpack.c.l.b16 %v5978
        %v6559 = vunpack.c.l.b16 %v5979
        %v6560 = vunpack.c.l.b16 %v5980
        %v6561 = vunpack.c.l.b16 %v5981
        %v6562 = vunpack.c.l.b16 %v5982
        %v6563 = vunpack.c.l.b16 %v5983
        %v6564 = vunpack.c.l.b16 %v5984
        %v6565 = vunpack.c.l.b16 %v5985
        %v6566 = vunpack.c.l.b16 %v5986
        %v6567 = vunpack.c.l.b16 %v5987
        %v6568 = vunpack.c.l.b16 %v5988
        %v6569 = vunpack.c.l.b16 %v5989
        %v6570 = vunpack.c.l.b16 %v5990
        %v6571 = vunpack.c.l.b16 %v5991
        %v6572 = vunpack.c.l.b16 %v5992
        %v6573 = vunpack.c.l.b16 %v5993
        %v6574 = vunpack.c.l.b16 %v5994
        %v6575 = vunpack.c.l.b16 %v5995
        %v6576 = vunpack.c.l.b16 %v5996
        %v6577 = vunpack.c.l.b16 %v5997
        %v6578 = vunpack.c.l.b16 %v5998
        %v6579 = vunpack.c.l.b16 %v5999
        %v6580 = vunpack.c.l.b16 %v6000
        %v6581 = vunpack.c.l.b16 %v6001
        %v6582 = vunpack.c.l.b16 %v6002
        %v6583 = vunpack.c.l.b16 %v6003
        %v6584 = vunpack.c.l.b16 %v6004
        %v6585 = vunpack.c.l.b16 %v6005
        %v6586 = vunpack.c.l.b16 %v6006
        %v6587 = vunpack.c.l.b16 %v6007
        %v6588 = vunpack.c.l.b16 %v6008
        %v6589 = vunpack.c.l.b16 %v6009
        %v6590 = vpack.c.b16 %v6511, %v6510
        %v6591 = vpack.c.b16 %v6513, %v6512
        %v6592 = vpack.c.b16 %v6515, %v6514
        %v6593 = vpack.c.b16 %v6517, %v6516
        %v6594 = vpack.c.b16 %v6519, %v6518
        %v6595 = vpack.c.b16 %v6521, %v6520
        %v6596 = vpack.c.b16 %v6523, %v6522
        %v6597 = vpack.c.b16 %v6525, %v6524
        %v6598 = vpack.c.b16 %v6527, %v6526
        %v6599 = vpack.c.b16 %v6529, %v6528
        %v6600 = vpack.c.b16 %v6531, %v6530
        %v6601 = vpack.c.b16 %v6533, %v6532
        %v6602 = vpack.c.b16 %v6535, %v6534
        %v6603 = vpack.c.b16 %v6537, %v6536
        %v6604 = vpack.c.b16 %v6539, %v6538
        %v6605 = vpack.c.b16 %v6541, %v6540
        %v6606 = vpack.c.b16 %v6543, %v6542
        %v6607 = vpack.c.b16 %v6545, %v6544
        %v6608 = vpack.c.b16 %v6547, %v6546
        %v6609 = vpack.c.b16 %v6549, %v6548
        %v6610 = vpack.c.b16 %v6551, %v6550
        %v6611 = vpack.c.b16 %v6553, %v6552
        %v6612 = vpack.c.b16 %v6555, %v6554
        %v6613 = vpack.c.b16 %v6557, %v6556
        %v6614 = vpack.c.b16 %v6559, %v6558
        %v6615 = vpack.c.b16 %v6561, %v6560
        %v6616 = vpack.c.b16 %v6563, %v6562
        %v6617 = vpack.c.b16 %v6565, %v6564
        %v6618 = vpack.c.b16 %v6567, %v6566
        %v6619 = vpack.c.b16 %v6569, %v6568
        %v6620 = vpack.c.b16 %v6571, %v6570
        %v6621 = vpack.c.b16 %v6573, %v6572
        %v6622 = vpack.c.b16 %v6575, %v6574
        %v6623 = vpack.c.b16 %v6577, %v6576
        %v6624 = vpack.c.b16 %v6579, %v6578
        %v6625 = vpack.c.b16 %v6581, %v6580
        %v6626 = vpack.c.b16 %v6583, %v6582
        %v6627 = vpack.c.b16 %v6585, %v6584
        %v6628 = vpack.c.b16 %v6587, %v6586
        %v6629 = vpack.c.b16 %v6589, %v6588
        %6670 = vmatpush.bf16.msra.mxu0 %v6597
        %6671 = vmatpush.bf16.msra.mxu0 %v6596
        %6672 = vmatpush.bf16.msra.mxu0 %v6595
        %6673 = vmatpush.bf16.msra.mxu0 %v6594
        %6674 = vmatpush.bf16.msra.mxu0 %v6593
        %6675 = vmatpush.bf16.msra.mxu0 %v6592
        %6676 = vmatpush.bf16.msra.mxu0 %v6591
        %6677 = vmatpush.bf16.msra.mxu0 %v6590
        %6678 = vmatmul.bf16.gmra.mxu0 %v6270
        %v6679 = vpop.f32.mrf.mxu0
        %v6680 = vadd.f32 %v6012, %v6679
        %v6681 = vpop.f32.mrf.mxu0
        %v6682 = vadd.f32 %v6012, %v6681
        %6683 = vmatmul.bf16.gmra.mxu0 %v6275
        %v6684 = vpop.f32.mrf.mxu0
        %v6685 = vadd.f32 %v6012, %v6684
        %v6686 = vpop.f32.mrf.mxu0
        %v6687 = vadd.f32 %v6012, %v6686
        %6688 = vmatmul.bf16.gmra.mxu0 %v6280
        %v6689 = vpop.f32.mrf.mxu0
        %v6690 = vadd.f32 %v6012, %v6689
        %v6691 = vpop.f32.mrf.mxu0
        %v6692 = vadd.f32 %v6012, %v6691
        %6693 = vmatmul.bf16.gmra.mxu0 %v6285
        %v6694 = vpop.f32.mrf.mxu0
        %v6695 = vadd.f32 %v6012, %v6694
        %v6696 = vpop.f32.mrf.mxu0
        %v6697 = vadd.f32 %v6012, %v6696
        %6698 = vmatmul.bf16.gmra.mxu0 %v6290
        %v6699 = vpop.f32.mrf.mxu0
        %v6700 = vadd.f32 %v6012, %v6699
        %v6701 = vpop.f32.mrf.mxu0
        %v6702 = vadd.f32 %v6012, %v6701
        %6703 = vmatmul.bf16.gmra.mxu0 %v6295
        %v6704 = vpop.f32.mrf.mxu0
        %v6705 = vadd.f32 %v6012, %v6704
        %v6706 = vpop.f32.mrf.mxu0
        %v6707 = vadd.f32 %v6012, %v6706
        %6708 = vmatmul.bf16.gmra.mxu0 %v6300
        %v6709 = vpop.f32.mrf.mxu0
        %v6710 = vadd.f32 %v6012, %v6709
        %v6711 = vpop.f32.mrf.mxu0
        %v6712 = vadd.f32 %v6012, %v6711
        %6713 = vmatmul.bf16.gmra.mxu0 %v6305
        %v6714 = vpop.f32.mrf.mxu0
        %v6715 = vadd.f32 %v6012, %v6714
        %v6716 = vpop.f32.mrf.mxu0
        %v6717 = vadd.f32 %v6012, %v6716
        %6718 = vmatmul.bf16.gmra.mxu0 %v6310
        %v6719 = vpop.f32.mrf.mxu0
        %v6720 = vadd.f32 %v6012, %v6719
        %v6721 = vpop.f32.mrf.mxu0
        %v6722 = vadd.f32 %v6012, %v6721
        %6723 = vmatmul.bf16.gmra.mxu0 %v6315
        %v6724 = vpop.f32.mrf.mxu0
        %v6725 = vadd.f32 %v6012, %v6724
        %v6726 = vpop.f32.mrf.mxu0
        %v6727 = vadd.f32 %v6012, %v6726
        %6728 = vmatmul.bf16.gmra.mxu0 %v6320
        %v6729 = vpop.f32.mrf.mxu0
        %v6730 = vadd.f32 %v6012, %v6729
        %v6731 = vpop.f32.mrf.mxu0
        %v6732 = vadd.f32 %v6012, %v6731
        %6733 = vmatmul.bf16.gmra.mxu0 %v6325
        %v6734 = vpop.f32.mrf.mxu0
        %v6735 = vadd.f32 %v6012, %v6734
        %v6736 = vpop.f32.mrf.mxu0
        %v6737 = vadd.f32 %v6012, %v6736
        %6738 = vmatmul.bf16.gmra.mxu0 %v6330
        %v6739 = vpop.f32.mrf.mxu0
        %v6740 = vadd.f32 %v6012, %v6739
        %v6741 = vpop.f32.mrf.mxu0
        %v6742 = vadd.f32 %v6012, %v6741
        %6743 = vmatmul.bf16.gmra.mxu0 %v6335
        %v6744 = vpop.f32.mrf.mxu0
        %v6745 = vadd.f32 %v6012, %v6744
        %v6746 = vpop.f32.mrf.mxu0
        %v6747 = vadd.f32 %v6012, %v6746
        %6748 = vmatmul.bf16.gmra.mxu0 %v6340
        %v6749 = vpop.f32.mrf.mxu0
        %v6750 = vadd.f32 %v6012, %v6749
        %v6751 = vpop.f32.mrf.mxu0
        %v6752 = vadd.f32 %v6012, %v6751
        %6753 = vmatmul.bf16.gmra.mxu0 %v6345
        %v6754 = vpop.f32.mrf.mxu0
        %v6755 = vadd.f32 %v6012, %v6754
        %v6756 = vpop.f32.mrf.mxu0
        %v6757 = vadd.f32 %v6012, %v6756
        %6758 = vdwg.mxu0
        %6759 = vmatpush.bf16.msra.mxu0 %v6605
        %6760 = vmatpush.bf16.msra.mxu0 %v6604
        %6761 = vmatpush.bf16.msra.mxu0 %v6603
        %6762 = vmatpush.bf16.msra.mxu0 %v6602
        %6763 = vmatpush.bf16.msra.mxu0 %v6601
        %6764 = vmatpush.bf16.msra.mxu0 %v6600
        %6765 = vmatpush.bf16.msra.mxu0 %v6599
        %6766 = vmatpush.bf16.msra.mxu0 %v6598
        %6767 = vmatmul.bf16.gmra.mxu0 %v6271
        %v6768 = vpop.f32.mrf.mxu0
        %v6769 = vadd.f32 %v6680, %v6768
        %v6770 = vpop.f32.mrf.mxu0
        %v6771 = vadd.f32 %v6682, %v6770
        %6772 = vmatmul.bf16.gmra.mxu0 %v6276
        %v6773 = vpop.f32.mrf.mxu0
        %v6774 = vadd.f32 %v6685, %v6773
        %v6775 = vpop.f32.mrf.mxu0
        %v6776 = vadd.f32 %v6687, %v6775
        %6777 = vmatmul.bf16.gmra.mxu0 %v6281
        %v6778 = vpop.f32.mrf.mxu0
        %v6779 = vadd.f32 %v6690, %v6778
        %v6780 = vpop.f32.mrf.mxu0
        %v6781 = vadd.f32 %v6692, %v6780
        %6782 = vmatmul.bf16.gmra.mxu0 %v6286
        %v6783 = vpop.f32.mrf.mxu0
        %v6784 = vadd.f32 %v6695, %v6783
        %v6785 = vpop.f32.mrf.mxu0
        %v6786 = vadd.f32 %v6697, %v6785
        %6787 = vmatmul.bf16.gmra.mxu0 %v6291
        %v6788 = vpop.f32.mrf.mxu0
        %v6789 = vadd.f32 %v6700, %v6788
        %v6790 = vpop.f32.mrf.mxu0
        %v6791 = vadd.f32 %v6702, %v6790
        %6792 = vmatmul.bf16.gmra.mxu0 %v6296
        %v6793 = vpop.f32.mrf.mxu0
        %v6794 = vadd.f32 %v6705, %v6793
        %v6795 = vpop.f32.mrf.mxu0
        %v6796 = vadd.f32 %v6707, %v6795
        %6797 = vmatmul.bf16.gmra.mxu0 %v6301
        %v6798 = vpop.f32.mrf.mxu0
        %v6799 = vadd.f32 %v6710, %v6798
        %v6800 = vpop.f32.mrf.mxu0
        %v6801 = vadd.f32 %v6712, %v6800
        %6802 = vmatmul.bf16.gmra.mxu0 %v6306
        %v6803 = vpop.f32.mrf.mxu0
        %v6804 = vadd.f32 %v6715, %v6803
        %v6805 = vpop.f32.mrf.mxu0
        %v6806 = vadd.f32 %v6717, %v6805
        %6807 = vmatmul.bf16.gmra.mxu0 %v6311
        %v6808 = vpop.f32.mrf.mxu0
        %v6809 = vadd.f32 %v6720, %v6808
        %v6810 = vpop.f32.mrf.mxu0
        %v6811 = vadd.f32 %v6722, %v6810
        %6812 = vmatmul.bf16.gmra.mxu0 %v6316
        %v6813 = vpop.f32.mrf.mxu0
        %v6814 = vadd.f32 %v6725, %v6813
        %v6815 = vpop.f32.mrf.mxu0
        %v6816 = vadd.f32 %v6727, %v6815
        %6817 = vmatmul.bf16.gmra.mxu0 %v6321
        %v6818 = vpop.f32.mrf.mxu0
        %v6819 = vadd.f32 %v6730, %v6818
        %v6820 = vpop.f32.mrf.mxu0
        %v6821 = vadd.f32 %v6732, %v6820
        %6822 = vmatmul.bf16.gmra.mxu0 %v6326
        %v6823 = vpop.f32.mrf.mxu0
        %v6824 = vadd.f32 %v6735, %v6823
        %v6825 = vpop.f32.mrf.mxu0
        %v6826 = vadd.f32 %v6737, %v6825
        %6827 = vmatmul.bf16.gmra.mxu0 %v6331
        %v6828 = vpop.f32.mrf.mxu0
        %v6829 = vadd.f32 %v6740, %v6828
        %v6830 = vpop.f32.mrf.mxu0
        %v6831 = vadd.f32 %v6742, %v6830
        %6832 = vmatmul.bf16.gmra.mxu0 %v6336
        %v6833 = vpop.f32.mrf.mxu0
        %v6834 = vadd.f32 %v6745, %v6833
        %v6835 = vpop.f32.mrf.mxu0
        %v6836 = vadd.f32 %v6747, %v6835
        %6837 = vmatmul.bf16.gmra.mxu0 %v6341
        %v6838 = vpop.f32.mrf.mxu0
        %v6839 = vadd.f32 %v6750, %v6838
        %v6840 = vpop.f32.mrf.mxu0
        %v6841 = vadd.f32 %v6752, %v6840
        %6842 = vmatmul.bf16.gmra.mxu0 %v6346
        %v6843 = vpop.f32.mrf.mxu0
        %v6844 = vadd.f32 %v6755, %v6843
        %v6845 = vpop.f32.mrf.mxu0
        %v6846 = vadd.f32 %v6757, %v6845
        %6847 = vdwg.mxu0
        %6848 = vmatpush.bf16.msra.mxu0 %v6613
        %6849 = vmatpush.bf16.msra.mxu0 %v6612
        %6850 = vmatpush.bf16.msra.mxu0 %v6611
        %6851 = vmatpush.bf16.msra.mxu0 %v6610
        %6852 = vmatpush.bf16.msra.mxu0 %v6609
        %6853 = vmatpush.bf16.msra.mxu0 %v6608
        %6854 = vmatpush.bf16.msra.mxu0 %v6607
        %6855 = vmatpush.bf16.msra.mxu0 %v6606
        %6856 = vmatmul.bf16.gmra.mxu0 %v6272
        %v6857 = vpop.f32.mrf.mxu0
        %v6858 = vadd.f32 %v6769, %v6857
        %v6859 = vpop.f32.mrf.mxu0
        %v6860 = vadd.f32 %v6771, %v6859
        %6861 = vmatmul.bf16.gmra.mxu0 %v6277
        %v6862 = vpop.f32.mrf.mxu0
        %v6863 = vadd.f32 %v6774, %v6862
        %v6864 = vpop.f32.mrf.mxu0
        %v6865 = vadd.f32 %v6776, %v6864
        %6866 = vmatmul.bf16.gmra.mxu0 %v6282
        %v6867 = vpop.f32.mrf.mxu0
        %v6868 = vadd.f32 %v6779, %v6867
        %v6869 = vpop.f32.mrf.mxu0
        %v6870 = vadd.f32 %v6781, %v6869
        %6871 = vmatmul.bf16.gmra.mxu0 %v6287
        %v6872 = vpop.f32.mrf.mxu0
        %v6873 = vadd.f32 %v6784, %v6872
        %v6874 = vpop.f32.mrf.mxu0
        %v6875 = vadd.f32 %v6786, %v6874
        %6876 = vmatmul.bf16.gmra.mxu0 %v6292
        %v6877 = vpop.f32.mrf.mxu0
        %v6878 = vadd.f32 %v6789, %v6877
        %v6879 = vpop.f32.mrf.mxu0
        %v6880 = vadd.f32 %v6791, %v6879
        %6881 = vmatmul.bf16.gmra.mxu0 %v6297
        %v6882 = vpop.f32.mrf.mxu0
        %v6883 = vadd.f32 %v6794, %v6882
        %v6884 = vpop.f32.mrf.mxu0
        %v6885 = vadd.f32 %v6796, %v6884
        %6886 = vmatmul.bf16.gmra.mxu0 %v6302
        %v6887 = vpop.f32.mrf.mxu0
        %v6888 = vadd.f32 %v6799, %v6887
        %v6889 = vpop.f32.mrf.mxu0
        %v6890 = vadd.f32 %v6801, %v6889
        %6891 = vmatmul.bf16.gmra.mxu0 %v6307
        %v6892 = vpop.f32.mrf.mxu0
        %v6893 = vadd.f32 %v6804, %v6892
        %v6894 = vpop.f32.mrf.mxu0
        %v6895 = vadd.f32 %v6806, %v6894
        %6896 = vmatmul.bf16.gmra.mxu0 %v6312
        %v6897 = vpop.f32.mrf.mxu0
        %v6898 = vadd.f32 %v6809, %v6897
        %v6899 = vpop.f32.mrf.mxu0
        %v6900 = vadd.f32 %v6811, %v6899
        %6901 = vmatmul.bf16.gmra.mxu0 %v6317
        %v6902 = vpop.f32.mrf.mxu0
        %v6903 = vadd.f32 %v6814, %v6902
        %v6904 = vpop.f32.mrf.mxu0
        %v6905 = vadd.f32 %v6816, %v6904
        %6906 = vmatmul.bf16.gmra.mxu0 %v6322
        %v6907 = vpop.f32.mrf.mxu0
        %v6908 = vadd.f32 %v6819, %v6907
        %v6909 = vpop.f32.mrf.mxu0
        %v6910 = vadd.f32 %v6821, %v6909
        %6911 = vmatmul.bf16.gmra.mxu0 %v6327
        %v6912 = vpop.f32.mrf.mxu0
        %v6913 = vadd.f32 %v6824, %v6912
        %v6914 = vpop.f32.mrf.mxu0
        %v6915 = vadd.f32 %v6826, %v6914
        %6916 = vmatmul.bf16.gmra.mxu0 %v6332
        %v6917 = vpop.f32.mrf.mxu0
        %v6918 = vadd.f32 %v6829, %v6917
        %v6919 = vpop.f32.mrf.mxu0
        %v6920 = vadd.f32 %v6831, %v6919
        %6921 = vmatmul.bf16.gmra.mxu0 %v6337
        %v6922 = vpop.f32.mrf.mxu0
        %v6923 = vadd.f32 %v6834, %v6922
        %v6924 = vpop.f32.mrf.mxu0
        %v6925 = vadd.f32 %v6836, %v6924
        %6926 = vmatmul.bf16.gmra.mxu0 %v6342
        %v6927 = vpop.f32.mrf.mxu0
        %v6928 = vadd.f32 %v6839, %v6927
        %v6929 = vpop.f32.mrf.mxu0
        %v6930 = vadd.f32 %v6841, %v6929
        %6931 = vmatmul.bf16.gmra.mxu0 %v6347
        %v6932 = vpop.f32.mrf.mxu0
        %v6933 = vadd.f32 %v6844, %v6932
        %v6934 = vpop.f32.mrf.mxu0
        %v6935 = vadd.f32 %v6846, %v6934
        %6936 = vdwg.mxu0
        %6937 = vmatpush.bf16.msra.mxu0 %v6621
        %6938 = vmatpush.bf16.msra.mxu0 %v6620
        %6939 = vmatpush.bf16.msra.mxu0 %v6619
        %6940 = vmatpush.bf16.msra.mxu0 %v6618
        %6941 = vmatpush.bf16.msra.mxu0 %v6617
        %6942 = vmatpush.bf16.msra.mxu0 %v6616
        %6943 = vmatpush.bf16.msra.mxu0 %v6615
        %6944 = vmatpush.bf16.msra.mxu0 %v6614
        %6945 = vmatmul.bf16.gmra.mxu0 %v6273
        %v6946 = vpop.f32.mrf.mxu0
        %v6947 = vadd.f32 %v6858, %v6946
        %v6948 = vpop.f32.mrf.mxu0
        %v6949 = vadd.f32 %v6860, %v6948
        %6950 = vmatmul.bf16.gmra.mxu0 %v6278
        %v6951 = vpop.f32.mrf.mxu0
        %v6952 = vadd.f32 %v6863, %v6951
        %v6953 = vpop.f32.mrf.mxu0
        %v6954 = vadd.f32 %v6865, %v6953
        %6955 = vmatmul.bf16.gmra.mxu0 %v6283
        %v6956 = vpop.f32.mrf.mxu0
        %v6957 = vadd.f32 %v6868, %v6956
        %v6958 = vpop.f32.mrf.mxu0
        %v6959 = vadd.f32 %v6870, %v6958
        %6960 = vmatmul.bf16.gmra.mxu0 %v6288
        %v6961 = vpop.f32.mrf.mxu0
        %v6962 = vadd.f32 %v6873, %v6961
        %v6963 = vpop.f32.mrf.mxu0
        %v6964 = vadd.f32 %v6875, %v6963
        %6965 = vmatmul.bf16.gmra.mxu0 %v6293
        %v6966 = vpop.f32.mrf.mxu0
        %v6967 = vadd.f32 %v6878, %v6966
        %v6968 = vpop.f32.mrf.mxu0
        %v6969 = vadd.f32 %v6880, %v6968
        %6970 = vmatmul.bf16.gmra.mxu0 %v6298
        %v6971 = vpop.f32.mrf.mxu0
        %v6972 = vadd.f32 %v6883, %v6971
        %v6973 = vpop.f32.mrf.mxu0
        %v6974 = vadd.f32 %v6885, %v6973
        %6975 = vmatmul.bf16.gmra.mxu0 %v6303
        %v6976 = vpop.f32.mrf.mxu0
        %v6977 = vadd.f32 %v6888, %v6976
        %v6978 = vpop.f32.mrf.mxu0
        %v6979 = vadd.f32 %v6890, %v6978
        %6980 = vmatmul.bf16.gmra.mxu0 %v6308
        %v6981 = vpop.f32.mrf.mxu0
        %v6982 = vadd.f32 %v6893, %v6981
        %v6983 = vpop.f32.mrf.mxu0
        %v6984 = vadd.f32 %v6895, %v6983
        %6985 = vmatmul.bf16.gmra.mxu0 %v6313
        %v6986 = vpop.f32.mrf.mxu0
        %v6987 = vadd.f32 %v6898, %v6986
        %v6988 = vpop.f32.mrf.mxu0
        %v6989 = vadd.f32 %v6900, %v6988
        %6990 = vmatmul.bf16.gmra.mxu0 %v6318
        %v6991 = vpop.f32.mrf.mxu0
        %v6992 = vadd.f32 %v6903, %v6991
        %v6993 = vpop.f32.mrf.mxu0
        %v6994 = vadd.f32 %v6905, %v6993
        %6995 = vmatmul.bf16.gmra.mxu0 %v6323
        %v6996 = vpop.f32.mrf.mxu0
        %v6997 = vadd.f32 %v6908, %v6996
        %v6998 = vpop.f32.mrf.mxu0
        %v6999 = vadd.f32 %v6910, %v6998
        %7000 = vmatmul.bf16.gmra.mxu0 %v6328
        %v7001 = vpop.f32.mrf.mxu0
        %v7002 = vadd.f32 %v6913, %v7001
        %v7003 = vpop.f32.mrf.mxu0
        %v7004 = vadd.f32 %v6915, %v7003
        %7005 = vmatmul.bf16.gmra.mxu0 %v6333
        %v7006 = vpop.f32.mrf.mxu0
        %v7007 = vadd.f32 %v6918, %v7006
        %v7008 = vpop.f32.mrf.mxu0
        %v7009 = vadd.f32 %v6920, %v7008
        %7010 = vmatmul.bf16.gmra.mxu0 %v6338
        %v7011 = vpop.f32.mrf.mxu0
        %v7012 = vadd.f32 %v6923, %v7011
        %v7013 = vpop.f32.mrf.mxu0
        %v7014 = vadd.f32 %v6925, %v7013
        %7015 = vmatmul.bf16.gmra.mxu0 %v6343
        %v7016 = vpop.f32.mrf.mxu0
        %v7017 = vadd.f32 %v6928, %v7016
        %v7018 = vpop.f32.mrf.mxu0
        %v7019 = vadd.f32 %v6930, %v7018
        %7020 = vmatmul.bf16.gmra.mxu0 %v6348
        %v7021 = vpop.f32.mrf.mxu0
        %v7022 = vadd.f32 %v6933, %v7021
        %v7023 = vpop.f32.mrf.mxu0
        %v7024 = vadd.f32 %v6935, %v7023
        %7025 = vdwg.mxu0
        %7026 = vmatpush.bf16.msra.mxu0 %v6629
        %7027 = vmatpush.bf16.msra.mxu0 %v6628
        %7028 = vmatpush.bf16.msra.mxu0 %v6627
        %7029 = vmatpush.bf16.msra.mxu0 %v6626
        %7030 = vmatpush.bf16.msra.mxu0 %v6625
        %7031 = vmatpush.bf16.msra.mxu0 %v6624
        %7032 = vmatpush.bf16.msra.mxu0 %v6623
        %7033 = vmatpush.bf16.msra.mxu0 %v6622
        %7034 = vmatmul.bf16.gmra.mxu0 %v6274
        %v7035 = vpop.f32.mrf.mxu0
        %v7036 = vadd.f32 %v6947, %v7035
        %v7037 = vpop.f32.mrf.mxu0
        %v7038 = vadd.f32 %v6949, %v7037
        %7039 = vmatmul.bf16.gmra.mxu0 %v6279
        %v7040 = vpop.f32.mrf.mxu0
        %v7041 = vadd.f32 %v6952, %v7040
        %v7042 = vpop.f32.mrf.mxu0
        %v7043 = vadd.f32 %v6954, %v7042
        %7044 = vmatmul.bf16.gmra.mxu0 %v6284
        %v7045 = vpop.f32.mrf.mxu0
        %v7046 = vadd.f32 %v6957, %v7045
        %v7047 = vpop.f32.mrf.mxu0
        %v7048 = vadd.f32 %v6959, %v7047
        %7049 = vmatmul.bf16.gmra.mxu0 %v6289
        %v7050 = vpop.f32.mrf.mxu0
        %v7051 = vadd.f32 %v6962, %v7050
        %v7052 = vpop.f32.mrf.mxu0
        %v7053 = vadd.f32 %v6964, %v7052
        %7054 = vmatmul.bf16.gmra.mxu0 %v6294
        %v7055 = vpop.f32.mrf.mxu0
        %v7056 = vadd.f32 %v6967, %v7055
        %v7057 = vpop.f32.mrf.mxu0
        %v7058 = vadd.f32 %v6969, %v7057
        %7059 = vmatmul.bf16.gmra.mxu0 %v6299
        %v7060 = vpop.f32.mrf.mxu0
        %v7061 = vadd.f32 %v6972, %v7060
        %v7062 = vpop.f32.mrf.mxu0
        %v7063 = vadd.f32 %v6974, %v7062
        %7064 = vmatmul.bf16.gmra.mxu0 %v6304
        %v7065 = vpop.f32.mrf.mxu0
        %v7066 = vadd.f32 %v6977, %v7065
        %v7067 = vpop.f32.mrf.mxu0
        %v7068 = vadd.f32 %v6979, %v7067
        %7069 = vmatmul.bf16.gmra.mxu0 %v6309
        %v7070 = vpop.f32.mrf.mxu0
        %v7071 = vadd.f32 %v6982, %v7070
        %v7072 = vpop.f32.mrf.mxu0
        %v7073 = vadd.f32 %v6984, %v7072
        %7074 = vmatmul.bf16.gmra.mxu0 %v6314
        %v7075 = vpop.f32.mrf.mxu0
        %v7076 = vadd.f32 %v6987, %v7075
        %v7077 = vpop.f32.mrf.mxu0
        %v7078 = vadd.f32 %v6989, %v7077
        %7079 = vmatmul.bf16.gmra.mxu0 %v6319
        %v7080 = vpop.f32.mrf.mxu0
        %v7081 = vadd.f32 %v6992, %v7080
        %v7082 = vpop.f32.mrf.mxu0
        %v7083 = vadd.f32 %v6994, %v7082
        %7084 = vmatmul.bf16.gmra.mxu0 %v6324
        %v7085 = vpop.f32.mrf.mxu0
        %v7086 = vadd.f32 %v6997, %v7085
        %v7087 = vpop.f32.mrf.mxu0
        %v7088 = vadd.f32 %v6999, %v7087
        %7089 = vmatmul.bf16.gmra.mxu0 %v6329
        %v7090 = vpop.f32.mrf.mxu0
        %v7091 = vadd.f32 %v7002, %v7090
        %v7092 = vpop.f32.mrf.mxu0
        %v7093 = vadd.f32 %v7004, %v7092
        %7094 = vmatmul.bf16.gmra.mxu0 %v6334
        %v7095 = vpop.f32.mrf.mxu0
        %v7096 = vadd.f32 %v7007, %v7095
        %v7097 = vpop.f32.mrf.mxu0
        %v7098 = vadd.f32 %v7009, %v7097
        %7099 = vmatmul.bf16.gmra.mxu0 %v6339
        %v7100 = vpop.f32.mrf.mxu0
        %v7101 = vadd.f32 %v7012, %v7100
        %v7102 = vpop.f32.mrf.mxu0
        %v7103 = vadd.f32 %v7014, %v7102
        %7104 = vmatmul.bf16.gmra.mxu0 %v6344
        %v7105 = vpop.f32.mrf.mxu0
        %v7106 = vadd.f32 %v7017, %v7105
        %v7107 = vpop.f32.mrf.mxu0
        %v7108 = vadd.f32 %v7019, %v7107
        %7109 = vmatmul.bf16.gmra.mxu0 %v6349
        %v7110 = vpop.f32.mrf.mxu0
        %v7111 = vadd.f32 %v7022, %v7110
        %v7112 = vpop.f32.mrf.mxu0
        %v7113 = vadd.f32 %v7024, %v7112
        %7114 = vdwg.mxu0
        %v7115 = vmax.f32 %v7036, 0.0
        %v7116 = vmax.f32 %v7038, 0.0
        %v7117 = vmax.f32 %v7041, 0.0
        %v7118 = vmax.f32 %v7043, 0.0
        %v7119 = vmax.f32 %v7046, 0.0
        %v7120 = vmax.f32 %v7048, 0.0
        %v7121 = vmax.f32 %v7051, 0.0
        %v7122 = vmax.f32 %v7053, 0.0
        %v7123 = vmax.f32 %v7056, 0.0
        %v7124 = vmax.f32 %v7058, 0.0
        %v7125 = vmax.f32 %v7061, 0.0
        %v7126 = vmax.f32 %v7063, 0.0
        %v7127 = vmax.f32 %v7066, 0.0
        %v7128 = vmax.f32 %v7068, 0.0
        %v7129 = vmax.f32 %v7071, 0.0
        %v7130 = vmax.f32 %v7073, 0.0
        %v7131 = vmax.f32 %v7076, 0.0
        %v7132 = vmax.f32 %v7078, 0.0
        %v7133 = vmax.f32 %v7081, 0.0
        %v7134 = vmax.f32 %v7083, 0.0
        %v7135 = vmax.f32 %v7086, 0.0
        %v7136 = vmax.f32 %v7088, 0.0
        %v7137 = vmax.f32 %v7091, 0.0
        %v7138 = vmax.f32 %v7093, 0.0
        %v7139 = vmax.f32 %v7096, 0.0
        %v7140 = vmax.f32 %v7098, 0.0
        %v7141 = vmax.f32 %v7101, 0.0
        %v7142 = vmax.f32 %v7103, 0.0
        %v7143 = vmax.f32 %v7106, 0.0
        %v7144 = vmax.f32 %v7108, 0.0
        %v7145 = vmax.f32 %v7111, 0.0
        %v7146 = vmax.f32 %v7113, 0.0
        %7147 = vst.msk [vmem:[%s303 + $0x1] sm:$0xff] %vm294, %v7115
        %7148 = vst.msk [vmem:[%s303 + $0x9] sm:$0xff] %vm294, %v7116
        %7149 = vst.msk [vmem:[%s303 + $0x19] sm:$0xff] %vm294, %v7117
        %7150 = vst.msk [vmem:[%s303 + $0x21] sm:$0xff] %vm294, %v7118
        %7151 = vst.msk [vmem:[%s303 + $0x31] sm:$0xff] %vm294, %v7119
        %7152 = vst.msk [vmem:[%s303 + $0x39] sm:$0xff] %vm294, %v7120
        %7153 = vst.msk [vmem:[%s303 + $0x49] sm:$0xff] %vm294, %v7121
        %7154 = vst.msk [vmem:[%s303 + $0x51] sm:$0xff] %vm294, %v7122
        %7155 = vst.msk [vmem:[%s303 + $0x61] sm:$0xff] %vm294, %v7123
        %7156 = vst.msk [vmem:[%s303 + $0x69] sm:$0xff] %vm294, %v7124
        %7157 = vst.msk [vmem:[%s303 + $0x79] sm:$0xff] %vm294, %v7125
        %7158 = vst.msk [vmem:[%s303 + $0x81] sm:$0xff] %vm294, %v7126
        %7159 = vst.msk [vmem:[%s303 + $0x91] sm:$0xff] %vm294, %v7127
        %7160 = vst.msk [vmem:[%s303 + $0x99] sm:$0xff] %vm294, %v7128
        %7161 = vst.msk [vmem:[%s303 + $0xa9] sm:$0xff] %vm294, %v7129
        %7162 = vst.msk [vmem:[%s303 + $0xb1] sm:$0xff] %vm294, %v7130
        %7163 = vst.msk [vmem:[%s303 + $0xc1] sm:$0xff] %vm294, %v7131
        %7164 = vst.msk [vmem:[%s303 + $0xc9] sm:$0xff] %vm294, %v7132
        %7165 = vst.msk [vmem:[%s303 + $0xd9] sm:$0xff] %vm294, %v7133
        %7166 = vst.msk [vmem:[%s303 + $0xe1] sm:$0xff] %vm294, %v7134
        %7167 = vst.msk [vmem:[%s303 + $0xf1] sm:$0xff] %vm294, %v7135
        %7168 = vst.msk [vmem:[%s303 + $0xf9] sm:$0xff] %vm294, %v7136
        %7169 = vst.msk [vmem:[%s303 + $0x109] sm:$0xff] %vm294, %v7137
        %7170 = vst.msk [vmem:[%s303 + $0x111] sm:$0xff] %vm294, %v7138
        %7171 = vst.msk [vmem:[%s303 + $0x121] sm:$0xff] %vm294, %v7139
        %7172 = vst.msk [vmem:[%s303 + $0x129] sm:$0xff] %vm294, %v7140
        %7173 = vst.msk [vmem:[%s303 + $0x139] sm:$0xff] %vm294, %v7141
        %7174 = vst.msk [vmem:[%s303 + $0x141] sm:$0xff] %vm294, %v7142
        %7175 = vst.msk [vmem:[%s303 + $0x151] sm:$0xff] %vm294, %v7143
        %7176 = vst.msk [vmem:[%s303 + $0x159] sm:$0xff] %vm294, %v7144
        %7177 = vst.msk [vmem:[%s303 + $0x169] sm:$0xff] %vm294, %v7145
        %7178 = vst.msk [vmem:[%s303 + $0x171] sm:$0xff] %vm294, %v7146
        %v7179 = vld [vmem:[%s293] sm:$0xff]
        %v7180 = vld [vmem:[%s293 + $0x8] sm:$0xff]
        %v7181 = vld [vmem:[%s293 + $0x10] sm:$0xff]
        %v7182 = vld [vmem:[%s293 + $0x18] sm:$0xff]
        %v7183 = vld [vmem:[%s293 + $0x20] sm:$0xff]
        %v7184 = vld [vmem:[%s293 + $0x28] sm:$0xff]
        %v7185 = vld [vmem:[%s293 + $0x30] sm:$0xff]
        %v7186 = vld [vmem:[%s293 + $0x38] sm:$0xff]
        %v7187 = vld [vmem:[%s293 + $0x40] sm:$0xff]
        %v7188 = vld [vmem:[%s293 + $0x48] sm:$0xff]
        %v7189 = vld [vmem:[%s293 + $0x50] sm:$0xff]
        %v7190 = vld [vmem:[%s293 + $0x58] sm:$0xff]
        %v7191 = vld [vmem:[%s293 + $0x60] sm:$0xff]
        %v7192 = vld [vmem:[%s293 + $0x68] sm:$0xff]
        %v7193 = vld [vmem:[%s293 + $0x70] sm:$0xff]
        %v7194 = vld [vmem:[%s293 + $0x78] sm:$0xff]
        %v7195 = vld [vmem:[%s293 + $0x80] sm:$0xff]
        %v7196 = vld [vmem:[%s293 + $0x88] sm:$0xff]
        %v7197 = vld [vmem:[%s293 + $0x90] sm:$0xff]
        %v7198 = vld [vmem:[%s293 + $0x98] sm:$0xff]
        %v7199 = vld [vmem:[%s293 + $0xa0] sm:$0xff]
        %v7200 = vld [vmem:[%s293 + $0xa8] sm:$0xff]
        %v7201 = vld [vmem:[%s293 + $0xb0] sm:$0xff]
        %v7202 = vld [vmem:[%s293 + $0xb8] sm:$0xff]
        %v7203 = vld [vmem:[%s293 + $0xc0] sm:$0xff]
        %v7204 = vld [vmem:[%s293 + $0xc8] sm:$0xff]
        %v7205 = vld [vmem:[%s293 + $0xd0] sm:$0xff]
        %v7206 = vld [vmem:[%s293 + $0xd8] sm:$0xff]
        %v7207 = vld [vmem:[%s293 + $0xe0] sm:$0xff]
        %v7208 = vld [vmem:[%s293 + $0xe8] sm:$0xff]
        %v7209 = vld [vmem:[%s293 + $0xf0] sm:$0xff]
        %v7210 = vld [vmem:[%s293 + $0xf8] sm:$0xff]
        %v7211 = vld [vmem:[#allocation2] sm:$0xff]
        %v7212 = vld [vmem:[#allocation2 + $0x8] sm:$0xff]
        %v7213 = vld [vmem:[#allocation2 + $0x18] sm:$0xff]
        %v7214 = vld [vmem:[#allocation2 + $0x20] sm:$0xff]
        %v7215 = vld [vmem:[#allocation2 + $0x30] sm:$0xff]
        %v7216 = vld [vmem:[#allocation2 + $0x38] sm:$0xff]
        %v7217 = vld [vmem:[#allocation2 + $0x48] sm:$0xff]
        %v7218 = vld [vmem:[#allocation2 + $0x50] sm:$0xff]
        %v7219 = vld [vmem:[#allocation2 + $0x60] sm:$0xff]
        %v7220 = vld [vmem:[#allocation2 + $0x68] sm:$0xff]
        %v7221 = vld [vmem:[#allocation2 + $0x78] sm:$0xff]
        %v7222 = vld [vmem:[#allocation2 + $0x80] sm:$0xff]
        %v7223 = vld [vmem:[#allocation2 + $0x90] sm:$0xff]
        %v7224 = vld [vmem:[#allocation2 + $0x98] sm:$0xff]
        %v7225 = vld [vmem:[#allocation2 + $0xa8] sm:$0xff]
        %v7226 = vld [vmem:[#allocation2 + $0xb0] sm:$0xff]
        %v7227 = vld [vmem:[#allocation2 + $0xc0] sm:$0xff]
        %v7228 = vld [vmem:[#allocation2 + $0xc8] sm:$0xff]
        %v7229 = vld [vmem:[#allocation2 + $0xd8] sm:$0xff]
        %v7230 = vld [vmem:[#allocation2 + $0xe0] sm:$0xff]
        %v7231 = vld [vmem:[#allocation2 + $0xf0] sm:$0xff]
        %v7232 = vld [vmem:[#allocation2 + $0xf8] sm:$0xff]
        %v7233 = vld [vmem:[#allocation2 + $0x108] sm:$0xff]
        %v7234 = vld [vmem:[#allocation2 + $0x110] sm:$0xff]
        %v7235 = vld [vmem:[#allocation2 + $0x120] sm:$0xff]
        %v7236 = vld [vmem:[#allocation2 + $0x128] sm:$0xff]
        %v7237 = vld [vmem:[#allocation2 + $0x138] sm:$0xff]
        %v7238 = vld [vmem:[#allocation2 + $0x140] sm:$0xff]
        %v7239 = vld [vmem:[#allocation2 + $0x150] sm:$0xff]
        %v7240 = vld [vmem:[#allocation2 + $0x158] sm:$0xff]
        %v7241 = vld [vmem:[#allocation2 + $0x168] sm:$0xff]
        %v7242 = vld [vmem:[#allocation2 + $0x170] sm:$0xff]
        %v7243 = vld [vmem:[#allocation2 + $0x1] sm:$0xff]
        %v7244 = vld [vmem:[#allocation2 + $0x9] sm:$0xff]
        %v7245 = vld [vmem:[#allocation2 + $0x19] sm:$0xff]
        %v7246 = vld [vmem:[#allocation2 + $0x21] sm:$0xff]
        %v7247 = vld [vmem:[#allocation2 + $0x31] sm:$0xff]
        %v7248 = vld [vmem:[#allocation2 + $0x39] sm:$0xff]
        %v7249 = vld [vmem:[#allocation2 + $0x49] sm:$0xff]
        %v7250 = vld [vmem:[#allocation2 + $0x51] sm:$0xff]
        %v7251 = vld [vmem:[#allocation2 + $0x61] sm:$0xff]
        %v7252 = vld [vmem:[#allocation2 + $0x69] sm:$0xff]
        %v7253 = vld [vmem:[#allocation2 + $0x79] sm:$0xff]
        %v7254 = vld [vmem:[#allocation2 + $0x81] sm:$0xff]
        %v7255 = vld [vmem:[#allocation2 + $0x91] sm:$0xff]
        %v7256 = vld [vmem:[#allocation2 + $0x99] sm:$0xff]
        %v7257 = vld [vmem:[#allocation2 + $0xa9] sm:$0xff]
        %v7258 = vld [vmem:[#allocation2 + $0xb1] sm:$0xff]
        %v7259 = vld [vmem:[#allocation2 + $0xc1] sm:$0xff]
        %v7260 = vld [vmem:[#allocation2 + $0xc9] sm:$0xff]
        %v7261 = vld [vmem:[#allocation2 + $0xd9] sm:$0xff]
        %v7262 = vld [vmem:[#allocation2 + $0xe1] sm:$0xff]
        %v7263 = vld [vmem:[#allocation2 + $0xf1] sm:$0xff]
        %v7264 = vld [vmem:[#allocation2 + $0xf9] sm:$0xff]
        %v7265 = vld [vmem:[#allocation2 + $0x109] sm:$0xff]
        %v7266 = vld [vmem:[#allocation2 + $0x111] sm:$0xff]
        %v7267 = vld [vmem:[#allocation2 + $0x121] sm:$0xff]
        %v7268 = vld [vmem:[#allocation2 + $0x129] sm:$0xff]
        %v7269 = vld [vmem:[#allocation2 + $0x139] sm:$0xff]
        %v7270 = vld [vmem:[#allocation2 + $0x141] sm:$0xff]
        %v7271 = vld [vmem:[#allocation2 + $0x151] sm:$0xff]
        %v7272 = vld [vmem:[#allocation2 + $0x159] sm:$0xff]
        %v7273 = vld [vmem:[#allocation2 + $0x169] sm:$0xff]
        %v7274 = vld [vmem:[#allocation2 + $0x171] sm:$0xff]
        %7307 = vrot.lane.b32.xlu0 %v7243, 64
        %v7308 = vpop.permute.xlu0 %7307
        %7309 = vrot.lane.b32.xlu0 %v7244, 64
        %v7310 = vpop.permute.xlu0 %7309
        %7311 = vrot.lane.b32.xlu0 %v7245, 64
        %v7312 = vpop.permute.xlu0 %7311
        %7313 = vrot.lane.b32.xlu0 %v7246, 64
        %v7314 = vpop.permute.xlu0 %7313
        %7315 = vrot.lane.b32.xlu0 %v7247, 64
        %v7316 = vpop.permute.xlu0 %7315
        %7317 = vrot.lane.b32.xlu0 %v7248, 64
        %v7318 = vpop.permute.xlu0 %7317
        %7319 = vrot.lane.b32.xlu0 %v7249, 64
        %v7320 = vpop.permute.xlu0 %7319
        %7321 = vrot.lane.b32.xlu0 %v7250, 64
        %v7322 = vpop.permute.xlu0 %7321
        %7323 = vrot.lane.b32.xlu0 %v7251, 64
        %v7324 = vpop.permute.xlu0 %7323
        %7325 = vrot.lane.b32.xlu0 %v7252, 64
        %v7326 = vpop.permute.xlu0 %7325
        %7327 = vrot.lane.b32.xlu0 %v7253, 64
        %v7328 = vpop.permute.xlu0 %7327
        %7329 = vrot.lane.b32.xlu0 %v7254, 64
        %v7330 = vpop.permute.xlu0 %7329
        %7331 = vrot.lane.b32.xlu0 %v7255, 64
        %v7332 = vpop.permute.xlu0 %7331
        %7333 = vrot.lane.b32.xlu0 %v7256, 64
        %v7334 = vpop.permute.xlu0 %7333
        %7335 = vrot.lane.b32.xlu0 %v7257, 64
        %v7336 = vpop.permute.xlu0 %7335
        %7337 = vrot.lane.b32.xlu0 %v7258, 64
        %v7338 = vpop.permute.xlu0 %7337
        %7339 = vrot.lane.b32.xlu0 %v7259, 64
        %v7340 = vpop.permute.xlu0 %7339
        %7341 = vrot.lane.b32.xlu0 %v7260, 64
        %v7342 = vpop.permute.xlu0 %7341
        %7343 = vrot.lane.b32.xlu0 %v7261, 64
        %v7344 = vpop.permute.xlu0 %7343
        %7345 = vrot.lane.b32.xlu0 %v7262, 64
        %v7346 = vpop.permute.xlu0 %7345
        %7347 = vrot.lane.b32.xlu0 %v7263, 64
        %v7348 = vpop.permute.xlu0 %7347
        %7349 = vrot.lane.b32.xlu0 %v7264, 64
        %v7350 = vpop.permute.xlu0 %7349
        %7351 = vrot.lane.b32.xlu0 %v7265, 64
        %v7352 = vpop.permute.xlu0 %7351
        %7353 = vrot.lane.b32.xlu0 %v7266, 64
        %v7354 = vpop.permute.xlu0 %7353
        %7355 = vrot.lane.b32.xlu0 %v7267, 64
        %v7356 = vpop.permute.xlu0 %7355
        %7357 = vrot.lane.b32.xlu0 %v7268, 64
        %v7358 = vpop.permute.xlu0 %7357
        %7359 = vrot.lane.b32.xlu0 %v7269, 64
        %v7360 = vpop.permute.xlu0 %7359
        %7361 = vrot.lane.b32.xlu0 %v7270, 64
        %v7362 = vpop.permute.xlu0 %7361
        %7363 = vrot.lane.b32.xlu0 %v7271, 64
        %v7364 = vpop.permute.xlu0 %7363
        %7365 = vrot.lane.b32.xlu0 %v7272, 64
        %v7366 = vpop.permute.xlu0 %7365
        %7367 = vrot.lane.b32.xlu0 %v7273, 64
        %v7368 = vpop.permute.xlu0 %7367
        %7369 = vrot.lane.b32.xlu0 %v7274, 64
        %v7370 = vpop.permute.xlu0 %7369
        %v7403 = vsel %vm294, %v7211, %v7308
        %v7404 = vsel %vm294, %v7212, %v7310
        %v7405 = vsel %vm294, %v7213, %v7312
        %v7406 = vsel %vm294, %v7214, %v7314
        %v7407 = vsel %vm294, %v7215, %v7316
        %v7408 = vsel %vm294, %v7216, %v7318
        %v7409 = vsel %vm294, %v7217, %v7320
        %v7410 = vsel %vm294, %v7218, %v7322
        %v7411 = vsel %vm294, %v7219, %v7324
        %v7412 = vsel %vm294, %v7220, %v7326
        %v7413 = vsel %vm294, %v7221, %v7328
        %v7414 = vsel %vm294, %v7222, %v7330
        %v7415 = vsel %vm294, %v7223, %v7332
        %v7416 = vsel %vm294, %v7224, %v7334
        %v7417 = vsel %vm294, %v7225, %v7336
        %v7418 = vsel %vm294, %v7226, %v7338
        %v7419 = vsel %vm294, %v7227, %v7340
        %v7420 = vsel %vm294, %v7228, %v7342
        %v7421 = vsel %vm294, %v7229, %v7344
        %v7422 = vsel %vm294, %v7230, %v7346
        %v7423 = vsel %vm294, %v7231, %v7348
        %v7424 = vsel %vm294, %v7232, %v7350
        %v7425 = vsel %vm294, %v7233, %v7352
        %v7426 = vsel %vm294, %v7234, %v7354
        %v7427 = vsel %vm294, %v7235, %v7356
        %v7428 = vsel %vm294, %v7236, %v7358
        %v7429 = vsel %vm294, %v7237, %v7360
        %v7430 = vsel %vm294, %v7238, %v7362
        %v7431 = vsel %vm294, %v7239, %v7364
        %v7432 = vsel %vm294, %v7240, %v7366
        %v7433 = vsel %vm294, %v7241, %v7368
        %v7434 = vsel %vm294, %v7242, %v7370
        %v7435 = vpack.c.bf16 %v7403, %v7403
        %v7436 = vpack.c.bf16 %v7404, %v7404
        %v7437 = vpack.c.bf16 %v7405, %v7405
        %v7438 = vpack.c.bf16 %v7406, %v7406
        %v7439 = vpack.c.bf16 %v7407, %v7407
        %v7440 = vpack.c.bf16 %v7408, %v7408
        %v7441 = vpack.c.bf16 %v7409, %v7409
        %v7442 = vpack.c.bf16 %v7410, %v7410
        %v7443 = vpack.c.bf16 %v7411, %v7411
        %v7444 = vpack.c.bf16 %v7412, %v7412
        %v7445 = vpack.c.bf16 %v7413, %v7413
        %v7446 = vpack.c.bf16 %v7414, %v7414
        %v7447 = vpack.c.bf16 %v7415, %v7415
        %v7448 = vpack.c.bf16 %v7416, %v7416
        %v7449 = vpack.c.bf16 %v7417, %v7417
        %v7450 = vpack.c.bf16 %v7418, %v7418
        %v7451 = vpack.c.bf16 %v7419, %v7419
        %v7452 = vpack.c.bf16 %v7420, %v7420
        %v7453 = vpack.c.bf16 %v7421, %v7421
        %v7454 = vpack.c.bf16 %v7422, %v7422
        %v7455 = vpack.c.bf16 %v7423, %v7423
        %v7456 = vpack.c.bf16 %v7424, %v7424
        %v7457 = vpack.c.bf16 %v7425, %v7425
        %v7458 = vpack.c.bf16 %v7426, %v7426
        %v7459 = vpack.c.bf16 %v7427, %v7427
        %v7460 = vpack.c.bf16 %v7428, %v7428
        %v7461 = vpack.c.bf16 %v7429, %v7429
        %v7462 = vpack.c.bf16 %v7430, %v7430
        %v7463 = vpack.c.bf16 %v7431, %v7431
        %v7464 = vpack.c.bf16 %v7432, %v7432
        %v7465 = vpack.c.bf16 %v7433, %v7433
        %v7466 = vpack.c.bf16 %v7434, %v7434
        %7467 = vst [vmem:[#allocation3] sm:$0xf] %v7435
        %7468 = vst [vmem:[#allocation3 + $0x14] sm:$0xf] %v7436
        %7469 = vst [vmem:[#allocation3 + $0x28] sm:$0xf] %v7437
        %7470 = vst [vmem:[#allocation3 + $0x3c] sm:$0xf] %v7438
        %7471 = vst [vmem:[#allocation3 + $0x50] sm:$0xf] %v7439
        %7472 = vst [vmem:[#allocation3 + $0x64] sm:$0xf] %v7440
        %7473 = vst [vmem:[#allocation3 + $0x78] sm:$0xf] %v7441
        %7474 = vst [vmem:[#allocation3 + $0x8c] sm:$0xf] %v7442
        %7475 = vst [vmem:[#allocation3 + $0xa0] sm:$0xf] %v7443
        %7476 = vst [vmem:[#allocation3 + $0xb4] sm:$0xf] %v7444
        %7477 = vst [vmem:[#allocation3 + $0xc8] sm:$0xf] %v7445
        %7478 = vst [vmem:[#allocation3 + $0xdc] sm:$0xf] %v7446
        %7479 = vst [vmem:[#allocation3 + $0xf0] sm:$0xf] %v7447
        %7480 = vst [vmem:[#allocation3 + $0x104] sm:$0xf] %v7448
        %7481 = vst [vmem:[#allocation3 + $0x118] sm:$0xf] %v7449
        %7482 = vst [vmem:[#allocation3 + $0x12c] sm:$0xf] %v7450
        %7483 = vst [vmem:[#allocation3 + $0x140] sm:$0xf] %v7451
        %7484 = vst [vmem:[#allocation3 + $0x154] sm:$0xf] %v7452
        %7485 = vst [vmem:[#allocation3 + $0x168] sm:$0xf] %v7453
        %7486 = vst [vmem:[#allocation3 + $0x17c] sm:$0xf] %v7454
        %7487 = vst [vmem:[#allocation3 + $0x190] sm:$0xf] %v7455
        %7488 = vst [vmem:[#allocation3 + $0x1a4] sm:$0xf] %v7456
        %7489 = vst [vmem:[#allocation3 + $0x1b8] sm:$0xf] %v7457
        %7490 = vst [vmem:[#allocation3 + $0x1cc] sm:$0xf] %v7458
        %7491 = vst [vmem:[#allocation3 + $0x1e0] sm:$0xf] %v7459
        %7492 = vst [vmem:[#allocation3 + $0x1f4] sm:$0xf] %v7460
        %7493 = vst [vmem:[#allocation3 + $0x208] sm:$0xf] %v7461
        %7494 = vst [vmem:[#allocation3 + $0x21c] sm:$0xf] %v7462
        %7495 = vst [vmem:[#allocation3 + $0x230] sm:$0xf] %v7463
        %7496 = vst [vmem:[#allocation3 + $0x244] sm:$0xf] %v7464
        %7497 = vst [vmem:[#allocation3 + $0x258] sm:$0xf] %v7465
        %7498 = vst [vmem:[#allocation3 + $0x26c] sm:$0xf] %v7466
        %v7499 = vld [vmem:[#allocation2 + $0x2] sm:$0xff]
        %v7500 = vld [vmem:[#allocation2 + $0xa] sm:$0xff]
        %v7501 = vld [vmem:[#allocation2 + $0x1a] sm:$0xff]
        %v7502 = vld [vmem:[#allocation2 + $0x22] sm:$0xff]
        %v7503 = vld [vmem:[#allocation2 + $0x32] sm:$0xff]
        %v7504 = vld [vmem:[#allocation2 + $0x3a] sm:$0xff]
        %v7505 = vld [vmem:[#allocation2 + $0x4a] sm:$0xff]
        %v7506 = vld [vmem:[#allocation2 + $0x52] sm:$0xff]
        %v7507 = vld [vmem:[#allocation2 + $0x62] sm:$0xff]
        %v7508 = vld [vmem:[#allocation2 + $0x6a] sm:$0xff]
        %v7509 = vld [vmem:[#allocation2 + $0x7a] sm:$0xff]
        %v7510 = vld [vmem:[#allocation2 + $0x82] sm:$0xff]
        %v7511 = vld [vmem:[#allocation2 + $0x92] sm:$0xff]
        %v7512 = vld [vmem:[#allocation2 + $0x9a] sm:$0xff]
        %v7513 = vld [vmem:[#allocation2 + $0xaa] sm:$0xff]
        %v7514 = vld [vmem:[#allocation2 + $0xb2] sm:$0xff]
        %v7515 = vld [vmem:[#allocation2 + $0xc2] sm:$0xff]
        %v7516 = vld [vmem:[#allocation2 + $0xca] sm:$0xff]
        %v7517 = vld [vmem:[#allocation2 + $0xda] sm:$0xff]
        %v7518 = vld [vmem:[#allocation2 + $0xe2] sm:$0xff]
        %v7519 = vld [vmem:[#allocation2 + $0xf2] sm:$0xff]
        %v7520 = vld [vmem:[#allocation2 + $0xfa] sm:$0xff]
        %v7521 = vld [vmem:[#allocation2 + $0x10a] sm:$0xff]
        %v7522 = vld [vmem:[#allocation2 + $0x112] sm:$0xff]
        %v7523 = vld [vmem:[#allocation2 + $0x122] sm:$0xff]
        %v7524 = vld [vmem:[#allocation2 + $0x12a] sm:$0xff]
        %v7525 = vld [vmem:[#allocation2 + $0x13a] sm:$0xff]
        %v7526 = vld [vmem:[#allocation2 + $0x142] sm:$0xff]
        %v7527 = vld [vmem:[#allocation2 + $0x152] sm:$0xff]
        %v7528 = vld [vmem:[#allocation2 + $0x15a] sm:$0xff]
        %v7529 = vld [vmem:[#allocation2 + $0x16a] sm:$0xff]
        %v7530 = vld [vmem:[#allocation2 + $0x172] sm:$0xff]
        %v7531 = vld [vmem:[%s303] sm:$0xff]
        %v7532 = vld [vmem:[%s303 + $0x8] sm:$0xff]
        %v7533 = vld [vmem:[%s303 + $0x18] sm:$0xff]
        %v7534 = vld [vmem:[%s303 + $0x20] sm:$0xff]
        %v7535 = vld [vmem:[%s303 + $0x30] sm:$0xff]
        %v7536 = vld [vmem:[%s303 + $0x38] sm:$0xff]
        %v7537 = vld [vmem:[%s303 + $0x48] sm:$0xff]
        %v7538 = vld [vmem:[%s303 + $0x50] sm:$0xff]
        %v7539 = vld [vmem:[%s303 + $0x60] sm:$0xff]
        %v7540 = vld [vmem:[%s303 + $0x68] sm:$0xff]
        %v7541 = vld [vmem:[%s303 + $0x78] sm:$0xff]
        %v7542 = vld [vmem:[%s303 + $0x80] sm:$0xff]
        %v7543 = vld [vmem:[%s303 + $0x90] sm:$0xff]
        %v7544 = vld [vmem:[%s303 + $0x98] sm:$0xff]
        %v7545 = vld [vmem:[%s303 + $0xa8] sm:$0xff]
        %v7546 = vld [vmem:[%s303 + $0xb0] sm:$0xff]
        %v7547 = vld [vmem:[%s303 + $0xc0] sm:$0xff]
        %v7548 = vld [vmem:[%s303 + $0xc8] sm:$0xff]
        %v7549 = vld [vmem:[%s303 + $0xd8] sm:$0xff]
        %v7550 = vld [vmem:[%s303 + $0xe0] sm:$0xff]
        %v7551 = vld [vmem:[%s303 + $0xf0] sm:$0xff]
        %v7552 = vld [vmem:[%s303 + $0xf8] sm:$0xff]
        %v7553 = vld [vmem:[%s303 + $0x108] sm:$0xff]
        %v7554 = vld [vmem:[%s303 + $0x110] sm:$0xff]
        %v7555 = vld [vmem:[%s303 + $0x120] sm:$0xff]
        %v7556 = vld [vmem:[%s303 + $0x128] sm:$0xff]
        %v7557 = vld [vmem:[%s303 + $0x138] sm:$0xff]
        %v7558 = vld [vmem:[%s303 + $0x140] sm:$0xff]
        %v7559 = vld [vmem:[%s303 + $0x150] sm:$0xff]
        %v7560 = vld [vmem:[%s303 + $0x158] sm:$0xff]
        %v7561 = vld [vmem:[%s303 + $0x168] sm:$0xff]
        %v7562 = vld [vmem:[%s303 + $0x170] sm:$0xff]
        %7595 = vrot.lane.b32.xlu0 %v7531, 64
        %v7596 = vpop.permute.xlu0 %7595
        %7597 = vrot.lane.b32.xlu0 %v7532, 64
        %v7598 = vpop.permute.xlu0 %7597
        %7599 = vrot.lane.b32.xlu0 %v7533, 64
        %v7600 = vpop.permute.xlu0 %7599
        %7601 = vrot.lane.b32.xlu0 %v7534, 64
        %v7602 = vpop.permute.xlu0 %7601
        %7603 = vrot.lane.b32.xlu0 %v7535, 64
        %v7604 = vpop.permute.xlu0 %7603
        %7605 = vrot.lane.b32.xlu0 %v7536, 64
        %v7606 = vpop.permute.xlu0 %7605
        %7607 = vrot.lane.b32.xlu0 %v7537, 64
        %v7608 = vpop.permute.xlu0 %7607
        %7609 = vrot.lane.b32.xlu0 %v7538, 64
        %v7610 = vpop.permute.xlu0 %7609
        %7611 = vrot.lane.b32.xlu0 %v7539, 64
        %v7612 = vpop.permute.xlu0 %7611
        %7613 = vrot.lane.b32.xlu0 %v7540, 64
        %v7614 = vpop.permute.xlu0 %7613
        %7615 = vrot.lane.b32.xlu0 %v7541, 64
        %v7616 = vpop.permute.xlu0 %7615
        %7617 = vrot.lane.b32.xlu0 %v7542, 64
        %v7618 = vpop.permute.xlu0 %7617
        %7619 = vrot.lane.b32.xlu0 %v7543, 64
        %v7620 = vpop.permute.xlu0 %7619
        %7621 = vrot.lane.b32.xlu0 %v7544, 64
        %v7622 = vpop.permute.xlu0 %7621
        %7623 = vrot.lane.b32.xlu0 %v7545, 64
        %v7624 = vpop.permute.xlu0 %7623
        %7625 = vrot.lane.b32.xlu0 %v7546, 64
        %v7626 = vpop.permute.xlu0 %7625
        %7627 = vrot.lane.b32.xlu0 %v7547, 64
        %v7628 = vpop.permute.xlu0 %7627
        %7629 = vrot.lane.b32.xlu0 %v7548, 64
        %v7630 = vpop.permute.xlu0 %7629
        %7631 = vrot.lane.b32.xlu0 %v7549, 64
        %v7632 = vpop.permute.xlu0 %7631
        %7633 = vrot.lane.b32.xlu0 %v7550, 64
        %v7634 = vpop.permute.xlu0 %7633
        %7635 = vrot.lane.b32.xlu0 %v7551, 64
        %v7636 = vpop.permute.xlu0 %7635
        %7637 = vrot.lane.b32.xlu0 %v7552, 64
        %v7638 = vpop.permute.xlu0 %7637
        %7639 = vrot.lane.b32.xlu0 %v7553, 64
        %v7640 = vpop.permute.xlu0 %7639
        %7641 = vrot.lane.b32.xlu0 %v7554, 64
        %v7642 = vpop.permute.xlu0 %7641
        %7643 = vrot.lane.b32.xlu0 %v7555, 64
        %v7644 = vpop.permute.xlu0 %7643
        %7645 = vrot.lane.b32.xlu0 %v7556, 64
        %v7646 = vpop.permute.xlu0 %7645
        %7647 = vrot.lane.b32.xlu0 %v7557, 64
        %v7648 = vpop.permute.xlu0 %7647
        %7649 = vrot.lane.b32.xlu0 %v7558, 64
        %v7650 = vpop.permute.xlu0 %7649
        %7651 = vrot.lane.b32.xlu0 %v7559, 64
        %v7652 = vpop.permute.xlu0 %7651
        %7653 = vrot.lane.b32.xlu0 %v7560, 64
        %v7654 = vpop.permute.xlu0 %7653
        %7655 = vrot.lane.b32.xlu0 %v7561, 64
        %v7656 = vpop.permute.xlu0 %7655
        %7657 = vrot.lane.b32.xlu0 %v7562, 64
        %v7658 = vpop.permute.xlu0 %7657
        %v7691 = vsel %vm294, %v7499, %v7596
        %v7692 = vsel %vm294, %v7500, %v7598
        %v7693 = vsel %vm294, %v7501, %v7600
        %v7694 = vsel %vm294, %v7502, %v7602
        %v7695 = vsel %vm294, %v7503, %v7604
        %v7696 = vsel %vm294, %v7504, %v7606
        %v7697 = vsel %vm294, %v7505, %v7608
        %v7698 = vsel %vm294, %v7506, %v7610
        %v7699 = vsel %vm294, %v7507, %v7612
        %v7700 = vsel %vm294, %v7508, %v7614
        %v7701 = vsel %vm294, %v7509, %v7616
        %v7702 = vsel %vm294, %v7510, %v7618
        %v7703 = vsel %vm294, %v7511, %v7620
        %v7704 = vsel %vm294, %v7512, %v7622
        %v7705 = vsel %vm294, %v7513, %v7624
        %v7706 = vsel %vm294, %v7514, %v7626
        %v7707 = vsel %vm294, %v7515, %v7628
        %v7708 = vsel %vm294, %v7516, %v7630
        %v7709 = vsel %vm294, %v7517, %v7632
        %v7710 = vsel %vm294, %v7518, %v7634
        %v7711 = vsel %vm294, %v7519, %v7636
        %v7712 = vsel %vm294, %v7520, %v7638
        %v7713 = vsel %vm294, %v7521, %v7640
        %v7714 = vsel %vm294, %v7522, %v7642
        %v7715 = vsel %vm294, %v7523, %v7644
        %v7716 = vsel %vm294, %v7524, %v7646
        %v7717 = vsel %vm294, %v7525, %v7648
        %v7718 = vsel %vm294, %v7526, %v7650
        %v7719 = vsel %vm294, %v7527, %v7652
        %v7720 = vsel %vm294, %v7528, %v7654
        %v7721 = vsel %vm294, %v7529, %v7656
        %v7722 = vsel %vm294, %v7530, %v7658
        %v7723 = vpack.c.bf16 %v7691, %v7691
        %v7724 = vpack.c.bf16 %v7692, %v7692
        %v7725 = vpack.c.bf16 %v7693, %v7693
        %v7726 = vpack.c.bf16 %v7694, %v7694
        %v7727 = vpack.c.bf16 %v7695, %v7695
        %v7728 = vpack.c.bf16 %v7696, %v7696
        %v7729 = vpack.c.bf16 %v7697, %v7697
        %v7730 = vpack.c.bf16 %v7698, %v7698
        %v7731 = vpack.c.bf16 %v7699, %v7699
        %v7732 = vpack.c.bf16 %v7700, %v7700
        %v7733 = vpack.c.bf16 %v7701, %v7701
        %v7734 = vpack.c.bf16 %v7702, %v7702
        %v7735 = vpack.c.bf16 %v7703, %v7703
        %v7736 = vpack.c.bf16 %v7704, %v7704
        %v7737 = vpack.c.bf16 %v7705, %v7705
        %v7738 = vpack.c.bf16 %v7706, %v7706
        %v7739 = vpack.c.bf16 %v7707, %v7707
        %v7740 = vpack.c.bf16 %v7708, %v7708
        %v7741 = vpack.c.bf16 %v7709, %v7709
        %v7742 = vpack.c.bf16 %v7710, %v7710
        %v7743 = vpack.c.bf16 %v7711, %v7711
        %v7744 = vpack.c.bf16 %v7712, %v7712
        %v7745 = vpack.c.bf16 %v7713, %v7713
        %v7746 = vpack.c.bf16 %v7714, %v7714
        %v7747 = vpack.c.bf16 %v7715, %v7715
        %v7748 = vpack.c.bf16 %v7716, %v7716
        %v7749 = vpack.c.bf16 %v7717, %v7717
        %v7750 = vpack.c.bf16 %v7718, %v7718
        %v7751 = vpack.c.bf16 %v7719, %v7719
        %v7752 = vpack.c.bf16 %v7720, %v7720
        %v7753 = vpack.c.bf16 %v7721, %v7721
        %v7754 = vpack.c.bf16 %v7722, %v7722
        %7755 = vst [vmem:[#allocation3 + $0x4] sm:$0xf] %v7723
        %7756 = vst [vmem:[#allocation3 + $0x18] sm:$0xf] %v7724
        %7757 = vst [vmem:[#allocation3 + $0x2c] sm:$0xf] %v7725
        %7758 = vst [vmem:[#allocation3 + $0x40] sm:$0xf] %v7726
        %7759 = vst [vmem:[#allocation3 + $0x54] sm:$0xf] %v7727
        %7760 = vst [vmem:[#allocation3 + $0x68] sm:$0xf] %v7728
        %7761 = vst [vmem:[#allocation3 + $0x7c] sm:$0xf] %v7729
        %7762 = vst [vmem:[#allocation3 + $0x90] sm:$0xf] %v7730
        %7763 = vst [vmem:[#allocation3 + $0xa4] sm:$0xf] %v7731
        %7764 = vst [vmem:[#allocation3 + $0xb8] sm:$0xf] %v7732
        %7765 = vst [vmem:[#allocation3 + $0xcc] sm:$0xf] %v7733
        %7766 = vst [vmem:[#allocation3 + $0xe0] sm:$0xf] %v7734
        %7767 = vst [vmem:[#allocation3 + $0xf4] sm:$0xf] %v7735
        %7768 = vst [vmem:[#allocation3 + $0x108] sm:$0xf] %v7736
        %7769 = vst [vmem:[#allocation3 + $0x11c] sm:$0xf] %v7737
        %7770 = vst [vmem:[#allocation3 + $0x130] sm:$0xf] %v7738
        %7771 = vst [vmem:[#allocation3 + $0x144] sm:$0xf] %v7739
        %7772 = vst [vmem:[#allocation3 + $0x158] sm:$0xf] %v7740
        %7773 = vst [vmem:[#allocation3 + $0x16c] sm:$0xf] %v7741
        %7774 = vst [vmem:[#allocation3 + $0x180] sm:$0xf] %v7742
        %7775 = vst [vmem:[#allocation3 + $0x194] sm:$0xf] %v7743
        %7776 = vst [vmem:[#allocation3 + $0x1a8] sm:$0xf] %v7744
        %7777 = vst [vmem:[#allocation3 + $0x1bc] sm:$0xf] %v7745
        %7778 = vst [vmem:[#allocation3 + $0x1d0] sm:$0xf] %v7746
        %7779 = vst [vmem:[#allocation3 + $0x1e4] sm:$0xf] %v7747
        %7780 = vst [vmem:[#allocation3 + $0x1f8] sm:$0xf] %v7748
        %7781 = vst [vmem:[#allocation3 + $0x20c] sm:$0xf] %v7749
        %7782 = vst [vmem:[#allocation3 + $0x220] sm:$0xf] %v7750
        %7783 = vst [vmem:[#allocation3 + $0x234] sm:$0xf] %v7751
        %7784 = vst [vmem:[#allocation3 + $0x248] sm:$0xf] %v7752
        %7785 = vst [vmem:[#allocation3 + $0x25c] sm:$0xf] %v7753
        %7786 = vst [vmem:[#allocation3 + $0x270] sm:$0xf] %v7754
        %v7787 = vld [vmem:[%s303 + $0x2] sm:$0xff]
        %v7788 = vld [vmem:[%s303 + $0xa] sm:$0xff]
        %v7789 = vld [vmem:[%s303 + $0x1a] sm:$0xff]
        %v7790 = vld [vmem:[%s303 + $0x22] sm:$0xff]
        %v7791 = vld [vmem:[%s303 + $0x32] sm:$0xff]
        %v7792 = vld [vmem:[%s303 + $0x3a] sm:$0xff]
        %v7793 = vld [vmem:[%s303 + $0x4a] sm:$0xff]
        %v7794 = vld [vmem:[%s303 + $0x52] sm:$0xff]
        %v7795 = vld [vmem:[%s303 + $0x62] sm:$0xff]
        %v7796 = vld [vmem:[%s303 + $0x6a] sm:$0xff]
        %v7797 = vld [vmem:[%s303 + $0x7a] sm:$0xff]
        %v7798 = vld [vmem:[%s303 + $0x82] sm:$0xff]
        %v7799 = vld [vmem:[%s303 + $0x92] sm:$0xff]
        %v7800 = vld [vmem:[%s303 + $0x9a] sm:$0xff]
        %v7801 = vld [vmem:[%s303 + $0xaa] sm:$0xff]
        %v7802 = vld [vmem:[%s303 + $0xb2] sm:$0xff]
        %v7803 = vld [vmem:[%s303 + $0xc2] sm:$0xff]
        %v7804 = vld [vmem:[%s303 + $0xca] sm:$0xff]
        %v7805 = vld [vmem:[%s303 + $0xda] sm:$0xff]
        %v7806 = vld [vmem:[%s303 + $0xe2] sm:$0xff]
        %v7807 = vld [vmem:[%s303 + $0xf2] sm:$0xff]
        %v7808 = vld [vmem:[%s303 + $0xfa] sm:$0xff]
        %v7809 = vld [vmem:[%s303 + $0x10a] sm:$0xff]
        %v7810 = vld [vmem:[%s303 + $0x112] sm:$0xff]
        %v7811 = vld [vmem:[%s303 + $0x122] sm:$0xff]
        %v7812 = vld [vmem:[%s303 + $0x12a] sm:$0xff]
        %v7813 = vld [vmem:[%s303 + $0x13a] sm:$0xff]
        %v7814 = vld [vmem:[%s303 + $0x142] sm:$0xff]
        %v7815 = vld [vmem:[%s303 + $0x152] sm:$0xff]
        %v7816 = vld [vmem:[%s303 + $0x15a] sm:$0xff]
        %v7817 = vld [vmem:[%s303 + $0x16a] sm:$0xff]
        %v7818 = vld [vmem:[%s303 + $0x172] sm:$0xff]
        %7851 = vrot.lane.b32.xlu0 %v7787, 64
        %v7852 = vpop.permute.xlu0 %7851
        %7853 = vrot.lane.b32.xlu0 %v7788, 64
        %v7854 = vpop.permute.xlu0 %7853
        %7855 = vrot.lane.b32.xlu0 %v7789, 64
        %v7856 = vpop.permute.xlu0 %7855
        %7857 = vrot.lane.b32.xlu0 %v7790, 64
        %v7858 = vpop.permute.xlu0 %7857
        %7859 = vrot.lane.b32.xlu0 %v7791, 64
        %v7860 = vpop.permute.xlu0 %7859
        %7861 = vrot.lane.b32.xlu0 %v7792, 64
        %v7862 = vpop.permute.xlu0 %7861
        %7863 = vrot.lane.b32.xlu0 %v7793, 64
        %v7864 = vpop.permute.xlu0 %7863
        %7865 = vrot.lane.b32.xlu0 %v7794, 64
        %v7866 = vpop.permute.xlu0 %7865
        %7867 = vrot.lane.b32.xlu0 %v7795, 64
        %v7868 = vpop.permute.xlu0 %7867
        %7869 = vrot.lane.b32.xlu0 %v7796, 64
        %v7870 = vpop.permute.xlu0 %7869
        %7871 = vrot.lane.b32.xlu0 %v7797, 64
        %v7872 = vpop.permute.xlu0 %7871
        %7873 = vrot.lane.b32.xlu0 %v7798, 64
        %v7874 = vpop.permute.xlu0 %7873
        %7875 = vrot.lane.b32.xlu0 %v7799, 64
        %v7876 = vpop.permute.xlu0 %7875
        %7877 = vrot.lane.b32.xlu0 %v7800, 64
        %v7878 = vpop.permute.xlu0 %7877
        %7879 = vrot.lane.b32.xlu0 %v7801, 64
        %v7880 = vpop.permute.xlu0 %7879
        %7881 = vrot.lane.b32.xlu0 %v7802, 64
        %v7882 = vpop.permute.xlu0 %7881
        %7883 = vrot.lane.b32.xlu0 %v7803, 64
        %v7884 = vpop.permute.xlu0 %7883
        %7885 = vrot.lane.b32.xlu0 %v7804, 64
        %v7886 = vpop.permute.xlu0 %7885
        %7887 = vrot.lane.b32.xlu0 %v7805, 64
        %v7888 = vpop.permute.xlu0 %7887
        %7889 = vrot.lane.b32.xlu0 %v7806, 64
        %v7890 = vpop.permute.xlu0 %7889
        %7891 = vrot.lane.b32.xlu0 %v7807, 64
        %v7892 = vpop.permute.xlu0 %7891
        %7893 = vrot.lane.b32.xlu0 %v7808, 64
        %v7894 = vpop.permute.xlu0 %7893
        %7895 = vrot.lane.b32.xlu0 %v7809, 64
        %v7896 = vpop.permute.xlu0 %7895
        %7897 = vrot.lane.b32.xlu0 %v7810, 64
        %v7898 = vpop.permute.xlu0 %7897
        %7899 = vrot.lane.b32.xlu0 %v7811, 64
        %v7900 = vpop.permute.xlu0 %7899
        %7901 = vrot.lane.b32.xlu0 %v7812, 64
        %v7902 = vpop.permute.xlu0 %7901
        %7903 = vrot.lane.b32.xlu0 %v7813, 64
        %v7904 = vpop.permute.xlu0 %7903
        %7905 = vrot.lane.b32.xlu0 %v7814, 64
        %v7906 = vpop.permute.xlu0 %7905
        %7907 = vrot.lane.b32.xlu0 %v7815, 64
        %v7908 = vpop.permute.xlu0 %7907
        %7909 = vrot.lane.b32.xlu0 %v7816, 64
        %v7910 = vpop.permute.xlu0 %7909
        %7911 = vrot.lane.b32.xlu0 %v7817, 64
        %v7912 = vpop.permute.xlu0 %7911
        %7913 = vrot.lane.b32.xlu0 %v7818, 64
        %v7914 = vpop.permute.xlu0 %7913
        %v7947 = vsel %vm294, %v7115, %v7852
        %v7948 = vsel %vm294, %v7116, %v7854
        %v7949 = vsel %vm294, %v7117, %v7856
        %v7950 = vsel %vm294, %v7118, %v7858
        %v7951 = vsel %vm294, %v7119, %v7860
        %v7952 = vsel %vm294, %v7120, %v7862
        %v7953 = vsel %vm294, %v7121, %v7864
        %v7954 = vsel %vm294, %v7122, %v7866
        %v7955 = vsel %vm294, %v7123, %v7868
        %v7956 = vsel %vm294, %v7124, %v7870
        %v7957 = vsel %vm294, %v7125, %v7872
        %v7958 = vsel %vm294, %v7126, %v7874
        %v7959 = vsel %vm294, %v7127, %v7876
        %v7960 = vsel %vm294, %v7128, %v7878
        %v7961 = vsel %vm294, %v7129, %v7880
        %v7962 = vsel %vm294, %v7130, %v7882
        %v7963 = vsel %vm294, %v7131, %v7884
        %v7964 = vsel %vm294, %v7132, %v7886
        %v7965 = vsel %vm294, %v7133, %v7888
        %v7966 = vsel %vm294, %v7134, %v7890
        %v7967 = vsel %vm294, %v7135, %v7892
        %v7968 = vsel %vm294, %v7136, %v7894
        %v7969 = vsel %vm294, %v7137, %v7896
        %v7970 = vsel %vm294, %v7138, %v7898
        %v7971 = vsel %vm294, %v7139, %v7900
        %v7972 = vsel %vm294, %v7140, %v7902
        %v7973 = vsel %vm294, %v7141, %v7904
        %v7974 = vsel %vm294, %v7142, %v7906
        %v7975 = vsel %vm294, %v7143, %v7908
        %v7976 = vsel %vm294, %v7144, %v7910
        %v7977 = vsel %vm294, %v7145, %v7912
        %v7978 = vsel %vm294, %v7146, %v7914
        %v7979 = vpack.c.bf16 %v7947, %v7947
        %v7980 = vpack.c.bf16 %v7948, %v7948
        %v7981 = vpack.c.bf16 %v7949, %v7949
        %v7982 = vpack.c.bf16 %v7950, %v7950
        %v7983 = vpack.c.bf16 %v7951, %v7951
        %v7984 = vpack.c.bf16 %v7952, %v7952
        %v7985 = vpack.c.bf16 %v7953, %v7953
        %v7986 = vpack.c.bf16 %v7954, %v7954
        %v7987 = vpack.c.bf16 %v7955, %v7955
        %v7988 = vpack.c.bf16 %v7956, %v7956
        %v7989 = vpack.c.bf16 %v7957, %v7957
        %v7990 = vpack.c.bf16 %v7958, %v7958
        %v7991 = vpack.c.bf16 %v7959, %v7959
        %v7992 = vpack.c.bf16 %v7960, %v7960
        %v7993 = vpack.c.bf16 %v7961, %v7961
        %v7994 = vpack.c.bf16 %v7962, %v7962
        %v7995 = vpack.c.bf16 %v7963, %v7963
        %v7996 = vpack.c.bf16 %v7964, %v7964
        %v7997 = vpack.c.bf16 %v7965, %v7965
        %v7998 = vpack.c.bf16 %v7966, %v7966
        %v7999 = vpack.c.bf16 %v7967, %v7967
        %v8000 = vpack.c.bf16 %v7968, %v7968
        %v8001 = vpack.c.bf16 %v7969, %v7969
        %v8002 = vpack.c.bf16 %v7970, %v7970
        %v8003 = vpack.c.bf16 %v7971, %v7971
        %v8004 = vpack.c.bf16 %v7972, %v7972
        %v8005 = vpack.c.bf16 %v7973, %v7973
        %v8006 = vpack.c.bf16 %v7974, %v7974
        %v8007 = vpack.c.bf16 %v7975, %v7975
        %v8008 = vpack.c.bf16 %v7976, %v7976
        %v8009 = vpack.c.bf16 %v7977, %v7977
        %v8010 = vpack.c.bf16 %v7978, %v7978
        %8011 = vst [vmem:[#allocation3 + $0x8] sm:$0xf] %v7979
        %8012 = vst [vmem:[#allocation3 + $0x1c] sm:$0xf] %v7980
        %8013 = vst [vmem:[#allocation3 + $0x30] sm:$0xf] %v7981
        %8014 = vst [vmem:[#allocation3 + $0x44] sm:$0xf] %v7982
        %8015 = vst [vmem:[#allocation3 + $0x58] sm:$0xf] %v7983
        %8016 = vst [vmem:[#allocation3 + $0x6c] sm:$0xf] %v7984
        %8017 = vst [vmem:[#allocation3 + $0x80] sm:$0xf] %v7985
        %8018 = vst [vmem:[#allocation3 + $0x94] sm:$0xf] %v7986
        %8019 = vst [vmem:[#allocation3 + $0xa8] sm:$0xf] %v7987
        %8020 = vst [vmem:[#allocation3 + $0xbc] sm:$0xf] %v7988
        %8021 = vst [vmem:[#allocation3 + $0xd0] sm:$0xf] %v7989
        %8022 = vst [vmem:[#allocation3 + $0xe4] sm:$0xf] %v7990
        %8023 = vst [vmem:[#allocation3 + $0xf8] sm:$0xf] %v7991
        %8024 = vst [vmem:[#allocation3 + $0x10c] sm:$0xf] %v7992
        %8025 = vst [vmem:[#allocation3 + $0x120] sm:$0xf] %v7993
        %8026 = vst [vmem:[#allocation3 + $0x134] sm:$0xf] %v7994
        %8027 = vst [vmem:[#allocation3 + $0x148] sm:$0xf] %v7995
        %8028 = vst [vmem:[#allocation3 + $0x15c] sm:$0xf] %v7996
        %8029 = vst [vmem:[#allocation3 + $0x170] sm:$0xf] %v7997
        %8030 = vst [vmem:[#allocation3 + $0x184] sm:$0xf] %v7998
        %8031 = vst [vmem:[#allocation3 + $0x198] sm:$0xf] %v7999
        %8032 = vst [vmem:[#allocation3 + $0x1ac] sm:$0xf] %v8000
        %8033 = vst [vmem:[#allocation3 + $0x1c0] sm:$0xf] %v8001
        %8034 = vst [vmem:[#allocation3 + $0x1d4] sm:$0xf] %v8002
        %8035 = vst [vmem:[#allocation3 + $0x1e8] sm:$0xf] %v8003
        %8036 = vst [vmem:[#allocation3 + $0x1fc] sm:$0xf] %v8004
        %8037 = vst [vmem:[#allocation3 + $0x210] sm:$0xf] %v8005
        %8038 = vst [vmem:[#allocation3 + $0x224] sm:$0xf] %v8006
        %8039 = vst [vmem:[#allocation3 + $0x238] sm:$0xf] %v8007
        %8040 = vst [vmem:[#allocation3 + $0x24c] sm:$0xf] %v8008
        %8041 = vst [vmem:[#allocation3 + $0x260] sm:$0xf] %v8009
        %8042 = vst [vmem:[#allocation3 + $0x274] sm:$0xf] %v8010
        %v8043 = vld [vmem:[%s1233] sm:$0xff]
        %v8044 = vld [vmem:[%s1233 + $0x8] sm:$0xff]
        %v8045 = vld [vmem:[%s1233 + $0x18] sm:$0xff]
        %v8046 = vld [vmem:[%s1233 + $0x20] sm:$0xff]
        %v8047 = vld [vmem:[%s1233 + $0x30] sm:$0xff]
        %v8048 = vld [vmem:[%s1233 + $0x38] sm:$0xff]
        %v8049 = vld [vmem:[%s1233 + $0x48] sm:$0xff]
        %v8050 = vld [vmem:[%s1233 + $0x50] sm:$0xff]
        %v8051 = vld [vmem:[%s1233 + $0x60] sm:$0xff]
        %v8052 = vld [vmem:[%s1233 + $0x68] sm:$0xff]
        %v8053 = vld [vmem:[%s1233 + $0x78] sm:$0xff]
        %v8054 = vld [vmem:[%s1233 + $0x80] sm:$0xff]
        %v8055 = vld [vmem:[%s1233 + $0x90] sm:$0xff]
        %v8056 = vld [vmem:[%s1233 + $0x98] sm:$0xff]
        %v8057 = vld [vmem:[%s1233 + $0xa8] sm:$0xff]
        %v8058 = vld [vmem:[%s1233 + $0xb0] sm:$0xff]
        %v8059 = vld [vmem:[%s1233 + $0xc0] sm:$0xff]
        %v8060 = vld [vmem:[%s1233 + $0xc8] sm:$0xff]
        %v8061 = vld [vmem:[%s1233 + $0xd8] sm:$0xff]
        %v8062 = vld [vmem:[%s1233 + $0xe0] sm:$0xff]
        %v8063 = vld [vmem:[%s1233 + $0xf0] sm:$0xff]
        %v8064 = vld [vmem:[%s1233 + $0xf8] sm:$0xff]
        %v8065 = vld [vmem:[%s1233 + $0x108] sm:$0xff]
        %v8066 = vld [vmem:[%s1233 + $0x110] sm:$0xff]
        %v8067 = vld [vmem:[%s1233 + $0x120] sm:$0xff]
        %v8068 = vld [vmem:[%s1233 + $0x128] sm:$0xff]
        %v8069 = vld [vmem:[%s1233 + $0x138] sm:$0xff]
        %v8070 = vld [vmem:[%s1233 + $0x140] sm:$0xff]
        %v8071 = vld [vmem:[%s1233 + $0x150] sm:$0xff]
        %v8072 = vld [vmem:[%s1233 + $0x158] sm:$0xff]
        %v8073 = vld [vmem:[%s1233 + $0x168] sm:$0xff]
        %v8074 = vld [vmem:[%s1233 + $0x170] sm:$0xff]
        %v8075 = vld [vmem:[%s1233 + $0x1] sm:$0xff]
        %v8076 = vld [vmem:[%s1233 + $0x9] sm:$0xff]
        %v8077 = vld [vmem:[%s1233 + $0x19] sm:$0xff]
        %v8078 = vld [vmem:[%s1233 + $0x21] sm:$0xff]
        %v8079 = vld [vmem:[%s1233 + $0x31] sm:$0xff]
        %v8080 = vld [vmem:[%s1233 + $0x39] sm:$0xff]
        %v8081 = vld [vmem:[%s1233 + $0x49] sm:$0xff]
        %v8082 = vld [vmem:[%s1233 + $0x51] sm:$0xff]
        %v8083 = vld [vmem:[%s1233 + $0x61] sm:$0xff]
        %v8084 = vld [vmem:[%s1233 + $0x69] sm:$0xff]
        %v8085 = vld [vmem:[%s1233 + $0x79] sm:$0xff]
        %v8086 = vld [vmem:[%s1233 + $0x81] sm:$0xff]
        %v8087 = vld [vmem:[%s1233 + $0x91] sm:$0xff]
        %v8088 = vld [vmem:[%s1233 + $0x99] sm:$0xff]
        %v8089 = vld [vmem:[%s1233 + $0xa9] sm:$0xff]
        %v8090 = vld [vmem:[%s1233 + $0xb1] sm:$0xff]
        %v8091 = vld [vmem:[%s1233 + $0xc1] sm:$0xff]
        %v8092 = vld [vmem:[%s1233 + $0xc9] sm:$0xff]
        %v8093 = vld [vmem:[%s1233 + $0xd9] sm:$0xff]
        %v8094 = vld [vmem:[%s1233 + $0xe1] sm:$0xff]
        %v8095 = vld [vmem:[%s1233 + $0xf1] sm:$0xff]
        %v8096 = vld [vmem:[%s1233 + $0xf9] sm:$0xff]
        %v8097 = vld [vmem:[%s1233 + $0x109] sm:$0xff]
        %v8098 = vld [vmem:[%s1233 + $0x111] sm:$0xff]
        %v8099 = vld [vmem:[%s1233 + $0x121] sm:$0xff]
        %v8100 = vld [vmem:[%s1233 + $0x129] sm:$0xff]
        %v8101 = vld [vmem:[%s1233 + $0x139] sm:$0xff]
        %v8102 = vld [vmem:[%s1233 + $0x141] sm:$0xff]
        %v8103 = vld [vmem:[%s1233 + $0x151] sm:$0xff]
        %v8104 = vld [vmem:[%s1233 + $0x159] sm:$0xff]
        %v8105 = vld [vmem:[%s1233 + $0x169] sm:$0xff]
        %v8106 = vld [vmem:[%s1233 + $0x171] sm:$0xff]
        %8139 = vrot.lane.b32.xlu0 %v8075, 64
        %v8140 = vpop.permute.xlu0 %8139
        %8141 = vrot.lane.b32.xlu0 %v8076, 64
        %v8142 = vpop.permute.xlu0 %8141
        %8143 = vrot.lane.b32.xlu0 %v8077, 64
        %v8144 = vpop.permute.xlu0 %8143
        %8145 = vrot.lane.b32.xlu0 %v8078, 64
        %v8146 = vpop.permute.xlu0 %8145
        %8147 = vrot.lane.b32.xlu0 %v8079, 64
        %v8148 = vpop.permute.xlu0 %8147
        %8149 = vrot.lane.b32.xlu0 %v8080, 64
        %v8150 = vpop.permute.xlu0 %8149
        %8151 = vrot.lane.b32.xlu0 %v8081, 64
        %v8152 = vpop.permute.xlu0 %8151
        %8153 = vrot.lane.b32.xlu0 %v8082, 64
        %v8154 = vpop.permute.xlu0 %8153
        %8155 = vrot.lane.b32.xlu0 %v8083, 64
        %v8156 = vpop.permute.xlu0 %8155
        %8157 = vrot.lane.b32.xlu0 %v8084, 64
        %v8158 = vpop.permute.xlu0 %8157
        %8159 = vrot.lane.b32.xlu0 %v8085, 64
        %v8160 = vpop.permute.xlu0 %8159
        %8161 = vrot.lane.b32.xlu0 %v8086, 64
        %v8162 = vpop.permute.xlu0 %8161
        %8163 = vrot.lane.b32.xlu0 %v8087, 64
        %v8164 = vpop.permute.xlu0 %8163
        %8165 = vrot.lane.b32.xlu0 %v8088, 64
        %v8166 = vpop.permute.xlu0 %8165
        %8167 = vrot.lane.b32.xlu0 %v8089, 64
        %v8168 = vpop.permute.xlu0 %8167
        %8169 = vrot.lane.b32.xlu0 %v8090, 64
        %v8170 = vpop.permute.xlu0 %8169
        %8171 = vrot.lane.b32.xlu0 %v8091, 64
        %v8172 = vpop.permute.xlu0 %8171
        %8173 = vrot.lane.b32.xlu0 %v8092, 64
        %v8174 = vpop.permute.xlu0 %8173
        %8175 = vrot.lane.b32.xlu0 %v8093, 64
        %v8176 = vpop.permute.xlu0 %8175
        %8177 = vrot.lane.b32.xlu0 %v8094, 64
        %v8178 = vpop.permute.xlu0 %8177
        %8179 = vrot.lane.b32.xlu0 %v8095, 64
        %v8180 = vpop.permute.xlu0 %8179
        %8181 = vrot.lane.b32.xlu0 %v8096, 64
        %v8182 = vpop.permute.xlu0 %8181
        %8183 = vrot.lane.b32.xlu0 %v8097, 64
        %v8184 = vpop.permute.xlu0 %8183
        %8185 = vrot.lane.b32.xlu0 %v8098, 64
        %v8186 = vpop.permute.xlu0 %8185
        %8187 = vrot.lane.b32.xlu0 %v8099, 64
        %v8188 = vpop.permute.xlu0 %8187
        %8189 = vrot.lane.b32.xlu0 %v8100, 64
        %v8190 = vpop.permute.xlu0 %8189
        %8191 = vrot.lane.b32.xlu0 %v8101, 64
        %v8192 = vpop.permute.xlu0 %8191
        %8193 = vrot.lane.b32.xlu0 %v8102, 64
        %v8194 = vpop.permute.xlu0 %8193
        %8195 = vrot.lane.b32.xlu0 %v8103, 64
        %v8196 = vpop.permute.xlu0 %8195
        %8197 = vrot.lane.b32.xlu0 %v8104, 64
        %v8198 = vpop.permute.xlu0 %8197
        %8199 = vrot.lane.b32.xlu0 %v8105, 64
        %v8200 = vpop.permute.xlu0 %8199
        %8201 = vrot.lane.b32.xlu0 %v8106, 64
        %v8202 = vpop.permute.xlu0 %8201
        %v8235 = vsel %vm294, %v8043, %v8140
        %v8236 = vsel %vm294, %v8044, %v8142
        %v8237 = vsel %vm294, %v8045, %v8144
        %v8238 = vsel %vm294, %v8046, %v8146
        %v8239 = vsel %vm294, %v8047, %v8148
        %v8240 = vsel %vm294, %v8048, %v8150
        %v8241 = vsel %vm294, %v8049, %v8152
        %v8242 = vsel %vm294, %v8050, %v8154
        %v8243 = vsel %vm294, %v8051, %v8156
        %v8244 = vsel %vm294, %v8052, %v8158
        %v8245 = vsel %vm294, %v8053, %v8160
        %v8246 = vsel %vm294, %v8054, %v8162
        %v8247 = vsel %vm294, %v8055, %v8164
        %v8248 = vsel %vm294, %v8056, %v8166
        %v8249 = vsel %vm294, %v8057, %v8168
        %v8250 = vsel %vm294, %v8058, %v8170
        %v8251 = vsel %vm294, %v8059, %v8172
        %v8252 = vsel %vm294, %v8060, %v8174
        %v8253 = vsel %vm294, %v8061, %v8176
        %v8254 = vsel %vm294, %v8062, %v8178
        %v8255 = vsel %vm294, %v8063, %v8180
        %v8256 = vsel %vm294, %v8064, %v8182
        %v8257 = vsel %vm294, %v8065, %v8184
        %v8258 = vsel %vm294, %v8066, %v8186
        %v8259 = vsel %vm294, %v8067, %v8188
        %v8260 = vsel %vm294, %v8068, %v8190
        %v8261 = vsel %vm294, %v8069, %v8192
        %v8262 = vsel %vm294, %v8070, %v8194
        %v8263 = vsel %vm294, %v8071, %v8196
        %v8264 = vsel %vm294, %v8072, %v8198
        %v8265 = vsel %vm294, %v8073, %v8200
        %v8266 = vsel %vm294, %v8074, %v8202
        %v8267 = vpack.c.bf16 %v8235, %v8235
        %v8268 = vpack.c.bf16 %v8236, %v8236
        %v8269 = vpack.c.bf16 %v8237, %v8237
        %v8270 = vpack.c.bf16 %v8238, %v8238
        %v8271 = vpack.c.bf16 %v8239, %v8239
        %v8272 = vpack.c.bf16 %v8240, %v8240
        %v8273 = vpack.c.bf16 %v8241, %v8241
        %v8274 = vpack.c.bf16 %v8242, %v8242
        %v8275 = vpack.c.bf16 %v8243, %v8243
        %v8276 = vpack.c.bf16 %v8244, %v8244
        %v8277 = vpack.c.bf16 %v8245, %v8245
        %v8278 = vpack.c.bf16 %v8246, %v8246
        %v8279 = vpack.c.bf16 %v8247, %v8247
        %v8280 = vpack.c.bf16 %v8248, %v8248
        %v8281 = vpack.c.bf16 %v8249, %v8249
        %v8282 = vpack.c.bf16 %v8250, %v8250
        %v8283 = vpack.c.bf16 %v8251, %v8251
        %v8284 = vpack.c.bf16 %v8252, %v8252
        %v8285 = vpack.c.bf16 %v8253, %v8253
        %v8286 = vpack.c.bf16 %v8254, %v8254
        %v8287 = vpack.c.bf16 %v8255, %v8255
        %v8288 = vpack.c.bf16 %v8256, %v8256
        %v8289 = vpack.c.bf16 %v8257, %v8257
        %v8290 = vpack.c.bf16 %v8258, %v8258
        %v8291 = vpack.c.bf16 %v8259, %v8259
        %v8292 = vpack.c.bf16 %v8260, %v8260
        %v8293 = vpack.c.bf16 %v8261, %v8261
        %v8294 = vpack.c.bf16 %v8262, %v8262
        %v8295 = vpack.c.bf16 %v8263, %v8263
        %v8296 = vpack.c.bf16 %v8264, %v8264
        %v8297 = vpack.c.bf16 %v8265, %v8265
        %v8298 = vpack.c.bf16 %v8266, %v8266
        %8299 = vst [vmem:[#allocation3 + $0xc] sm:$0xf] %v8267
        %8300 = vst [vmem:[#allocation3 + $0x20] sm:$0xf] %v8268
        %8301 = vst [vmem:[#allocation3 + $0x34] sm:$0xf] %v8269
        %8302 = vst [vmem:[#allocation3 + $0x48] sm:$0xf] %v8270
        %8303 = vst [vmem:[#allocation3 + $0x5c] sm:$0xf] %v8271
        %8304 = vst [vmem:[#allocation3 + $0x70] sm:$0xf] %v8272
        %8305 = vst [vmem:[#allocation3 + $0x84] sm:$0xf] %v8273
        %8306 = vst [vmem:[#allocation3 + $0x98] sm:$0xf] %v8274
        %8307 = vst [vmem:[#allocation3 + $0xac] sm:$0xf] %v8275
        %8308 = vst [vmem:[#allocation3 + $0xc0] sm:$0xf] %v8276
        %8309 = vst [vmem:[#allocation3 + $0xd4] sm:$0xf] %v8277
        %8310 = vst [vmem:[#allocation3 + $0xe8] sm:$0xf] %v8278
        %8311 = vst [vmem:[#allocation3 + $0xfc] sm:$0xf] %v8279
        %8312 = vst [vmem:[#allocation3 + $0x110] sm:$0xf] %v8280
        %8313 = vst [vmem:[#allocation3 + $0x124] sm:$0xf] %v8281
        %8314 = vst [vmem:[#allocation3 + $0x138] sm:$0xf] %v8282
        %8315 = vst [vmem:[#allocation3 + $0x14c] sm:$0xf] %v8283
        %8316 = vst [vmem:[#allocation3 + $0x160] sm:$0xf] %v8284
        %8317 = vst [vmem:[#allocation3 + $0x174] sm:$0xf] %v8285
        %8318 = vst [vmem:[#allocation3 + $0x188] sm:$0xf] %v8286
        %8319 = vst [vmem:[#allocation3 + $0x19c] sm:$0xf] %v8287
        %8320 = vst [vmem:[#allocation3 + $0x1b0] sm:$0xf] %v8288
        %8321 = vst [vmem:[#allocation3 + $0x1c4] sm:$0xf] %v8289
        %8322 = vst [vmem:[#allocation3 + $0x1d8] sm:$0xf] %v8290
        %8323 = vst [vmem:[#allocation3 + $0x1ec] sm:$0xf] %v8291
        %8324 = vst [vmem:[#allocation3 + $0x200] sm:$0xf] %v8292
        %8325 = vst [vmem:[#allocation3 + $0x214] sm:$0xf] %v8293
        %8326 = vst [vmem:[#allocation3 + $0x228] sm:$0xf] %v8294
        %8327 = vst [vmem:[#allocation3 + $0x23c] sm:$0xf] %v8295
        %8328 = vst [vmem:[#allocation3 + $0x250] sm:$0xf] %v8296
        %8329 = vst [vmem:[#allocation3 + $0x264] sm:$0xf] %v8297
        %8330 = vst [vmem:[#allocation3 + $0x278] sm:$0xf] %v8298
        %v8331 = vld [vmem:[%s1233 + $0x2] sm:$0xff]
        %v8332 = vld [vmem:[%s1233 + $0xa] sm:$0xff]
        %v8333 = vld [vmem:[%s1233 + $0x1a] sm:$0xff]
        %v8334 = vld [vmem:[%s1233 + $0x22] sm:$0xff]
        %v8335 = vld [vmem:[%s1233 + $0x32] sm:$0xff]
        %v8336 = vld [vmem:[%s1233 + $0x3a] sm:$0xff]
        %v8337 = vld [vmem:[%s1233 + $0x4a] sm:$0xff]
        %v8338 = vld [vmem:[%s1233 + $0x52] sm:$0xff]
        %v8339 = vld [vmem:[%s1233 + $0x62] sm:$0xff]
        %v8340 = vld [vmem:[%s1233 + $0x6a] sm:$0xff]
        %v8341 = vld [vmem:[%s1233 + $0x7a] sm:$0xff]
        %v8342 = vld [vmem:[%s1233 + $0x82] sm:$0xff]
        %v8343 = vld [vmem:[%s1233 + $0x92] sm:$0xff]
        %v8344 = vld [vmem:[%s1233 + $0x9a] sm:$0xff]
        %v8345 = vld [vmem:[%s1233 + $0xaa] sm:$0xff]
        %v8346 = vld [vmem:[%s1233 + $0xb2] sm:$0xff]
        %v8347 = vld [vmem:[%s1233 + $0xc2] sm:$0xff]
        %v8348 = vld [vmem:[%s1233 + $0xca] sm:$0xff]
        %v8349 = vld [vmem:[%s1233 + $0xda] sm:$0xff]
        %v8350 = vld [vmem:[%s1233 + $0xe2] sm:$0xff]
        %v8351 = vld [vmem:[%s1233 + $0xf2] sm:$0xff]
        %v8352 = vld [vmem:[%s1233 + $0xfa] sm:$0xff]
        %v8353 = vld [vmem:[%s1233 + $0x10a] sm:$0xff]
        %v8354 = vld [vmem:[%s1233 + $0x112] sm:$0xff]
        %v8355 = vld [vmem:[%s1233 + $0x122] sm:$0xff]
        %v8356 = vld [vmem:[%s1233 + $0x12a] sm:$0xff]
        %v8357 = vld [vmem:[%s1233 + $0x13a] sm:$0xff]
        %v8358 = vld [vmem:[%s1233 + $0x142] sm:$0xff]
        %v8359 = vld [vmem:[%s1233 + $0x152] sm:$0xff]
        %v8360 = vld [vmem:[%s1233 + $0x15a] sm:$0xff]
        %v8361 = vld [vmem:[%s1233 + $0x16a] sm:$0xff]
        %v8362 = vld [vmem:[%s1233 + $0x172] sm:$0xff]
        %8395 = vrot.lane.b32.xlu0 %v7179, 64
        %v8396 = vpop.permute.xlu0 %8395
        %8397 = vrot.lane.b32.xlu0 %v7180, 64
        %v8398 = vpop.permute.xlu0 %8397
        %8399 = vrot.lane.b32.xlu0 %v7181, 64
        %v8400 = vpop.permute.xlu0 %8399
        %8401 = vrot.lane.b32.xlu0 %v7182, 64
        %v8402 = vpop.permute.xlu0 %8401
        %8403 = vrot.lane.b32.xlu0 %v7183, 64
        %v8404 = vpop.permute.xlu0 %8403
        %8405 = vrot.lane.b32.xlu0 %v7184, 64
        %v8406 = vpop.permute.xlu0 %8405
        %8407 = vrot.lane.b32.xlu0 %v7185, 64
        %v8408 = vpop.permute.xlu0 %8407
        %8409 = vrot.lane.b32.xlu0 %v7186, 64
        %v8410 = vpop.permute.xlu0 %8409
        %8411 = vrot.lane.b32.xlu0 %v7187, 64
        %v8412 = vpop.permute.xlu0 %8411
        %8413 = vrot.lane.b32.xlu0 %v7188, 64
        %v8414 = vpop.permute.xlu0 %8413
        %8415 = vrot.lane.b32.xlu0 %v7189, 64
        %v8416 = vpop.permute.xlu0 %8415
        %8417 = vrot.lane.b32.xlu0 %v7190, 64
        %v8418 = vpop.permute.xlu0 %8417
        %8419 = vrot.lane.b32.xlu0 %v7191, 64
        %v8420 = vpop.permute.xlu0 %8419
        %8421 = vrot.lane.b32.xlu0 %v7192, 64
        %v8422 = vpop.permute.xlu0 %8421
        %8423 = vrot.lane.b32.xlu0 %v7193, 64
        %v8424 = vpop.permute.xlu0 %8423
        %8425 = vrot.lane.b32.xlu0 %v7194, 64
        %v8426 = vpop.permute.xlu0 %8425
        %8427 = vrot.lane.b32.xlu0 %v7195, 64
        %v8428 = vpop.permute.xlu0 %8427
        %8429 = vrot.lane.b32.xlu0 %v7196, 64
        %v8430 = vpop.permute.xlu0 %8429
        %8431 = vrot.lane.b32.xlu0 %v7197, 64
        %v8432 = vpop.permute.xlu0 %8431
        %8433 = vrot.lane.b32.xlu0 %v7198, 64
        %v8434 = vpop.permute.xlu0 %8433
        %8435 = vrot.lane.b32.xlu0 %v7199, 64
        %v8436 = vpop.permute.xlu0 %8435
        %8437 = vrot.lane.b32.xlu0 %v7200, 64
        %v8438 = vpop.permute.xlu0 %8437
        %8439 = vrot.lane.b32.xlu0 %v7201, 64
        %v8440 = vpop.permute.xlu0 %8439
        %8441 = vrot.lane.b32.xlu0 %v7202, 64
        %v8442 = vpop.permute.xlu0 %8441
        %8443 = vrot.lane.b32.xlu0 %v7203, 64
        %v8444 = vpop.permute.xlu0 %8443
        %8445 = vrot.lane.b32.xlu0 %v7204, 64
        %v8446 = vpop.permute.xlu0 %8445
        %8447 = vrot.lane.b32.xlu0 %v7205, 64
        %v8448 = vpop.permute.xlu0 %8447
        %8449 = vrot.lane.b32.xlu0 %v7206, 64
        %v8450 = vpop.permute.xlu0 %8449
        %8451 = vrot.lane.b32.xlu0 %v7207, 64
        %v8452 = vpop.permute.xlu0 %8451
        %8453 = vrot.lane.b32.xlu0 %v7208, 64
        %v8454 = vpop.permute.xlu0 %8453
        %8455 = vrot.lane.b32.xlu0 %v7209, 64
        %v8456 = vpop.permute.xlu0 %8455
        %8457 = vrot.lane.b32.xlu0 %v7210, 64
        %v8458 = vpop.permute.xlu0 %8457
        %v8491 = vsel %vm294, %v8331, %v8396
        %v8492 = vsel %vm294, %v8332, %v8398
        %v8493 = vsel %vm294, %v8333, %v8400
        %v8494 = vsel %vm294, %v8334, %v8402
        %v8495 = vsel %vm294, %v8335, %v8404
        %v8496 = vsel %vm294, %v8336, %v8406
        %v8497 = vsel %vm294, %v8337, %v8408
        %v8498 = vsel %vm294, %v8338, %v8410
        %v8499 = vsel %vm294, %v8339, %v8412
        %v8500 = vsel %vm294, %v8340, %v8414
        %v8501 = vsel %vm294, %v8341, %v8416
        %v8502 = vsel %vm294, %v8342, %v8418
        %v8503 = vsel %vm294, %v8343, %v8420
        %v8504 = vsel %vm294, %v8344, %v8422
        %v8505 = vsel %vm294, %v8345, %v8424
        %v8506 = vsel %vm294, %v8346, %v8426
        %v8507 = vsel %vm294, %v8347, %v8428
        %v8508 = vsel %vm294, %v8348, %v8430
        %v8509 = vsel %vm294, %v8349, %v8432
        %v8510 = vsel %vm294, %v8350, %v8434
        %v8511 = vsel %vm294, %v8351, %v8436
        %v8512 = vsel %vm294, %v8352, %v8438
        %v8513 = vsel %vm294, %v8353, %v8440
        %v8514 = vsel %vm294, %v8354, %v8442
        %v8515 = vsel %vm294, %v8355, %v8444
        %v8516 = vsel %vm294, %v8356, %v8446
        %v8517 = vsel %vm294, %v8357, %v8448
        %v8518 = vsel %vm294, %v8358, %v8450
        %v8519 = vsel %vm294, %v8359, %v8452
        %v8520 = vsel %vm294, %v8360, %v8454
        %v8521 = vsel %vm294, %v8361, %v8456
        %v8522 = vsel %vm294, %v8362, %v8458
        %v8523 = vpack.c.bf16 %v8491, %v8491
        %v8524 = vpack.c.bf16 %v8492, %v8492
        %v8525 = vpack.c.bf16 %v8493, %v8493
        %v8526 = vpack.c.bf16 %v8494, %v8494
        %v8527 = vpack.c.bf16 %v8495, %v8495
        %v8528 = vpack.c.bf16 %v8496, %v8496
        %v8529 = vpack.c.bf16 %v8497, %v8497
        %v8530 = vpack.c.bf16 %v8498, %v8498
        %v8531 = vpack.c.bf16 %v8499, %v8499
        %v8532 = vpack.c.bf16 %v8500, %v8500
        %v8533 = vpack.c.bf16 %v8501, %v8501
        %v8534 = vpack.c.bf16 %v8502, %v8502
        %v8535 = vpack.c.bf16 %v8503, %v8503
        %v8536 = vpack.c.bf16 %v8504, %v8504
        %v8537 = vpack.c.bf16 %v8505, %v8505
        %v8538 = vpack.c.bf16 %v8506, %v8506
        %v8539 = vpack.c.bf16 %v8507, %v8507
        %v8540 = vpack.c.bf16 %v8508, %v8508
        %v8541 = vpack.c.bf16 %v8509, %v8509
        %v8542 = vpack.c.bf16 %v8510, %v8510
        %v8543 = vpack.c.bf16 %v8511, %v8511
        %v8544 = vpack.c.bf16 %v8512, %v8512
        %v8545 = vpack.c.bf16 %v8513, %v8513
        %v8546 = vpack.c.bf16 %v8514, %v8514
        %v8547 = vpack.c.bf16 %v8515, %v8515
        %v8548 = vpack.c.bf16 %v8516, %v8516
        %v8549 = vpack.c.bf16 %v8517, %v8517
        %v8550 = vpack.c.bf16 %v8518, %v8518
        %v8551 = vpack.c.bf16 %v8519, %v8519
        %v8552 = vpack.c.bf16 %v8520, %v8520
        %v8553 = vpack.c.bf16 %v8521, %v8521
        %v8554 = vpack.c.bf16 %v8522, %v8522
        %8555 = vst [vmem:[#allocation3 + $0x10] sm:$0xf] %v8523
        %8556 = vst [vmem:[#allocation3 + $0x24] sm:$0xf] %v8524
        %8557 = vst [vmem:[#allocation3 + $0x38] sm:$0xf] %v8525
        %8558 = vst [vmem:[#allocation3 + $0x4c] sm:$0xf] %v8526
        %8559 = vst [vmem:[#allocation3 + $0x60] sm:$0xf] %v8527
        %8560 = vst [vmem:[#allocation3 + $0x74] sm:$0xf] %v8528
        %8561 = vst [vmem:[#allocation3 + $0x88] sm:$0xf] %v8529
        %8562 = vst [vmem:[#allocation3 + $0x9c] sm:$0xf] %v8530
        %8563 = vst [vmem:[#allocation3 + $0xb0] sm:$0xf] %v8531
        %8564 = vst [vmem:[#allocation3 + $0xc4] sm:$0xf] %v8532
        %8565 = vst [vmem:[#allocation3 + $0xd8] sm:$0xf] %v8533
        %8566 = vst [vmem:[#allocation3 + $0xec] sm:$0xf] %v8534
        %8567 = vst [vmem:[#allocation3 + $0x100] sm:$0xf] %v8535
        %8568 = vst [vmem:[#allocation3 + $0x114] sm:$0xf] %v8536
        %8569 = vst [vmem:[#allocation3 + $0x128] sm:$0xf] %v8537
        %8570 = vst [vmem:[#allocation3 + $0x13c] sm:$0xf] %v8538
        %8571 = vst [vmem:[#allocation3 + $0x150] sm:$0xf] %v8539
        %8572 = vst [vmem:[#allocation3 + $0x164] sm:$0xf] %v8540
        %8573 = vst [vmem:[#allocation3 + $0x178] sm:$0xf] %v8541
        %8574 = vst [vmem:[#allocation3 + $0x18c] sm:$0xf] %v8542
        %8575 = vst [vmem:[#allocation3 + $0x1a0] sm:$0xf] %v8543
        %8576 = vst [vmem:[#allocation3 + $0x1b4] sm:$0xf] %v8544
        %8577 = vst [vmem:[#allocation3 + $0x1c8] sm:$0xf] %v8545
        %8578 = vst [vmem:[#allocation3 + $0x1dc] sm:$0xf] %v8546
        %8579 = vst [vmem:[#allocation3 + $0x1f0] sm:$0xf] %v8547
        %8580 = vst [vmem:[#allocation3 + $0x204] sm:$0xf] %v8548
        %8581 = vst [vmem:[#allocation3 + $0x218] sm:$0xf] %v8549
        %8582 = vst [vmem:[#allocation3 + $0x22c] sm:$0xf] %v8550
        %8583 = vst [vmem:[#allocation3 + $0x240] sm:$0xf] %v8551
        %8584 = vst [vmem:[#allocation3 + $0x254] sm:$0xf] %v8552
        %8585 = vst [vmem:[#allocation3 + $0x268] sm:$0xf] %v8553
        %8586 = vst [vmem:[#allocation3 + $0x27c] sm:$0xf] %v8554
        %v8587 = vld [vmem:[#allocation3] sm:$0xff]
        %v8588 = vld [vmem:[#allocation3 + $0x8] sm:$0xff]
        %v8589 = vld [vmem:[#allocation3 + $0x10] sm:$0xf]
        %v8590 = vld [vmem:[#allocation3 + $0x14] sm:$0xff]
        %v8591 = vld [vmem:[#allocation3 + $0x1c] sm:$0xff]
        %v8592 = vld [vmem:[#allocation3 + $0x24] sm:$0xf]
        %v8593 = vld [vmem:[#allocation3 + $0x28] sm:$0xff]
        %v8594 = vld [vmem:[#allocation3 + $0x30] sm:$0xff]
        %v8595 = vld [vmem:[#allocation3 + $0x38] sm:$0xf]
        %v8596 = vld [vmem:[#allocation3 + $0x3c] sm:$0xff]
        %v8597 = vld [vmem:[#allocation3 + $0x44] sm:$0xff]
        %v8598 = vld [vmem:[#allocation3 + $0x4c] sm:$0xf]
        %v8599 = vld [vmem:[#allocation3 + $0x50] sm:$0xff]
        %v8600 = vld [vmem:[#allocation3 + $0x58] sm:$0xff]
        %v8601 = vld [vmem:[#allocation3 + $0x60] sm:$0xf]
        %v8602 = vld [vmem:[#allocation3 + $0x64] sm:$0xff]
        %v8603 = vld [vmem:[#allocation3 + $0x6c] sm:$0xff]
        %v8604 = vld [vmem:[#allocation3 + $0x74] sm:$0xf]
        %v8605 = vld [vmem:[#allocation3 + $0x78] sm:$0xff]
        %v8606 = vld [vmem:[#allocation3 + $0x80] sm:$0xff]
        %v8607 = vld [vmem:[#allocation3 + $0x88] sm:$0xf]
        %v8608 = vld [vmem:[#allocation3 + $0x8c] sm:$0xff]
        %v8609 = vld [vmem:[#allocation3 + $0x94] sm:$0xff]
        %v8610 = vld [vmem:[#allocation3 + $0x9c] sm:$0xf]
        %v8611 = vld [vmem:[#allocation3 + $0xa0] sm:$0xff]
        %v8612 = vld [vmem:[#allocation3 + $0xa8] sm:$0xff]
        %v8613 = vld [vmem:[#allocation3 + $0xb0] sm:$0xf]
        %v8614 = vld [vmem:[#allocation3 + $0xb4] sm:$0xff]
        %v8615 = vld [vmem:[#allocation3 + $0xbc] sm:$0xff]
        %v8616 = vld [vmem:[#allocation3 + $0xc4] sm:$0xf]
        %v8617 = vld [vmem:[#allocation3 + $0xc8] sm:$0xff]
        %v8618 = vld [vmem:[#allocation3 + $0xd0] sm:$0xff]
        %v8619 = vld [vmem:[#allocation3 + $0xd8] sm:$0xf]
        %v8620 = vld [vmem:[#allocation3 + $0xdc] sm:$0xff]
        %v8621 = vld [vmem:[#allocation3 + $0xe4] sm:$0xff]
        %v8622 = vld [vmem:[#allocation3 + $0xec] sm:$0xf]
        %v8623 = vld [vmem:[#allocation3 + $0xf0] sm:$0xff]
        %v8624 = vld [vmem:[#allocation3 + $0xf8] sm:$0xff]
        %v8625 = vld [vmem:[#allocation3 + $0x100] sm:$0xf]
        %v8626 = vld [vmem:[#allocation3 + $0x104] sm:$0xff]
        %v8627 = vld [vmem:[#allocation3 + $0x10c] sm:$0xff]
        %v8628 = vld [vmem:[#allocation3 + $0x114] sm:$0xf]
        %v8629 = vld [vmem:[#allocation3 + $0x118] sm:$0xff]
        %v8630 = vld [vmem:[#allocation3 + $0x120] sm:$0xff]
        %v8631 = vld [vmem:[#allocation3 + $0x128] sm:$0xf]
        %v8632 = vld [vmem:[#allocation3 + $0x12c] sm:$0xff]
        %v8633 = vld [vmem:[#allocation3 + $0x134] sm:$0xff]
        %v8634 = vld [vmem:[#allocation3 + $0x13c] sm:$0xf]
        %v8635 = vld [vmem:[#allocation3 + $0x140] sm:$0xff]
        %v8636 = vld [vmem:[#allocation3 + $0x148] sm:$0xff]
        %v8637 = vld [vmem:[#allocation3 + $0x150] sm:$0xf]
        %v8638 = vld [vmem:[#allocation3 + $0x154] sm:$0xff]
        %v8639 = vld [vmem:[#allocation3 + $0x15c] sm:$0xff]
        %v8640 = vld [vmem:[#allocation3 + $0x164] sm:$0xf]
        %v8641 = vld [vmem:[#allocation3 + $0x168] sm:$0xff]
        %v8642 = vld [vmem:[#allocation3 + $0x170] sm:$0xff]
        %v8643 = vld [vmem:[#allocation3 + $0x178] sm:$0xf]
        %v8644 = vld [vmem:[#allocation3 + $0x17c] sm:$0xff]
        %v8645 = vld [vmem:[#allocation3 + $0x184] sm:$0xff]
        %v8646 = vld [vmem:[#allocation3 + $0x18c] sm:$0xf]
        %v8647 = vld [vmem:[#allocation3 + $0x190] sm:$0xff]
        %v8648 = vld [vmem:[#allocation3 + $0x198] sm:$0xff]
        %v8649 = vld [vmem:[#allocation3 + $0x1a0] sm:$0xf]
        %v8650 = vld [vmem:[#allocation3 + $0x1a4] sm:$0xff]
        %v8651 = vld [vmem:[#allocation3 + $0x1ac] sm:$0xff]
        %v8652 = vld [vmem:[#allocation3 + $0x1b4] sm:$0xf]
        %v8653 = vld [vmem:[#allocation3 + $0x1b8] sm:$0xff]
        %v8654 = vld [vmem:[#allocation3 + $0x1c0] sm:$0xff]
        %v8655 = vld [vmem:[#allocation3 + $0x1c8] sm:$0xf]
        %v8656 = vld [vmem:[#allocation3 + $0x1cc] sm:$0xff]
        %v8657 = vld [vmem:[#allocation3 + $0x1d4] sm:$0xff]
        %v8658 = vld [vmem:[#allocation3 + $0x1dc] sm:$0xf]
        %v8659 = vld [vmem:[#allocation3 + $0x1e0] sm:$0xff]
        %v8660 = vld [vmem:[#allocation3 + $0x1e8] sm:$0xff]
        %v8661 = vld [vmem:[#allocation3 + $0x1f0] sm:$0xf]
        %v8662 = vld [vmem:[#allocation3 + $0x1f4] sm:$0xff]
        %v8663 = vld [vmem:[#allocation3 + $0x1fc] sm:$0xff]
        %v8664 = vld [vmem:[#allocation3 + $0x204] sm:$0xf]
        %v8665 = vld [vmem:[#allocation3 + $0x208] sm:$0xff]
        %v8666 = vld [vmem:[#allocation3 + $0x210] sm:$0xff]
        %v8667 = vld [vmem:[#allocation3 + $0x218] sm:$0xf]
        %v8668 = vld [vmem:[#allocation3 + $0x21c] sm:$0xff]
        %v8669 = vld [vmem:[#allocation3 + $0x224] sm:$0xff]
        %v8670 = vld [vmem:[#allocation3 + $0x22c] sm:$0xf]
        %v8671 = vld [vmem:[#allocation3 + $0x230] sm:$0xff]
        %v8672 = vld [vmem:[#allocation3 + $0x238] sm:$0xff]
        %v8673 = vld [vmem:[#allocation3 + $0x240] sm:$0xf]
        %v8674 = vld [vmem:[#allocation3 + $0x244] sm:$0xff]
        %v8675 = vld [vmem:[#allocation3 + $0x24c] sm:$0xff]
        %v8676 = vld [vmem:[#allocation3 + $0x254] sm:$0xf]
        %v8677 = vld [vmem:[#allocation3 + $0x258] sm:$0xff]
        %v8678 = vld [vmem:[#allocation3 + $0x260] sm:$0xff]
        %v8679 = vld [vmem:[#allocation3 + $0x268] sm:$0xf]
        %v8680 = vld [vmem:[#allocation3 + $0x26c] sm:$0xff]
        %v8681 = vld [vmem:[#allocation3 + $0x274] sm:$0xff]
        %v8682 = vld [vmem:[#allocation3 + $0x27c] sm:$0xf]
        %v8683 = vld [vmem:[%s5] sm:$0xf]
        %v8684 = vld [vmem:[%s5 + $0x4] sm:$0xf]
        %v8685 = vld [vmem:[%s5 + $0x8] sm:$0xf]
        %v8686 = vld [vmem:[%s5 + $0xc] sm:$0xf]
        %v8687 = vld [vmem:[%s5 + $0x10] sm:$0xf]
        %v8688 = vld [vmem:[%s5 + $0x14] sm:$0xf]
        %v8689 = vld [vmem:[%s5 + $0x18] sm:$0xf]
        %v8690 = vld [vmem:[%s5 + $0x1c] sm:$0xf]
        %v8691 = vld [vmem:[%s5 + $0x20] sm:$0xf]
        %v8692 = vld [vmem:[%s5 + $0x24] sm:$0xf]
        %v8693 = vld [vmem:[%s5 + $0x28] sm:$0xf]
        %v8694 = vld [vmem:[%s5 + $0x2c] sm:$0xf]
        %v8695 = vld [vmem:[%s5 + $0x30] sm:$0xf]
        %v8696 = vld [vmem:[%s5 + $0x34] sm:$0xf]
        %v8697 = vld [vmem:[%s5 + $0x38] sm:$0xf]
        %v8698 = vld [vmem:[%s5 + $0x3c] sm:$0xf]
        %v8699 = vld [vmem:[%s5 + $0x40] sm:$0xf]
        %v8700 = vld [vmem:[%s5 + $0x44] sm:$0xf]
        %v8701 = vld [vmem:[%s5 + $0x48] sm:$0xf]
        %v8702 = vld [vmem:[%s5 + $0x4c] sm:$0xf]
        %v8703 = vld [vmem:[%s5 + $0x50] sm:$0xf]
        %v8704 = vld [vmem:[%s5 + $0x54] sm:$0xf]
        %v8705 = vld [vmem:[%s5 + $0x58] sm:$0xf]
        %v8706 = vld [vmem:[%s5 + $0x5c] sm:$0xf]
        %v8707 = vld [vmem:[%s5 + $0x60] sm:$0xf]
        %v8708 = vld [vmem:[%s5 + $0x64] sm:$0xf]
        %v8709 = vld [vmem:[%s5 + $0x68] sm:$0xf]
        %v8710 = vld [vmem:[%s5 + $0x6c] sm:$0xf]
        %v8711 = vld [vmem:[%s5 + $0x70] sm:$0xf]
        %v8712 = vld [vmem:[%s5 + $0x74] sm:$0xf]
        %v8713 = vld [vmem:[%s5 + $0x78] sm:$0xf]
        %v8714 = vld [vmem:[%s5 + $0x7c] sm:$0xf]
        %v8715 = vld [vmem:[%s5 + $0x80] sm:$0xf]
        %v8716 = vld [vmem:[%s5 + $0x84] sm:$0xf]
        %v8717 = vld [vmem:[%s5 + $0x88] sm:$0xf]
        %v8718 = vld [vmem:[%s5 + $0x8c] sm:$0xf]
        %v8719 = vld [vmem:[%s5 + $0x90] sm:$0xf]
        %v8720 = vld [vmem:[%s5 + $0x94] sm:$0xf]
        %v8721 = vld [vmem:[%s5 + $0x98] sm:$0xf]
        %v8722 = vld [vmem:[%s5 + $0x9c] sm:$0xf]
        %v8723 = vld [vmem:[%s5 + $0xa0] sm:$0xf]
        %v8724 = vld [vmem:[%s5 + $0xa4] sm:$0xf]
        %v8725 = vld [vmem:[%s5 + $0xa8] sm:$0xf]
        %v8726 = vld [vmem:[%s5 + $0xac] sm:$0xf]
        %v8727 = vld [vmem:[%s5 + $0xb0] sm:$0xf]
        %v8728 = vld [vmem:[%s5 + $0xb4] sm:$0xf]
        %v8729 = vld [vmem:[%s5 + $0xb8] sm:$0xf]
        %v8730 = vld [vmem:[%s5 + $0xbc] sm:$0xf]
        %v8731 = vld [vmem:[%s5 + $0xc0] sm:$0xf]
        %v8732 = vld [vmem:[%s5 + $0xc4] sm:$0xf]
        %v8733 = vld [vmem:[%s5 + $0xc8] sm:$0xf]
        %v8734 = vld [vmem:[%s5 + $0xcc] sm:$0xf]
        %v8735 = vld [vmem:[%s5 + $0xd0] sm:$0xf]
        %v8736 = vld [vmem:[%s5 + $0xd4] sm:$0xf]
        %v8737 = vld [vmem:[%s5 + $0xd8] sm:$0xf]
        %v8738 = vld [vmem:[%s5 + $0xdc] sm:$0xf]
        %v8739 = vld [vmem:[%s5 + $0xe0] sm:$0xf]
        %v8740 = vld [vmem:[%s5 + $0xe4] sm:$0xf]
        %v8741 = vld [vmem:[%s5 + $0xe8] sm:$0xf]
        %v8742 = vld [vmem:[%s5 + $0xec] sm:$0xf]
        %v8743 = vld [vmem:[%s5 + $0xf0] sm:$0xf]
        %v8744 = vld [vmem:[%s5 + $0xf4] sm:$0xf]
        %v8745 = vld [vmem:[%s5 + $0xf8] sm:$0xf]
        %v8746 = vld [vmem:[%s5 + $0xfc] sm:$0xf]
        %v8747 = vld [vmem:[%s5 + $0x100] sm:$0xf]
        %v8748 = vld [vmem:[%s5 + $0x104] sm:$0xf]
        %v8749 = vld [vmem:[%s5 + $0x108] sm:$0xf]
        %v8750 = vld [vmem:[%s5 + $0x10c] sm:$0xf]
        %v8751 = vld [vmem:[%s5 + $0x110] sm:$0xf]
        %v8752 = vld [vmem:[%s5 + $0x114] sm:$0xf]
        %v8753 = vld [vmem:[%s5 + $0x118] sm:$0xf]
        %v8754 = vld [vmem:[%s5 + $0x11c] sm:$0xf]
        %v8755 = vld [vmem:[%s5 + $0x120] sm:$0xf]
        %v8756 = vld [vmem:[%s5 + $0x124] sm:$0xf]
        %v8757 = vld [vmem:[%s5 + $0x128] sm:$0xf]
        %v8758 = vld [vmem:[%s5 + $0x12c] sm:$0xf]
        %v8759 = vld [vmem:[%s5 + $0x130] sm:$0xf]
        %v8760 = vld [vmem:[%s5 + $0x134] sm:$0xf]
        %v8761 = vld [vmem:[%s5 + $0x138] sm:$0xf]
        %v8762 = vld [vmem:[%s5 + $0x13c] sm:$0xf]
        %v8763 = vld [vmem:[%s6] sm:$0x1]
        %v8765 = vperm.slane %v8763, 0
        %v8863 = vunpack.c.l.b16 %v8587
        %v8864 = vunpack.c.h.b16 %v8587
        %v8865 = vunpack.c.l.b16 %v8588
        %v8866 = vunpack.c.h.b16 %v8588
        %v8867 = vunpack.c.l.b16 %v8589
        %v8868 = vunpack.c.l.b16 %v8590
        %v8869 = vunpack.c.h.b16 %v8590
        %v8870 = vunpack.c.l.b16 %v8591
        %v8871 = vunpack.c.h.b16 %v8591
        %v8872 = vunpack.c.l.b16 %v8592
        %v8873 = vunpack.c.l.b16 %v8593
        %v8874 = vunpack.c.h.b16 %v8593
        %v8875 = vunpack.c.l.b16 %v8594
        %v8876 = vunpack.c.h.b16 %v8594
        %v8877 = vunpack.c.l.b16 %v8595
        %v8878 = vunpack.c.l.b16 %v8596
        %v8879 = vunpack.c.h.b16 %v8596
        %v8880 = vunpack.c.l.b16 %v8597
        %v8881 = vunpack.c.h.b16 %v8597
        %v8882 = vunpack.c.l.b16 %v8598
        %v8883 = vunpack.c.l.b16 %v8599
        %v8884 = vunpack.c.h.b16 %v8599
        %v8885 = vunpack.c.l.b16 %v8600
        %v8886 = vunpack.c.h.b16 %v8600
        %v8887 = vunpack.c.l.b16 %v8601
        %v8888 = vunpack.c.l.b16 %v8602
        %v8889 = vunpack.c.h.b16 %v8602
        %v8890 = vunpack.c.l.b16 %v8603
        %v8891 = vunpack.c.h.b16 %v8603
        %v8892 = vunpack.c.l.b16 %v8604
        %v8893 = vunpack.c.l.b16 %v8605
        %v8894 = vunpack.c.h.b16 %v8605
        %v8895 = vunpack.c.l.b16 %v8606
        %v8896 = vunpack.c.h.b16 %v8606
        %v8897 = vunpack.c.l.b16 %v8607
        %v8898 = vunpack.c.l.b16 %v8608
        %v8899 = vunpack.c.h.b16 %v8608
        %v8900 = vunpack.c.l.b16 %v8609
        %v8901 = vunpack.c.h.b16 %v8609
        %v8902 = vunpack.c.l.b16 %v8610
        %v8903 = vunpack.c.l.b16 %v8611
        %v8904 = vunpack.c.h.b16 %v8611
        %v8905 = vunpack.c.l.b16 %v8612
        %v8906 = vunpack.c.h.b16 %v8612
        %v8907 = vunpack.c.l.b16 %v8613
        %v8908 = vunpack.c.l.b16 %v8614
        %v8909 = vunpack.c.h.b16 %v8614
        %v8910 = vunpack.c.l.b16 %v8615
        %v8911 = vunpack.c.h.b16 %v8615
        %v8912 = vunpack.c.l.b16 %v8616
        %v8913 = vunpack.c.l.b16 %v8617
        %v8914 = vunpack.c.h.b16 %v8617
        %v8915 = vunpack.c.l.b16 %v8618
        %v8916 = vunpack.c.h.b16 %v8618
        %v8917 = vunpack.c.l.b16 %v8619
        %v8918 = vunpack.c.l.b16 %v8620
        %v8919 = vunpack.c.h.b16 %v8620
        %v8920 = vunpack.c.l.b16 %v8621
        %v8921 = vunpack.c.h.b16 %v8621
        %v8922 = vunpack.c.l.b16 %v8622
        %v8923 = vunpack.c.l.b16 %v8623
        %v8924 = vunpack.c.h.b16 %v8623
        %v8925 = vunpack.c.l.b16 %v8624
        %v8926 = vunpack.c.h.b16 %v8624
        %v8927 = vunpack.c.l.b16 %v8625
        %v8928 = vunpack.c.l.b16 %v8626
        %v8929 = vunpack.c.h.b16 %v8626
        %v8930 = vunpack.c.l.b16 %v8627
        %v8931 = vunpack.c.h.b16 %v8627
        %v8932 = vunpack.c.l.b16 %v8628
        %v8933 = vunpack.c.l.b16 %v8629
        %v8934 = vunpack.c.h.b16 %v8629
        %v8935 = vunpack.c.l.b16 %v8630
        %v8936 = vunpack.c.h.b16 %v8630
        %v8937 = vunpack.c.l.b16 %v8631
        %v8938 = vunpack.c.l.b16 %v8632
        %v8939 = vunpack.c.h.b16 %v8632
        %v8940 = vunpack.c.l.b16 %v8633
        %v8941 = vunpack.c.h.b16 %v8633
        %v8942 = vunpack.c.l.b16 %v8634
        %v8943 = vunpack.c.l.b16 %v8635
        %v8944 = vunpack.c.h.b16 %v8635
        %v8945 = vunpack.c.l.b16 %v8636
        %v8946 = vunpack.c.h.b16 %v8636
        %v8947 = vunpack.c.l.b16 %v8637
        %v8948 = vunpack.c.l.b16 %v8638
        %v8949 = vunpack.c.h.b16 %v8638
        %v8950 = vunpack.c.l.b16 %v8639
        %v8951 = vunpack.c.h.b16 %v8639
        %v8952 = vunpack.c.l.b16 %v8640
        %v8953 = vunpack.c.l.b16 %v8641
        %v8954 = vunpack.c.h.b16 %v8641
        %v8955 = vunpack.c.l.b16 %v8642
        %v8956 = vunpack.c.h.b16 %v8642
        %v8957 = vunpack.c.l.b16 %v8643
        %v8958 = vunpack.c.l.b16 %v8644
        %v8959 = vunpack.c.h.b16 %v8644
        %v8960 = vunpack.c.l.b16 %v8645
        %v8961 = vunpack.c.h.b16 %v8645
        %v8962 = vunpack.c.l.b16 %v8646
        %v8963 = vunpack.c.l.b16 %v8647
        %v8964 = vunpack.c.h.b16 %v8647
        %v8965 = vunpack.c.l.b16 %v8648
        %v8966 = vunpack.c.h.b16 %v8648
        %v8967 = vunpack.c.l.b16 %v8649
        %v8968 = vunpack.c.l.b16 %v8650
        %v8969 = vunpack.c.h.b16 %v8650
        %v8970 = vunpack.c.l.b16 %v8651
        %v8971 = vunpack.c.h.b16 %v8651
        %v8972 = vunpack.c.l.b16 %v8652
        %v8973 = vunpack.c.l.b16 %v8653
        %v8974 = vunpack.c.h.b16 %v8653
        %v8975 = vunpack.c.l.b16 %v8654
        %v8976 = vunpack.c.h.b16 %v8654
        %v8977 = vunpack.c.l.b16 %v8655
        %v8978 = vunpack.c.l.b16 %v8656
        %v8979 = vunpack.c.h.b16 %v8656
        %v8980 = vunpack.c.l.b16 %v8657
        %v8981 = vunpack.c.h.b16 %v8657
        %v8982 = vunpack.c.l.b16 %v8658
        %v8983 = vunpack.c.l.b16 %v8659
        %v8984 = vunpack.c.h.b16 %v8659
        %v8985 = vunpack.c.l.b16 %v8660
        %v8986 = vunpack.c.h.b16 %v8660
        %v8987 = vunpack.c.l.b16 %v8661
        %v8988 = vunpack.c.l.b16 %v8662
        %v8989 = vunpack.c.h.b16 %v8662
        %v8990 = vunpack.c.l.b16 %v8663
        %v8991 = vunpack.c.h.b16 %v8663
        %v8992 = vunpack.c.l.b16 %v8664
        %v8993 = vunpack.c.l.b16 %v8665
        %v8994 = vunpack.c.h.b16 %v8665
        %v8995 = vunpack.c.l.b16 %v8666
        %v8996 = vunpack.c.h.b16 %v8666
        %v8997 = vunpack.c.l.b16 %v8667
        %v8998 = vunpack.c.l.b16 %v8668
        %v8999 = vunpack.c.h.b16 %v8668
        %v9000 = vunpack.c.l.b16 %v8669
        %v9001 = vunpack.c.h.b16 %v8669
        %v9002 = vunpack.c.l.b16 %v8670
        %v9003 = vunpack.c.l.b16 %v8671
        %v9004 = vunpack.c.h.b16 %v8671
        %v9005 = vunpack.c.l.b16 %v8672
        %v9006 = vunpack.c.h.b16 %v8672
        %v9007 = vunpack.c.l.b16 %v8673
        %v9008 = vunpack.c.l.b16 %v8674
        %v9009 = vunpack.c.h.b16 %v8674
        %v9010 = vunpack.c.l.b16 %v8675
        %v9011 = vunpack.c.h.b16 %v8675
        %v9012 = vunpack.c.l.b16 %v8676
        %v9013 = vunpack.c.l.b16 %v8677
        %v9014 = vunpack.c.h.b16 %v8677
        %v9015 = vunpack.c.l.b16 %v8678
        %v9016 = vunpack.c.h.b16 %v8678
        %v9017 = vunpack.c.l.b16 %v8679
        %v9018 = vunpack.c.l.b16 %v8680
        %v9019 = vunpack.c.h.b16 %v8680
        %v9020 = vunpack.c.l.b16 %v8681
        %v9021 = vunpack.c.h.b16 %v8681
        %v9022 = vunpack.c.l.b16 %v8682
        %v9023 = vpack.c.b16 %v8868, %v8863
        %v9024 = vpack.c.b16 %v8869, %v8864
        %v9025 = vpack.c.b16 %v8870, %v8865
        %v9026 = vpack.c.b16 %v8871, %v8866
        %v9027 = vpack.c.b16 %v8872, %v8867
        %v9028 = vpack.c.b16 %v8878, %v8873
        %v9029 = vpack.c.b16 %v8879, %v8874
        %v9030 = vpack.c.b16 %v8880, %v8875
        %v9031 = vpack.c.b16 %v8881, %v8876
        %v9032 = vpack.c.b16 %v8882, %v8877
        %v9033 = vpack.c.b16 %v8888, %v8883
        %v9034 = vpack.c.b16 %v8889, %v8884
        %v9035 = vpack.c.b16 %v8890, %v8885
        %v9036 = vpack.c.b16 %v8891, %v8886
        %v9037 = vpack.c.b16 %v8892, %v8887
        %v9038 = vpack.c.b16 %v8898, %v8893
        %v9039 = vpack.c.b16 %v8899, %v8894
        %v9040 = vpack.c.b16 %v8900, %v8895
        %v9041 = vpack.c.b16 %v8901, %v8896
        %v9042 = vpack.c.b16 %v8902, %v8897
        %v9043 = vpack.c.b16 %v8908, %v8903
        %v9044 = vpack.c.b16 %v8909, %v8904
        %v9045 = vpack.c.b16 %v8910, %v8905
        %v9046 = vpack.c.b16 %v8911, %v8906
        %v9047 = vpack.c.b16 %v8912, %v8907
        %v9048 = vpack.c.b16 %v8918, %v8913
        %v9049 = vpack.c.b16 %v8919, %v8914
        %v9050 = vpack.c.b16 %v8920, %v8915
        %v9051 = vpack.c.b16 %v8921, %v8916
        %v9052 = vpack.c.b16 %v8922, %v8917
        %v9053 = vpack.c.b16 %v8928, %v8923
        %v9054 = vpack.c.b16 %v8929, %v8924
        %v9055 = vpack.c.b16 %v8930, %v8925
        %v9056 = vpack.c.b16 %v8931, %v8926
        %v9057 = vpack.c.b16 %v8932, %v8927
        %v9058 = vpack.c.b16 %v8938, %v8933
        %v9059 = vpack.c.b16 %v8939, %v8934
        %v9060 = vpack.c.b16 %v8940, %v8935
        %v9061 = vpack.c.b16 %v8941, %v8936
        %v9062 = vpack.c.b16 %v8942, %v8937
        %v9063 = vpack.c.b16 %v8948, %v8943
        %v9064 = vpack.c.b16 %v8949, %v8944
        %v9065 = vpack.c.b16 %v8950, %v8945
        %v9066 = vpack.c.b16 %v8951, %v8946
        %v9067 = vpack.c.b16 %v8952, %v8947
        %v9068 = vpack.c.b16 %v8958, %v8953
        %v9069 = vpack.c.b16 %v8959, %v8954
        %v9070 = vpack.c.b16 %v8960, %v8955
        %v9071 = vpack.c.b16 %v8961, %v8956
        %v9072 = vpack.c.b16 %v8962, %v8957
        %v9073 = vpack.c.b16 %v8968, %v8963
        %v9074 = vpack.c.b16 %v8969, %v8964
        %v9075 = vpack.c.b16 %v8970, %v8965
        %v9076 = vpack.c.b16 %v8971, %v8966
        %v9077 = vpack.c.b16 %v8972, %v8967
        %v9078 = vpack.c.b16 %v8978, %v8973
        %v9079 = vpack.c.b16 %v8979, %v8974
        %v9080 = vpack.c.b16 %v8980, %v8975
        %v9081 = vpack.c.b16 %v8981, %v8976
        %v9082 = vpack.c.b16 %v8982, %v8977
        %v9083 = vpack.c.b16 %v8988, %v8983
        %v9084 = vpack.c.b16 %v8989, %v8984
        %v9085 = vpack.c.b16 %v8990, %v8985
        %v9086 = vpack.c.b16 %v8991, %v8986
        %v9087 = vpack.c.b16 %v8992, %v8987
        %v9088 = vpack.c.b16 %v8998, %v8993
        %v9089 = vpack.c.b16 %v8999, %v8994
        %v9090 = vpack.c.b16 %v9000, %v8995
        %v9091 = vpack.c.b16 %v9001, %v8996
        %v9092 = vpack.c.b16 %v9002, %v8997
        %v9093 = vpack.c.b16 %v9008, %v9003
        %v9094 = vpack.c.b16 %v9009, %v9004
        %v9095 = vpack.c.b16 %v9010, %v9005
        %v9096 = vpack.c.b16 %v9011, %v9006
        %v9097 = vpack.c.b16 %v9012, %v9007
        %v9098 = vpack.c.b16 %v9018, %v9013
        %v9099 = vpack.c.b16 %v9019, %v9014
        %v9100 = vpack.c.b16 %v9020, %v9015
        %v9101 = vpack.c.b16 %v9021, %v9016
        %v9102 = vpack.c.b16 %v9022, %v9017
        %v9263 = vunpack.c.l.b16 %v8683
        %v9264 = vunpack.c.l.b16 %v8684
        %v9265 = vunpack.c.l.b16 %v8685
        %v9266 = vunpack.c.l.b16 %v8686
        %v9267 = vunpack.c.l.b16 %v8687
        %v9268 = vunpack.c.l.b16 %v8688
        %v9269 = vunpack.c.l.b16 %v8689
        %v9270 = vunpack.c.l.b16 %v8690
        %v9271 = vunpack.c.l.b16 %v8691
        %v9272 = vunpack.c.l.b16 %v8692
        %v9273 = vunpack.c.l.b16 %v8693
        %v9274 = vunpack.c.l.b16 %v8694
        %v9275 = vunpack.c.l.b16 %v8695
        %v9276 = vunpack.c.l.b16 %v8696
        %v9277 = vunpack.c.l.b16 %v8697
        %v9278 = vunpack.c.l.b16 %v8698
        %v9279 = vunpack.c.l.b16 %v8699
        %v9280 = vunpack.c.l.b16 %v8700
        %v9281 = vunpack.c.l.b16 %v8701
        %v9282 = vunpack.c.l.b16 %v8702
        %v9283 = vunpack.c.l.b16 %v8703
        %v9284 = vunpack.c.l.b16 %v8704
        %v9285 = vunpack.c.l.b16 %v8705
        %v9286 = vunpack.c.l.b16 %v8706
        %v9287 = vunpack.c.l.b16 %v8707
        %v9288 = vunpack.c.l.b16 %v8708
        %v9289 = vunpack.c.l.b16 %v8709
        %v9290 = vunpack.c.l.b16 %v8710
        %v9291 = vunpack.c.l.b16 %v8711
        %v9292 = vunpack.c.l.b16 %v8712
        %v9293 = vunpack.c.l.b16 %v8713
        %v9294 = vunpack.c.l.b16 %v8714
        %v9295 = vunpack.c.l.b16 %v8715
        %v9296 = vunpack.c.l.b16 %v8716
        %v9297 = vunpack.c.l.b16 %v8717
        %v9298 = vunpack.c.l.b16 %v8718
        %v9299 = vunpack.c.l.b16 %v8719
        %v9300 = vunpack.c.l.b16 %v8720
        %v9301 = vunpack.c.l.b16 %v8721
        %v9302 = vunpack.c.l.b16 %v8722
        %v9303 = vunpack.c.l.b16 %v8723
        %v9304 = vunpack.c.l.b16 %v8724
        %v9305 = vunpack.c.l.b16 %v8725
        %v9306 = vunpack.c.l.b16 %v8726
        %v9307 = vunpack.c.l.b16 %v8727
        %v9308 = vunpack.c.l.b16 %v8728
        %v9309 = vunpack.c.l.b16 %v8729
        %v9310 = vunpack.c.l.b16 %v8730
        %v9311 = vunpack.c.l.b16 %v8731
        %v9312 = vunpack.c.l.b16 %v8732
        %v9313 = vunpack.c.l.b16 %v8733
        %v9314 = vunpack.c.l.b16 %v8734
        %v9315 = vunpack.c.l.b16 %v8735
        %v9316 = vunpack.c.l.b16 %v8736
        %v9317 = vunpack.c.l.b16 %v8737
        %v9318 = vunpack.c.l.b16 %v8738
        %v9319 = vunpack.c.l.b16 %v8739
        %v9320 = vunpack.c.l.b16 %v8740
        %v9321 = vunpack.c.l.b16 %v8741
        %v9322 = vunpack.c.l.b16 %v8742
        %v9323 = vunpack.c.l.b16 %v8743
        %v9324 = vunpack.c.l.b16 %v8744
        %v9325 = vunpack.c.l.b16 %v8745
        %v9326 = vunpack.c.l.b16 %v8746
        %v9327 = vunpack.c.l.b16 %v8747
        %v9328 = vunpack.c.l.b16 %v8748
        %v9329 = vunpack.c.l.b16 %v8749
        %v9330 = vunpack.c.l.b16 %v8750
        %v9331 = vunpack.c.l.b16 %v8751
        %v9332 = vunpack.c.l.b16 %v8752
        %v9333 = vunpack.c.l.b16 %v8753
        %v9334 = vunpack.c.l.b16 %v8754
        %v9335 = vunpack.c.l.b16 %v8755
        %v9336 = vunpack.c.l.b16 %v8756
        %v9337 = vunpack.c.l.b16 %v8757
        %v9338 = vunpack.c.l.b16 %v8758
        %v9339 = vunpack.c.l.b16 %v8759
        %v9340 = vunpack.c.l.b16 %v8760
        %v9341 = vunpack.c.l.b16 %v8761
        %v9342 = vunpack.c.l.b16 %v8762
        %v9343 = vpack.c.b16 %v9264, %v9263
        %v9344 = vpack.c.b16 %v9266, %v9265
        %v9345 = vpack.c.b16 %v9268, %v9267
        %v9346 = vpack.c.b16 %v9270, %v9269
        %v9347 = vpack.c.b16 %v9272, %v9271
        %v9348 = vpack.c.b16 %v9274, %v9273
        %v9349 = vpack.c.b16 %v9276, %v9275
        %v9350 = vpack.c.b16 %v9278, %v9277
        %v9351 = vpack.c.b16 %v9280, %v9279
        %v9352 = vpack.c.b16 %v9282, %v9281
        %v9353 = vpack.c.b16 %v9284, %v9283
        %v9354 = vpack.c.b16 %v9286, %v9285
        %v9355 = vpack.c.b16 %v9288, %v9287
        %v9356 = vpack.c.b16 %v9290, %v9289
        %v9357 = vpack.c.b16 %v9292, %v9291
        %v9358 = vpack.c.b16 %v9294, %v9293
        %v9359 = vpack.c.b16 %v9296, %v9295
        %v9360 = vpack.c.b16 %v9298, %v9297
        %v9361 = vpack.c.b16 %v9300, %v9299
        %v9362 = vpack.c.b16 %v9302, %v9301
        %v9363 = vpack.c.b16 %v9304, %v9303
        %v9364 = vpack.c.b16 %v9306, %v9305
        %v9365 = vpack.c.b16 %v9308, %v9307
        %v9366 = vpack.c.b16 %v9310, %v9309
        %v9367 = vpack.c.b16 %v9312, %v9311
        %v9368 = vpack.c.b16 %v9314, %v9313
        %v9369 = vpack.c.b16 %v9316, %v9315
        %v9370 = vpack.c.b16 %v9318, %v9317
        %v9371 = vpack.c.b16 %v9320, %v9319
        %v9372 = vpack.c.b16 %v9322, %v9321
        %v9373 = vpack.c.b16 %v9324, %v9323
        %v9374 = vpack.c.b16 %v9326, %v9325
        %v9375 = vpack.c.b16 %v9328, %v9327
        %v9376 = vpack.c.b16 %v9330, %v9329
        %v9377 = vpack.c.b16 %v9332, %v9331
        %v9378 = vpack.c.b16 %v9334, %v9333
        %v9379 = vpack.c.b16 %v9336, %v9335
        %v9380 = vpack.c.b16 %v9338, %v9337
        %v9381 = vpack.c.b16 %v9340, %v9339
        %v9382 = vpack.c.b16 %v9342, %v9341
        %9423 = vmatpush.bf16.msra.mxu0 %v9350
        %9424 = vmatpush.bf16.msra.mxu0 %v9349
        %9425 = vmatpush.bf16.msra.mxu0 %v9348
        %9426 = vmatpush.bf16.msra.mxu0 %v9347
        %9427 = vmatpush.bf16.msra.mxu0 %v9346
        %9428 = vmatpush.bf16.msra.mxu0 %v9345
        %9429 = vmatpush.bf16.msra.mxu0 %v9344
        %9430 = vmatpush.bf16.msra.mxu0 %v9343
        %9431 = vmatmul.bf16.gmra.mxu0 %v9023
        %v9432 = vpop.f32.mrf.mxu0
        %v9433 = vadd.f32 %v8765, %v9432
        %v9434 = vpop.f32.mrf.mxu0
        %v9435 = vadd.f32 %v8765, %v9434
        %9436 = vmatmul.bf16.gmra.mxu0 %v9028
        %v9437 = vpop.f32.mrf.mxu0
        %v9438 = vadd.f32 %v8765, %v9437
        %v9439 = vpop.f32.mrf.mxu0
        %v9440 = vadd.f32 %v8765, %v9439
        %9441 = vmatmul.bf16.gmra.mxu0 %v9033
        %v9442 = vpop.f32.mrf.mxu0
        %v9443 = vadd.f32 %v8765, %v9442
        %v9444 = vpop.f32.mrf.mxu0
        %v9445 = vadd.f32 %v8765, %v9444
        %9446 = vmatmul.bf16.gmra.mxu0 %v9038
        %v9447 = vpop.f32.mrf.mxu0
        %v9448 = vadd.f32 %v8765, %v9447
        %v9449 = vpop.f32.mrf.mxu0
        %v9450 = vadd.f32 %v8765, %v9449
        %9451 = vmatmul.bf16.gmra.mxu0 %v9043
        %v9452 = vpop.f32.mrf.mxu0
        %v9453 = vadd.f32 %v8765, %v9452
        %v9454 = vpop.f32.mrf.mxu0
        %v9455 = vadd.f32 %v8765, %v9454
        %9456 = vmatmul.bf16.gmra.mxu0 %v9048
        %v9457 = vpop.f32.mrf.mxu0
        %v9458 = vadd.f32 %v8765, %v9457
        %v9459 = vpop.f32.mrf.mxu0
        %v9460 = vadd.f32 %v8765, %v9459
        %9461 = vmatmul.bf16.gmra.mxu0 %v9053
        %v9462 = vpop.f32.mrf.mxu0
        %v9463 = vadd.f32 %v8765, %v9462
        %v9464 = vpop.f32.mrf.mxu0
        %v9465 = vadd.f32 %v8765, %v9464
        %9466 = vmatmul.bf16.gmra.mxu0 %v9058
        %v9467 = vpop.f32.mrf.mxu0
        %v9468 = vadd.f32 %v8765, %v9467
        %v9469 = vpop.f32.mrf.mxu0
        %v9470 = vadd.f32 %v8765, %v9469
        %9471 = vmatmul.bf16.gmra.mxu0 %v9063
        %v9472 = vpop.f32.mrf.mxu0
        %v9473 = vadd.f32 %v8765, %v9472
        %v9474 = vpop.f32.mrf.mxu0
        %v9475 = vadd.f32 %v8765, %v9474
        %9476 = vmatmul.bf16.gmra.mxu0 %v9068
        %v9477 = vpop.f32.mrf.mxu0
        %v9478 = vadd.f32 %v8765, %v9477
        %v9479 = vpop.f32.mrf.mxu0
        %v9480 = vadd.f32 %v8765, %v9479
        %9481 = vmatmul.bf16.gmra.mxu0 %v9073
        %v9482 = vpop.f32.mrf.mxu0
        %v9483 = vadd.f32 %v8765, %v9482
        %v9484 = vpop.f32.mrf.mxu0
        %v9485 = vadd.f32 %v8765, %v9484
        %9486 = vmatmul.bf16.gmra.mxu0 %v9078
        %v9487 = vpop.f32.mrf.mxu0
        %v9488 = vadd.f32 %v8765, %v9487
        %v9489 = vpop.f32.mrf.mxu0
        %v9490 = vadd.f32 %v8765, %v9489
        %9491 = vmatmul.bf16.gmra.mxu0 %v9083
        %v9492 = vpop.f32.mrf.mxu0
        %v9493 = vadd.f32 %v8765, %v9492
        %v9494 = vpop.f32.mrf.mxu0
        %v9495 = vadd.f32 %v8765, %v9494
        %9496 = vmatmul.bf16.gmra.mxu0 %v9088
        %v9497 = vpop.f32.mrf.mxu0
        %v9498 = vadd.f32 %v8765, %v9497
        %v9499 = vpop.f32.mrf.mxu0
        %v9500 = vadd.f32 %v8765, %v9499
        %9501 = vmatmul.bf16.gmra.mxu0 %v9093
        %v9502 = vpop.f32.mrf.mxu0
        %v9503 = vadd.f32 %v8765, %v9502
        %v9504 = vpop.f32.mrf.mxu0
        %v9505 = vadd.f32 %v8765, %v9504
        %9506 = vmatmul.bf16.gmra.mxu0 %v9098
        %v9507 = vpop.f32.mrf.mxu0
        %v9508 = vadd.f32 %v8765, %v9507
        %v9509 = vpop.f32.mrf.mxu0
        %v9510 = vadd.f32 %v8765, %v9509
        %9511 = vdwg.mxu0
        %9512 = vmatpush.bf16.msra.mxu0 %v9358
        %9513 = vmatpush.bf16.msra.mxu0 %v9357
        %9514 = vmatpush.bf16.msra.mxu0 %v9356
        %9515 = vmatpush.bf16.msra.mxu0 %v9355
        %9516 = vmatpush.bf16.msra.mxu0 %v9354
        %9517 = vmatpush.bf16.msra.mxu0 %v9353
        %9518 = vmatpush.bf16.msra.mxu0 %v9352
        %9519 = vmatpush.bf16.msra.mxu0 %v9351
        %9520 = vmatmul.bf16.gmra.mxu0 %v9024
        %v9521 = vpop.f32.mrf.mxu0
        %v9522 = vadd.f32 %v9433, %v9521
        %v9523 = vpop.f32.mrf.mxu0
        %v9524 = vadd.f32 %v9435, %v9523
        %9525 = vmatmul.bf16.gmra.mxu0 %v9029
        %v9526 = vpop.f32.mrf.mxu0
        %v9527 = vadd.f32 %v9438, %v9526
        %v9528 = vpop.f32.mrf.mxu0
        %v9529 = vadd.f32 %v9440, %v9528
        %9530 = vmatmul.bf16.gmra.mxu0 %v9034
        %v9531 = vpop.f32.mrf.mxu0
        %v9532 = vadd.f32 %v9443, %v9531
        %v9533 = vpop.f32.mrf.mxu0
        %v9534 = vadd.f32 %v9445, %v9533
        %9535 = vmatmul.bf16.gmra.mxu0 %v9039
        %v9536 = vpop.f32.mrf.mxu0
        %v9537 = vadd.f32 %v9448, %v9536
        %v9538 = vpop.f32.mrf.mxu0
        %v9539 = vadd.f32 %v9450, %v9538
        %9540 = vmatmul.bf16.gmra.mxu0 %v9044
        %v9541 = vpop.f32.mrf.mxu0
        %v9542 = vadd.f32 %v9453, %v9541
        %v9543 = vpop.f32.mrf.mxu0
        %v9544 = vadd.f32 %v9455, %v9543
        %9545 = vmatmul.bf16.gmra.mxu0 %v9049
        %v9546 = vpop.f32.mrf.mxu0
        %v9547 = vadd.f32 %v9458, %v9546
        %v9548 = vpop.f32.mrf.mxu0
        %v9549 = vadd.f32 %v9460, %v9548
        %9550 = vmatmul.bf16.gmra.mxu0 %v9054
        %v9551 = vpop.f32.mrf.mxu0
        %v9552 = vadd.f32 %v9463, %v9551
        %v9553 = vpop.f32.mrf.mxu0
        %v9554 = vadd.f32 %v9465, %v9553
        %9555 = vmatmul.bf16.gmra.mxu0 %v9059
        %v9556 = vpop.f32.mrf.mxu0
        %v9557 = vadd.f32 %v9468, %v9556
        %v9558 = vpop.f32.mrf.mxu0
        %v9559 = vadd.f32 %v9470, %v9558
        %9560 = vmatmul.bf16.gmra.mxu0 %v9064
        %v9561 = vpop.f32.mrf.mxu0
        %v9562 = vadd.f32 %v9473, %v9561
        %v9563 = vpop.f32.mrf.mxu0
        %v9564 = vadd.f32 %v9475, %v9563
        %9565 = vmatmul.bf16.gmra.mxu0 %v9069
        %v9566 = vpop.f32.mrf.mxu0
        %v9567 = vadd.f32 %v9478, %v9566
        %v9568 = vpop.f32.mrf.mxu0
        %v9569 = vadd.f32 %v9480, %v9568
        %9570 = vmatmul.bf16.gmra.mxu0 %v9074
        %v9571 = vpop.f32.mrf.mxu0
        %v9572 = vadd.f32 %v9483, %v9571
        %v9573 = vpop.f32.mrf.mxu0
        %v9574 = vadd.f32 %v9485, %v9573
        %9575 = vmatmul.bf16.gmra.mxu0 %v9079
        %v9576 = vpop.f32.mrf.mxu0
        %v9577 = vadd.f32 %v9488, %v9576
        %v9578 = vpop.f32.mrf.mxu0
        %v9579 = vadd.f32 %v9490, %v9578
        %9580 = vmatmul.bf16.gmra.mxu0 %v9084
        %v9581 = vpop.f32.mrf.mxu0
        %v9582 = vadd.f32 %v9493, %v9581
        %v9583 = vpop.f32.mrf.mxu0
        %v9584 = vadd.f32 %v9495, %v9583
        %9585 = vmatmul.bf16.gmra.mxu0 %v9089
        %v9586 = vpop.f32.mrf.mxu0
        %v9587 = vadd.f32 %v9498, %v9586
        %v9588 = vpop.f32.mrf.mxu0
        %v9589 = vadd.f32 %v9500, %v9588
        %9590 = vmatmul.bf16.gmra.mxu0 %v9094
        %v9591 = vpop.f32.mrf.mxu0
        %v9592 = vadd.f32 %v9503, %v9591
        %v9593 = vpop.f32.mrf.mxu0
        %v9594 = vadd.f32 %v9505, %v9593
        %9595 = vmatmul.bf16.gmra.mxu0 %v9099
        %v9596 = vpop.f32.mrf.mxu0
        %v9597 = vadd.f32 %v9508, %v9596
        %v9598 = vpop.f32.mrf.mxu0
        %v9599 = vadd.f32 %v9510, %v9598
        %9600 = vdwg.mxu0
        %9601 = vmatpush.bf16.msra.mxu0 %v9366
        %9602 = vmatpush.bf16.msra.mxu0 %v9365
        %9603 = vmatpush.bf16.msra.mxu0 %v9364
        %9604 = vmatpush.bf16.msra.mxu0 %v9363
        %9605 = vmatpush.bf16.msra.mxu0 %v9362
        %9606 = vmatpush.bf16.msra.mxu0 %v9361
        %9607 = vmatpush.bf16.msra.mxu0 %v9360
        %9608 = vmatpush.bf16.msra.mxu0 %v9359
        %9609 = vmatmul.bf16.gmra.mxu0 %v9025
        %v9610 = vpop.f32.mrf.mxu0
        %v9611 = vadd.f32 %v9522, %v9610
        %v9612 = vpop.f32.mrf.mxu0
        %v9613 = vadd.f32 %v9524, %v9612
        %9614 = vmatmul.bf16.gmra.mxu0 %v9030
        %v9615 = vpop.f32.mrf.mxu0
        %v9616 = vadd.f32 %v9527, %v9615
        %v9617 = vpop.f32.mrf.mxu0
        %v9618 = vadd.f32 %v9529, %v9617
        %9619 = vmatmul.bf16.gmra.mxu0 %v9035
        %v9620 = vpop.f32.mrf.mxu0
        %v9621 = vadd.f32 %v9532, %v9620
        %v9622 = vpop.f32.mrf.mxu0
        %v9623 = vadd.f32 %v9534, %v9622
        %9624 = vmatmul.bf16.gmra.mxu0 %v9040
        %v9625 = vpop.f32.mrf.mxu0
        %v9626 = vadd.f32 %v9537, %v9625
        %v9627 = vpop.f32.mrf.mxu0
        %v9628 = vadd.f32 %v9539, %v9627
        %9629 = vmatmul.bf16.gmra.mxu0 %v9045
        %v9630 = vpop.f32.mrf.mxu0
        %v9631 = vadd.f32 %v9542, %v9630
        %v9632 = vpop.f32.mrf.mxu0
        %v9633 = vadd.f32 %v9544, %v9632
        %9634 = vmatmul.bf16.gmra.mxu0 %v9050
        %v9635 = vpop.f32.mrf.mxu0
        %v9636 = vadd.f32 %v9547, %v9635
        %v9637 = vpop.f32.mrf.mxu0
        %v9638 = vadd.f32 %v9549, %v9637
        %9639 = vmatmul.bf16.gmra.mxu0 %v9055
        %v9640 = vpop.f32.mrf.mxu0
        %v9641 = vadd.f32 %v9552, %v9640
        %v9642 = vpop.f32.mrf.mxu0
        %v9643 = vadd.f32 %v9554, %v9642
        %9644 = vmatmul.bf16.gmra.mxu0 %v9060
        %v9645 = vpop.f32.mrf.mxu0
        %v9646 = vadd.f32 %v9557, %v9645
        %v9647 = vpop.f32.mrf.mxu0
        %v9648 = vadd.f32 %v9559, %v9647
        %9649 = vmatmul.bf16.gmra.mxu0 %v9065
        %v9650 = vpop.f32.mrf.mxu0
        %v9651 = vadd.f32 %v9562, %v9650
        %v9652 = vpop.f32.mrf.mxu0
        %v9653 = vadd.f32 %v9564, %v9652
        %9654 = vmatmul.bf16.gmra.mxu0 %v9070
        %v9655 = vpop.f32.mrf.mxu0
        %v9656 = vadd.f32 %v9567, %v9655
        %v9657 = vpop.f32.mrf.mxu0
        %v9658 = vadd.f32 %v9569, %v9657
        %9659 = vmatmul.bf16.gmra.mxu0 %v9075
        %v9660 = vpop.f32.mrf.mxu0
        %v9661 = vadd.f32 %v9572, %v9660
        %v9662 = vpop.f32.mrf.mxu0
        %v9663 = vadd.f32 %v9574, %v9662
        %9664 = vmatmul.bf16.gmra.mxu0 %v9080
        %v9665 = vpop.f32.mrf.mxu0
        %v9666 = vadd.f32 %v9577, %v9665
        %v9667 = vpop.f32.mrf.mxu0
        %v9668 = vadd.f32 %v9579, %v9667
        %9669 = vmatmul.bf16.gmra.mxu0 %v9085
        %v9670 = vpop.f32.mrf.mxu0
        %v9671 = vadd.f32 %v9582, %v9670
        %v9672 = vpop.f32.mrf.mxu0
        %v9673 = vadd.f32 %v9584, %v9672
        %9674 = vmatmul.bf16.gmra.mxu0 %v9090
        %v9675 = vpop.f32.mrf.mxu0
        %v9676 = vadd.f32 %v9587, %v9675
        %v9677 = vpop.f32.mrf.mxu0
        %v9678 = vadd.f32 %v9589, %v9677
        %9679 = vmatmul.bf16.gmra.mxu0 %v9095
        %v9680 = vpop.f32.mrf.mxu0
        %v9681 = vadd.f32 %v9592, %v9680
        %v9682 = vpop.f32.mrf.mxu0
        %v9683 = vadd.f32 %v9594, %v9682
        %9684 = vmatmul.bf16.gmra.mxu0 %v9100
        %v9685 = vpop.f32.mrf.mxu0
        %v9686 = vadd.f32 %v9597, %v9685
        %v9687 = vpop.f32.mrf.mxu0
        %v9688 = vadd.f32 %v9599, %v9687
        %9689 = vdwg.mxu0
        %9690 = vmatpush.bf16.msra.mxu0 %v9374
        %9691 = vmatpush.bf16.msra.mxu0 %v9373
        %9692 = vmatpush.bf16.msra.mxu0 %v9372
        %9693 = vmatpush.bf16.msra.mxu0 %v9371
        %9694 = vmatpush.bf16.msra.mxu0 %v9370
        %9695 = vmatpush.bf16.msra.mxu0 %v9369
        %9696 = vmatpush.bf16.msra.mxu0 %v9368
        %9697 = vmatpush.bf16.msra.mxu0 %v9367
        %9698 = vmatmul.bf16.gmra.mxu0 %v9026
        %v9699 = vpop.f32.mrf.mxu0
        %v9700 = vadd.f32 %v9611, %v9699
        %v9701 = vpop.f32.mrf.mxu0
        %v9702 = vadd.f32 %v9613, %v9701
        %9703 = vmatmul.bf16.gmra.mxu0 %v9031
        %v9704 = vpop.f32.mrf.mxu0
        %v9705 = vadd.f32 %v9616, %v9704
        %v9706 = vpop.f32.mrf.mxu0
        %v9707 = vadd.f32 %v9618, %v9706
        %9708 = vmatmul.bf16.gmra.mxu0 %v9036
        %v9709 = vpop.f32.mrf.mxu0
        %v9710 = vadd.f32 %v9621, %v9709
        %v9711 = vpop.f32.mrf.mxu0
        %v9712 = vadd.f32 %v9623, %v9711
        %9713 = vmatmul.bf16.gmra.mxu0 %v9041
        %v9714 = vpop.f32.mrf.mxu0
        %v9715 = vadd.f32 %v9626, %v9714
        %v9716 = vpop.f32.mrf.mxu0
        %v9717 = vadd.f32 %v9628, %v9716
        %9718 = vmatmul.bf16.gmra.mxu0 %v9046
        %v9719 = vpop.f32.mrf.mxu0
        %v9720 = vadd.f32 %v9631, %v9719
        %v9721 = vpop.f32.mrf.mxu0
        %v9722 = vadd.f32 %v9633, %v9721
        %9723 = vmatmul.bf16.gmra.mxu0 %v9051
        %v9724 = vpop.f32.mrf.mxu0
        %v9725 = vadd.f32 %v9636, %v9724
        %v9726 = vpop.f32.mrf.mxu0
        %v9727 = vadd.f32 %v9638, %v9726
        %9728 = vmatmul.bf16.gmra.mxu0 %v9056
        %v9729 = vpop.f32.mrf.mxu0
        %v9730 = vadd.f32 %v9641, %v9729
        %v9731 = vpop.f32.mrf.mxu0
        %v9732 = vadd.f32 %v9643, %v9731
        %9733 = vmatmul.bf16.gmra.mxu0 %v9061
        %v9734 = vpop.f32.mrf.mxu0
        %v9735 = vadd.f32 %v9646, %v9734
        %v9736 = vpop.f32.mrf.mxu0
        %v9737 = vadd.f32 %v9648, %v9736
        %9738 = vmatmul.bf16.gmra.mxu0 %v9066
        %v9739 = vpop.f32.mrf.mxu0
        %v9740 = vadd.f32 %v9651, %v9739
        %v9741 = vpop.f32.mrf.mxu0
        %v9742 = vadd.f32 %v9653, %v9741
        %9743 = vmatmul.bf16.gmra.mxu0 %v9071
        %v9744 = vpop.f32.mrf.mxu0
        %v9745 = vadd.f32 %v9656, %v9744
        %v9746 = vpop.f32.mrf.mxu0
        %v9747 = vadd.f32 %v9658, %v9746
        %9748 = vmatmul.bf16.gmra.mxu0 %v9076
        %v9749 = vpop.f32.mrf.mxu0
        %v9750 = vadd.f32 %v9661, %v9749
        %v9751 = vpop.f32.mrf.mxu0
        %v9752 = vadd.f32 %v9663, %v9751
        %9753 = vmatmul.bf16.gmra.mxu0 %v9081
        %v9754 = vpop.f32.mrf.mxu0
        %v9755 = vadd.f32 %v9666, %v9754
        %v9756 = vpop.f32.mrf.mxu0
        %v9757 = vadd.f32 %v9668, %v9756
        %9758 = vmatmul.bf16.gmra.mxu0 %v9086
        %v9759 = vpop.f32.mrf.mxu0
        %v9760 = vadd.f32 %v9671, %v9759
        %v9761 = vpop.f32.mrf.mxu0
        %v9762 = vadd.f32 %v9673, %v9761
        %9763 = vmatmul.bf16.gmra.mxu0 %v9091
        %v9764 = vpop.f32.mrf.mxu0
        %v9765 = vadd.f32 %v9676, %v9764
        %v9766 = vpop.f32.mrf.mxu0
        %v9767 = vadd.f32 %v9678, %v9766
        %9768 = vmatmul.bf16.gmra.mxu0 %v9096
        %v9769 = vpop.f32.mrf.mxu0
        %v9770 = vadd.f32 %v9681, %v9769
        %v9771 = vpop.f32.mrf.mxu0
        %v9772 = vadd.f32 %v9683, %v9771
        %9773 = vmatmul.bf16.gmra.mxu0 %v9101
        %v9774 = vpop.f32.mrf.mxu0
        %v9775 = vadd.f32 %v9686, %v9774
        %v9776 = vpop.f32.mrf.mxu0
        %v9777 = vadd.f32 %v9688, %v9776
        %9778 = vdwg.mxu0
        %9779 = vmatpush.bf16.msra.mxu0 %v9382
        %9780 = vmatpush.bf16.msra.mxu0 %v9381
        %9781 = vmatpush.bf16.msra.mxu0 %v9380
        %9782 = vmatpush.bf16.msra.mxu0 %v9379
        %9783 = vmatpush.bf16.msra.mxu0 %v9378
        %9784 = vmatpush.bf16.msra.mxu0 %v9377
        %9785 = vmatpush.bf16.msra.mxu0 %v9376
        %9786 = vmatpush.bf16.msra.mxu0 %v9375
        %9787 = vmatmul.bf16.gmra.mxu0 %v9027
        %v9788 = vpop.f32.mrf.mxu0
        %v9789 = vadd.f32 %v9700, %v9788
        %v9790 = vpop.f32.mrf.mxu0
        %v9791 = vadd.f32 %v9702, %v9790
        %9792 = vmatmul.bf16.gmra.mxu0 %v9032
        %v9793 = vpop.f32.mrf.mxu0
        %v9794 = vadd.f32 %v9705, %v9793
        %v9795 = vpop.f32.mrf.mxu0
        %v9796 = vadd.f32 %v9707, %v9795
        %9797 = vmatmul.bf16.gmra.mxu0 %v9037
        %v9798 = vpop.f32.mrf.mxu0
        %v9799 = vadd.f32 %v9710, %v9798
        %v9800 = vpop.f32.mrf.mxu0
        %v9801 = vadd.f32 %v9712, %v9800
        %9802 = vmatmul.bf16.gmra.mxu0 %v9042
        %v9803 = vpop.f32.mrf.mxu0
        %v9804 = vadd.f32 %v9715, %v9803
        %v9805 = vpop.f32.mrf.mxu0
        %v9806 = vadd.f32 %v9717, %v9805
        %9807 = vmatmul.bf16.gmra.mxu0 %v9047
        %v9808 = vpop.f32.mrf.mxu0
        %v9809 = vadd.f32 %v9720, %v9808
        %v9810 = vpop.f32.mrf.mxu0
        %v9811 = vadd.f32 %v9722, %v9810
        %9812 = vmatmul.bf16.gmra.mxu0 %v9052
        %v9813 = vpop.f32.mrf.mxu0
        %v9814 = vadd.f32 %v9725, %v9813
        %v9815 = vpop.f32.mrf.mxu0
        %v9816 = vadd.f32 %v9727, %v9815
        %9817 = vmatmul.bf16.gmra.mxu0 %v9057
        %v9818 = vpop.f32.mrf.mxu0
        %v9819 = vadd.f32 %v9730, %v9818
        %v9820 = vpop.f32.mrf.mxu0
        %v9821 = vadd.f32 %v9732, %v9820
        %9822 = vmatmul.bf16.gmra.mxu0 %v9062
        %v9823 = vpop.f32.mrf.mxu0
        %v9824 = vadd.f32 %v9735, %v9823
        %v9825 = vpop.f32.mrf.mxu0
        %v9826 = vadd.f32 %v9737, %v9825
        %9827 = vmatmul.bf16.gmra.mxu0 %v9067
        %v9828 = vpop.f32.mrf.mxu0
        %v9829 = vadd.f32 %v9740, %v9828
        %v9830 = vpop.f32.mrf.mxu0
        %v9831 = vadd.f32 %v9742, %v9830
        %9832 = vmatmul.bf16.gmra.mxu0 %v9072
        %v9833 = vpop.f32.mrf.mxu0
        %v9834 = vadd.f32 %v9745, %v9833
        %v9835 = vpop.f32.mrf.mxu0
        %v9836 = vadd.f32 %v9747, %v9835
        %9837 = vmatmul.bf16.gmra.mxu0 %v9077
        %v9838 = vpop.f32.mrf.mxu0
        %v9839 = vadd.f32 %v9750, %v9838
        %v9840 = vpop.f32.mrf.mxu0
        %v9841 = vadd.f32 %v9752, %v9840
        %9842 = vmatmul.bf16.gmra.mxu0 %v9082
        %v9843 = vpop.f32.mrf.mxu0
        %v9844 = vadd.f32 %v9755, %v9843
        %v9845 = vpop.f32.mrf.mxu0
        %v9846 = vadd.f32 %v9757, %v9845
        %9847 = vmatmul.bf16.gmra.mxu0 %v9087
        %v9848 = vpop.f32.mrf.mxu0
        %v9849 = vadd.f32 %v9760, %v9848
        %v9850 = vpop.f32.mrf.mxu0
        %v9851 = vadd.f32 %v9762, %v9850
        %9852 = vmatmul.bf16.gmra.mxu0 %v9092
        %v9853 = vpop.f32.mrf.mxu0
        %v9854 = vadd.f32 %v9765, %v9853
        %v9855 = vpop.f32.mrf.mxu0
        %v9856 = vadd.f32 %v9767, %v9855
        %9857 = vmatmul.bf16.gmra.mxu0 %v9097
        %v9858 = vpop.f32.mrf.mxu0
        %v9859 = vadd.f32 %v9770, %v9858
        %v9860 = vpop.f32.mrf.mxu0
        %v9861 = vadd.f32 %v9772, %v9860
        %9862 = vmatmul.bf16.gmra.mxu0 %v9102
        %v9863 = vpop.f32.mrf.mxu0
        %v9864 = vadd.f32 %v9775, %v9863
        %v9865 = vpop.f32.mrf.mxu0
        %v9866 = vadd.f32 %v9777, %v9865
        %9867 = vdwg.mxu0
        %v9868 = vmax.f32 %v9789, 0.0
        %v9869 = vmax.f32 %v9791, 0.0
        %v9870 = vmax.f32 %v9794, 0.0
        %v9871 = vmax.f32 %v9796, 0.0
        %v9872 = vmax.f32 %v9799, 0.0
        %v9873 = vmax.f32 %v9801, 0.0
        %v9874 = vmax.f32 %v9804, 0.0
        %v9875 = vmax.f32 %v9806, 0.0
        %v9876 = vmax.f32 %v9809, 0.0
        %v9877 = vmax.f32 %v9811, 0.0
        %v9878 = vmax.f32 %v9814, 0.0
        %v9879 = vmax.f32 %v9816, 0.0
        %v9880 = vmax.f32 %v9819, 0.0
        %v9881 = vmax.f32 %v9821, 0.0
        %v9882 = vmax.f32 %v9824, 0.0
        %v9883 = vmax.f32 %v9826, 0.0
        %v9884 = vmax.f32 %v9829, 0.0
        %v9885 = vmax.f32 %v9831, 0.0
        %v9886 = vmax.f32 %v9834, 0.0
        %v9887 = vmax.f32 %v9836, 0.0
        %v9888 = vmax.f32 %v9839, 0.0
        %v9889 = vmax.f32 %v9841, 0.0
        %v9890 = vmax.f32 %v9844, 0.0
        %v9891 = vmax.f32 %v9846, 0.0
        %v9892 = vmax.f32 %v9849, 0.0
        %v9893 = vmax.f32 %v9851, 0.0
        %v9894 = vmax.f32 %v9854, 0.0
        %v9895 = vmax.f32 %v9856, 0.0
        %v9896 = vmax.f32 %v9859, 0.0
        %v9897 = vmax.f32 %v9861, 0.0
        %v9898 = vmax.f32 %v9864, 0.0
        %v9899 = vmax.f32 %v9866, 0.0
        %9900 = vst.msk [vmem:[%s288] sm:$0xff] %vm294, %v9868
        %9901 = vst.msk [vmem:[%s288 + $0x8] sm:$0xff] %vm294, %v9869
        %9902 = vst.msk [vmem:[%s288 + $0x10] sm:$0xff] %vm294, %v9870
        %9903 = vst.msk [vmem:[%s288 + $0x18] sm:$0xff] %vm294, %v9871
        %9904 = vst.msk [vmem:[%s288 + $0x20] sm:$0xff] %vm294, %v9872
        %9905 = vst.msk [vmem:[%s288 + $0x28] sm:$0xff] %vm294, %v9873
        %9906 = vst.msk [vmem:[%s288 + $0x30] sm:$0xff] %vm294, %v9874
        %9907 = vst.msk [vmem:[%s288 + $0x38] sm:$0xff] %vm294, %v9875
        %9908 = vst.msk [vmem:[%s288 + $0x40] sm:$0xff] %vm294, %v9876
        %9909 = vst.msk [vmem:[%s288 + $0x48] sm:$0xff] %vm294, %v9877
        %9910 = vst.msk [vmem:[%s288 + $0x50] sm:$0xff] %vm294, %v9878
        %9911 = vst.msk [vmem:[%s288 + $0x58] sm:$0xff] %vm294, %v9879
        %9912 = vst.msk [vmem:[%s288 + $0x60] sm:$0xff] %vm294, %v9880
        %9913 = vst.msk [vmem:[%s288 + $0x68] sm:$0xff] %vm294, %v9881
        %9914 = vst.msk [vmem:[%s288 + $0x70] sm:$0xff] %vm294, %v9882
        %9915 = vst.msk [vmem:[%s288 + $0x78] sm:$0xff] %vm294, %v9883
        %9916 = vst.msk [vmem:[%s288 + $0x80] sm:$0xff] %vm294, %v9884
        %9917 = vst.msk [vmem:[%s288 + $0x88] sm:$0xff] %vm294, %v9885
        %9918 = vst.msk [vmem:[%s288 + $0x90] sm:$0xff] %vm294, %v9886
        %9919 = vst.msk [vmem:[%s288 + $0x98] sm:$0xff] %vm294, %v9887
        %9920 = vst.msk [vmem:[%s288 + $0xa0] sm:$0xff] %vm294, %v9888
        %9921 = vst.msk [vmem:[%s288 + $0xa8] sm:$0xff] %vm294, %v9889
        %9922 = vst.msk [vmem:[%s288 + $0xb0] sm:$0xff] %vm294, %v9890
        %9923 = vst.msk [vmem:[%s288 + $0xb8] sm:$0xff] %vm294, %v9891
        %9924 = vst.msk [vmem:[%s288 + $0xc0] sm:$0xff] %vm294, %v9892
        %9925 = vst.msk [vmem:[%s288 + $0xc8] sm:$0xff] %vm294, %v9893
        %9926 = vst.msk [vmem:[%s288 + $0xd0] sm:$0xff] %vm294, %v9894
        %9927 = vst.msk [vmem:[%s288 + $0xd8] sm:$0xff] %vm294, %v9895
        %9928 = vst.msk [vmem:[%s288 + $0xe0] sm:$0xff] %vm294, %v9896
        %9929 = vst.msk [vmem:[%s288 + $0xe8] sm:$0xff] %vm294, %v9897
        %9930 = vst.msk [vmem:[%s288 + $0xf0] sm:$0xff] %vm294, %v9898
        %9931 = vst.msk [vmem:[%s288 + $0xf8] sm:$0xff] %vm294, %v9899
        %s9932 = sand.u32 %s182, 1
        %s9933 = scalar_lea.sflag [#allocation8], %s9932
        %s9934 = sand.u32 %s182, 1
        %s9935 = smul.addr %s9934, 256
        %s9936 = scalar_lea.vmem [#allocation9], %s9935
        // Predicated region
        $region53: #{tpu_custom_call.1} parent=47 // pred_check
          %p9937 = pneg %p192
        $region54: #{tpu_custom_call.1} parent=47 // pred_check_branch
          %9939 = sbr.rel (%p9937) target = $region56
        $region55: #{tpu_custom_call.1} parent=47 // pred_region
          %9941 = vsyncadd %s9933, 0
          %s9942 = smul.addr %s22, 32
          %s9943 = smul.addr %s9942, 8
          %s9944 = scalar_lea.hbm %s7, %s9943
          %s9945 = sshll.u32 %s9936, 4
          %s9946 = int_to_ptr.vmem [resolvable:$true] %s9945
          %s9947 = sshll.u32 %s9944, 4
          %s9948 = int_to_ptr.hbm [resolvable:$true] %s9947
          %9953 = dma.vmem_to_hbm [thread:$0]  %s9946, 4096, %s9948, %s9933, 128, 128, 8
        $region56: #{tpu_custom_call.1} parent=47 // pred_fallthru
          _
      $region48: #{tpu_custom_call.1} parent=5 // pred_fallthru
        _
      %p9954 = scmp.le.s32.totalorder 2, %s17
      // Predicated region
      $region57: #{tpu_custom_call.1} parent=5 // pred_check
        %p9955 = pneg %p9954
      $region58: #{tpu_custom_call.1} parent=5 // pred_check_branch
        %9957 = sbr.rel (%p9955) target = $region60
      $region59: #{tpu_custom_call.1} parent=5 // pred_region
        %s9958 = ssub.s32 %s17, 2
        // Predicated region
        $region61: #{tpu_custom_call.1} parent=59 // pred_check
          %p9959 = pneg %p198
        $region62: #{tpu_custom_call.1} parent=59 // pred_check_branch
          %9961 = sbr.rel (%p9959) target = $region64
        $region63: #{tpu_custom_call.1} parent=59 // pred_region
          %s9962 = sand.u32 %s183, 1
          %s9963 = scalar_lea.sflag [#allocation8], %s9962
          %s9964 = sand.u32 %s183, 1
          %s9965 = smul.addr %s9964, 256
          %s9966 = scalar_lea.vmem [#allocation9], %s9965
          %9968 = dma.done %s9963, 4096
        $region64: #{tpu_custom_call.1} parent=59 // pred_fallthru
          _
      $region60: #{tpu_custom_call.1} parent=5 // pred_fallthru
        _
    $region6: #{tpu_custom_call.1} parent=1 // loop_footer
      %s21 = sadd.s32 1, %s17
    $region7: #{tpu_custom_call.1} parent=1 // loop_footer_branch
      %16 = sbr.rel target = $region3
    $region8: #{tpu_custom_call.1} parent=1 // loop_exit
      _
    %9969 = vsyncpa [#allocation7], 1
    %s9970 = scalar_lea.sflag [#allocation7], 1
    %9971 = vsyncpa %s9970, 1
    %9972 = vsyncpa [#allocation8], 1
    %s9973 = scalar_lea.sflag [#allocation8], 1
    %9974 = vsyncpa %s9973, 1

</llo_original>
